<compile_context>
chip_gen: v7x
topology: tpu7x:2x2x1
jax: 0.10.0
libtpu: 0.0.40
codegen_flags: <defaults>
</compile_context>

<pallas_src>
import numpy as np
import jax
import jax.numpy as jnp
from jax.experimental import pallas as pl
from jax.experimental.pallas import tpu as pltpu


# ----------------------------- config -----------------------------
CHANNELS_ARG = 64
FACTOR = 2
CH = CHANNELS_ARG // FACTOR          # self.channels = 32
NUM_PIXELS = 100
PE = int(np.sqrt(NUM_PIXELS))        # pixels_edge = 10
PACK_NUM = 1
INIT_PIXEL = 2
BN_EPS = 1e-5
LRELU_SLOPE = 0.2

CONV_CHANNELS = [1 * PACK_NUM, CH // 8, CH // 4, CH // 2, CH]   # [1, 4, 8, 16, 32]


# ----------------------------- fused kernel -----------------------------
def _fused_forward_kernel(x_ref,
                          g1_ref, w1_ref, gm1_ref, bt1_ref,
                          g2_ref, w2_ref, gm2_ref, bt2_ref,
                          g3_ref, w3_ref, gm3_ref, bt3_ref,
                          g4_ref, w4_ref, gm4_ref, bt4_ref,
                          wl_ref, s_ref, bl_ref,
                          o_ref):
    # x_ref: (N*10*10, 1) NHWC-flat input
    # g*_ref: (9, M_out, M_in) 0/1 gather matrices (one per 3x3 tap, batch block-diagonal)
    # w*_ref: (9, C_in, C_out) per-tap conv weight slices
    # gm*/bt*: (1, C_out) BatchNorm gamma/beta
    # wl_ref: (N*4, 32) per-row linear weights (torch NCHW flatten order folded in)
    # s_ref:  (N, N*4) group-sum selector ; bl_ref: (1, 1) linear bias ; o_ref: (N, 1)
    act = x_ref[...]
    layers = ((g1_ref, w1_ref, gm1_ref, bt1_ref),
              (g2_ref, w2_ref, gm2_ref, bt2_ref),
              (g3_ref, w3_ref, gm3_ref, bt3_ref),
              (g4_ref, w4_ref, gm4_ref, bt4_ref))

    for (g_ref, w_ref, gm_ref, bt_ref) in layers:
        c_in = w_ref.shape[1]
        c_out = w_ref.shape[2]
        m_out = g_ref.shape[1]

        # 3x3 valid conv as 9 accumulated matmuls: acc += (G_t @ act) @ W_t
        acc = jnp.zeros((m_out, c_out), jnp.float32)
        for t in range(9):
            shifted = jnp.dot(g_ref[t], act, preferred_element_type=jnp.float32)  # (m_out, c_in)
            if c_in == 1:
                acc = acc + shifted * w_ref[t]      # (m_out,1) * (1,c_out) broadcast
            else:
                acc = acc + jnp.dot(shifted, w_ref[t], preferred_element_type=jnp.float32)

        # BatchNorm2d (training mode: batch stats over N*H*W rows, biased var), single pass.
        inv_m = 1.0 / float(m_out)
        mean = jnp.sum(acc, axis=0, keepdims=True) * inv_m
        meansq = jnp.sum(acc * acc, axis=0, keepdims=True) * inv_m
        var = jnp.maximum(meansq - mean * mean, 0.0)
        z = (acc - mean) * (jax.lax.rsqrt(var + BN_EPS) * gm_ref[...]) + bt_ref[...]

        # LeakyReLU(0.2)
        act = jnp.where(z >= 0, z, LRELU_SLOPE * z)

    # Linear(128 -> 1) in torch NCHW-flatten order (folded into per-row weights) + Sigmoid.
    rowsum = jnp.sum(act * wl_ref[...], axis=1, keepdims=True)              # (N*4, 1)
    zlin = jnp.dot(s_ref[...], rowsum, preferred_element_type=jnp.float32) + bl_ref[...]
    o_ref[...] = pl.reciprocal(1.0 + jnp.exp(-zlin), approx=True)


def discriminator_forward(x, y, kernel_params):
    # x: (B, num_pixels) ; y unused (num_condition is forced to 0 in the module)
    del y
    B = x.shape[0]
    n = B // PACK_NUM
    act0 = x.reshape(n * PE * PE, 1 * PACK_NUM)     # NHWC-flat (C_in = 1)

    inputs = [act0]
    for layer in kernel_params["conv"]:
        inputs.extend(layer)                        # (G_stack, W_stack, gamma, beta)
    inputs.extend(kernel_params["linear"])          # (WLfull, S, bl)

    vmem = pl.BlockSpec(memory_space=pltpu.MemorySpace.VMEM)
    return pl.pallas_call(
        _fused_forward_kernel,
        out_shape=jax.ShapeDtypeStruct((n, 1), jnp.float32),
        in_specs=[vmem] * len(inputs),
        out_specs=vmem,
    )(*inputs)


forward_jit = jax.jit(discriminator_forward)


# ----------------------------- init / packing -----------------------------
def init_raw_params(key):
    """Parameters in torch layout (Conv2d OIHW, BN (C,), Linear (in_feat, 1))."""
    raw = {"conv": [], "linear": None}
    for li in range(4):
        cin, cout = CONV_CHANNELS[li], CONV_CHANNELS[li + 1]
        key, kw, kg, kb = jax.random.split(key, 4)
        w = 0.1 * jax.random.normal(kw, (cout, cin, 3, 3), jnp.float32)
        gamma = 1.0 + 0.05 * jax.random.normal(kg, (cout,), jnp.float32)
        beta = 0.05 * jax.random.normal(kb, (cout,), jnp.float32)
        raw["conv"].append((w, gamma, beta))
    feat = CH * INIT_PIXEL * INIT_PIXEL                                    # 128
    key, kw, kb = jax.random.split(key, 3)
    wl = 0.1 * jax.random.normal(kw, (feat, 1), jnp.float32)               # torch weight.T
    bl = 0.05 * jax.random.normal(kb, (1, 1), jnp.float32)
    raw["linear"] = (wl, bl)
    return raw


def _build_gather_stack(n, h, w):
    """9 x (n*Ho*Wo, n*H*W) 0/1 matrices: G[t] @ act_nhwc = tap-(kh,kw) shifted window."""
    ho, wo = h - 2, w - 2
    g = np.zeros((9, n * ho * wo, n * h * w), np.float32)
    for kh in range(3):
        for kw in range(3):
            t = kh * 3 + kw
            for b in range(n):
                for i in range(ho):
                    for j in range(wo):
                        r = b * ho * wo + i * wo + j
                        c = b * h * w + (i + kh) * w + (j + kw)
                        g[t, r, c] = 1.0
    return jnp.asarray(g)


def pack_kernel_params(raw, batch):
    """One-time host-side packing: gather matrices, per-tap weights, permuted linear weight."""
    n = batch // PACK_NUM
    conv_inputs = []
    h = w = PE
    for (wt, gamma, beta) in raw["conv"]:
        cout, cin = wt.shape[0], wt.shape[1]
        g_stack = _build_gather_stack(n, h, w)                         # (9, n*Ho*Wo, n*H*W)
        w_stack = jnp.transpose(wt, (2, 3, 1, 0)).reshape(9, cin, cout)  # [kh*3+kw, ci, co]
        conv_inputs.append((g_stack, w_stack,
                            gamma.reshape(1, cout), beta.reshape(1, cout)))
        h, w = h - 2, w - 2

    wl, bl = raw["linear"]
    # torch flatten is NCHW: feature f = c*4 + (h*2+w). Fold into per-(n,h,w)-row weights.
    wl_sc = jnp.transpose(wl.reshape(CH, INIT_PIXEL * INIT_PIXEL), (1, 0))   # (4, 32): [s, c]
    wl_full = jnp.tile(wl_sc, (n, 1))                                        # (n*4, 32)
    s_mat = jnp.asarray(np.kron(np.eye(n, dtype=np.float32),
                                np.ones((1, INIT_PIXEL * INIT_PIXEL), np.float32)))  # (n, n*4)
    return {"conv": conv_inputs, "linear": (wl_full, s_mat, bl)}


# ----------------------------- pure-JAX reference -----------------------------
def reference_forward(x, raw):
    b = x.shape[0]
    h = x.reshape(b // PACK_NUM, 1 * PACK_NUM, PE, PE)
    for (wt, gamma, beta) in raw["conv"]:
        h = jax.lax.conv_general_dilated(h, wt, (1, 1), "VALID",
                                         dimension_numbers=("NCHW", "OIHW", "NCHW"))
        mean = jnp.mean(h, axis=(0, 2, 3), keepdims=True)
        var = jnp.mean((h - mean) ** 2, axis=(0, 2, 3), keepdims=True)
        h = (h - mean) * jax.lax.rsqrt(var + BN_EPS)
        h = h * gamma.reshape(1, -1, 1, 1) + beta.reshape(1, -1, 1, 1)
        h = jnp.where(h >= 0, h, LRELU_SLOPE * h)
    flat = h.reshape(h.shape[0], -1)
    wl, bl = raw["linear"]
    z = flat @ wl + bl
    return 1.0 / (1.0 + jnp.exp(-z))


# ----------------------------- main -----------------------------
if __name__ == "__main__":
    key = jax.random.PRNGKey(0)
    key, kx, ky, kp = jax.random.split(key, 4)

    batch = 2
    x = jax.random.normal(kx, (batch, NUM_PIXELS), jnp.float32)   # (2, 100)
    y = jax.random.normal(ky, (batch, 1), jnp.float32)            # unused condition

    raw_params = init_raw_params(kp)
    kernel_params = pack_kernel_params(raw_params, batch)

    out = forward_jit(x, y, kernel_params)
    out = jax.block_until_ready(out)

    assert out.shape == (batch, 1), out.shape
    assert bool(jnp.all(jnp.isfinite(out)))

    ref = jax.block_until_ready(reference_forward(x, raw_params))
    assert bool(jnp.allclose(out, ref, rtol=5e-3, atol=5e-3)), (out, ref)

    print("KERNEL_OK")
</pallas_src>

<mosaic_0001>
module attributes {stable_mosaic.version = 11 : i64} {
  func.func @_fused_forward_kernel(%arg0: memref<200x1xf32, #tpu.memory_space<vmem>>, %arg1: memref<9x128x200xf32, #tpu.memory_space<vmem>>, %arg2: memref<9x1x4xf32, #tpu.memory_space<vmem>>, %arg3: memref<1x4xf32, #tpu.memory_space<vmem>>, %arg4: memref<1x4xf32, #tpu.memory_space<vmem>>, %arg5: memref<9x72x128xf32, #tpu.memory_space<vmem>>, %arg6: memref<9x4x8xf32, #tpu.memory_space<vmem>>, %arg7: memref<1x8xf32, #tpu.memory_space<vmem>>, %arg8: memref<1x8xf32, #tpu.memory_space<vmem>>, %arg9: memref<9x32x72xf32, #tpu.memory_space<vmem>>, %arg10: memref<9x8x16xf32, #tpu.memory_space<vmem>>, %arg11: memref<1x16xf32, #tpu.memory_space<vmem>>, %arg12: memref<1x16xf32, #tpu.memory_space<vmem>>, %arg13: memref<9x8x32xf32, #tpu.memory_space<vmem>>, %arg14: memref<9x16x32xf32, #tpu.memory_space<vmem>>, %arg15: memref<1x32xf32, #tpu.memory_space<vmem>>, %arg16: memref<1x32xf32, #tpu.memory_space<vmem>>, %arg17: memref<8x32xf32, #tpu.memory_space<vmem>>, %arg18: memref<2x8xf32, #tpu.memory_space<vmem>>, %arg19: memref<1x1xf32, #tpu.memory_space<vmem>>, %arg20: memref<2x1xf32, #tpu.memory_space<vmem>>) attributes {dimension_semantics = [], scalar_prefetch = 0 : i64, scratch_operands = 0 : i64, tpu.core_type = #tpu.core_type<tc>} {
    %c0 = arith.constant 0 : index
    %c0_0 = arith.constant 0 : index
    %0 = vector.load %arg0[%c0, %c0_0] : memref<200x1xf32, #tpu.memory_space<vmem>>, vector<200x1xf32>
    %cst = arith.constant 0.000000e+00 : f32
    %1 = vector.broadcast %cst : f32 to vector<128x4xf32>
    %c0_1 = arith.constant 0 : index
    %c0_2 = arith.constant 0 : index
    %c0_3 = arith.constant 0 : index
    %2 = vector.load %arg1[%c0_1, %c0_2, %c0_3] : memref<9x128x200xf32, #tpu.memory_space<vmem>>, vector<1x128x200xf32>
    %3 = vector.shape_cast %2 : vector<1x128x200xf32> to vector<128x200xf32>
    %cst_4 = arith.constant dense<0.000000e+00> : vector<128x1xf32>
    %4 = tpu.matmul %3, %0, %cst_4 {dimension_numbers = #tpu.dot_dimension_numbers<[1], [0], [0], [1], [0, 0, 1, 1], [], []>} : vector<128x200xf32>, vector<200x1xf32>, vector<128x1xf32> -> vector<128x1xf32>
    %c0_5 = arith.constant 0 : index
    %c0_6 = arith.constant 0 : index
    %c0_7 = arith.constant 0 : index
    %5 = vector.load %arg2[%c0_5, %c0_6, %c0_7] : memref<9x1x4xf32, #tpu.memory_space<vmem>>, vector<1x1x4xf32>
    %6 = vector.shape_cast %5 : vector<1x1x4xf32> to vector<1x4xf32>
    %7 = vector.broadcast %4 : vector<128x1xf32> to vector<128x4xf32>
    %8 = vector.broadcast %6 : vector<1x4xf32> to vector<128x4xf32>
    %9 = arith.mulf %7, %8 : vector<128x4xf32>
    %10 = arith.addf %1, %9 : vector<128x4xf32>
    %c1 = arith.constant 1 : index
    %c0_8 = arith.constant 0 : index
    %c0_9 = arith.constant 0 : index
    %11 = vector.load %arg1[%c1, %c0_8, %c0_9] : memref<9x128x200xf32, #tpu.memory_space<vmem>>, vector<1x128x200xf32>
    %12 = vector.shape_cast %11 : vector<1x128x200xf32> to vector<128x200xf32>
    %cst_10 = arith.constant dense<0.000000e+00> : vector<128x1xf32>
    %13 = tpu.matmul %12, %0, %cst_10 {dimension_numbers = #tpu.dot_dimension_numbers<[1], [0], [0], [1], [0, 0, 1, 1], [], []>} : vector<128x200xf32>, vector<200x1xf32>, vector<128x1xf32> -> vector<128x1xf32>
    %c1_11 = arith.constant 1 : index
    %c0_12 = arith.constant 0 : index
    %c0_13 = arith.constant 0 : index
    %14 = vector.load %arg2[%c1_11, %c0_12, %c0_13] : memref<9x1x4xf32, #tpu.memory_space<vmem>>, vector<1x1x4xf32>
    %15 = vector.shape_cast %14 : vector<1x1x4xf32> to vector<1x4xf32>
    %16 = vector.broadcast %13 : vector<128x1xf32> to vector<128x4xf32>
    %17 = vector.broadcast %15 : vector<1x4xf32> to vector<128x4xf32>
    %18 = arith.mulf %16, %17 : vector<128x4xf32>
    %19 = arith.addf %10, %18 : vector<128x4xf32>
    %c2 = arith.constant 2 : index
    %c0_14 = arith.constant 0 : index
    %c0_15 = arith.constant 0 : index
    %20 = vector.load %arg1[%c2, %c0_14, %c0_15] : memref<9x128x200xf32, #tpu.memory_space<vmem>>, vector<1x128x200xf32>
    %21 = vector.shape_cast %20 : vector<1x128x200xf32> to vector<128x200xf32>
    %cst_16 = arith.constant dense<0.000000e+00> : vector<128x1xf32>
    %22 = tpu.matmul %21, %0, %cst_16 {dimension_numbers = #tpu.dot_dimension_numbers<[1], [0], [0], [1], [0, 0, 1, 1], [], []>} : vector<128x200xf32>, vector<200x1xf32>, vector<128x1xf32> -> vector<128x1xf32>
    %c2_17 = arith.constant 2 : index
    %c0_18 = arith.constant 0 : index
    %c0_19 = arith.constant 0 : index
    %23 = vector.load %arg2[%c2_17, %c0_18, %c0_19] : memref<9x1x4xf32, #tpu.memory_space<vmem>>, vector<1x1x4xf32>
    %24 = vector.shape_cast %23 : vector<1x1x4xf32> to vector<1x4xf32>
    %25 = vector.broadcast %22 : vector<128x1xf32> to vector<128x4xf32>
    %26 = vector.broadcast %24 : vector<1x4xf32> to vector<128x4xf32>
    %27 = arith.mulf %25, %26 : vector<128x4xf32>
    %28 = arith.addf %19, %27 : vector<128x4xf32>
    %c3 = arith.constant 3 : index
    %c0_20 = arith.constant 0 : index
    %c0_21 = arith.constant 0 : index
    %29 = vector.load %arg1[%c3, %c0_20, %c0_21] : memref<9x128x200xf32, #tpu.memory_space<vmem>>, vector<1x128x200xf32>
    %30 = vector.shape_cast %29 : vector<1x128x200xf32> to vector<128x200xf32>
    %cst_22 = arith.constant dense<0.000000e+00> : vector<128x1xf32>
    %31 = tpu.matmul %30, %0, %cst_22 {dimension_numbers = #tpu.dot_dimension_numbers<[1], [0], [0], [1], [0, 0, 1, 1], [], []>} : vector<128x200xf32>, vector<200x1xf32>, vector<128x1xf32> -> vector<128x1xf32>
    %c3_23 = arith.constant 3 : index
    %c0_24 = arith.constant 0 : index
    %c0_25 = arith.constant 0 : index
    %32 = vector.load %arg2[%c3_23, %c0_24, %c0_25] : memref<9x1x4xf32, #tpu.memory_space<vmem>>, vector<1x1x4xf32>
    %33 = vector.shape_cast %32 : vector<1x1x4xf32> to vector<1x4xf32>
    %34 = vector.broadcast %31 : vector<128x1xf32> to vector<128x4xf32>
    %35 = vector.broadcast %33 : vector<1x4xf32> to vector<128x4xf32>
    %36 = arith.mulf %34, %35 : vector<128x4xf32>
    %37 = arith.addf %28, %36 : vector<128x4xf32>
    %c4 = arith.constant 4 : index
    %c0_26 = arith.constant 0 : index
    %c0_27 = arith.constant 0 : index
    %38 = vector.load %arg1[%c4, %c0_26, %c0_27] : memref<9x128x200xf32, #tpu.memory_space<vmem>>, vector<1x128x200xf32>
    %39 = vector.shape_cast %38 : vector<1x128x200xf32> to vector<128x200xf32>
    %cst_28 = arith.constant dense<0.000000e+00> : vector<128x1xf32>
    %40 = tpu.matmul %39, %0, %cst_28 {dimension_numbers = #tpu.dot_dimension_numbers<[1], [0], [0], [1], [0, 0, 1, 1], [], []>} : vector<128x200xf32>, vector<200x1xf32>, vector<128x1xf32> -> vector<128x1xf32>
    %c4_29 = arith.constant 4 : index
    %c0_30 = arith.constant 0 : index
    %c0_31 = arith.constant 0 : index
    %41 = vector.load %arg2[%c4_29, %c0_30, %c0_31] : memref<9x1x4xf32, #tpu.memory_space<vmem>>, vector<1x1x4xf32>
    %42 = vector.shape_cast %41 : vector<1x1x4xf32> to vector<1x4xf32>
    %43 = vector.broadcast %40 : vector<128x1xf32> to vector<128x4xf32>
    %44 = vector.broadcast %42 : vector<1x4xf32> to vector<128x4xf32>
    %45 = arith.mulf %43, %44 : vector<128x4xf32>
    %46 = arith.addf %37, %45 : vector<128x4xf32>
    %c5 = arith.constant 5 : index
    %c0_32 = arith.constant 0 : index
    %c0_33 = arith.constant 0 : index
    %47 = vector.load %arg1[%c5, %c0_32, %c0_33] : memref<9x128x200xf32, #tpu.memory_space<vmem>>, vector<1x128x200xf32>
    %48 = vector.shape_cast %47 : vector<1x128x200xf32> to vector<128x200xf32>
    %cst_34 = arith.constant dense<0.000000e+00> : vector<128x1xf32>
    %49 = tpu.matmul %48, %0, %cst_34 {dimension_numbers = #tpu.dot_dimension_numbers<[1], [0], [0], [1], [0, 0, 1, 1], [], []>} : vector<128x200xf32>, vector<200x1xf32>, vector<128x1xf32> -> vector<128x1xf32>
    %c5_35 = arith.constant 5 : index
    %c0_36 = arith.constant 0 : index
    %c0_37 = arith.constant 0 : index
    %50 = vector.load %arg2[%c5_35, %c0_36, %c0_37] : memref<9x1x4xf32, #tpu.memory_space<vmem>>, vector<1x1x4xf32>
    %51 = vector.shape_cast %50 : vector<1x1x4xf32> to vector<1x4xf32>
    %52 = vector.broadcast %49 : vector<128x1xf32> to vector<128x4xf32>
    %53 = vector.broadcast %51 : vector<1x4xf32> to vector<128x4xf32>
    %54 = arith.mulf %52, %53 : vector<128x4xf32>
    %55 = arith.addf %46, %54 : vector<128x4xf32>
    %c6 = arith.constant 6 : index
    %c0_38 = arith.constant 0 : index
    %c0_39 = arith.constant 0 : index
    %56 = vector.load %arg1[%c6, %c0_38, %c0_39] : memref<9x128x200xf32, #tpu.memory_space<vmem>>, vector<1x128x200xf32>
    %57 = vector.shape_cast %56 : vector<1x128x200xf32> to vector<128x200xf32>
    %cst_40 = arith.constant dense<0.000000e+00> : vector<128x1xf32>
    %58 = tpu.matmul %57, %0, %cst_40 {dimension_numbers = #tpu.dot_dimension_numbers<[1], [0], [0], [1], [0, 0, 1, 1], [], []>} : vector<128x200xf32>, vector<200x1xf32>, vector<128x1xf32> -> vector<128x1xf32>
    %c6_41 = arith.constant 6 : index
    %c0_42 = arith.constant 0 : index
    %c0_43 = arith.constant 0 : index
    %59 = vector.load %arg2[%c6_41, %c0_42, %c0_43] : memref<9x1x4xf32, #tpu.memory_space<vmem>>, vector<1x1x4xf32>
    %60 = vector.shape_cast %59 : vector<1x1x4xf32> to vector<1x4xf32>
    %61 = vector.broadcast %58 : vector<128x1xf32> to vector<128x4xf32>
    %62 = vector.broadcast %60 : vector<1x4xf32> to vector<128x4xf32>
    %63 = arith.mulf %61, %62 : vector<128x4xf32>
    %64 = arith.addf %55, %63 : vector<128x4xf32>
    %c7 = arith.constant 7 : index
    %c0_44 = arith.constant 0 : index
    %c0_45 = arith.constant 0 : index
    %65 = vector.load %arg1[%c7, %c0_44, %c0_45] : memref<9x128x200xf32, #tpu.memory_space<vmem>>, vector<1x128x200xf32>
    %66 = vector.shape_cast %65 : vector<1x128x200xf32> to vector<128x200xf32>
    %cst_46 = arith.constant dense<0.000000e+00> : vector<128x1xf32>
    %67 = tpu.matmul %66, %0, %cst_46 {dimension_numbers = #tpu.dot_dimension_numbers<[1], [0], [0], [1], [0, 0, 1, 1], [], []>} : vector<128x200xf32>, vector<200x1xf32>, vector<128x1xf32> -> vector<128x1xf32>
    %c7_47 = arith.constant 7 : index
    %c0_48 = arith.constant 0 : index
    %c0_49 = arith.constant 0 : index
    %68 = vector.load %arg2[%c7_47, %c0_48, %c0_49] : memref<9x1x4xf32, #tpu.memory_space<vmem>>, vector<1x1x4xf32>
    %69 = vector.shape_cast %68 : vector<1x1x4xf32> to vector<1x4xf32>
    %70 = vector.broadcast %67 : vector<128x1xf32> to vector<128x4xf32>
    %71 = vector.broadcast %69 : vector<1x4xf32> to vector<128x4xf32>
    %72 = arith.mulf %70, %71 : vector<128x4xf32>
    %73 = arith.addf %64, %72 : vector<128x4xf32>
    %c8 = arith.constant 8 : index
    %c0_50 = arith.constant 0 : index
    %c0_51 = arith.constant 0 : index
    %74 = vector.load %arg1[%c8, %c0_50, %c0_51] : memref<9x128x200xf32, #tpu.memory_space<vmem>>, vector<1x128x200xf32>
    %75 = vector.shape_cast %74 : vector<1x128x200xf32> to vector<128x200xf32>
    %cst_52 = arith.constant dense<0.000000e+00> : vector<128x1xf32>
    %76 = tpu.matmul %75, %0, %cst_52 {dimension_numbers = #tpu.dot_dimension_numbers<[1], [0], [0], [1], [0, 0, 1, 1], [], []>} : vector<128x200xf32>, vector<200x1xf32>, vector<128x1xf32> -> vector<128x1xf32>
    %c8_53 = arith.constant 8 : index
    %c0_54 = arith.constant 0 : index
    %c0_55 = arith.constant 0 : index
    %77 = vector.load %arg2[%c8_53, %c0_54, %c0_55] : memref<9x1x4xf32, #tpu.memory_space<vmem>>, vector<1x1x4xf32>
    %78 = vector.shape_cast %77 : vector<1x1x4xf32> to vector<1x4xf32>
    %79 = vector.broadcast %76 : vector<128x1xf32> to vector<128x4xf32>
    %80 = vector.broadcast %78 : vector<1x4xf32> to vector<128x4xf32>
    %81 = arith.mulf %79, %80 : vector<128x4xf32>
    %82 = arith.addf %73, %81 : vector<128x4xf32>
    %cst_56 = arith.constant dense<0.000000e+00> : vector<4xf32>
    %83 = vector.multi_reduction <add>, %82, %cst_56 [0] : vector<128x4xf32> to vector<4xf32>
    %84 = vector.shape_cast %83 : vector<4xf32> to vector<1x4xf32>
    %cst_57 = arith.constant 7.812500e-03 : f32
    %85 = vector.broadcast %cst_57 : f32 to vector<1x4xf32>
    %86 = arith.mulf %84, %85 : vector<1x4xf32>
    %87 = arith.mulf %82, %82 : vector<128x4xf32>
    %cst_58 = arith.constant dense<0.000000e+00> : vector<4xf32>
    %88 = vector.multi_reduction <add>, %87, %cst_58 [0] : vector<128x4xf32> to vector<4xf32>
    %89 = vector.shape_cast %88 : vector<4xf32> to vector<1x4xf32>
    %cst_59 = arith.constant 7.812500e-03 : f32
    %90 = vector.broadcast %cst_59 : f32 to vector<1x4xf32>
    %91 = arith.mulf %89, %90 : vector<1x4xf32>
    %92 = arith.mulf %86, %86 : vector<1x4xf32>
    %93 = arith.subf %91, %92 : vector<1x4xf32>
    %cst_60 = arith.constant 0.000000e+00 : f32
    %94 = vector.broadcast %cst_60 : f32 to vector<1x4xf32>
    %95 = arith.maximumf %93, %94 : vector<1x4xf32>
    %96 = vector.broadcast %86 : vector<1x4xf32> to vector<128x4xf32>
    %97 = arith.subf %82, %96 : vector<128x4xf32>
    %cst_61 = arith.constant 9.99999974E-6 : f32
    %98 = vector.broadcast %cst_61 : f32 to vector<1x4xf32>
    %99 = arith.addf %95, %98 : vector<1x4xf32>
    %100 = math.rsqrt %99 : vector<1x4xf32>
    %c0_62 = arith.constant 0 : index
    %c0_63 = arith.constant 0 : index
    %101 = vector.load %arg3[%c0_62, %c0_63] : memref<1x4xf32, #tpu.memory_space<vmem>>, vector<1x4xf32>
    %102 = arith.mulf %100, %101 : vector<1x4xf32>
    %103 = vector.broadcast %102 : vector<1x4xf32> to vector<128x4xf32>
    %104 = arith.mulf %97, %103 : vector<128x4xf32>
    %c0_64 = arith.constant 0 : index
    %c0_65 = arith.constant 0 : index
    %105 = vector.load %arg4[%c0_64, %c0_65] : memref<1x4xf32, #tpu.memory_space<vmem>>, vector<1x4xf32>
    %106 = vector.broadcast %105 : vector<1x4xf32> to vector<128x4xf32>
    %107 = arith.addf %104, %106 : vector<128x4xf32>
    %cst_66 = arith.constant 0.000000e+00 : f32
    %108 = vector.broadcast %cst_66 : f32 to vector<128x4xf32>
    %109 = arith.cmpf oge, %107, %108 : vector<128x4xf32>
    %cst_67 = arith.constant 2.000000e-01 : f32
    %110 = vector.broadcast %cst_67 : f32 to vector<128x4xf32>
    %111 = arith.mulf %110, %107 : vector<128x4xf32>
    %112 = arith.select %109, %107, %111 : vector<128x4xi1>, vector<128x4xf32>
    %cst_68 = arith.constant 0.000000e+00 : f32
    %113 = vector.broadcast %cst_68 : f32 to vector<72x8xf32>
    %c0_69 = arith.constant 0 : index
    %c0_70 = arith.constant 0 : index
    %c0_71 = arith.constant 0 : index
    %114 = vector.load %arg5[%c0_69, %c0_70, %c0_71] : memref<9x72x128xf32, #tpu.memory_space<vmem>>, vector<1x72x128xf32>
    %115 = vector.shape_cast %114 : vector<1x72x128xf32> to vector<72x128xf32>
    %cst_72 = arith.constant dense<0.000000e+00> : vector<72x4xf32>
    %116 = tpu.matmul %115, %112, %cst_72 {dimension_numbers = #tpu.dot_dimension_numbers<[1], [0], [0], [1], [0, 0, 1, 1], [], []>} : vector<72x128xf32>, vector<128x4xf32>, vector<72x4xf32> -> vector<72x4xf32>
    %c0_73 = arith.constant 0 : index
    %c0_74 = arith.constant 0 : index
    %c0_75 = arith.constant 0 : index
    %117 = vector.load %arg6[%c0_73, %c0_74, %c0_75] : memref<9x4x8xf32, #tpu.memory_space<vmem>>, vector<1x4x8xf32>
    %118 = vector.shape_cast %117 : vector<1x4x8xf32> to vector<4x8xf32>
    %cst_76 = arith.constant dense<0.000000e+00> : vector<72x8xf32>
    %119 = tpu.matmul %116, %118, %cst_76 {dimension_numbers = #tpu.dot_dimension_numbers<[1], [0], [0], [1], [0, 0, 1, 1], [], []>} : vector<72x4xf32>, vector<4x8xf32>, vector<72x8xf32> -> vector<72x8xf32>
    %120 = arith.addf %113, %119 : vector<72x8xf32>
    %c1_77 = arith.constant 1 : index
    %c0_78 = arith.constant 0 : index
    %c0_79 = arith.constant 0 : index
    %121 = vector.load %arg5[%c1_77, %c0_78, %c0_79] : memref<9x72x128xf32, #tpu.memory_space<vmem>>, vector<1x72x128xf32>
    %122 = vector.shape_cast %121 : vector<1x72x128xf32> to vector<72x128xf32>
    %cst_80 = arith.constant dense<0.000000e+00> : vector<72x4xf32>
    %123 = tpu.matmul %122, %112, %cst_80 {dimension_numbers = #tpu.dot_dimension_numbers<[1], [0], [0], [1], [0, 0, 1, 1], [], []>} : vector<72x128xf32>, vector<128x4xf32>, vector<72x4xf32> -> vector<72x4xf32>
    %c1_81 = arith.constant 1 : index
    %c0_82 = arith.constant 0 : index
    %c0_83 = arith.constant 0 : index
    %124 = vector.load %arg6[%c1_81, %c0_82, %c0_83] : memref<9x4x8xf32, #tpu.memory_space<vmem>>, vector<1x4x8xf32>
    %125 = vector.shape_cast %124 : vector<1x4x8xf32> to vector<4x8xf32>
    %cst_84 = arith.constant dense<0.000000e+00> : vector<72x8xf32>
    %126 = tpu.matmul %123, %125, %cst_84 {dimension_numbers = #tpu.dot_dimension_numbers<[1], [0], [0], [1], [0, 0, 1, 1], [], []>} : vector<72x4xf32>, vector<4x8xf32>, vector<72x8xf32> -> vector<72x8xf32>
    %127 = arith.addf %120, %126 : vector<72x8xf32>
    %c2_85 = arith.constant 2 : index
    %c0_86 = arith.constant 0 : index
    %c0_87 = arith.constant 0 : index
    %128 = vector.load %arg5[%c2_85, %c0_86, %c0_87] : memref<9x72x128xf32, #tpu.memory_space<vmem>>, vector<1x72x128xf32>
    %129 = vector.shape_cast %128 : vector<1x72x128xf32> to vector<72x128xf32>
    %cst_88 = arith.constant dense<0.000000e+00> : vector<72x4xf32>
    %130 = tpu.matmul %129, %112, %cst_88 {dimension_numbers = #tpu.dot_dimension_numbers<[1], [0], [0], [1], [0, 0, 1, 1], [], []>} : vector<72x128xf32>, vector<128x4xf32>, vector<72x4xf32> -> vector<72x4xf32>
    %c2_89 = arith.constant 2 : index
    %c0_90 = arith.constant 0 : index
    %c0_91 = arith.constant 0 : index
    %131 = vector.load %arg6[%c2_89, %c0_90, %c0_91] : memref<9x4x8xf32, #tpu.memory_space<vmem>>, vector<1x4x8xf32>
    %132 = vector.shape_cast %131 : vector<1x4x8xf32> to vector<4x8xf32>
    %cst_92 = arith.constant dense<0.000000e+00> : vector<72x8xf32>
    %133 = tpu.matmul %130, %132, %cst_92 {dimension_numbers = #tpu.dot_dimension_numbers<[1], [0], [0], [1], [0, 0, 1, 1], [], []>} : vector<72x4xf32>, vector<4x8xf32>, vector<72x8xf32> -> vector<72x8xf32>
    %134 = arith.addf %127, %133 : vector<72x8xf32>
    %c3_93 = arith.constant 3 : index
    %c0_94 = arith.constant 0 : index
    %c0_95 = arith.constant 0 : index
    %135 = vector.load %arg5[%c3_93, %c0_94, %c0_95] : memref<9x72x128xf32, #tpu.memory_space<vmem>>, vector<1x72x128xf32>
    %136 = vector.shape_cast %135 : vector<1x72x128xf32> to vector<72x128xf32>
    %cst_96 = arith.constant dense<0.000000e+00> : vector<72x4xf32>
    %137 = tpu.matmul %136, %112, %cst_96 {dimension_numbers = #tpu.dot_dimension_numbers<[1], [0], [0], [1], [0, 0, 1, 1], [], []>} : vector<72x128xf32>, vector<128x4xf32>, vector<72x4xf32> -> vector<72x4xf32>
    %c3_97 = arith.constant 3 : index
    %c0_98 = arith.constant 0 : index
    %c0_99 = arith.constant 0 : index
    %138 = vector.load %arg6[%c3_97, %c0_98, %c0_99] : memref<9x4x8xf32, #tpu.memory_space<vmem>>, vector<1x4x8xf32>
    %139 = vector.shape_cast %138 : vector<1x4x8xf32> to vector<4x8xf32>
    %cst_100 = arith.constant dense<0.000000e+00> : vector<72x8xf32>
    %140 = tpu.matmul %137, %139, %cst_100 {dimension_numbers = #tpu.dot_dimension_numbers<[1], [0], [0], [1], [0, 0, 1, 1], [], []>} : vector<72x4xf32>, vector<4x8xf32>, vector<72x8xf32> -> vector<72x8xf32>
    %141 = arith.addf %134, %140 : vector<72x8xf32>
    %c4_101 = arith.constant 4 : index
    %c0_102 = arith.constant 0 : index
    %c0_103 = arith.constant 0 : index
    %142 = vector.load %arg5[%c4_101, %c0_102, %c0_103] : memref<9x72x128xf32, #tpu.memory_space<vmem>>, vector<1x72x128xf32>
    %143 = vector.shape_cast %142 : vector<1x72x128xf32> to vector<72x128xf32>
    %cst_104 = arith.constant dense<0.000000e+00> : vector<72x4xf32>
    %144 = tpu.matmul %143, %112, %cst_104 {dimension_numbers = #tpu.dot_dimension_numbers<[1], [0], [0], [1], [0, 0, 1, 1], [], []>} : vector<72x128xf32>, vector<128x4xf32>, vector<72x4xf32> -> vector<72x4xf32>
    %c4_105 = arith.constant 4 : index
    %c0_106 = arith.constant 0 : index
    %c0_107 = arith.constant 0 : index
    %145 = vector.load %arg6[%c4_105, %c0_106, %c0_107] : memref<9x4x8xf32, #tpu.memory_space<vmem>>, vector<1x4x8xf32>
    %146 = vector.shape_cast %145 : vector<1x4x8xf32> to vector<4x8xf32>
    %cst_108 = arith.constant dense<0.000000e+00> : vector<72x8xf32>
    %147 = tpu.matmul %144, %146, %cst_108 {dimension_numbers = #tpu.dot_dimension_numbers<[1], [0], [0], [1], [0, 0, 1, 1], [], []>} : vector<72x4xf32>, vector<4x8xf32>, vector<72x8xf32> -> vector<72x8xf32>
    %148 = arith.addf %141, %147 : vector<72x8xf32>
    %c5_109 = arith.constant 5 : index
    %c0_110 = arith.constant 0 : index
    %c0_111 = arith.constant 0 : index
    %149 = vector.load %arg5[%c5_109, %c0_110, %c0_111] : memref<9x72x128xf32, #tpu.memory_space<vmem>>, vector<1x72x128xf32>
    %150 = vector.shape_cast %149 : vector<1x72x128xf32> to vector<72x128xf32>
    %cst_112 = arith.constant dense<0.000000e+00> : vector<72x4xf32>
    %151 = tpu.matmul %150, %112, %cst_112 {dimension_numbers = #tpu.dot_dimension_numbers<[1], [0], [0], [1], [0, 0, 1, 1], [], []>} : vector<72x128xf32>, vector<128x4xf32>, vector<72x4xf32> -> vector<72x4xf32>
    %c5_113 = arith.constant 5 : index
    %c0_114 = arith.constant 0 : index
    %c0_115 = arith.constant 0 : index
    %152 = vector.load %arg6[%c5_113, %c0_114, %c0_115] : memref<9x4x8xf32, #tpu.memory_space<vmem>>, vector<1x4x8xf32>
    %153 = vector.shape_cast %152 : vector<1x4x8xf32> to vector<4x8xf32>
    %cst_116 = arith.constant dense<0.000000e+00> : vector<72x8xf32>
    %154 = tpu.matmul %151, %153, %cst_116 {dimension_numbers = #tpu.dot_dimension_numbers<[1], [0], [0], [1], [0, 0, 1, 1], [], []>} : vector<72x4xf32>, vector<4x8xf32>, vector<72x8xf32> -> vector<72x8xf32>
    %155 = arith.addf %148, %154 : vector<72x8xf32>
    %c6_117 = arith.constant 6 : index
    %c0_118 = arith.constant 0 : index
    %c0_119 = arith.constant 0 : index
    %156 = vector.load %arg5[%c6_117, %c0_118, %c0_119] : memref<9x72x128xf32, #tpu.memory_space<vmem>>, vector<1x72x128xf32>
    %157 = vector.shape_cast %156 : vector<1x72x128xf32> to vector<72x128xf32>
    %cst_120 = arith.constant dense<0.000000e+00> : vector<72x4xf32>
    %158 = tpu.matmul %157, %112, %cst_120 {dimension_numbers = #tpu.dot_dimension_numbers<[1], [0], [0], [1], [0, 0, 1, 1], [], []>} : vector<72x128xf32>, vector<128x4xf32>, vector<72x4xf32> -> vector<72x4xf32>
    %c6_121 = arith.constant 6 : index
    %c0_122 = arith.constant 0 : index
    %c0_123 = arith.constant 0 : index
    %159 = vector.load %arg6[%c6_121, %c0_122, %c0_123] : memref<9x4x8xf32, #tpu.memory_space<vmem>>, vector<1x4x8xf32>
    %160 = vector.shape_cast %159 : vector<1x4x8xf32> to vector<4x8xf32>
    %cst_124 = arith.constant dense<0.000000e+00> : vector<72x8xf32>
    %161 = tpu.matmul %158, %160, %cst_124 {dimension_numbers = #tpu.dot_dimension_numbers<[1], [0], [0], [1], [0, 0, 1, 1], [], []>} : vector<72x4xf32>, vector<4x8xf32>, vector<72x8xf32> -> vector<72x8xf32>
    %162 = arith.addf %155, %161 : vector<72x8xf32>
    %c7_125 = arith.constant 7 : index
    %c0_126 = arith.constant 0 : index
    %c0_127 = arith.constant 0 : index
    %163 = vector.load %arg5[%c7_125, %c0_126, %c0_127] : memref<9x72x128xf32, #tpu.memory_space<vmem>>, vector<1x72x128xf32>
    %164 = vector.shape_cast %163 : vector<1x72x128xf32> to vector<72x128xf32>
    %cst_128 = arith.constant dense<0.000000e+00> : vector<72x4xf32>
    %165 = tpu.matmul %164, %112, %cst_128 {dimension_numbers = #tpu.dot_dimension_numbers<[1], [0], [0], [1], [0, 0, 1, 1], [], []>} : vector<72x128xf32>, vector<128x4xf32>, vector<72x4xf32> -> vector<72x4xf32>
    %c7_129 = arith.constant 7 : index
    %c0_130 = arith.constant 0 : index
    %c0_131 = arith.constant 0 : index
    %166 = vector.load %arg6[%c7_129, %c0_130, %c0_131] : memref<9x4x8xf32, #tpu.memory_space<vmem>>, vector<1x4x8xf32>
    %167 = vector.shape_cast %166 : vector<1x4x8xf32> to vector<4x8xf32>
    %cst_132 = arith.constant dense<0.000000e+00> : vector<72x8xf32>
    %168 = tpu.matmul %165, %167, %cst_132 {dimension_numbers = #tpu.dot_dimension_numbers<[1], [0], [0], [1], [0, 0, 1, 1], [], []>} : vector<72x4xf32>, vector<4x8xf32>, vector<72x8xf32> -> vector<72x8xf32>
    %169 = arith.addf %162, %168 : vector<72x8xf32>
    %c8_133 = arith.constant 8 : index
    %c0_134 = arith.constant 0 : index
    %c0_135 = arith.constant 0 : index
    %170 = vector.load %arg5[%c8_133, %c0_134, %c0_135] : memref<9x72x128xf32, #tpu.memory_space<vmem>>, vector<1x72x128xf32>
    %171 = vector.shape_cast %170 : vector<1x72x128xf32> to vector<72x128xf32>
    %cst_136 = arith.constant dense<0.000000e+00> : vector<72x4xf32>
    %172 = tpu.matmul %171, %112, %cst_136 {dimension_numbers = #tpu.dot_dimension_numbers<[1], [0], [0], [1], [0, 0, 1, 1], [], []>} : vector<72x128xf32>, vector<128x4xf32>, vector<72x4xf32> -> vector<72x4xf32>
    %c8_137 = arith.constant 8 : index
    %c0_138 = arith.constant 0 : index
    %c0_139 = arith.constant 0 : index
    %173 = vector.load %arg6[%c8_137, %c0_138, %c0_139] : memref<9x4x8xf32, #tpu.memory_space<vmem>>, vector<1x4x8xf32>
    %174 = vector.shape_cast %173 : vector<1x4x8xf32> to vector<4x8xf32>
    %cst_140 = arith.constant dense<0.000000e+00> : vector<72x8xf32>
    %175 = tpu.matmul %172, %174, %cst_140 {dimension_numbers = #tpu.dot_dimension_numbers<[1], [0], [0], [1], [0, 0, 1, 1], [], []>} : vector<72x4xf32>, vector<4x8xf32>, vector<72x8xf32> -> vector<72x8xf32>
    %176 = arith.addf %169, %175 : vector<72x8xf32>
    %cst_141 = arith.constant dense<0.000000e+00> : vector<8xf32>
    %177 = vector.multi_reduction <add>, %176, %cst_141 [0] : vector<72x8xf32> to vector<8xf32>
    %178 = vector.shape_cast %177 : vector<8xf32> to vector<1x8xf32>
    %cst_142 = arith.constant 0.013888889 : f32
    %179 = vector.broadcast %cst_142 : f32 to vector<1x8xf32>
    %180 = arith.mulf %178, %179 : vector<1x8xf32>
    %181 = arith.mulf %176, %176 : vector<72x8xf32>
    %cst_143 = arith.constant dense<0.000000e+00> : vector<8xf32>
    %182 = vector.multi_reduction <add>, %181, %cst_143 [0] : vector<72x8xf32> to vector<8xf32>
    %183 = vector.shape_cast %182 : vector<8xf32> to vector<1x8xf32>
    %cst_144 = arith.constant 0.013888889 : f32
    %184 = vector.broadcast %cst_144 : f32 to vector<1x8xf32>
    %185 = arith.mulf %183, %184 : vector<1x8xf32>
    %186 = arith.mulf %180, %180 : vector<1x8xf32>
    %187 = arith.subf %185, %186 : vector<1x8xf32>
    %cst_145 = arith.constant 0.000000e+00 : f32
    %188 = vector.broadcast %cst_145 : f32 to vector<1x8xf32>
    %189 = arith.maximumf %187, %188 : vector<1x8xf32>
    %190 = vector.broadcast %180 : vector<1x8xf32> to vector<72x8xf32>
    %191 = arith.subf %176, %190 : vector<72x8xf32>
    %cst_146 = arith.constant 9.99999974E-6 : f32
    %192 = vector.broadcast %cst_146 : f32 to vector<1x8xf32>
    %193 = arith.addf %189, %192 : vector<1x8xf32>
    %194 = math.rsqrt %193 : vector<1x8xf32>
    %c0_147 = arith.constant 0 : index
    %c0_148 = arith.constant 0 : index
    %195 = vector.load %arg7[%c0_147, %c0_148] : memref<1x8xf32, #tpu.memory_space<vmem>>, vector<1x8xf32>
    %196 = arith.mulf %194, %195 : vector<1x8xf32>
    %197 = vector.broadcast %196 : vector<1x8xf32> to vector<72x8xf32>
    %198 = arith.mulf %191, %197 : vector<72x8xf32>
    %c0_149 = arith.constant 0 : index
    %c0_150 = arith.constant 0 : index
    %199 = vector.load %arg8[%c0_149, %c0_150] : memref<1x8xf32, #tpu.memory_space<vmem>>, vector<1x8xf32>
    %200 = vector.broadcast %199 : vector<1x8xf32> to vector<72x8xf32>
    %201 = arith.addf %198, %200 : vector<72x8xf32>
    %cst_151 = arith.constant 0.000000e+00 : f32
    %202 = vector.broadcast %cst_151 : f32 to vector<72x8xf32>
    %203 = arith.cmpf oge, %201, %202 : vector<72x8xf32>
    %cst_152 = arith.constant 2.000000e-01 : f32
    %204 = vector.broadcast %cst_152 : f32 to vector<72x8xf32>
    %205 = arith.mulf %204, %201 : vector<72x8xf32>
    %206 = arith.select %203, %201, %205 : vector<72x8xi1>, vector<72x8xf32>
    %cst_153 = arith.constant 0.000000e+00 : f32
    %207 = vector.broadcast %cst_153 : f32 to vector<32x16xf32>
    %c0_154 = arith.constant 0 : index
    %c0_155 = arith.constant 0 : index
    %c0_156 = arith.constant 0 : index
    %208 = vector.load %arg9[%c0_154, %c0_155, %c0_156] : memref<9x32x72xf32, #tpu.memory_space<vmem>>, vector<1x32x72xf32>
    %209 = vector.shape_cast %208 : vector<1x32x72xf32> to vector<32x72xf32>
    %cst_157 = arith.constant dense<0.000000e+00> : vector<32x8xf32>
    %210 = tpu.matmul %209, %206, %cst_157 {dimension_numbers = #tpu.dot_dimension_numbers<[1], [0], [0], [1], [0, 0, 1, 1], [], []>} : vector<32x72xf32>, vector<72x8xf32>, vector<32x8xf32> -> vector<32x8xf32>
    %c0_158 = arith.constant 0 : index
    %c0_159 = arith.constant 0 : index
    %c0_160 = arith.constant 0 : index
    %211 = vector.load %arg10[%c0_158, %c0_159, %c0_160] : memref<9x8x16xf32, #tpu.memory_space<vmem>>, vector<1x8x16xf32>
    %212 = vector.shape_cast %211 : vector<1x8x16xf32> to vector<8x16xf32>
    %cst_161 = arith.constant dense<0.000000e+00> : vector<32x16xf32>
    %213 = tpu.matmul %210, %212, %cst_161 {dimension_numbers = #tpu.dot_dimension_numbers<[1], [0], [0], [1], [0, 0, 1, 1], [], []>} : vector<32x8xf32>, vector<8x16xf32>, vector<32x16xf32> -> vector<32x16xf32>
    %214 = arith.addf %207, %213 : vector<32x16xf32>
    %c1_162 = arith.constant 1 : index
    %c0_163 = arith.constant 0 : index
    %c0_164 = arith.constant 0 : index
    %215 = vector.load %arg9[%c1_162, %c0_163, %c0_164] : memref<9x32x72xf32, #tpu.memory_space<vmem>>, vector<1x32x72xf32>
    %216 = vector.shape_cast %215 : vector<1x32x72xf32> to vector<32x72xf32>
    %cst_165 = arith.constant dense<0.000000e+00> : vector<32x8xf32>
    %217 = tpu.matmul %216, %206, %cst_165 {dimension_numbers = #tpu.dot_dimension_numbers<[1], [0], [0], [1], [0, 0, 1, 1], [], []>} : vector<32x72xf32>, vector<72x8xf32>, vector<32x8xf32> -> vector<32x8xf32>
    %c1_166 = arith.constant 1 : index
    %c0_167 = arith.constant 0 : index
    %c0_168 = arith.constant 0 : index
    %218 = vector.load %arg10[%c1_166, %c0_167, %c0_168] : memref<9x8x16xf32, #tpu.memory_space<vmem>>, vector<1x8x16xf32>
    %219 = vector.shape_cast %218 : vector<1x8x16xf32> to vector<8x16xf32>
    %cst_169 = arith.constant dense<0.000000e+00> : vector<32x16xf32>
    %220 = tpu.matmul %217, %219, %cst_169 {dimension_numbers = #tpu.dot_dimension_numbers<[1], [0], [0], [1], [0, 0, 1, 1], [], []>} : vector<32x8xf32>, vector<8x16xf32>, vector<32x16xf32> -> vector<32x16xf32>
    %221 = arith.addf %214, %220 : vector<32x16xf32>
    %c2_170 = arith.constant 2 : index
    %c0_171 = arith.constant 0 : index
    %c0_172 = arith.constant 0 : index
    %222 = vector.load %arg9[%c2_170, %c0_171, %c0_172] : memref<9x32x72xf32, #tpu.memory_space<vmem>>, vector<1x32x72xf32>
    %223 = vector.shape_cast %222 : vector<1x32x72xf32> to vector<32x72xf32>
    %cst_173 = arith.constant dense<0.000000e+00> : vector<32x8xf32>
    %224 = tpu.matmul %223, %206, %cst_173 {dimension_numbers = #tpu.dot_dimension_numbers<[1], [0], [0], [1], [0, 0, 1, 1], [], []>} : vector<32x72xf32>, vector<72x8xf32>, vector<32x8xf32> -> vector<32x8xf32>
    %c2_174 = arith.constant 2 : index
    %c0_175 = arith.constant 0 : index
    %c0_176 = arith.constant 0 : index
    %225 = vector.load %arg10[%c2_174, %c0_175, %c0_176] : memref<9x8x16xf32, #tpu.memory_space<vmem>>, vector<1x8x16xf32>
    %226 = vector.shape_cast %225 : vector<1x8x16xf32> to vector<8x16xf32>
    %cst_177 = arith.constant dense<0.000000e+00> : vector<32x16xf32>
    %227 = tpu.matmul %224, %226, %cst_177 {dimension_numbers = #tpu.dot_dimension_numbers<[1], [0], [0], [1], [0, 0, 1, 1], [], []>} : vector<32x8xf32>, vector<8x16xf32>, vector<32x16xf32> -> vector<32x16xf32>
    %228 = arith.addf %221, %227 : vector<32x16xf32>
    %c3_178 = arith.constant 3 : index
    %c0_179 = arith.constant 0 : index
    %c0_180 = arith.constant 0 : index
    %229 = vector.load %arg9[%c3_178, %c0_179, %c0_180] : memref<9x32x72xf32, #tpu.memory_space<vmem>>, vector<1x32x72xf32>
    %230 = vector.shape_cast %229 : vector<1x32x72xf32> to vector<32x72xf32>
    %cst_181 = arith.constant dense<0.000000e+00> : vector<32x8xf32>
    %231 = tpu.matmul %230, %206, %cst_181 {dimension_numbers = #tpu.dot_dimension_numbers<[1], [0], [0], [1], [0, 0, 1, 1], [], []>} : vector<32x72xf32>, vector<72x8xf32>, vector<32x8xf32> -> vector<32x8xf32>
    %c3_182 = arith.constant 3 : index
    %c0_183 = arith.constant 0 : index
    %c0_184 = arith.constant 0 : index
    %232 = vector.load %arg10[%c3_182, %c0_183, %c0_184] : memref<9x8x16xf32, #tpu.memory_space<vmem>>, vector<1x8x16xf32>
    %233 = vector.shape_cast %232 : vector<1x8x16xf32> to vector<8x16xf32>
    %cst_185 = arith.constant dense<0.000000e+00> : vector<32x16xf32>
    %234 = tpu.matmul %231, %233, %cst_185 {dimension_numbers = #tpu.dot_dimension_numbers<[1], [0], [0], [1], [0, 0, 1, 1], [], []>} : vector<32x8xf32>, vector<8x16xf32>, vector<32x16xf32> -> vector<32x16xf32>
    %235 = arith.addf %228, %234 : vector<32x16xf32>
    %c4_186 = arith.constant 4 : index
    %c0_187 = arith.constant 0 : index
    %c0_188 = arith.constant 0 : index
    %236 = vector.load %arg9[%c4_186, %c0_187, %c0_188] : memref<9x32x72xf32, #tpu.memory_space<vmem>>, vector<1x32x72xf32>
    %237 = vector.shape_cast %236 : vector<1x32x72xf32> to vector<32x72xf32>
    %cst_189 = arith.constant dense<0.000000e+00> : vector<32x8xf32>
    %238 = tpu.matmul %237, %206, %cst_189 {dimension_numbers = #tpu.dot_dimension_numbers<[1], [0], [0], [1], [0, 0, 1, 1], [], []>} : vector<32x72xf32>, vector<72x8xf32>, vector<32x8xf32> -> vector<32x8xf32>
    %c4_190 = arith.constant 4 : index
    %c0_191 = arith.constant 0 : index
    %c0_192 = arith.constant 0 : index
    %239 = vector.load %arg10[%c4_190, %c0_191, %c0_192] : memref<9x8x16xf32, #tpu.memory_space<vmem>>, vector<1x8x16xf32>
    %240 = vector.shape_cast %239 : vector<1x8x16xf32> to vector<8x16xf32>
    %cst_193 = arith.constant dense<0.000000e+00> : vector<32x16xf32>
    %241 = tpu.matmul %238, %240, %cst_193 {dimension_numbers = #tpu.dot_dimension_numbers<[1], [0], [0], [1], [0, 0, 1, 1], [], []>} : vector<32x8xf32>, vector<8x16xf32>, vector<32x16xf32> -> vector<32x16xf32>
    %242 = arith.addf %235, %241 : vector<32x16xf32>
    %c5_194 = arith.constant 5 : index
    %c0_195 = arith.constant 0 : index
    %c0_196 = arith.constant 0 : index
    %243 = vector.load %arg9[%c5_194, %c0_195, %c0_196] : memref<9x32x72xf32, #tpu.memory_space<vmem>>, vector<1x32x72xf32>
    %244 = vector.shape_cast %243 : vector<1x32x72xf32> to vector<32x72xf32>
    %cst_197 = arith.constant dense<0.000000e+00> : vector<32x8xf32>
    %245 = tpu.matmul %244, %206, %cst_197 {dimension_numbers = #tpu.dot_dimension_numbers<[1], [0], [0], [1], [0, 0, 1, 1], [], []>} : vector<32x72xf32>, vector<72x8xf32>, vector<32x8xf32> -> vector<32x8xf32>
    %c5_198 = arith.constant 5 : index
    %c0_199 = arith.constant 0 : index
    %c0_200 = arith.constant 0 : index
    %246 = vector.load %arg10[%c5_198, %c0_199, %c0_200] : memref<9x8x16xf32, #tpu.memory_space<vmem>>, vector<1x8x16xf32>
    %247 = vector.shape_cast %246 : vector<1x8x16xf32> to vector<8x16xf32>
    %cst_201 = arith.constant dense<0.000000e+00> : vector<32x16xf32>
    %248 = tpu.matmul %245, %247, %cst_201 {dimension_numbers = #tpu.dot_dimension_numbers<[1], [0], [0], [1], [0, 0, 1, 1], [], []>} : vector<32x8xf32>, vector<8x16xf32>, vector<32x16xf32> -> vector<32x16xf32>
    %249 = arith.addf %242, %248 : vector<32x16xf32>
    %c6_202 = arith.constant 6 : index
    %c0_203 = arith.constant 0 : index
    %c0_204 = arith.constant 0 : index
    %250 = vector.load %arg9[%c6_202, %c0_203, %c0_204] : memref<9x32x72xf32, #tpu.memory_space<vmem>>, vector<1x32x72xf32>
    %251 = vector.shape_cast %250 : vector<1x32x72xf32> to vector<32x72xf32>
    %cst_205 = arith.constant dense<0.000000e+00> : vector<32x8xf32>
    %252 = tpu.matmul %251, %206, %cst_205 {dimension_numbers = #tpu.dot_dimension_numbers<[1], [0], [0], [1], [0, 0, 1, 1], [], []>} : vector<32x72xf32>, vector<72x8xf32>, vector<32x8xf32> -> vector<32x8xf32>
    %c6_206 = arith.constant 6 : index
    %c0_207 = arith.constant 0 : index
    %c0_208 = arith.constant 0 : index
    %253 = vector.load %arg10[%c6_206, %c0_207, %c0_208] : memref<9x8x16xf32, #tpu.memory_space<vmem>>, vector<1x8x16xf32>
    %254 = vector.shape_cast %253 : vector<1x8x16xf32> to vector<8x16xf32>
    %cst_209 = arith.constant dense<0.000000e+00> : vector<32x16xf32>
    %255 = tpu.matmul %252, %254, %cst_209 {dimension_numbers = #tpu.dot_dimension_numbers<[1], [0], [0], [1], [0, 0, 1, 1], [], []>} : vector<32x8xf32>, vector<8x16xf32>, vector<32x16xf32> -> vector<32x16xf32>
    %256 = arith.addf %249, %255 : vector<32x16xf32>
    %c7_210 = arith.constant 7 : index
    %c0_211 = arith.constant 0 : index
    %c0_212 = arith.constant 0 : index
    %257 = vector.load %arg9[%c7_210, %c0_211, %c0_212] : memref<9x32x72xf32, #tpu.memory_space<vmem>>, vector<1x32x72xf32>
    %258 = vector.shape_cast %257 : vector<1x32x72xf32> to vector<32x72xf32>
    %cst_213 = arith.constant dense<0.000000e+00> : vector<32x8xf32>
    %259 = tpu.matmul %258, %206, %cst_213 {dimension_numbers = #tpu.dot_dimension_numbers<[1], [0], [0], [1], [0, 0, 1, 1], [], []>} : vector<32x72xf32>, vector<72x8xf32>, vector<32x8xf32> -> vector<32x8xf32>
    %c7_214 = arith.constant 7 : index
    %c0_215 = arith.constant 0 : index
    %c0_216 = arith.constant 0 : index
    %260 = vector.load %arg10[%c7_214, %c0_215, %c0_216] : memref<9x8x16xf32, #tpu.memory_space<vmem>>, vector<1x8x16xf32>
    %261 = vector.shape_cast %260 : vector<1x8x16xf32> to vector<8x16xf32>
    %cst_217 = arith.constant dense<0.000000e+00> : vector<32x16xf32>
    %262 = tpu.matmul %259, %261, %cst_217 {dimension_numbers = #tpu.dot_dimension_numbers<[1], [0], [0], [1], [0, 0, 1, 1], [], []>} : vector<32x8xf32>, vector<8x16xf32>, vector<32x16xf32> -> vector<32x16xf32>
    %263 = arith.addf %256, %262 : vector<32x16xf32>
    %c8_218 = arith.constant 8 : index
    %c0_219 = arith.constant 0 : index
    %c0_220 = arith.constant 0 : index
    %264 = vector.load %arg9[%c8_218, %c0_219, %c0_220] : memref<9x32x72xf32, #tpu.memory_space<vmem>>, vector<1x32x72xf32>
    %265 = vector.shape_cast %264 : vector<1x32x72xf32> to vector<32x72xf32>
    %cst_221 = arith.constant dense<0.000000e+00> : vector<32x8xf32>
    %266 = tpu.matmul %265, %206, %cst_221 {dimension_numbers = #tpu.dot_dimension_numbers<[1], [0], [0], [1], [0, 0, 1, 1], [], []>} : vector<32x72xf32>, vector<72x8xf32>, vector<32x8xf32> -> vector<32x8xf32>
    %c8_222 = arith.constant 8 : index
    %c0_223 = arith.constant 0 : index
    %c0_224 = arith.constant 0 : index
    %267 = vector.load %arg10[%c8_222, %c0_223, %c0_224] : memref<9x8x16xf32, #tpu.memory_space<vmem>>, vector<1x8x16xf32>
    %268 = vector.shape_cast %267 : vector<1x8x16xf32> to vector<8x16xf32>
    %cst_225 = arith.constant dense<0.000000e+00> : vector<32x16xf32>
    %269 = tpu.matmul %266, %268, %cst_225 {dimension_numbers = #tpu.dot_dimension_numbers<[1], [0], [0], [1], [0, 0, 1, 1], [], []>} : vector<32x8xf32>, vector<8x16xf32>, vector<32x16xf32> -> vector<32x16xf32>
    %270 = arith.addf %263, %269 : vector<32x16xf32>
    %cst_226 = arith.constant dense<0.000000e+00> : vector<16xf32>
    %271 = vector.multi_reduction <add>, %270, %cst_226 [0] : vector<32x16xf32> to vector<16xf32>
    %272 = vector.shape_cast %271 : vector<16xf32> to vector<1x16xf32>
    %cst_227 = arith.constant 3.125000e-02 : f32
    %273 = vector.broadcast %cst_227 : f32 to vector<1x16xf32>
    %274 = arith.mulf %272, %273 : vector<1x16xf32>
    %275 = arith.mulf %270, %270 : vector<32x16xf32>
    %cst_228 = arith.constant dense<0.000000e+00> : vector<16xf32>
    %276 = vector.multi_reduction <add>, %275, %cst_228 [0] : vector<32x16xf32> to vector<16xf32>
    %277 = vector.shape_cast %276 : vector<16xf32> to vector<1x16xf32>
    %cst_229 = arith.constant 3.125000e-02 : f32
    %278 = vector.broadcast %cst_229 : f32 to vector<1x16xf32>
    %279 = arith.mulf %277, %278 : vector<1x16xf32>
    %280 = arith.mulf %274, %274 : vector<1x16xf32>
    %281 = arith.subf %279, %280 : vector<1x16xf32>
    %cst_230 = arith.constant 0.000000e+00 : f32
    %282 = vector.broadcast %cst_230 : f32 to vector<1x16xf32>
    %283 = arith.maximumf %281, %282 : vector<1x16xf32>
    %284 = vector.broadcast %274 : vector<1x16xf32> to vector<32x16xf32>
    %285 = arith.subf %270, %284 : vector<32x16xf32>
    %cst_231 = arith.constant 9.99999974E-6 : f32
    %286 = vector.broadcast %cst_231 : f32 to vector<1x16xf32>
    %287 = arith.addf %283, %286 : vector<1x16xf32>
    %288 = math.rsqrt %287 : vector<1x16xf32>
    %c0_232 = arith.constant 0 : index
    %c0_233 = arith.constant 0 : index
    %289 = vector.load %arg11[%c0_232, %c0_233] : memref<1x16xf32, #tpu.memory_space<vmem>>, vector<1x16xf32>
    %290 = arith.mulf %288, %289 : vector<1x16xf32>
    %291 = vector.broadcast %290 : vector<1x16xf32> to vector<32x16xf32>
    %292 = arith.mulf %285, %291 : vector<32x16xf32>
    %c0_234 = arith.constant 0 : index
    %c0_235 = arith.constant 0 : index
    %293 = vector.load %arg12[%c0_234, %c0_235] : memref<1x16xf32, #tpu.memory_space<vmem>>, vector<1x16xf32>
    %294 = vector.broadcast %293 : vector<1x16xf32> to vector<32x16xf32>
    %295 = arith.addf %292, %294 : vector<32x16xf32>
    %cst_236 = arith.constant 0.000000e+00 : f32
    %296 = vector.broadcast %cst_236 : f32 to vector<32x16xf32>
    %297 = arith.cmpf oge, %295, %296 : vector<32x16xf32>
    %cst_237 = arith.constant 2.000000e-01 : f32
    %298 = vector.broadcast %cst_237 : f32 to vector<32x16xf32>
    %299 = arith.mulf %298, %295 : vector<32x16xf32>
    %300 = arith.select %297, %295, %299 : vector<32x16xi1>, vector<32x16xf32>
    %cst_238 = arith.constant 0.000000e+00 : f32
    %301 = vector.broadcast %cst_238 : f32 to vector<8x32xf32>
    %c0_239 = arith.constant 0 : index
    %c0_240 = arith.constant 0 : index
    %c0_241 = arith.constant 0 : index
    %302 = vector.load %arg13[%c0_239, %c0_240, %c0_241] : memref<9x8x32xf32, #tpu.memory_space<vmem>>, vector<1x8x32xf32>
    %303 = vector.shape_cast %302 : vector<1x8x32xf32> to vector<8x32xf32>
    %cst_242 = arith.constant dense<0.000000e+00> : vector<8x16xf32>
    %304 = tpu.matmul %303, %300, %cst_242 {dimension_numbers = #tpu.dot_dimension_numbers<[1], [0], [0], [1], [0, 0, 1, 1], [], []>} : vector<8x32xf32>, vector<32x16xf32>, vector<8x16xf32> -> vector<8x16xf32>
    %c0_243 = arith.constant 0 : index
    %c0_244 = arith.constant 0 : index
    %c0_245 = arith.constant 0 : index
    %305 = vector.load %arg14[%c0_243, %c0_244, %c0_245] : memref<9x16x32xf32, #tpu.memory_space<vmem>>, vector<1x16x32xf32>
    %306 = vector.shape_cast %305 : vector<1x16x32xf32> to vector<16x32xf32>
    %cst_246 = arith.constant dense<0.000000e+00> : vector<8x32xf32>
    %307 = tpu.matmul %304, %306, %cst_246 {dimension_numbers = #tpu.dot_dimension_numbers<[1], [0], [0], [1], [0, 0, 1, 1], [], []>} : vector<8x16xf32>, vector<16x32xf32>, vector<8x32xf32> -> vector<8x32xf32>
    %308 = arith.addf %301, %307 : vector<8x32xf32>
    %c1_247 = arith.constant 1 : index
    %c0_248 = arith.constant 0 : index
    %c0_249 = arith.constant 0 : index
    %309 = vector.load %arg13[%c1_247, %c0_248, %c0_249] : memref<9x8x32xf32, #tpu.memory_space<vmem>>, vector<1x8x32xf32>
    %310 = vector.shape_cast %309 : vector<1x8x32xf32> to vector<8x32xf32>
    %cst_250 = arith.constant dense<0.000000e+00> : vector<8x16xf32>
    %311 = tpu.matmul %310, %300, %cst_250 {dimension_numbers = #tpu.dot_dimension_numbers<[1], [0], [0], [1], [0, 0, 1, 1], [], []>} : vector<8x32xf32>, vector<32x16xf32>, vector<8x16xf32> -> vector<8x16xf32>
    %c1_251 = arith.constant 1 : index
    %c0_252 = arith.constant 0 : index
    %c0_253 = arith.constant 0 : index
    %312 = vector.load %arg14[%c1_251, %c0_252, %c0_253] : memref<9x16x32xf32, #tpu.memory_space<vmem>>, vector<1x16x32xf32>
    %313 = vector.shape_cast %312 : vector<1x16x32xf32> to vector<16x32xf32>
    %cst_254 = arith.constant dense<0.000000e+00> : vector<8x32xf32>
    %314 = tpu.matmul %311, %313, %cst_254 {dimension_numbers = #tpu.dot_dimension_numbers<[1], [0], [0], [1], [0, 0, 1, 1], [], []>} : vector<8x16xf32>, vector<16x32xf32>, vector<8x32xf32> -> vector<8x32xf32>
    %315 = arith.addf %308, %314 : vector<8x32xf32>
    %c2_255 = arith.constant 2 : index
    %c0_256 = arith.constant 0 : index
    %c0_257 = arith.constant 0 : index
    %316 = vector.load %arg13[%c2_255, %c0_256, %c0_257] : memref<9x8x32xf32, #tpu.memory_space<vmem>>, vector<1x8x32xf32>
    %317 = vector.shape_cast %316 : vector<1x8x32xf32> to vector<8x32xf32>
    %cst_258 = arith.constant dense<0.000000e+00> : vector<8x16xf32>
    %318 = tpu.matmul %317, %300, %cst_258 {dimension_numbers = #tpu.dot_dimension_numbers<[1], [0], [0], [1], [0, 0, 1, 1], [], []>} : vector<8x32xf32>, vector<32x16xf32>, vector<8x16xf32> -> vector<8x16xf32>
    %c2_259 = arith.constant 2 : index
    %c0_260 = arith.constant 0 : index
    %c0_261 = arith.constant 0 : index
    %319 = vector.load %arg14[%c2_259, %c0_260, %c0_261] : memref<9x16x32xf32, #tpu.memory_space<vmem>>, vector<1x16x32xf32>
    %320 = vector.shape_cast %319 : vector<1x16x32xf32> to vector<16x32xf32>
    %cst_262 = arith.constant dense<0.000000e+00> : vector<8x32xf32>
    %321 = tpu.matmul %318, %320, %cst_262 {dimension_numbers = #tpu.dot_dimension_numbers<[1], [0], [0], [1], [0, 0, 1, 1], [], []>} : vector<8x16xf32>, vector<16x32xf32>, vector<8x32xf32> -> vector<8x32xf32>
    %322 = arith.addf %315, %321 : vector<8x32xf32>
    %c3_263 = arith.constant 3 : index
    %c0_264 = arith.constant 0 : index
    %c0_265 = arith.constant 0 : index
    %323 = vector.load %arg13[%c3_263, %c0_264, %c0_265] : memref<9x8x32xf32, #tpu.memory_space<vmem>>, vector<1x8x32xf32>
    %324 = vector.shape_cast %323 : vector<1x8x32xf32> to vector<8x32xf32>
    %cst_266 = arith.constant dense<0.000000e+00> : vector<8x16xf32>
    %325 = tpu.matmul %324, %300, %cst_266 {dimension_numbers = #tpu.dot_dimension_numbers<[1], [0], [0], [1], [0, 0, 1, 1], [], []>} : vector<8x32xf32>, vector<32x16xf32>, vector<8x16xf32> -> vector<8x16xf32>
    %c3_267 = arith.constant 3 : index
    %c0_268 = arith.constant 0 : index
    %c0_269 = arith.constant 0 : index
    %326 = vector.load %arg14[%c3_267, %c0_268, %c0_269] : memref<9x16x32xf32, #tpu.memory_space<vmem>>, vector<1x16x32xf32>
    %327 = vector.shape_cast %326 : vector<1x16x32xf32> to vector<16x32xf32>
    %cst_270 = arith.constant dense<0.000000e+00> : vector<8x32xf32>
    %328 = tpu.matmul %325, %327, %cst_270 {dimension_numbers = #tpu.dot_dimension_numbers<[1], [0], [0], [1], [0, 0, 1, 1], [], []>} : vector<8x16xf32>, vector<16x32xf32>, vector<8x32xf32> -> vector<8x32xf32>
    %329 = arith.addf %322, %328 : vector<8x32xf32>
    %c4_271 = arith.constant 4 : index
    %c0_272 = arith.constant 0 : index
    %c0_273 = arith.constant 0 : index
    %330 = vector.load %arg13[%c4_271, %c0_272, %c0_273] : memref<9x8x32xf32, #tpu.memory_space<vmem>>, vector<1x8x32xf32>
    %331 = vector.shape_cast %330 : vector<1x8x32xf32> to vector<8x32xf32>
    %cst_274 = arith.constant dense<0.000000e+00> : vector<8x16xf32>
    %332 = tpu.matmul %331, %300, %cst_274 {dimension_numbers = #tpu.dot_dimension_numbers<[1], [0], [0], [1], [0, 0, 1, 1], [], []>} : vector<8x32xf32>, vector<32x16xf32>, vector<8x16xf32> -> vector<8x16xf32>
    %c4_275 = arith.constant 4 : index
    %c0_276 = arith.constant 0 : index
    %c0_277 = arith.constant 0 : index
    %333 = vector.load %arg14[%c4_275, %c0_276, %c0_277] : memref<9x16x32xf32, #tpu.memory_space<vmem>>, vector<1x16x32xf32>
    %334 = vector.shape_cast %333 : vector<1x16x32xf32> to vector<16x32xf32>
    %cst_278 = arith.constant dense<0.000000e+00> : vector<8x32xf32>
    %335 = tpu.matmul %332, %334, %cst_278 {dimension_numbers = #tpu.dot_dimension_numbers<[1], [0], [0], [1], [0, 0, 1, 1], [], []>} : vector<8x16xf32>, vector<16x32xf32>, vector<8x32xf32> -> vector<8x32xf32>
    %336 = arith.addf %329, %335 : vector<8x32xf32>
    %c5_279 = arith.constant 5 : index
    %c0_280 = arith.constant 0 : index
    %c0_281 = arith.constant 0 : index
    %337 = vector.load %arg13[%c5_279, %c0_280, %c0_281] : memref<9x8x32xf32, #tpu.memory_space<vmem>>, vector<1x8x32xf32>
    %338 = vector.shape_cast %337 : vector<1x8x32xf32> to vector<8x32xf32>
    %cst_282 = arith.constant dense<0.000000e+00> : vector<8x16xf32>
    %339 = tpu.matmul %338, %300, %cst_282 {dimension_numbers = #tpu.dot_dimension_numbers<[1], [0], [0], [1], [0, 0, 1, 1], [], []>} : vector<8x32xf32>, vector<32x16xf32>, vector<8x16xf32> -> vector<8x16xf32>
    %c5_283 = arith.constant 5 : index
    %c0_284 = arith.constant 0 : index
    %c0_285 = arith.constant 0 : index
    %340 = vector.load %arg14[%c5_283, %c0_284, %c0_285] : memref<9x16x32xf32, #tpu.memory_space<vmem>>, vector<1x16x32xf32>
    %341 = vector.shape_cast %340 : vector<1x16x32xf32> to vector<16x32xf32>
    %cst_286 = arith.constant dense<0.000000e+00> : vector<8x32xf32>
    %342 = tpu.matmul %339, %341, %cst_286 {dimension_numbers = #tpu.dot_dimension_numbers<[1], [0], [0], [1], [0, 0, 1, 1], [], []>} : vector<8x16xf32>, vector<16x32xf32>, vector<8x32xf32> -> vector<8x32xf32>
    %343 = arith.addf %336, %342 : vector<8x32xf32>
    %c6_287 = arith.constant 6 : index
    %c0_288 = arith.constant 0 : index
    %c0_289 = arith.constant 0 : index
    %344 = vector.load %arg13[%c6_287, %c0_288, %c0_289] : memref<9x8x32xf32, #tpu.memory_space<vmem>>, vector<1x8x32xf32>
    %345 = vector.shape_cast %344 : vector<1x8x32xf32> to vector<8x32xf32>
    %cst_290 = arith.constant dense<0.000000e+00> : vector<8x16xf32>
    %346 = tpu.matmul %345, %300, %cst_290 {dimension_numbers = #tpu.dot_dimension_numbers<[1], [0], [0], [1], [0, 0, 1, 1], [], []>} : vector<8x32xf32>, vector<32x16xf32>, vector<8x16xf32> -> vector<8x16xf32>
    %c6_291 = arith.constant 6 : index
    %c0_292 = arith.constant 0 : index
    %c0_293 = arith.constant 0 : index
    %347 = vector.load %arg14[%c6_291, %c0_292, %c0_293] : memref<9x16x32xf32, #tpu.memory_space<vmem>>, vector<1x16x32xf32>
    %348 = vector.shape_cast %347 : vector<1x16x32xf32> to vector<16x32xf32>
    %cst_294 = arith.constant dense<0.000000e+00> : vector<8x32xf32>
    %349 = tpu.matmul %346, %348, %cst_294 {dimension_numbers = #tpu.dot_dimension_numbers<[1], [0], [0], [1], [0, 0, 1, 1], [], []>} : vector<8x16xf32>, vector<16x32xf32>, vector<8x32xf32> -> vector<8x32xf32>
    %350 = arith.addf %343, %349 : vector<8x32xf32>
    %c7_295 = arith.constant 7 : index
    %c0_296 = arith.constant 0 : index
    %c0_297 = arith.constant 0 : index
    %351 = vector.load %arg13[%c7_295, %c0_296, %c0_297] : memref<9x8x32xf32, #tpu.memory_space<vmem>>, vector<1x8x32xf32>
    %352 = vector.shape_cast %351 : vector<1x8x32xf32> to vector<8x32xf32>
    %cst_298 = arith.constant dense<0.000000e+00> : vector<8x16xf32>
    %353 = tpu.matmul %352, %300, %cst_298 {dimension_numbers = #tpu.dot_dimension_numbers<[1], [0], [0], [1], [0, 0, 1, 1], [], []>} : vector<8x32xf32>, vector<32x16xf32>, vector<8x16xf32> -> vector<8x16xf32>
    %c7_299 = arith.constant 7 : index
    %c0_300 = arith.constant 0 : index
    %c0_301 = arith.constant 0 : index
    %354 = vector.load %arg14[%c7_299, %c0_300, %c0_301] : memref<9x16x32xf32, #tpu.memory_space<vmem>>, vector<1x16x32xf32>
    %355 = vector.shape_cast %354 : vector<1x16x32xf32> to vector<16x32xf32>
    %cst_302 = arith.constant dense<0.000000e+00> : vector<8x32xf32>
    %356 = tpu.matmul %353, %355, %cst_302 {dimension_numbers = #tpu.dot_dimension_numbers<[1], [0], [0], [1], [0, 0, 1, 1], [], []>} : vector<8x16xf32>, vector<16x32xf32>, vector<8x32xf32> -> vector<8x32xf32>
    %357 = arith.addf %350, %356 : vector<8x32xf32>
    %c8_303 = arith.constant 8 : index
    %c0_304 = arith.constant 0 : index
    %c0_305 = arith.constant 0 : index
    %358 = vector.load %arg13[%c8_303, %c0_304, %c0_305] : memref<9x8x32xf32, #tpu.memory_space<vmem>>, vector<1x8x32xf32>
    %359 = vector.shape_cast %358 : vector<1x8x32xf32> to vector<8x32xf32>
    %cst_306 = arith.constant dense<0.000000e+00> : vector<8x16xf32>
    %360 = tpu.matmul %359, %300, %cst_306 {dimension_numbers = #tpu.dot_dimension_numbers<[1], [0], [0], [1], [0, 0, 1, 1], [], []>} : vector<8x32xf32>, vector<32x16xf32>, vector<8x16xf32> -> vector<8x16xf32>
    %c8_307 = arith.constant 8 : index
    %c0_308 = arith.constant 0 : index
    %c0_309 = arith.constant 0 : index
    %361 = vector.load %arg14[%c8_307, %c0_308, %c0_309] : memref<9x16x32xf32, #tpu.memory_space<vmem>>, vector<1x16x32xf32>
    %362 = vector.shape_cast %361 : vector<1x16x32xf32> to vector<16x32xf32>
    %cst_310 = arith.constant dense<0.000000e+00> : vector<8x32xf32>
    %363 = tpu.matmul %360, %362, %cst_310 {dimension_numbers = #tpu.dot_dimension_numbers<[1], [0], [0], [1], [0, 0, 1, 1], [], []>} : vector<8x16xf32>, vector<16x32xf32>, vector<8x32xf32> -> vector<8x32xf32>
    %364 = arith.addf %357, %363 : vector<8x32xf32>
    %cst_311 = arith.constant dense<0.000000e+00> : vector<32xf32>
    %365 = vector.multi_reduction <add>, %364, %cst_311 [0] : vector<8x32xf32> to vector<32xf32>
    %366 = vector.shape_cast %365 : vector<32xf32> to vector<1x32xf32>
    %cst_312 = arith.constant 1.250000e-01 : f32
    %367 = vector.broadcast %cst_312 : f32 to vector<1x32xf32>
    %368 = arith.mulf %366, %367 : vector<1x32xf32>
    %369 = arith.mulf %364, %364 : vector<8x32xf32>
    %cst_313 = arith.constant dense<0.000000e+00> : vector<32xf32>
    %370 = vector.multi_reduction <add>, %369, %cst_313 [0] : vector<8x32xf32> to vector<32xf32>
    %371 = vector.shape_cast %370 : vector<32xf32> to vector<1x32xf32>
    %cst_314 = arith.constant 1.250000e-01 : f32
    %372 = vector.broadcast %cst_314 : f32 to vector<1x32xf32>
    %373 = arith.mulf %371, %372 : vector<1x32xf32>
    %374 = arith.mulf %368, %368 : vector<1x32xf32>
    %375 = arith.subf %373, %374 : vector<1x32xf32>
    %cst_315 = arith.constant 0.000000e+00 : f32
    %376 = vector.broadcast %cst_315 : f32 to vector<1x32xf32>
    %377 = arith.maximumf %375, %376 : vector<1x32xf32>
    %378 = vector.broadcast %368 : vector<1x32xf32> to vector<8x32xf32>
    %379 = arith.subf %364, %378 : vector<8x32xf32>
    %cst_316 = arith.constant 9.99999974E-6 : f32
    %380 = vector.broadcast %cst_316 : f32 to vector<1x32xf32>
    %381 = arith.addf %377, %380 : vector<1x32xf32>
    %382 = math.rsqrt %381 : vector<1x32xf32>
    %c0_317 = arith.constant 0 : index
    %c0_318 = arith.constant 0 : index
    %383 = vector.load %arg15[%c0_317, %c0_318] : memref<1x32xf32, #tpu.memory_space<vmem>>, vector<1x32xf32>
    %384 = arith.mulf %382, %383 : vector<1x32xf32>
    %385 = vector.broadcast %384 : vector<1x32xf32> to vector<8x32xf32>
    %386 = arith.mulf %379, %385 : vector<8x32xf32>
    %c0_319 = arith.constant 0 : index
    %c0_320 = arith.constant 0 : index
    %387 = vector.load %arg16[%c0_319, %c0_320] : memref<1x32xf32, #tpu.memory_space<vmem>>, vector<1x32xf32>
    %388 = vector.broadcast %387 : vector<1x32xf32> to vector<8x32xf32>
    %389 = arith.addf %386, %388 : vector<8x32xf32>
    %cst_321 = arith.constant 0.000000e+00 : f32
    %390 = vector.broadcast %cst_321 : f32 to vector<8x32xf32>
    %391 = arith.cmpf oge, %389, %390 : vector<8x32xf32>
    %cst_322 = arith.constant 2.000000e-01 : f32
    %392 = vector.broadcast %cst_322 : f32 to vector<8x32xf32>
    %393 = arith.mulf %392, %389 : vector<8x32xf32>
    %394 = arith.select %391, %389, %393 : vector<8x32xi1>, vector<8x32xf32>
    %c0_323 = arith.constant 0 : index
    %c0_324 = arith.constant 0 : index
    %395 = vector.load %arg17[%c0_323, %c0_324] : memref<8x32xf32, #tpu.memory_space<vmem>>, vector<8x32xf32>
    %396 = arith.mulf %394, %395 : vector<8x32xf32>
    %cst_325 = arith.constant dense<0.000000e+00> : vector<8xf32>
    %397 = vector.multi_reduction <add>, %396, %cst_325 [1] : vector<8x32xf32> to vector<8xf32>
    %398 = vector.shape_cast %397 : vector<8xf32> to vector<8x1xf32>
    %c0_326 = arith.constant 0 : index
    %c0_327 = arith.constant 0 : index
    %399 = vector.load %arg18[%c0_326, %c0_327] : memref<2x8xf32, #tpu.memory_space<vmem>>, vector<2x8xf32>
    %cst_328 = arith.constant dense<0.000000e+00> : vector<2x1xf32>
    %400 = tpu.matmul %399, %398, %cst_328 {dimension_numbers = #tpu.dot_dimension_numbers<[1], [0], [0], [1], [0, 0, 1, 1], [], []>} : vector<2x8xf32>, vector<8x1xf32>, vector<2x1xf32> -> vector<2x1xf32>
    %c0_329 = arith.constant 0 : index
    %c0_330 = arith.constant 0 : index
    %401 = vector.load %arg19[%c0_329, %c0_330] : memref<1x1xf32, #tpu.memory_space<vmem>>, vector<1x1xf32>
    %402 = vector.broadcast %401 : vector<1x1xf32> to vector<2x1xf32>
    %403 = arith.addf %400, %402 : vector<2x1xf32>
    %cst_331 = arith.constant 0.000000e+00 : f32
    %404 = vector.broadcast %cst_331 : f32 to vector<2x1xf32>
    %405 = arith.subf %404, %403 : vector<2x1xf32>
    %406 = math.exp %405 : vector<2x1xf32>
    %cst_332 = arith.constant 1.000000e+00 : f32
    %407 = vector.broadcast %cst_332 : f32 to vector<2x1xf32>
    %408 = arith.addf %407, %406 : vector<2x1xf32>
    %409 = tpu.reciprocal %408 {approx = true} : vector<2x1xf32> -> vector<2x1xf32>
    %c0_333 = arith.constant 0 : index
    %c0_334 = arith.constant 0 : index
    %410 = vector.load %arg20[%c0_333, %c0_334] : memref<2x1xf32, #tpu.memory_space<vmem>>, vector<2x1xf32>
    tpu.vector_store %arg20[%c0_333, %c0_334], %409 {strides = array<i32>} : memref<2x1xf32, #tpu.memory_space<vmem>>, vector<2x1xf32>,
    return
  }
}

</mosaic_0001>

<llo_original>
// kernel: discriminator_forward.1
$region0: #{discriminator_forward.1}
  #allocation0 [shape = 'u32[]', space=smem, size = 0x4, offset = 0x4, fixed_abs, tag = 'smem constant byte address 0x4 - core index']
  #allocation1 [shape = 'u32[144,128]{1,0:T(1,128)}', space=vmem, size = 0x12000, scoped, tag = 'internal scratch']
  #allocation2 [shape = 'f32[1,1]{1,0:T(1,128)S(1)}', space=vmem, size = 0x200, scoped, tag = 'scoped memory for discriminator_forward.1']
  %s0 = inlined_call_operand.vmem [shape: f32[200,1], index: 0, kind: input, shape index: {}]
  %s1 = inlined_call_operand.vmem [shape: f32[9,128,200], index: 1, kind: input, shape index: {}]
  %s2 = inlined_call_operand.vmem [shape: f32[9,1,4], index: 2, kind: input, shape index: {}]
  %s3 = inlined_call_operand.vmem [shape: f32[1,4], index: 3, kind: input, shape index: {}]
  %s4 = inlined_call_operand.vmem [shape: f32[1,4], index: 4, kind: input, shape index: {}]
  %s5 = inlined_call_operand.vmem [shape: f32[9,72,128], index: 5, kind: input, shape index: {}]
  %s6 = inlined_call_operand.vmem [shape: f32[9,4,8], index: 6, kind: input, shape index: {}]
  %s7 = inlined_call_operand.vmem [shape: f32[1,8], index: 7, kind: input, shape index: {}]
  %s8 = inlined_call_operand.vmem [shape: f32[1,8], index: 8, kind: input, shape index: {}]
  %s9 = inlined_call_operand.vmem [shape: f32[9,32,72], index: 9, kind: input, shape index: {}]
  %s10 = inlined_call_operand.vmem [shape: f32[9,8,16], index: 10, kind: input, shape index: {}]
  %s11 = inlined_call_operand.vmem [shape: f32[1,16], index: 11, kind: input, shape index: {}]
  %s12 = inlined_call_operand.vmem [shape: f32[1,16], index: 12, kind: input, shape index: {}]
  %s13 = inlined_call_operand.vmem [shape: f32[9,8,32], index: 13, kind: input, shape index: {}]
  %s14 = inlined_call_operand.vmem [shape: f32[9,16,32], index: 14, kind: input, shape index: {}]
  %s15 = inlined_call_operand.vmem [shape: f32[1,32], index: 15, kind: input, shape index: {}]
  %s16 = inlined_call_operand.vmem [shape: f32[1,32], index: 16, kind: input, shape index: {}]
  %s17 = inlined_call_operand.vmem [shape: f32[8,32], index: 17, kind: input, shape index: {}]
  %s18 = inlined_call_operand.vmem [shape: f32[2,8], index: 18, kind: input, shape index: {}]
  %s19 = inlined_call_operand.<no memory space> [shape: f32[1,1], index: 19, kind: input, shape index: {}]
  %s20 = inlined_call_operand.vmem [shape: f32[2,1], index: 20, kind: output, shape index: {}]
  %s21 = sld [smem:[#allocation0]]
  $region90: #{discriminator_forward.1} parent=0
    _
  %s23 = ssub.s32 1, %s21
  %s24 = scalar_select 0, %s23, %s21
  %v25 = vstv %s19
  %26 = vst [vmem:[#allocation2] sm:$0x1] %v25
  // Predicated region
  $region2: #{discriminator_forward.1} parent=0 // pred_check
    _
  $region3: #{discriminator_forward.1} parent=0 // pred_check_branch
    %28 = sbr.rel (0) target = $region5
  $region4: #{discriminator_forward.1} parent=0 // pred_region
    _
  $region5: #{discriminator_forward.1} parent=0 // pred_fallthru
    _
  // Predicated region
  $region6: #{discriminator_forward.1} parent=0 // pred_check
    _
  $region7: #{discriminator_forward.1} parent=0 // pred_check_branch
    %30 = sbr.rel (0) target = $region9
  $region8: #{discriminator_forward.1} parent=0 // pred_region
    _
  $region9: #{discriminator_forward.1} parent=0 // pred_fallthru
    _
  // Predicated region
  $region10: #{discriminator_forward.1} parent=0 // pred_check
    _
  $region11: #{discriminator_forward.1} parent=0 // pred_check_branch
    %32 = sbr.rel (0) target = $region13
  $region12: #{discriminator_forward.1} parent=0 // pred_region
    _
  $region13: #{discriminator_forward.1} parent=0 // pred_fallthru
    _
  // Predicated region
  $region14: #{discriminator_forward.1} parent=0 // pred_check
    _
  $region15: #{discriminator_forward.1} parent=0 // pred_check_branch
    %34 = sbr.rel (0) target = $region17
  $region16: #{discriminator_forward.1} parent=0 // pred_region
    _
  $region17: #{discriminator_forward.1} parent=0 // pred_fallthru
    _
  // Predicated region
  $region18: #{discriminator_forward.1} parent=0 // pred_check
    _
  $region19: #{discriminator_forward.1} parent=0 // pred_check_branch
    %36 = sbr.rel (0) target = $region21
  $region20: #{discriminator_forward.1} parent=0 // pred_region
    _
  $region21: #{discriminator_forward.1} parent=0 // pred_fallthru
    _
  // Predicated region
  $region22: #{discriminator_forward.1} parent=0 // pred_check
    _
  $region23: #{discriminator_forward.1} parent=0 // pred_check_branch
    %38 = sbr.rel (0) target = $region25
  $region24: #{discriminator_forward.1} parent=0 // pred_region
    _
  $region25: #{discriminator_forward.1} parent=0 // pred_fallthru
    _
  // Predicated region
  $region26: #{discriminator_forward.1} parent=0 // pred_check
    _
  $region27: #{discriminator_forward.1} parent=0 // pred_check_branch
    %40 = sbr.rel (0) target = $region29
  $region28: #{discriminator_forward.1} parent=0 // pred_region
    _
  $region29: #{discriminator_forward.1} parent=0 // pred_fallthru
    _
  // Predicated region
  $region30: #{discriminator_forward.1} parent=0 // pred_check
    _
  $region31: #{discriminator_forward.1} parent=0 // pred_check_branch
    %42 = sbr.rel (0) target = $region33
  $region32: #{discriminator_forward.1} parent=0 // pred_region
    _
  $region33: #{discriminator_forward.1} parent=0 // pred_fallthru
    _
  // Predicated region
  $region34: #{discriminator_forward.1} parent=0 // pred_check
    _
  $region35: #{discriminator_forward.1} parent=0 // pred_check_branch
    %44 = sbr.rel (0) target = $region37
  $region36: #{discriminator_forward.1} parent=0 // pred_region
    _
  $region37: #{discriminator_forward.1} parent=0 // pred_fallthru
    _
  // Predicated region
  $region38: #{discriminator_forward.1} parent=0 // pred_check
    _
  $region39: #{discriminator_forward.1} parent=0 // pred_check_branch
    %46 = sbr.rel (0) target = $region41
  $region40: #{discriminator_forward.1} parent=0 // pred_region
    _
  $region41: #{discriminator_forward.1} parent=0 // pred_fallthru
    _
  // Predicated region
  $region42: #{discriminator_forward.1} parent=0 // pred_check
    _
  $region43: #{discriminator_forward.1} parent=0 // pred_check_branch
    %48 = sbr.rel (0) target = $region45
  $region44: #{discriminator_forward.1} parent=0 // pred_region
    _
  $region45: #{discriminator_forward.1} parent=0 // pred_fallthru
    _
  // Predicated region
  $region46: #{discriminator_forward.1} parent=0 // pred_check
    _
  $region47: #{discriminator_forward.1} parent=0 // pred_check_branch
    %50 = sbr.rel (0) target = $region49
  $region48: #{discriminator_forward.1} parent=0 // pred_region
    _
  $region49: #{discriminator_forward.1} parent=0 // pred_fallthru
    _
  // Predicated region
  $region50: #{discriminator_forward.1} parent=0 // pred_check
    _
  $region51: #{discriminator_forward.1} parent=0 // pred_check_branch
    %52 = sbr.rel (0) target = $region53
  $region52: #{discriminator_forward.1} parent=0 // pred_region
    _
  $region53: #{discriminator_forward.1} parent=0 // pred_fallthru
    _
  // Predicated region
  $region54: #{discriminator_forward.1} parent=0 // pred_check
    _
  $region55: #{discriminator_forward.1} parent=0 // pred_check_branch
    %54 = sbr.rel (0) target = $region57
  $region56: #{discriminator_forward.1} parent=0 // pred_region
    _
  $region57: #{discriminator_forward.1} parent=0 // pred_fallthru
    _
  // Predicated region
  $region58: #{discriminator_forward.1} parent=0 // pred_check
    _
  $region59: #{discriminator_forward.1} parent=0 // pred_check_branch
    %56 = sbr.rel (0) target = $region61
  $region60: #{discriminator_forward.1} parent=0 // pred_region
    _
  $region61: #{discriminator_forward.1} parent=0 // pred_fallthru
    _
  // Predicated region
  $region62: #{discriminator_forward.1} parent=0 // pred_check
    _
  $region63: #{discriminator_forward.1} parent=0 // pred_check_branch
    %58 = sbr.rel (0) target = $region65
  $region64: #{discriminator_forward.1} parent=0 // pred_region
    _
  $region65: #{discriminator_forward.1} parent=0 // pred_fallthru
    _
  // Predicated region
  $region66: #{discriminator_forward.1} parent=0 // pred_check
    _
  $region67: #{discriminator_forward.1} parent=0 // pred_check_branch
    %60 = sbr.rel (0) target = $region69
  $region68: #{discriminator_forward.1} parent=0 // pred_region
    _
  $region69: #{discriminator_forward.1} parent=0 // pred_fallthru
    _
  // Predicated region
  $region70: #{discriminator_forward.1} parent=0 // pred_check
    _
  $region71: #{discriminator_forward.1} parent=0 // pred_check_branch
    %62 = sbr.rel (0) target = $region73
  $region72: #{discriminator_forward.1} parent=0 // pred_region
    _
  $region73: #{discriminator_forward.1} parent=0 // pred_fallthru
    _
  // Predicated region
  $region74: #{discriminator_forward.1} parent=0 // pred_check
    _
  $region75: #{discriminator_forward.1} parent=0 // pred_check_branch
    %64 = sbr.rel (0) target = $region77
  $region76: #{discriminator_forward.1} parent=0 // pred_region
    _
  $region77: #{discriminator_forward.1} parent=0 // pred_fallthru
    _
  // Predicated region
  $region78: #{discriminator_forward.1} parent=0 // pred_check
    _
  $region79: #{discriminator_forward.1} parent=0 // pred_check_branch
    %66 = sbr.rel (0) target = $region81
  $region80: #{discriminator_forward.1} parent=0 // pred_region
    _
  $region81: #{discriminator_forward.1} parent=0 // pred_fallthru
    _
  %v67 = vld [vmem:[%s0] sm:$0xff]
  %v68 = vld [vmem:[%s0 + $0x8] sm:$0xff]
  %v69 = vld [vmem:[%s0 + $0x10] sm:$0xff]
  %v70 = vld [vmem:[%s0 + $0x18] sm:$0xff]
  %v71 = vld [vmem:[%s0 + $0x20] sm:$0xff]
  %v72 = vld [vmem:[%s0 + $0x28] sm:$0xff]
  %v73 = vld [vmem:[%s0 + $0x30] sm:$0xff]
  %v74 = vld [vmem:[%s0 + $0x38] sm:$0xff]
  %v75 = vld [vmem:[%s0 + $0x40] sm:$0xff]
  %v76 = vld [vmem:[%s0 + $0x48] sm:$0xff]
  %v77 = vld [vmem:[%s0 + $0x50] sm:$0xff]
  %v78 = vld [vmem:[%s0 + $0x58] sm:$0xff]
  %v79 = vld [vmem:[%s0 + $0x60] sm:$0xff]
  %v80 = vld [vmem:[%s0 + $0x68] sm:$0xff]
  %v81 = vld [vmem:[%s0 + $0x70] sm:$0xff]
  %v82 = vld [vmem:[%s0 + $0x78] sm:$0xff]
  %v83 = vld [vmem:[%s0 + $0x80] sm:$0xff]
  %v84 = vld [vmem:[%s0 + $0x88] sm:$0xff]
  %v85 = vld [vmem:[%s0 + $0x90] sm:$0xff]
  %v86 = vld [vmem:[%s0 + $0x98] sm:$0xff]
  %v87 = vld [vmem:[%s0 + $0xa0] sm:$0xff]
  %v88 = vld [vmem:[%s0 + $0xa8] sm:$0xff]
  %v89 = vld [vmem:[%s0 + $0xb0] sm:$0xff]
  %v90 = vld [vmem:[%s0 + $0xb8] sm:$0xff]
  %v91 = vld [vmem:[%s0 + $0xc0] sm:$0xff]
  %v92 = vld [vmem:[%s1] sm:$0xff]
  %v93 = vld [vmem:[%s1 + $0x8] sm:$0xff]
  %v94 = vld [vmem:[%s1 + $0x10] sm:$0xff]
  %v95 = vld [vmem:[%s1 + $0x18] sm:$0xff]
  %v96 = vld [vmem:[%s1 + $0x20] sm:$0xff]
  %v97 = vld [vmem:[%s1 + $0x28] sm:$0xff]
  %v98 = vld [vmem:[%s1 + $0x30] sm:$0xff]
  %v99 = vld [vmem:[%s1 + $0x38] sm:$0xff]
  %v100 = vld [vmem:[%s1 + $0x40] sm:$0xff]
  %v101 = vld [vmem:[%s1 + $0x48] sm:$0xff]
  %v102 = vld [vmem:[%s1 + $0x50] sm:$0xff]
  %v103 = vld [vmem:[%s1 + $0x58] sm:$0xff]
  %v104 = vld [vmem:[%s1 + $0x60] sm:$0xff]
  %v105 = vld [vmem:[%s1 + $0x68] sm:$0xff]
  %v106 = vld [vmem:[%s1 + $0x70] sm:$0xff]
  %v107 = vld [vmem:[%s1 + $0x78] sm:$0xff]
  %v108 = vld [vmem:[%s1 + $0x80] sm:$0xff]
  %v109 = vld [vmem:[%s1 + $0x88] sm:$0xff]
  %v110 = vld [vmem:[%s1 + $0x90] sm:$0xff]
  %v111 = vld [vmem:[%s1 + $0x98] sm:$0xff]
  %v112 = vld [vmem:[%s1 + $0xa0] sm:$0xff]
  %v113 = vld [vmem:[%s1 + $0xa8] sm:$0xff]
  %v114 = vld [vmem:[%s1 + $0xb0] sm:$0xff]
  %v115 = vld [vmem:[%s1 + $0xb8] sm:$0xff]
  %v116 = vld [vmem:[%s1 + $0xc0] sm:$0xff]
  %v117 = vld [vmem:[%s1 + $0xc8] sm:$0xff]
  %v118 = vld [vmem:[%s1 + $0xd0] sm:$0xff]
  %v119 = vld [vmem:[%s1 + $0xd8] sm:$0xff]
  %v120 = vld [vmem:[%s1 + $0xe0] sm:$0xff]
  %v121 = vld [vmem:[%s1 + $0xe8] sm:$0xff]
  %v122 = vld [vmem:[%s1 + $0xf0] sm:$0xff]
  %v123 = vld [vmem:[%s1 + $0xf8] sm:$0xff]
  %vm124 = vcmask 588800
  %v126 = vsel %vm124, %v93, 0
  %v129 = vsel %vm124, %v95, 0
  %v132 = vsel %vm124, %v97, 0
  %v135 = vsel %vm124, %v99, 0
  %v138 = vsel %vm124, %v101, 0
  %v141 = vsel %vm124, %v103, 0
  %v144 = vsel %vm124, %v105, 0
  %v147 = vsel %vm124, %v107, 0
  %v150 = vsel %vm124, %v109, 0
  %v153 = vsel %vm124, %v111, 0
  %v156 = vsel %vm124, %v113, 0
  %v159 = vsel %vm124, %v115, 0
  %v162 = vsel %vm124, %v117, 0
  %v165 = vsel %vm124, %v119, 0
  %v168 = vsel %vm124, %v121, 0
  %v171 = vsel %vm124, %v123, 0
  %173 = vmatprep.subr.mxu0 0.0
  %174 = vmatpush1.msra.mxu0 %v67
  %175 = vmatprep.subr.mxu0 0.0
  %176 = vmatpush1.msra.mxu0 %v68
  %177 = vmatprep.subr.mxu0 0.0
  %178 = vmatpush1.msra.mxu0 %v69
  %179 = vmatprep.subr.mxu0 0.0
  %180 = vmatpush1.msra.mxu0 %v70
  %181 = vmatprep.subr.mxu0 0.0
  %182 = vmatpush1.msra.mxu0 %v71
  %183 = vmatprep.subr.mxu0 0.0
  %184 = vmatpush1.msra.mxu0 %v72
  %185 = vmatprep.subr.mxu0 0.0
  %186 = vmatpush1.msra.mxu0 %v73
  %187 = vmatprep.subr.mxu0 0.0
  %188 = vmatpush1.msra.mxu0 %v74
  %189 = vmatprep.subr.mxu0 0.0
  %190 = vmatpush1.msra.mxu0 %v75
  %191 = vmatprep.subr.mxu0 0.0
  %192 = vmatpush1.msra.mxu0 %v76
  %193 = vmatprep.subr.mxu0 0.0
  %194 = vmatpush1.msra.mxu0 %v77
  %195 = vmatprep.subr.mxu0 0.0
  %196 = vmatpush1.msra.mxu0 %v78
  %197 = vmatprep.subr.mxu0 0.0
  %198 = vmatpush1.msra.mxu0 %v79
  %199 = vmatprep.subr.mxu0 0.0
  %200 = vmatpush1.msra.mxu0 %v80
  %201 = vmatprep.subr.mxu0 0.0
  %202 = vmatpush1.msra.mxu0 %v81
  %203 = vmatprep.subr.mxu0 0.0
  %204 = vmatpush1.msra.mxu0 %v82
  %205 = vmatprep.subr.mxu0 0.0
  %206 = vmatpush1.msra.mxu0 %v83
  %207 = vmatprep.subr.mxu0 0.0
  %208 = vmatpush1.msra.mxu0 %v84
  %209 = vmatprep.subr.mxu0 0.0
  %210 = vmatpush1.msra.mxu0 %v85
  %211 = vmatprep.subr.mxu0 0.0
  %212 = vmatpush1.msra.mxu0 %v86
  %213 = vmatprep.subr.mxu0 0.0
  %214 = vmatpush1.msra.mxu0 %v87
  %215 = vmatprep.subr.mxu0 0.0
  %216 = vmatpush1.msra.mxu0 %v88
  %217 = vmatprep.subr.mxu0 0.0
  %218 = vmatpush1.msra.mxu0 %v89
  %219 = vmatprep.subr.mxu0 0.0
  %220 = vmatpush1.msra.mxu0 %v90
  %221 = vmatprep.subr.mxu0 0.0
  %222 = vmatpush1.msra.mxu0 %v91
  %223 = vmatprep.subr.mxu0 0.0
  %224 = vmatpush1.msra.mxu0 0.0
  %225 = vmatprep.subr.mxu0 0.0
  %226 = vmatpush1.msra.mxu0 0.0
  %227 = vmatprep.subr.mxu0 0.0
  %228 = vmatpush1.msra.mxu0 0.0
  %229 = vmatprep.subr.mxu0 0.0
  %230 = vmatpush1.msra.mxu0 0.0
  %231 = vmatprep.subr.mxu0 0.0
  %232 = vmatpush1.msra.mxu0 0.0
  %233 = vmatprep.subr.mxu0 0.0
  %234 = vmatpush1.msra.mxu0 0.0
  %235 = vmatprep.subr.mxu0 0.0
  %236 = vmatpush1.msra.mxu0 0.0
  %237 = vmatprep.mubr.f32.mxu0 %v126
  %238 = vmatmul.mubr.f32.gmra.mrb[0].mxu0 %v92
  %v239 = vpop.f32.mrb[0].mxu0
  %v240 = vadd.f32 0.0, %v239
  %v241 = vpop.f32.mrb[0].mxu0
  %242 = vmatprep.mubr.f32.mxu0 %v129
  %243 = vmatmul.mubr.f32.gmra.mrb[0].mxu0 %v94
  %v244 = vpop.f32.mrb[0].mxu0
  %v245 = vadd.f32 0.0, %v244
  %v246 = vpop.f32.mrb[0].mxu0
  %247 = vmatprep.mubr.f32.mxu0 %v132
  %248 = vmatmul.mubr.f32.gmra.mrb[0].mxu0 %v96
  %v249 = vpop.f32.mrb[0].mxu0
  %v250 = vadd.f32 0.0, %v249
  %v251 = vpop.f32.mrb[0].mxu0
  %252 = vmatprep.mubr.f32.mxu0 %v135
  %253 = vmatmul.mubr.f32.gmra.mrb[0].mxu0 %v98
  %v254 = vpop.f32.mrb[0].mxu0
  %v255 = vadd.f32 0.0, %v254
  %v256 = vpop.f32.mrb[0].mxu0
  %257 = vmatprep.mubr.f32.mxu0 %v138
  %258 = vmatmul.mubr.f32.gmra.mrb[0].mxu0 %v100
  %v259 = vpop.f32.mrb[0].mxu0
  %v260 = vadd.f32 0.0, %v259
  %v261 = vpop.f32.mrb[0].mxu0
  %262 = vmatprep.mubr.f32.mxu0 %v141
  %263 = vmatmul.mubr.f32.gmra.mrb[0].mxu0 %v102
  %v264 = vpop.f32.mrb[0].mxu0
  %v265 = vadd.f32 0.0, %v264
  %v266 = vpop.f32.mrb[0].mxu0
  %267 = vmatprep.mubr.f32.mxu0 %v144
  %268 = vmatmul.mubr.f32.gmra.mrb[0].mxu0 %v104
  %v269 = vpop.f32.mrb[0].mxu0
  %v270 = vadd.f32 0.0, %v269
  %v271 = vpop.f32.mrb[0].mxu0
  %272 = vmatprep.mubr.f32.mxu0 %v147
  %273 = vmatmul.mubr.f32.gmra.mrb[0].mxu0 %v106
  %v274 = vpop.f32.mrb[0].mxu0
  %v275 = vadd.f32 0.0, %v274
  %v276 = vpop.f32.mrb[0].mxu0
  %277 = vmatprep.mubr.f32.mxu0 %v150
  %278 = vmatmul.mubr.f32.gmra.mrb[0].mxu0 %v108
  %v279 = vpop.f32.mrb[0].mxu0
  %v280 = vadd.f32 0.0, %v279
  %v281 = vpop.f32.mrb[0].mxu0
  %282 = vmatprep.mubr.f32.mxu0 %v153
  %283 = vmatmul.mubr.f32.gmra.mrb[0].mxu0 %v110
  %v284 = vpop.f32.mrb[0].mxu0
  %v285 = vadd.f32 0.0, %v284
  %v286 = vpop.f32.mrb[0].mxu0
  %287 = vmatprep.mubr.f32.mxu0 %v156
  %288 = vmatmul.mubr.f32.gmra.mrb[0].mxu0 %v112
  %v289 = vpop.f32.mrb[0].mxu0
  %v290 = vadd.f32 0.0, %v289
  %v291 = vpop.f32.mrb[0].mxu0
  %292 = vmatprep.mubr.f32.mxu0 %v159
  %293 = vmatmul.mubr.f32.gmra.mrb[0].mxu0 %v114
  %v294 = vpop.f32.mrb[0].mxu0
  %v295 = vadd.f32 0.0, %v294
  %v296 = vpop.f32.mrb[0].mxu0
  %297 = vmatprep.mubr.f32.mxu0 %v162
  %298 = vmatmul.mubr.f32.gmra.mrb[0].mxu0 %v116
  %v299 = vpop.f32.mrb[0].mxu0
  %v300 = vadd.f32 0.0, %v299
  %v301 = vpop.f32.mrb[0].mxu0
  %302 = vmatprep.mubr.f32.mxu0 %v165
  %303 = vmatmul.mubr.f32.gmra.mrb[0].mxu0 %v118
  %v304 = vpop.f32.mrb[0].mxu0
  %v305 = vadd.f32 0.0, %v304
  %v306 = vpop.f32.mrb[0].mxu0
  %307 = vmatprep.mubr.f32.mxu0 %v168
  %308 = vmatmul.mubr.f32.gmra.mrb[0].mxu0 %v120
  %v309 = vpop.f32.mrb[0].mxu0
  %v310 = vadd.f32 0.0, %v309
  %v311 = vpop.f32.mrb[0].mxu0
  %312 = vmatprep.mubr.f32.mxu0 %v171
  %313 = vmatmul.mubr.f32.gmra.mrb[0].mxu0 %v122
  %v314 = vpop.f32.mrb[0].mxu0
  %v315 = vadd.f32 0.0, %v314
  %v316 = vpop.f32.mrb[0].mxu0
  %317 = vdwg.mxu0
  %v318 = vld [vmem:[%s2] sm:$0x1]
  %320 = vset.pattern.permute.xlu0 0
  %321 = vperm.xlu0 %320, %v240
  %v322 = vpop.permute.xlu0 %321
  %325 = vset.pattern.permute.xlu0 0
  %326 = vperm.xlu0 %325, %v245
  %v327 = vpop.permute.xlu0 %326
  %330 = vset.pattern.permute.xlu0 0
  %331 = vperm.xlu0 %330, %v250
  %v332 = vpop.permute.xlu0 %331
  %335 = vset.pattern.permute.xlu0 0
  %336 = vperm.xlu0 %335, %v255
  %v337 = vpop.permute.xlu0 %336
  %340 = vset.pattern.permute.xlu0 0
  %341 = vperm.xlu0 %340, %v260
  %v342 = vpop.permute.xlu0 %341
  %345 = vset.pattern.permute.xlu0 0
  %346 = vperm.xlu0 %345, %v265
  %v347 = vpop.permute.xlu0 %346
  %350 = vset.pattern.permute.xlu0 0
  %351 = vperm.xlu0 %350, %v270
  %v352 = vpop.permute.xlu0 %351
  %355 = vset.pattern.permute.xlu0 0
  %356 = vperm.xlu0 %355, %v275
  %v357 = vpop.permute.xlu0 %356
  %360 = vset.pattern.permute.xlu0 0
  %361 = vperm.xlu0 %360, %v280
  %v362 = vpop.permute.xlu0 %361
  %365 = vset.pattern.permute.xlu0 0
  %366 = vperm.xlu0 %365, %v285
  %v367 = vpop.permute.xlu0 %366
  %370 = vset.pattern.permute.xlu0 0
  %371 = vperm.xlu0 %370, %v290
  %v372 = vpop.permute.xlu0 %371
  %375 = vset.pattern.permute.xlu0 0
  %376 = vperm.xlu0 %375, %v295
  %v377 = vpop.permute.xlu0 %376
  %380 = vset.pattern.permute.xlu0 0
  %381 = vperm.xlu0 %380, %v300
  %v382 = vpop.permute.xlu0 %381
  %385 = vset.pattern.permute.xlu0 0
  %386 = vperm.xlu0 %385, %v305
  %v387 = vpop.permute.xlu0 %386
  %390 = vset.pattern.permute.xlu0 0
  %391 = vperm.xlu0 %390, %v310
  %v392 = vpop.permute.xlu0 %391
  %395 = vset.pattern.permute.xlu0 0
  %396 = vperm.xlu0 %395, %v315
  %v397 = vpop.permute.xlu0 %396
  %v400 = vlaneseq
  %v401 = vshrl.u32 %v400, 7
  %v402 = vsub.s32 0, %v401
  %v403 = vrot.slane %v318, %v402
  %v405 = vmul.f32 %v322, %v403
  %v406 = vmul.f32 %v327, %v403
  %v407 = vmul.f32 %v332, %v403
  %v408 = vmul.f32 %v337, %v403
  %v409 = vmul.f32 %v342, %v403
  %v410 = vmul.f32 %v347, %v403
  %v411 = vmul.f32 %v352, %v403
  %v412 = vmul.f32 %v357, %v403
  %v413 = vmul.f32 %v362, %v403
  %v414 = vmul.f32 %v367, %v403
  %v415 = vmul.f32 %v372, %v403
  %v416 = vmul.f32 %v377, %v403
  %v417 = vmul.f32 %v382, %v403
  %v418 = vmul.f32 %v387, %v403
  %v419 = vmul.f32 %v392, %v403
  %v420 = vmul.f32 %v397, %v403
  %v421 = vadd.f32 %v405, 0.0
  %v422 = vadd.f32 %v406, 0.0
  %v423 = vadd.f32 %v407, 0.0
  %v424 = vadd.f32 %v408, 0.0
  %v425 = vadd.f32 %v409, 0.0
  %v426 = vadd.f32 %v410, 0.0
  %v427 = vadd.f32 %v411, 0.0
  %v428 = vadd.f32 %v412, 0.0
  %v429 = vadd.f32 %v413, 0.0
  %v430 = vadd.f32 %v414, 0.0
  %v431 = vadd.f32 %v415, 0.0
  %v432 = vadd.f32 %v416, 0.0
  %v433 = vadd.f32 %v417, 0.0
  %v434 = vadd.f32 %v418, 0.0
  %v435 = vadd.f32 %v419, 0.0
  %v436 = vadd.f32 %v420, 0.0
  %s437 = scalar_lea.vmem %s1, 256
  %v438 = vld [vmem:[%s437] sm:$0xff]
  %v439 = vld [vmem:[%s437 + $0x8] sm:$0xff]
  %v440 = vld [vmem:[%s437 + $0x10] sm:$0xff]
  %v441 = vld [vmem:[%s437 + $0x18] sm:$0xff]
  %v442 = vld [vmem:[%s437 + $0x20] sm:$0xff]
  %v443 = vld [vmem:[%s437 + $0x28] sm:$0xff]
  %v444 = vld [vmem:[%s437 + $0x30] sm:$0xff]
  %v445 = vld [vmem:[%s437 + $0x38] sm:$0xff]
  %v446 = vld [vmem:[%s437 + $0x40] sm:$0xff]
  %v447 = vld [vmem:[%s437 + $0x48] sm:$0xff]
  %v448 = vld [vmem:[%s437 + $0x50] sm:$0xff]
  %v449 = vld [vmem:[%s437 + $0x58] sm:$0xff]
  %v450 = vld [vmem:[%s437 + $0x60] sm:$0xff]
  %v451 = vld [vmem:[%s437 + $0x68] sm:$0xff]
  %v452 = vld [vmem:[%s437 + $0x70] sm:$0xff]
  %v453 = vld [vmem:[%s437 + $0x78] sm:$0xff]
  %v454 = vld [vmem:[%s437 + $0x80] sm:$0xff]
  %v455 = vld [vmem:[%s437 + $0x88] sm:$0xff]
  %v456 = vld [vmem:[%s437 + $0x90] sm:$0xff]
  %v457 = vld [vmem:[%s437 + $0x98] sm:$0xff]
  %v458 = vld [vmem:[%s437 + $0xa0] sm:$0xff]
  %v459 = vld [vmem:[%s437 + $0xa8] sm:$0xff]
  %v460 = vld [vmem:[%s437 + $0xb0] sm:$0xff]
  %v461 = vld [vmem:[%s437 + $0xb8] sm:$0xff]
  %v462 = vld [vmem:[%s437 + $0xc0] sm:$0xff]
  %v463 = vld [vmem:[%s437 + $0xc8] sm:$0xff]
  %v464 = vld [vmem:[%s437 + $0xd0] sm:$0xff]
  %v465 = vld [vmem:[%s437 + $0xd8] sm:$0xff]
  %v466 = vld [vmem:[%s437 + $0xe0] sm:$0xff]
  %v467 = vld [vmem:[%s437 + $0xe8] sm:$0xff]
  %v468 = vld [vmem:[%s437 + $0xf0] sm:$0xff]
  %v469 = vld [vmem:[%s437 + $0xf8] sm:$0xff]
  %v471 = vsel %vm124, %v439, 0
  %v474 = vsel %vm124, %v441, 0
  %v477 = vsel %vm124, %v443, 0
  %v480 = vsel %vm124, %v445, 0
  %v483 = vsel %vm124, %v447, 0
  %v486 = vsel %vm124, %v449, 0
  %v489 = vsel %vm124, %v451, 0
  %v492 = vsel %vm124, %v453, 0
  %v495 = vsel %vm124, %v455, 0
  %v498 = vsel %vm124, %v457, 0
  %v501 = vsel %vm124, %v459, 0
  %v504 = vsel %vm124, %v461, 0
  %v507 = vsel %vm124, %v463, 0
  %v510 = vsel %vm124, %v465, 0
  %v513 = vsel %vm124, %v467, 0
  %v516 = vsel %vm124, %v469, 0
  %518 = vmatprep.subr.mxu0 0.0
  %519 = vmatpush1.msra.mxu0 %v67
  %520 = vmatprep.subr.mxu0 0.0
  %521 = vmatpush1.msra.mxu0 %v68
  %522 = vmatprep.subr.mxu0 0.0
  %523 = vmatpush1.msra.mxu0 %v69
  %524 = vmatprep.subr.mxu0 0.0
  %525 = vmatpush1.msra.mxu0 %v70
  %526 = vmatprep.subr.mxu0 0.0
  %527 = vmatpush1.msra.mxu0 %v71
  %528 = vmatprep.subr.mxu0 0.0
  %529 = vmatpush1.msra.mxu0 %v72
  %530 = vmatprep.subr.mxu0 0.0
  %531 = vmatpush1.msra.mxu0 %v73
  %532 = vmatprep.subr.mxu0 0.0
  %533 = vmatpush1.msra.mxu0 %v74
  %534 = vmatprep.subr.mxu0 0.0
  %535 = vmatpush1.msra.mxu0 %v75
  %536 = vmatprep.subr.mxu0 0.0
  %537 = vmatpush1.msra.mxu0 %v76
  %538 = vmatprep.subr.mxu0 0.0
  %539 = vmatpush1.msra.mxu0 %v77
  %540 = vmatprep.subr.mxu0 0.0
  %541 = vmatpush1.msra.mxu0 %v78
  %542 = vmatprep.subr.mxu0 0.0
  %543 = vmatpush1.msra.mxu0 %v79
  %544 = vmatprep.subr.mxu0 0.0
  %545 = vmatpush1.msra.mxu0 %v80
  %546 = vmatprep.subr.mxu0 0.0
  %547 = vmatpush1.msra.mxu0 %v81
  %548 = vmatprep.subr.mxu0 0.0
  %549 = vmatpush1.msra.mxu0 %v82
  %550 = vmatprep.subr.mxu0 0.0
  %551 = vmatpush1.msra.mxu0 %v83
  %552 = vmatprep.subr.mxu0 0.0
  %553 = vmatpush1.msra.mxu0 %v84
  %554 = vmatprep.subr.mxu0 0.0
  %555 = vmatpush1.msra.mxu0 %v85
  %556 = vmatprep.subr.mxu0 0.0
  %557 = vmatpush1.msra.mxu0 %v86
  %558 = vmatprep.subr.mxu0 0.0
  %559 = vmatpush1.msra.mxu0 %v87
  %560 = vmatprep.subr.mxu0 0.0
  %561 = vmatpush1.msra.mxu0 %v88
  %562 = vmatprep.subr.mxu0 0.0
  %563 = vmatpush1.msra.mxu0 %v89
  %564 = vmatprep.subr.mxu0 0.0
  %565 = vmatpush1.msra.mxu0 %v90
  %566 = vmatprep.subr.mxu0 0.0
  %567 = vmatpush1.msra.mxu0 %v91
  %568 = vmatprep.subr.mxu0 0.0
  %569 = vmatpush1.msra.mxu0 0.0
  %570 = vmatprep.subr.mxu0 0.0
  %571 = vmatpush1.msra.mxu0 0.0
  %572 = vmatprep.subr.mxu0 0.0
  %573 = vmatpush1.msra.mxu0 0.0
  %574 = vmatprep.subr.mxu0 0.0
  %575 = vmatpush1.msra.mxu0 0.0
  %576 = vmatprep.subr.mxu0 0.0
  %577 = vmatpush1.msra.mxu0 0.0
  %578 = vmatprep.subr.mxu0 0.0
  %579 = vmatpush1.msra.mxu0 0.0
  %580 = vmatprep.subr.mxu0 0.0
  %581 = vmatpush1.msra.mxu0 0.0
  %582 = vmatprep.mubr.f32.mxu0 %v471
  %583 = vmatmul.mubr.f32.gmra.mrb[0].mxu0 %v438
  %v584 = vpop.f32.mrb[0].mxu0
  %v585 = vadd.f32 0.0, %v584
  %v586 = vpop.f32.mrb[0].mxu0
  %587 = vmatprep.mubr.f32.mxu0 %v474
  %588 = vmatmul.mubr.f32.gmra.mrb[0].mxu0 %v440
  %v589 = vpop.f32.mrb[0].mxu0
  %v590 = vadd.f32 0.0, %v589
  %v591 = vpop.f32.mrb[0].mxu0
  %592 = vmatprep.mubr.f32.mxu0 %v477
  %593 = vmatmul.mubr.f32.gmra.mrb[0].mxu0 %v442
  %v594 = vpop.f32.mrb[0].mxu0
  %v595 = vadd.f32 0.0, %v594
  %v596 = vpop.f32.mrb[0].mxu0
  %597 = vmatprep.mubr.f32.mxu0 %v480
  %598 = vmatmul.mubr.f32.gmra.mrb[0].mxu0 %v444
  %v599 = vpop.f32.mrb[0].mxu0
  %v600 = vadd.f32 0.0, %v599
  %v601 = vpop.f32.mrb[0].mxu0
  %602 = vmatprep.mubr.f32.mxu0 %v483
  %603 = vmatmul.mubr.f32.gmra.mrb[0].mxu0 %v446
  %v604 = vpop.f32.mrb[0].mxu0
  %v605 = vadd.f32 0.0, %v604
  %v606 = vpop.f32.mrb[0].mxu0
  %607 = vmatprep.mubr.f32.mxu0 %v486
  %608 = vmatmul.mubr.f32.gmra.mrb[0].mxu0 %v448
  %v609 = vpop.f32.mrb[0].mxu0
  %v610 = vadd.f32 0.0, %v609
  %v611 = vpop.f32.mrb[0].mxu0
  %612 = vmatprep.mubr.f32.mxu0 %v489
  %613 = vmatmul.mubr.f32.gmra.mrb[0].mxu0 %v450
  %v614 = vpop.f32.mrb[0].mxu0
  %v615 = vadd.f32 0.0, %v614
  %v616 = vpop.f32.mrb[0].mxu0
  %617 = vmatprep.mubr.f32.mxu0 %v492
  %618 = vmatmul.mubr.f32.gmra.mrb[0].mxu0 %v452
  %v619 = vpop.f32.mrb[0].mxu0
  %v620 = vadd.f32 0.0, %v619
  %v621 = vpop.f32.mrb[0].mxu0
  %622 = vmatprep.mubr.f32.mxu0 %v495
  %623 = vmatmul.mubr.f32.gmra.mrb[0].mxu0 %v454
  %v624 = vpop.f32.mrb[0].mxu0
  %v625 = vadd.f32 0.0, %v624
  %v626 = vpop.f32.mrb[0].mxu0
  %627 = vmatprep.mubr.f32.mxu0 %v498
  %628 = vmatmul.mubr.f32.gmra.mrb[0].mxu0 %v456
  %v629 = vpop.f32.mrb[0].mxu0
  %v630 = vadd.f32 0.0, %v629
  %v631 = vpop.f32.mrb[0].mxu0
  %632 = vmatprep.mubr.f32.mxu0 %v501
  %633 = vmatmul.mubr.f32.gmra.mrb[0].mxu0 %v458
  %v634 = vpop.f32.mrb[0].mxu0
  %v635 = vadd.f32 0.0, %v634
  %v636 = vpop.f32.mrb[0].mxu0
  %637 = vmatprep.mubr.f32.mxu0 %v504
  %638 = vmatmul.mubr.f32.gmra.mrb[0].mxu0 %v460
  %v639 = vpop.f32.mrb[0].mxu0
  %v640 = vadd.f32 0.0, %v639
  %v641 = vpop.f32.mrb[0].mxu0
  %642 = vmatprep.mubr.f32.mxu0 %v507
  %643 = vmatmul.mubr.f32.gmra.mrb[0].mxu0 %v462
  %v644 = vpop.f32.mrb[0].mxu0
  %v645 = vadd.f32 0.0, %v644
  %v646 = vpop.f32.mrb[0].mxu0
  %647 = vmatprep.mubr.f32.mxu0 %v510
  %648 = vmatmul.mubr.f32.gmra.mrb[0].mxu0 %v464
  %v649 = vpop.f32.mrb[0].mxu0
  %v650 = vadd.f32 0.0, %v649
  %v651 = vpop.f32.mrb[0].mxu0
  %652 = vmatprep.mubr.f32.mxu0 %v513
  %653 = vmatmul.mubr.f32.gmra.mrb[0].mxu0 %v466
  %v654 = vpop.f32.mrb[0].mxu0
  %v655 = vadd.f32 0.0, %v654
  %v656 = vpop.f32.mrb[0].mxu0
  %657 = vmatprep.mubr.f32.mxu0 %v516
  %658 = vmatmul.mubr.f32.gmra.mrb[0].mxu0 %v468
  %v659 = vpop.f32.mrb[0].mxu0
  %v660 = vadd.f32 0.0, %v659
  %v661 = vpop.f32.mrb[0].mxu0
  %662 = vdwg.mxu0
  %s663 = scalar_lea.vmem %s2, 1
  %v664 = vld [vmem:[%s663] sm:$0x1]
  %666 = vset.pattern.permute.xlu0 0
  %667 = vperm.xlu0 %666, %v585
  %v668 = vpop.permute.xlu0 %667
  %671 = vset.pattern.permute.xlu0 0
  %672 = vperm.xlu0 %671, %v590
  %v673 = vpop.permute.xlu0 %672
  %676 = vset.pattern.permute.xlu0 0
  %677 = vperm.xlu0 %676, %v595
  %v678 = vpop.permute.xlu0 %677
  %681 = vset.pattern.permute.xlu0 0
  %682 = vperm.xlu0 %681, %v600
  %v683 = vpop.permute.xlu0 %682
  %686 = vset.pattern.permute.xlu0 0
  %687 = vperm.xlu0 %686, %v605
  %v688 = vpop.permute.xlu0 %687
  %691 = vset.pattern.permute.xlu0 0
  %692 = vperm.xlu0 %691, %v610
  %v693 = vpop.permute.xlu0 %692
  %696 = vset.pattern.permute.xlu0 0
  %697 = vperm.xlu0 %696, %v615
  %v698 = vpop.permute.xlu0 %697
  %701 = vset.pattern.permute.xlu0 0
  %702 = vperm.xlu0 %701, %v620
  %v703 = vpop.permute.xlu0 %702
  %706 = vset.pattern.permute.xlu0 0
  %707 = vperm.xlu0 %706, %v625
  %v708 = vpop.permute.xlu0 %707
  %711 = vset.pattern.permute.xlu0 0
  %712 = vperm.xlu0 %711, %v630
  %v713 = vpop.permute.xlu0 %712
  %716 = vset.pattern.permute.xlu0 0
  %717 = vperm.xlu0 %716, %v635
  %v718 = vpop.permute.xlu0 %717
  %721 = vset.pattern.permute.xlu0 0
  %722 = vperm.xlu0 %721, %v640
  %v723 = vpop.permute.xlu0 %722
  %726 = vset.pattern.permute.xlu0 0
  %727 = vperm.xlu0 %726, %v645
  %v728 = vpop.permute.xlu0 %727
  %731 = vset.pattern.permute.xlu0 0
  %732 = vperm.xlu0 %731, %v650
  %v733 = vpop.permute.xlu0 %732
  %736 = vset.pattern.permute.xlu0 0
  %737 = vperm.xlu0 %736, %v655
  %v738 = vpop.permute.xlu0 %737
  %741 = vset.pattern.permute.xlu0 0
  %742 = vperm.xlu0 %741, %v660
  %v743 = vpop.permute.xlu0 %742
  %v746 = vlaneseq
  %v747 = vshrl.u32 %v746, 7
  %v748 = vsub.s32 0, %v747
  %v749 = vrot.slane %v664, %v748
  %v751 = vmul.f32 %v668, %v749
  %v752 = vmul.f32 %v673, %v749
  %v753 = vmul.f32 %v678, %v749
  %v754 = vmul.f32 %v683, %v749
  %v755 = vmul.f32 %v688, %v749
  %v756 = vmul.f32 %v693, %v749
  %v757 = vmul.f32 %v698, %v749
  %v758 = vmul.f32 %v703, %v749
  %v759 = vmul.f32 %v708, %v749
  %v760 = vmul.f32 %v713, %v749
  %v761 = vmul.f32 %v718, %v749
  %v762 = vmul.f32 %v723, %v749
  %v763 = vmul.f32 %v728, %v749
  %v764 = vmul.f32 %v733, %v749
  %v765 = vmul.f32 %v738, %v749
  %v766 = vmul.f32 %v743, %v749
  %v767 = vadd.f32 %v421, %v751
  %v768 = vadd.f32 %v422, %v752
  %v769 = vadd.f32 %v423, %v753
  %v770 = vadd.f32 %v424, %v754
  %v771 = vadd.f32 %v425, %v755
  %v772 = vadd.f32 %v426, %v756
  %v773 = vadd.f32 %v427, %v757
  %v774 = vadd.f32 %v428, %v758
  %v775 = vadd.f32 %v429, %v759
  %v776 = vadd.f32 %v430, %v760
  %v777 = vadd.f32 %v431, %v761
  %v778 = vadd.f32 %v432, %v762
  %v779 = vadd.f32 %v433, %v763
  %v780 = vadd.f32 %v434, %v764
  %v781 = vadd.f32 %v435, %v765
  %v782 = vadd.f32 %v436, %v766
  %s783 = scalar_lea.vmem %s1, 512
  %v784 = vld [vmem:[%s783] sm:$0xff]
  %v785 = vld [vmem:[%s783 + $0x8] sm:$0xff]
  %v786 = vld [vmem:[%s783 + $0x10] sm:$0xff]
  %v787 = vld [vmem:[%s783 + $0x18] sm:$0xff]
  %v788 = vld [vmem:[%s783 + $0x20] sm:$0xff]
  %v789 = vld [vmem:[%s783 + $0x28] sm:$0xff]
  %v790 = vld [vmem:[%s783 + $0x30] sm:$0xff]
  %v791 = vld [vmem:[%s783 + $0x38] sm:$0xff]
  %v792 = vld [vmem:[%s783 + $0x40] sm:$0xff]
  %v793 = vld [vmem:[%s783 + $0x48] sm:$0xff]
  %v794 = vld [vmem:[%s783 + $0x50] sm:$0xff]
  %v795 = vld [vmem:[%s783 + $0x58] sm:$0xff]
  %v796 = vld [vmem:[%s783 + $0x60] sm:$0xff]
  %v797 = vld [vmem:[%s783 + $0x68] sm:$0xff]
  %v798 = vld [vmem:[%s783 + $0x70] sm:$0xff]
  %v799 = vld [vmem:[%s783 + $0x78] sm:$0xff]
  %v800 = vld [vmem:[%s783 + $0x80] sm:$0xff]
  %v801 = vld [vmem:[%s783 + $0x88] sm:$0xff]
  %v802 = vld [vmem:[%s783 + $0x90] sm:$0xff]
  %v803 = vld [vmem:[%s783 + $0x98] sm:$0xff]
  %v804 = vld [vmem:[%s783 + $0xa0] sm:$0xff]
  %v805 = vld [vmem:[%s783 + $0xa8] sm:$0xff]
  %v806 = vld [vmem:[%s783 + $0xb0] sm:$0xff]
  %v807 = vld [vmem:[%s783 + $0xb8] sm:$0xff]
  %v808 = vld [vmem:[%s783 + $0xc0] sm:$0xff]
  %v809 = vld [vmem:[%s783 + $0xc8] sm:$0xff]
  %v810 = vld [vmem:[%s783 + $0xd0] sm:$0xff]
  %v811 = vld [vmem:[%s783 + $0xd8] sm:$0xff]
  %v812 = vld [vmem:[%s783 + $0xe0] sm:$0xff]
  %v813 = vld [vmem:[%s783 + $0xe8] sm:$0xff]
  %v814 = vld [vmem:[%s783 + $0xf0] sm:$0xff]
  %v815 = vld [vmem:[%s783 + $0xf8] sm:$0xff]
  %v817 = vsel %vm124, %v785, 0
  %v820 = vsel %vm124, %v787, 0
  %v823 = vsel %vm124, %v789, 0
  %v826 = vsel %vm124, %v791, 0
  %v829 = vsel %vm124, %v793, 0
  %v832 = vsel %vm124, %v795, 0
  %v835 = vsel %vm124, %v797, 0
  %v838 = vsel %vm124, %v799, 0
  %v841 = vsel %vm124, %v801, 0
  %v844 = vsel %vm124, %v803, 0
  %v847 = vsel %vm124, %v805, 0
  %v850 = vsel %vm124, %v807, 0
  %v853 = vsel %vm124, %v809, 0
  %v856 = vsel %vm124, %v811, 0
  %v859 = vsel %vm124, %v813, 0
  %v862 = vsel %vm124, %v815, 0
  %864 = vmatprep.subr.mxu0 0.0
  %865 = vmatpush1.msra.mxu0 %v67
  %866 = vmatprep.subr.mxu0 0.0
  %867 = vmatpush1.msra.mxu0 %v68
  %868 = vmatprep.subr.mxu0 0.0
  %869 = vmatpush1.msra.mxu0 %v69
  %870 = vmatprep.subr.mxu0 0.0
  %871 = vmatpush1.msra.mxu0 %v70
  %872 = vmatprep.subr.mxu0 0.0
  %873 = vmatpush1.msra.mxu0 %v71
  %874 = vmatprep.subr.mxu0 0.0
  %875 = vmatpush1.msra.mxu0 %v72
  %876 = vmatprep.subr.mxu0 0.0
  %877 = vmatpush1.msra.mxu0 %v73
  %878 = vmatprep.subr.mxu0 0.0
  %879 = vmatpush1.msra.mxu0 %v74
  %880 = vmatprep.subr.mxu0 0.0
  %881 = vmatpush1.msra.mxu0 %v75
  %882 = vmatprep.subr.mxu0 0.0
  %883 = vmatpush1.msra.mxu0 %v76
  %884 = vmatprep.subr.mxu0 0.0
  %885 = vmatpush1.msra.mxu0 %v77
  %886 = vmatprep.subr.mxu0 0.0
  %887 = vmatpush1.msra.mxu0 %v78
  %888 = vmatprep.subr.mxu0 0.0
  %889 = vmatpush1.msra.mxu0 %v79
  %890 = vmatprep.subr.mxu0 0.0
  %891 = vmatpush1.msra.mxu0 %v80
  %892 = vmatprep.subr.mxu0 0.0
  %893 = vmatpush1.msra.mxu0 %v81
  %894 = vmatprep.subr.mxu0 0.0
  %895 = vmatpush1.msra.mxu0 %v82
  %896 = vmatprep.subr.mxu0 0.0
  %897 = vmatpush1.msra.mxu0 %v83
  %898 = vmatprep.subr.mxu0 0.0
  %899 = vmatpush1.msra.mxu0 %v84
  %900 = vmatprep.subr.mxu0 0.0
  %901 = vmatpush1.msra.mxu0 %v85
  %902 = vmatprep.subr.mxu0 0.0
  %903 = vmatpush1.msra.mxu0 %v86
  %904 = vmatprep.subr.mxu0 0.0
  %905 = vmatpush1.msra.mxu0 %v87
  %906 = vmatprep.subr.mxu0 0.0
  %907 = vmatpush1.msra.mxu0 %v88
  %908 = vmatprep.subr.mxu0 0.0
  %909 = vmatpush1.msra.mxu0 %v89
  %910 = vmatprep.subr.mxu0 0.0
  %911 = vmatpush1.msra.mxu0 %v90
  %912 = vmatprep.subr.mxu0 0.0
  %913 = vmatpush1.msra.mxu0 %v91
  %914 = vmatprep.subr.mxu0 0.0
  %915 = vmatpush1.msra.mxu0 0.0
  %916 = vmatprep.subr.mxu0 0.0
  %917 = vmatpush1.msra.mxu0 0.0
  %918 = vmatprep.subr.mxu0 0.0
  %919 = vmatpush1.msra.mxu0 0.0
  %920 = vmatprep.subr.mxu0 0.0
  %921 = vmatpush1.msra.mxu0 0.0
  %922 = vmatprep.subr.mxu0 0.0
  %923 = vmatpush1.msra.mxu0 0.0
  %924 = vmatprep.subr.mxu0 0.0
  %925 = vmatpush1.msra.mxu0 0.0
  %926 = vmatprep.subr.mxu0 0.0
  %927 = vmatpush1.msra.mxu0 0.0
  %928 = vmatprep.mubr.f32.mxu0 %v817
  %929 = vmatmul.mubr.f32.gmra.mrb[0].mxu0 %v784
  %v930 = vpop.f32.mrb[0].mxu0
  %v931 = vadd.f32 0.0, %v930
  %v932 = vpop.f32.mrb[0].mxu0
  %933 = vmatprep.mubr.f32.mxu0 %v820
  %934 = vmatmul.mubr.f32.gmra.mrb[0].mxu0 %v786
  %v935 = vpop.f32.mrb[0].mxu0
  %v936 = vadd.f32 0.0, %v935
  %v937 = vpop.f32.mrb[0].mxu0
  %938 = vmatprep.mubr.f32.mxu0 %v823
  %939 = vmatmul.mubr.f32.gmra.mrb[0].mxu0 %v788
  %v940 = vpop.f32.mrb[0].mxu0
  %v941 = vadd.f32 0.0, %v940
  %v942 = vpop.f32.mrb[0].mxu0
  %943 = vmatprep.mubr.f32.mxu0 %v826
  %944 = vmatmul.mubr.f32.gmra.mrb[0].mxu0 %v790
  %v945 = vpop.f32.mrb[0].mxu0
  %v946 = vadd.f32 0.0, %v945
  %v947 = vpop.f32.mrb[0].mxu0
  %948 = vmatprep.mubr.f32.mxu0 %v829
  %949 = vmatmul.mubr.f32.gmra.mrb[0].mxu0 %v792
  %v950 = vpop.f32.mrb[0].mxu0
  %v951 = vadd.f32 0.0, %v950
  %v952 = vpop.f32.mrb[0].mxu0
  %953 = vmatprep.mubr.f32.mxu0 %v832
  %954 = vmatmul.mubr.f32.gmra.mrb[0].mxu0 %v794
  %v955 = vpop.f32.mrb[0].mxu0
  %v956 = vadd.f32 0.0, %v955
  %v957 = vpop.f32.mrb[0].mxu0
  %958 = vmatprep.mubr.f32.mxu0 %v835
  %959 = vmatmul.mubr.f32.gmra.mrb[0].mxu0 %v796
  %v960 = vpop.f32.mrb[0].mxu0
  %v961 = vadd.f32 0.0, %v960
  %v962 = vpop.f32.mrb[0].mxu0
  %963 = vmatprep.mubr.f32.mxu0 %v838
  %964 = vmatmul.mubr.f32.gmra.mrb[0].mxu0 %v798
  %v965 = vpop.f32.mrb[0].mxu0
  %v966 = vadd.f32 0.0, %v965
  %v967 = vpop.f32.mrb[0].mxu0
  %968 = vmatprep.mubr.f32.mxu0 %v841
  %969 = vmatmul.mubr.f32.gmra.mrb[0].mxu0 %v800
  %v970 = vpop.f32.mrb[0].mxu0
  %v971 = vadd.f32 0.0, %v970
  %v972 = vpop.f32.mrb[0].mxu0
  %973 = vmatprep.mubr.f32.mxu0 %v844
  %974 = vmatmul.mubr.f32.gmra.mrb[0].mxu0 %v802
  %v975 = vpop.f32.mrb[0].mxu0
  %v976 = vadd.f32 0.0, %v975
  %v977 = vpop.f32.mrb[0].mxu0
  %978 = vmatprep.mubr.f32.mxu0 %v847
  %979 = vmatmul.mubr.f32.gmra.mrb[0].mxu0 %v804
  %v980 = vpop.f32.mrb[0].mxu0
  %v981 = vadd.f32 0.0, %v980
  %v982 = vpop.f32.mrb[0].mxu0
  %983 = vmatprep.mubr.f32.mxu0 %v850
  %984 = vmatmul.mubr.f32.gmra.mrb[0].mxu0 %v806
  %v985 = vpop.f32.mrb[0].mxu0
  %v986 = vadd.f32 0.0, %v985
  %v987 = vpop.f32.mrb[0].mxu0
  %988 = vmatprep.mubr.f32.mxu0 %v853
  %989 = vmatmul.mubr.f32.gmra.mrb[0].mxu0 %v808
  %v990 = vpop.f32.mrb[0].mxu0
  %v991 = vadd.f32 0.0, %v990
  %v992 = vpop.f32.mrb[0].mxu0
  %993 = vmatprep.mubr.f32.mxu0 %v856
  %994 = vmatmul.mubr.f32.gmra.mrb[0].mxu0 %v810
  %v995 = vpop.f32.mrb[0].mxu0
  %v996 = vadd.f32 0.0, %v995
  %v997 = vpop.f32.mrb[0].mxu0
  %998 = vmatprep.mubr.f32.mxu0 %v859
  %999 = vmatmul.mubr.f32.gmra.mrb[0].mxu0 %v812
  %v1000 = vpop.f32.mrb[0].mxu0
  %v1001 = vadd.f32 0.0, %v1000
  %v1002 = vpop.f32.mrb[0].mxu0
  %1003 = vmatprep.mubr.f32.mxu0 %v862
  %1004 = vmatmul.mubr.f32.gmra.mrb[0].mxu0 %v814
  %v1005 = vpop.f32.mrb[0].mxu0
  %v1006 = vadd.f32 0.0, %v1005
  %v1007 = vpop.f32.mrb[0].mxu0
  %1008 = vdwg.mxu0
  %s1009 = scalar_lea.vmem %s2, 2
  %v1010 = vld [vmem:[%s1009] sm:$0x1]
  %1012 = vset.pattern.permute.xlu0 0
  %1013 = vperm.xlu0 %1012, %v931
  %v1014 = vpop.permute.xlu0 %1013
  %1017 = vset.pattern.permute.xlu0 0
  %1018 = vperm.xlu0 %1017, %v936
  %v1019 = vpop.permute.xlu0 %1018
  %1022 = vset.pattern.permute.xlu0 0
  %1023 = vperm.xlu0 %1022, %v941
  %v1024 = vpop.permute.xlu0 %1023
  %1027 = vset.pattern.permute.xlu0 0
  %1028 = vperm.xlu0 %1027, %v946
  %v1029 = vpop.permute.xlu0 %1028
  %1032 = vset.pattern.permute.xlu0 0
  %1033 = vperm.xlu0 %1032, %v951
  %v1034 = vpop.permute.xlu0 %1033
  %1037 = vset.pattern.permute.xlu0 0
  %1038 = vperm.xlu0 %1037, %v956
  %v1039 = vpop.permute.xlu0 %1038
  %1042 = vset.pattern.permute.xlu0 0
  %1043 = vperm.xlu0 %1042, %v961
  %v1044 = vpop.permute.xlu0 %1043
  %1047 = vset.pattern.permute.xlu0 0
  %1048 = vperm.xlu0 %1047, %v966
  %v1049 = vpop.permute.xlu0 %1048
  %1052 = vset.pattern.permute.xlu0 0
  %1053 = vperm.xlu0 %1052, %v971
  %v1054 = vpop.permute.xlu0 %1053
  %1057 = vset.pattern.permute.xlu0 0
  %1058 = vperm.xlu0 %1057, %v976
  %v1059 = vpop.permute.xlu0 %1058
  %1062 = vset.pattern.permute.xlu0 0
  %1063 = vperm.xlu0 %1062, %v981
  %v1064 = vpop.permute.xlu0 %1063
  %1067 = vset.pattern.permute.xlu0 0
  %1068 = vperm.xlu0 %1067, %v986
  %v1069 = vpop.permute.xlu0 %1068
  %1072 = vset.pattern.permute.xlu0 0
  %1073 = vperm.xlu0 %1072, %v991
  %v1074 = vpop.permute.xlu0 %1073
  %1077 = vset.pattern.permute.xlu0 0
  %1078 = vperm.xlu0 %1077, %v996
  %v1079 = vpop.permute.xlu0 %1078
  %1082 = vset.pattern.permute.xlu0 0
  %1083 = vperm.xlu0 %1082, %v1001
  %v1084 = vpop.permute.xlu0 %1083
  %1087 = vset.pattern.permute.xlu0 0
  %1088 = vperm.xlu0 %1087, %v1006
  %v1089 = vpop.permute.xlu0 %1088
  %v1092 = vlaneseq
  %v1093 = vshrl.u32 %v1092, 7
  %v1094 = vsub.s32 0, %v1093
  %v1095 = vrot.slane %v1010, %v1094
  %v1097 = vmul.f32 %v1014, %v1095
  %v1098 = vmul.f32 %v1019, %v1095
  %v1099 = vmul.f32 %v1024, %v1095
  %v1100 = vmul.f32 %v1029, %v1095
  %v1101 = vmul.f32 %v1034, %v1095
  %v1102 = vmul.f32 %v1039, %v1095
  %v1103 = vmul.f32 %v1044, %v1095
  %v1104 = vmul.f32 %v1049, %v1095
  %v1105 = vmul.f32 %v1054, %v1095
  %v1106 = vmul.f32 %v1059, %v1095
  %v1107 = vmul.f32 %v1064, %v1095
  %v1108 = vmul.f32 %v1069, %v1095
  %v1109 = vmul.f32 %v1074, %v1095
  %v1110 = vmul.f32 %v1079, %v1095
  %v1111 = vmul.f32 %v1084, %v1095
  %v1112 = vmul.f32 %v1089, %v1095
  %v1113 = vadd.f32 %v767, %v1097
  %v1114 = vadd.f32 %v768, %v1098
  %v1115 = vadd.f32 %v769, %v1099
  %v1116 = vadd.f32 %v770, %v1100
  %v1117 = vadd.f32 %v771, %v1101
  %v1118 = vadd.f32 %v772, %v1102
  %v1119 = vadd.f32 %v773, %v1103
  %v1120 = vadd.f32 %v774, %v1104
  %v1121 = vadd.f32 %v775, %v1105
  %v1122 = vadd.f32 %v776, %v1106
  %v1123 = vadd.f32 %v777, %v1107
  %v1124 = vadd.f32 %v778, %v1108
  %v1125 = vadd.f32 %v779, %v1109
  %v1126 = vadd.f32 %v780, %v1110
  %v1127 = vadd.f32 %v781, %v1111
  %v1128 = vadd.f32 %v782, %v1112
  %s1129 = scalar_lea.vmem %s1, 768
  %v1130 = vld [vmem:[%s1129] sm:$0xff]
  %v1131 = vld [vmem:[%s1129 + $0x8] sm:$0xff]
  %v1132 = vld [vmem:[%s1129 + $0x10] sm:$0xff]
  %v1133 = vld [vmem:[%s1129 + $0x18] sm:$0xff]
  %v1134 = vld [vmem:[%s1129 + $0x20] sm:$0xff]
  %v1135 = vld [vmem:[%s1129 + $0x28] sm:$0xff]
  %v1136 = vld [vmem:[%s1129 + $0x30] sm:$0xff]
  %v1137 = vld [vmem:[%s1129 + $0x38] sm:$0xff]
  %v1138 = vld [vmem:[%s1129 + $0x40] sm:$0xff]
  %v1139 = vld [vmem:[%s1129 + $0x48] sm:$0xff]
  %v1140 = vld [vmem:[%s1129 + $0x50] sm:$0xff]
  %v1141 = vld [vmem:[%s1129 + $0x58] sm:$0xff]
  %v1142 = vld [vmem:[%s1129 + $0x60] sm:$0xff]
  %v1143 = vld [vmem:[%s1129 + $0x68] sm:$0xff]
  %v1144 = vld [vmem:[%s1129 + $0x70] sm:$0xff]
  %v1145 = vld [vmem:[%s1129 + $0x78] sm:$0xff]
  %v1146 = vld [vmem:[%s1129 + $0x80] sm:$0xff]
  %v1147 = vld [vmem:[%s1129 + $0x88] sm:$0xff]
  %v1148 = vld [vmem:[%s1129 + $0x90] sm:$0xff]
  %v1149 = vld [vmem:[%s1129 + $0x98] sm:$0xff]
  %v1150 = vld [vmem:[%s1129 + $0xa0] sm:$0xff]
  %v1151 = vld [vmem:[%s1129 + $0xa8] sm:$0xff]
  %v1152 = vld [vmem:[%s1129 + $0xb0] sm:$0xff]
  %v1153 = vld [vmem:[%s1129 + $0xb8] sm:$0xff]
  %v1154 = vld [vmem:[%s1129 + $0xc0] sm:$0xff]
  %v1155 = vld [vmem:[%s1129 + $0xc8] sm:$0xff]
  %v1156 = vld [vmem:[%s1129 + $0xd0] sm:$0xff]
  %v1157 = vld [vmem:[%s1129 + $0xd8] sm:$0xff]
  %v1158 = vld [vmem:[%s1129 + $0xe0] sm:$0xff]
  %v1159 = vld [vmem:[%s1129 + $0xe8] sm:$0xff]
  %v1160 = vld [vmem:[%s1129 + $0xf0] sm:$0xff]
  %v1161 = vld [vmem:[%s1129 + $0xf8] sm:$0xff]
  %v1163 = vsel %vm124, %v1131, 0
  %v1166 = vsel %vm124, %v1133, 0
  %v1169 = vsel %vm124, %v1135, 0
  %v1172 = vsel %vm124, %v1137, 0
  %v1175 = vsel %vm124, %v1139, 0
  %v1178 = vsel %vm124, %v1141, 0
  %v1181 = vsel %vm124, %v1143, 0
  %v1184 = vsel %vm124, %v1145, 0
  %v1187 = vsel %vm124, %v1147, 0
  %v1190 = vsel %vm124, %v1149, 0
  %v1193 = vsel %vm124, %v1151, 0
  %v1196 = vsel %vm124, %v1153, 0
  %v1199 = vsel %vm124, %v1155, 0
  %v1202 = vsel %vm124, %v1157, 0
  %v1205 = vsel %vm124, %v1159, 0
  %v1208 = vsel %vm124, %v1161, 0
  %1210 = vmatprep.subr.mxu0 0.0
  %1211 = vmatpush1.msra.mxu0 %v67
  %1212 = vmatprep.subr.mxu0 0.0
  %1213 = vmatpush1.msra.mxu0 %v68
  %1214 = vmatprep.subr.mxu0 0.0
  %1215 = vmatpush1.msra.mxu0 %v69
  %1216 = vmatprep.subr.mxu0 0.0
  %1217 = vmatpush1.msra.mxu0 %v70
  %1218 = vmatprep.subr.mxu0 0.0
  %1219 = vmatpush1.msra.mxu0 %v71
  %1220 = vmatprep.subr.mxu0 0.0
  %1221 = vmatpush1.msra.mxu0 %v72
  %1222 = vmatprep.subr.mxu0 0.0
  %1223 = vmatpush1.msra.mxu0 %v73
  %1224 = vmatprep.subr.mxu0 0.0
  %1225 = vmatpush1.msra.mxu0 %v74
  %1226 = vmatprep.subr.mxu0 0.0
  %1227 = vmatpush1.msra.mxu0 %v75
  %1228 = vmatprep.subr.mxu0 0.0
  %1229 = vmatpush1.msra.mxu0 %v76
  %1230 = vmatprep.subr.mxu0 0.0
  %1231 = vmatpush1.msra.mxu0 %v77
  %1232 = vmatprep.subr.mxu0 0.0
  %1233 = vmatpush1.msra.mxu0 %v78
  %1234 = vmatprep.subr.mxu0 0.0
  %1235 = vmatpush1.msra.mxu0 %v79
  %1236 = vmatprep.subr.mxu0 0.0
  %1237 = vmatpush1.msra.mxu0 %v80
  %1238 = vmatprep.subr.mxu0 0.0
  %1239 = vmatpush1.msra.mxu0 %v81
  %1240 = vmatprep.subr.mxu0 0.0
  %1241 = vmatpush1.msra.mxu0 %v82
  %1242 = vmatprep.subr.mxu0 0.0
  %1243 = vmatpush1.msra.mxu0 %v83
  %1244 = vmatprep.subr.mxu0 0.0
  %1245 = vmatpush1.msra.mxu0 %v84
  %1246 = vmatprep.subr.mxu0 0.0
  %1247 = vmatpush1.msra.mxu0 %v85
  %1248 = vmatprep.subr.mxu0 0.0
  %1249 = vmatpush1.msra.mxu0 %v86
  %1250 = vmatprep.subr.mxu0 0.0
  %1251 = vmatpush1.msra.mxu0 %v87
  %1252 = vmatprep.subr.mxu0 0.0
  %1253 = vmatpush1.msra.mxu0 %v88
  %1254 = vmatprep.subr.mxu0 0.0
  %1255 = vmatpush1.msra.mxu0 %v89
  %1256 = vmatprep.subr.mxu0 0.0
  %1257 = vmatpush1.msra.mxu0 %v90
  %1258 = vmatprep.subr.mxu0 0.0
  %1259 = vmatpush1.msra.mxu0 %v91
  %1260 = vmatprep.subr.mxu0 0.0
  %1261 = vmatpush1.msra.mxu0 0.0
  %1262 = vmatprep.subr.mxu0 0.0
  %1263 = vmatpush1.msra.mxu0 0.0
  %1264 = vmatprep.subr.mxu0 0.0
  %1265 = vmatpush1.msra.mxu0 0.0
  %1266 = vmatprep.subr.mxu0 0.0
  %1267 = vmatpush1.msra.mxu0 0.0
  %1268 = vmatprep.subr.mxu0 0.0
  %1269 = vmatpush1.msra.mxu0 0.0
  %1270 = vmatprep.subr.mxu0 0.0
  %1271 = vmatpush1.msra.mxu0 0.0
  %1272 = vmatprep.subr.mxu0 0.0
  %1273 = vmatpush1.msra.mxu0 0.0
  %1274 = vmatprep.mubr.f32.mxu0 %v1163
  %1275 = vmatmul.mubr.f32.gmra.mrb[0].mxu0 %v1130
  %v1276 = vpop.f32.mrb[0].mxu0
  %v1277 = vadd.f32 0.0, %v1276
  %v1278 = vpop.f32.mrb[0].mxu0
  %1279 = vmatprep.mubr.f32.mxu0 %v1166
  %1280 = vmatmul.mubr.f32.gmra.mrb[0].mxu0 %v1132
  %v1281 = vpop.f32.mrb[0].mxu0
  %v1282 = vadd.f32 0.0, %v1281
  %v1283 = vpop.f32.mrb[0].mxu0
  %1284 = vmatprep.mubr.f32.mxu0 %v1169
  %1285 = vmatmul.mubr.f32.gmra.mrb[0].mxu0 %v1134
  %v1286 = vpop.f32.mrb[0].mxu0
  %v1287 = vadd.f32 0.0, %v1286
  %v1288 = vpop.f32.mrb[0].mxu0
  %1289 = vmatprep.mubr.f32.mxu0 %v1172
  %1290 = vmatmul.mubr.f32.gmra.mrb[0].mxu0 %v1136
  %v1291 = vpop.f32.mrb[0].mxu0
  %v1292 = vadd.f32 0.0, %v1291
  %v1293 = vpop.f32.mrb[0].mxu0
  %1294 = vmatprep.mubr.f32.mxu0 %v1175
  %1295 = vmatmul.mubr.f32.gmra.mrb[0].mxu0 %v1138
  %v1296 = vpop.f32.mrb[0].mxu0
  %v1297 = vadd.f32 0.0, %v1296
  %v1298 = vpop.f32.mrb[0].mxu0
  %1299 = vmatprep.mubr.f32.mxu0 %v1178
  %1300 = vmatmul.mubr.f32.gmra.mrb[0].mxu0 %v1140
  %v1301 = vpop.f32.mrb[0].mxu0
  %v1302 = vadd.f32 0.0, %v1301
  %v1303 = vpop.f32.mrb[0].mxu0
  %1304 = vmatprep.mubr.f32.mxu0 %v1181
  %1305 = vmatmul.mubr.f32.gmra.mrb[0].mxu0 %v1142
  %v1306 = vpop.f32.mrb[0].mxu0
  %v1307 = vadd.f32 0.0, %v1306
  %v1308 = vpop.f32.mrb[0].mxu0
  %1309 = vmatprep.mubr.f32.mxu0 %v1184
  %1310 = vmatmul.mubr.f32.gmra.mrb[0].mxu0 %v1144
  %v1311 = vpop.f32.mrb[0].mxu0
  %v1312 = vadd.f32 0.0, %v1311
  %v1313 = vpop.f32.mrb[0].mxu0
  %1314 = vmatprep.mubr.f32.mxu0 %v1187
  %1315 = vmatmul.mubr.f32.gmra.mrb[0].mxu0 %v1146
  %v1316 = vpop.f32.mrb[0].mxu0
  %v1317 = vadd.f32 0.0, %v1316
  %v1318 = vpop.f32.mrb[0].mxu0
  %1319 = vmatprep.mubr.f32.mxu0 %v1190
  %1320 = vmatmul.mubr.f32.gmra.mrb[0].mxu0 %v1148
  %v1321 = vpop.f32.mrb[0].mxu0
  %v1322 = vadd.f32 0.0, %v1321
  %v1323 = vpop.f32.mrb[0].mxu0
  %1324 = vmatprep.mubr.f32.mxu0 %v1193
  %1325 = vmatmul.mubr.f32.gmra.mrb[0].mxu0 %v1150
  %v1326 = vpop.f32.mrb[0].mxu0
  %v1327 = vadd.f32 0.0, %v1326
  %v1328 = vpop.f32.mrb[0].mxu0
  %1329 = vmatprep.mubr.f32.mxu0 %v1196
  %1330 = vmatmul.mubr.f32.gmra.mrb[0].mxu0 %v1152
  %v1331 = vpop.f32.mrb[0].mxu0
  %v1332 = vadd.f32 0.0, %v1331
  %v1333 = vpop.f32.mrb[0].mxu0
  %1334 = vmatprep.mubr.f32.mxu0 %v1199
  %1335 = vmatmul.mubr.f32.gmra.mrb[0].mxu0 %v1154
  %v1336 = vpop.f32.mrb[0].mxu0
  %v1337 = vadd.f32 0.0, %v1336
  %v1338 = vpop.f32.mrb[0].mxu0
  %1339 = vmatprep.mubr.f32.mxu0 %v1202
  %1340 = vmatmul.mubr.f32.gmra.mrb[0].mxu0 %v1156
  %v1341 = vpop.f32.mrb[0].mxu0
  %v1342 = vadd.f32 0.0, %v1341
  %v1343 = vpop.f32.mrb[0].mxu0
  %1344 = vmatprep.mubr.f32.mxu0 %v1205
  %1345 = vmatmul.mubr.f32.gmra.mrb[0].mxu0 %v1158
  %v1346 = vpop.f32.mrb[0].mxu0
  %v1347 = vadd.f32 0.0, %v1346
  %v1348 = vpop.f32.mrb[0].mxu0
  %1349 = vmatprep.mubr.f32.mxu0 %v1208
  %1350 = vmatmul.mubr.f32.gmra.mrb[0].mxu0 %v1160
  %v1351 = vpop.f32.mrb[0].mxu0
  %v1352 = vadd.f32 0.0, %v1351
  %v1353 = vpop.f32.mrb[0].mxu0
  %1354 = vdwg.mxu0
  %s1355 = scalar_lea.vmem %s2, 3
  %v1356 = vld [vmem:[%s1355] sm:$0x1]
  %1358 = vset.pattern.permute.xlu0 0
  %1359 = vperm.xlu0 %1358, %v1277
  %v1360 = vpop.permute.xlu0 %1359
  %1363 = vset.pattern.permute.xlu0 0
  %1364 = vperm.xlu0 %1363, %v1282
  %v1365 = vpop.permute.xlu0 %1364
  %1368 = vset.pattern.permute.xlu0 0
  %1369 = vperm.xlu0 %1368, %v1287
  %v1370 = vpop.permute.xlu0 %1369
  %1373 = vset.pattern.permute.xlu0 0
  %1374 = vperm.xlu0 %1373, %v1292
  %v1375 = vpop.permute.xlu0 %1374
  %1378 = vset.pattern.permute.xlu0 0
  %1379 = vperm.xlu0 %1378, %v1297
  %v1380 = vpop.permute.xlu0 %1379
  %1383 = vset.pattern.permute.xlu0 0
  %1384 = vperm.xlu0 %1383, %v1302
  %v1385 = vpop.permute.xlu0 %1384
  %1388 = vset.pattern.permute.xlu0 0
  %1389 = vperm.xlu0 %1388, %v1307
  %v1390 = vpop.permute.xlu0 %1389
  %1393 = vset.pattern.permute.xlu0 0
  %1394 = vperm.xlu0 %1393, %v1312
  %v1395 = vpop.permute.xlu0 %1394
  %1398 = vset.pattern.permute.xlu0 0
  %1399 = vperm.xlu0 %1398, %v1317
  %v1400 = vpop.permute.xlu0 %1399
  %1403 = vset.pattern.permute.xlu0 0
  %1404 = vperm.xlu0 %1403, %v1322
  %v1405 = vpop.permute.xlu0 %1404
  %1408 = vset.pattern.permute.xlu0 0
  %1409 = vperm.xlu0 %1408, %v1327
  %v1410 = vpop.permute.xlu0 %1409
  %1413 = vset.pattern.permute.xlu0 0
  %1414 = vperm.xlu0 %1413, %v1332
  %v1415 = vpop.permute.xlu0 %1414
  %1418 = vset.pattern.permute.xlu0 0
  %1419 = vperm.xlu0 %1418, %v1337
  %v1420 = vpop.permute.xlu0 %1419
  %1423 = vset.pattern.permute.xlu0 0
  %1424 = vperm.xlu0 %1423, %v1342
  %v1425 = vpop.permute.xlu0 %1424
  %1428 = vset.pattern.permute.xlu0 0
  %1429 = vperm.xlu0 %1428, %v1347
  %v1430 = vpop.permute.xlu0 %1429
  %1433 = vset.pattern.permute.xlu0 0
  %1434 = vperm.xlu0 %1433, %v1352
  %v1435 = vpop.permute.xlu0 %1434
  %v1438 = vlaneseq
  %v1439 = vshrl.u32 %v1438, 7
  %v1440 = vsub.s32 0, %v1439
  %v1441 = vrot.slane %v1356, %v1440
  %v1443 = vmul.f32 %v1360, %v1441
  %v1444 = vmul.f32 %v1365, %v1441
  %v1445 = vmul.f32 %v1370, %v1441
  %v1446 = vmul.f32 %v1375, %v1441
  %v1447 = vmul.f32 %v1380, %v1441
  %v1448 = vmul.f32 %v1385, %v1441
  %v1449 = vmul.f32 %v1390, %v1441
  %v1450 = vmul.f32 %v1395, %v1441
  %v1451 = vmul.f32 %v1400, %v1441
  %v1452 = vmul.f32 %v1405, %v1441
  %v1453 = vmul.f32 %v1410, %v1441
  %v1454 = vmul.f32 %v1415, %v1441
  %v1455 = vmul.f32 %v1420, %v1441
  %v1456 = vmul.f32 %v1425, %v1441
  %v1457 = vmul.f32 %v1430, %v1441
  %v1458 = vmul.f32 %v1435, %v1441
  %v1459 = vadd.f32 %v1113, %v1443
  %v1460 = vadd.f32 %v1114, %v1444
  %v1461 = vadd.f32 %v1115, %v1445
  %v1462 = vadd.f32 %v1116, %v1446
  %v1463 = vadd.f32 %v1117, %v1447
  %v1464 = vadd.f32 %v1118, %v1448
  %v1465 = vadd.f32 %v1119, %v1449
  %v1466 = vadd.f32 %v1120, %v1450
  %v1467 = vadd.f32 %v1121, %v1451
  %v1468 = vadd.f32 %v1122, %v1452
  %v1469 = vadd.f32 %v1123, %v1453
  %v1470 = vadd.f32 %v1124, %v1454
  %v1471 = vadd.f32 %v1125, %v1455
  %v1472 = vadd.f32 %v1126, %v1456
  %v1473 = vadd.f32 %v1127, %v1457
  %v1474 = vadd.f32 %v1128, %v1458
  %s1475 = scalar_lea.vmem %s1, 1024
  %v1476 = vld [vmem:[%s1475] sm:$0xff]
  %v1477 = vld [vmem:[%s1475 + $0x8] sm:$0xff]
  %v1478 = vld [vmem:[%s1475 + $0x10] sm:$0xff]
  %v1479 = vld [vmem:[%s1475 + $0x18] sm:$0xff]
  %v1480 = vld [vmem:[%s1475 + $0x20] sm:$0xff]
  %v1481 = vld [vmem:[%s1475 + $0x28] sm:$0xff]
  %v1482 = vld [vmem:[%s1475 + $0x30] sm:$0xff]
  %v1483 = vld [vmem:[%s1475 + $0x38] sm:$0xff]
  %v1484 = vld [vmem:[%s1475 + $0x40] sm:$0xff]
  %v1485 = vld [vmem:[%s1475 + $0x48] sm:$0xff]
  %v1486 = vld [vmem:[%s1475 + $0x50] sm:$0xff]
  %v1487 = vld [vmem:[%s1475 + $0x58] sm:$0xff]
  %v1488 = vld [vmem:[%s1475 + $0x60] sm:$0xff]
  %v1489 = vld [vmem:[%s1475 + $0x68] sm:$0xff]
  %v1490 = vld [vmem:[%s1475 + $0x70] sm:$0xff]
  %v1491 = vld [vmem:[%s1475 + $0x78] sm:$0xff]
  %v1492 = vld [vmem:[%s1475 + $0x80] sm:$0xff]
  %v1493 = vld [vmem:[%s1475 + $0x88] sm:$0xff]
  %v1494 = vld [vmem:[%s1475 + $0x90] sm:$0xff]
  %v1495 = vld [vmem:[%s1475 + $0x98] sm:$0xff]
  %v1496 = vld [vmem:[%s1475 + $0xa0] sm:$0xff]
  %v1497 = vld [vmem:[%s1475 + $0xa8] sm:$0xff]
  %v1498 = vld [vmem:[%s1475 + $0xb0] sm:$0xff]
  %v1499 = vld [vmem:[%s1475 + $0xb8] sm:$0xff]
  %v1500 = vld [vmem:[%s1475 + $0xc0] sm:$0xff]
  %v1501 = vld [vmem:[%s1475 + $0xc8] sm:$0xff]
  %v1502 = vld [vmem:[%s1475 + $0xd0] sm:$0xff]
  %v1503 = vld [vmem:[%s1475 + $0xd8] sm:$0xff]
  %v1504 = vld [vmem:[%s1475 + $0xe0] sm:$0xff]
  %v1505 = vld [vmem:[%s1475 + $0xe8] sm:$0xff]
  %v1506 = vld [vmem:[%s1475 + $0xf0] sm:$0xff]
  %v1507 = vld [vmem:[%s1475 + $0xf8] sm:$0xff]
  %v1509 = vsel %vm124, %v1477, 0
  %v1512 = vsel %vm124, %v1479, 0
  %v1515 = vsel %vm124, %v1481, 0
  %v1518 = vsel %vm124, %v1483, 0
  %v1521 = vsel %vm124, %v1485, 0
  %v1524 = vsel %vm124, %v1487, 0
  %v1527 = vsel %vm124, %v1489, 0
  %v1530 = vsel %vm124, %v1491, 0
  %v1533 = vsel %vm124, %v1493, 0
  %v1536 = vsel %vm124, %v1495, 0
  %v1539 = vsel %vm124, %v1497, 0
  %v1542 = vsel %vm124, %v1499, 0
  %v1545 = vsel %vm124, %v1501, 0
  %v1548 = vsel %vm124, %v1503, 0
  %v1551 = vsel %vm124, %v1505, 0
  %v1554 = vsel %vm124, %v1507, 0
  %1556 = vmatprep.subr.mxu0 0.0
  %1557 = vmatpush1.msra.mxu0 %v67
  %1558 = vmatprep.subr.mxu0 0.0
  %1559 = vmatpush1.msra.mxu0 %v68
  %1560 = vmatprep.subr.mxu0 0.0
  %1561 = vmatpush1.msra.mxu0 %v69
  %1562 = vmatprep.subr.mxu0 0.0
  %1563 = vmatpush1.msra.mxu0 %v70
  %1564 = vmatprep.subr.mxu0 0.0
  %1565 = vmatpush1.msra.mxu0 %v71
  %1566 = vmatprep.subr.mxu0 0.0
  %1567 = vmatpush1.msra.mxu0 %v72
  %1568 = vmatprep.subr.mxu0 0.0
  %1569 = vmatpush1.msra.mxu0 %v73
  %1570 = vmatprep.subr.mxu0 0.0
  %1571 = vmatpush1.msra.mxu0 %v74
  %1572 = vmatprep.subr.mxu0 0.0
  %1573 = vmatpush1.msra.mxu0 %v75
  %1574 = vmatprep.subr.mxu0 0.0
  %1575 = vmatpush1.msra.mxu0 %v76
  %1576 = vmatprep.subr.mxu0 0.0
  %1577 = vmatpush1.msra.mxu0 %v77
  %1578 = vmatprep.subr.mxu0 0.0
  %1579 = vmatpush1.msra.mxu0 %v78
  %1580 = vmatprep.subr.mxu0 0.0
  %1581 = vmatpush1.msra.mxu0 %v79
  %1582 = vmatprep.subr.mxu0 0.0
  %1583 = vmatpush1.msra.mxu0 %v80
  %1584 = vmatprep.subr.mxu0 0.0
  %1585 = vmatpush1.msra.mxu0 %v81
  %1586 = vmatprep.subr.mxu0 0.0
  %1587 = vmatpush1.msra.mxu0 %v82
  %1588 = vmatprep.subr.mxu0 0.0
  %1589 = vmatpush1.msra.mxu0 %v83
  %1590 = vmatprep.subr.mxu0 0.0
  %1591 = vmatpush1.msra.mxu0 %v84
  %1592 = vmatprep.subr.mxu0 0.0
  %1593 = vmatpush1.msra.mxu0 %v85
  %1594 = vmatprep.subr.mxu0 0.0
  %1595 = vmatpush1.msra.mxu0 %v86
  %1596 = vmatprep.subr.mxu0 0.0
  %1597 = vmatpush1.msra.mxu0 %v87
  %1598 = vmatprep.subr.mxu0 0.0
  %1599 = vmatpush1.msra.mxu0 %v88
  %1600 = vmatprep.subr.mxu0 0.0
  %1601 = vmatpush1.msra.mxu0 %v89
  %1602 = vmatprep.subr.mxu0 0.0
  %1603 = vmatpush1.msra.mxu0 %v90
  %1604 = vmatprep.subr.mxu0 0.0
  %1605 = vmatpush1.msra.mxu0 %v91
  %1606 = vmatprep.subr.mxu0 0.0
  %1607 = vmatpush1.msra.mxu0 0.0
  %1608 = vmatprep.subr.mxu0 0.0
  %1609 = vmatpush1.msra.mxu0 0.0
  %1610 = vmatprep.subr.mxu0 0.0
  %1611 = vmatpush1.msra.mxu0 0.0
  %1612 = vmatprep.subr.mxu0 0.0
  %1613 = vmatpush1.msra.mxu0 0.0
  %1614 = vmatprep.subr.mxu0 0.0
  %1615 = vmatpush1.msra.mxu0 0.0
  %1616 = vmatprep.subr.mxu0 0.0
  %1617 = vmatpush1.msra.mxu0 0.0
  %1618 = vmatprep.subr.mxu0 0.0
  %1619 = vmatpush1.msra.mxu0 0.0
  %1620 = vmatprep.mubr.f32.mxu0 %v1509
  %1621 = vmatmul.mubr.f32.gmra.mrb[0].mxu0 %v1476
  %v1622 = vpop.f32.mrb[0].mxu0
  %v1623 = vadd.f32 0.0, %v1622
  %v1624 = vpop.f32.mrb[0].mxu0
  %1625 = vmatprep.mubr.f32.mxu0 %v1512
  %1626 = vmatmul.mubr.f32.gmra.mrb[0].mxu0 %v1478
  %v1627 = vpop.f32.mrb[0].mxu0
  %v1628 = vadd.f32 0.0, %v1627
  %v1629 = vpop.f32.mrb[0].mxu0
  %1630 = vmatprep.mubr.f32.mxu0 %v1515
  %1631 = vmatmul.mubr.f32.gmra.mrb[0].mxu0 %v1480
  %v1632 = vpop.f32.mrb[0].mxu0
  %v1633 = vadd.f32 0.0, %v1632
  %v1634 = vpop.f32.mrb[0].mxu0
  %1635 = vmatprep.mubr.f32.mxu0 %v1518
  %1636 = vmatmul.mubr.f32.gmra.mrb[0].mxu0 %v1482
  %v1637 = vpop.f32.mrb[0].mxu0
  %v1638 = vadd.f32 0.0, %v1637
  %v1639 = vpop.f32.mrb[0].mxu0
  %1640 = vmatprep.mubr.f32.mxu0 %v1521
  %1641 = vmatmul.mubr.f32.gmra.mrb[0].mxu0 %v1484
  %v1642 = vpop.f32.mrb[0].mxu0
  %v1643 = vadd.f32 0.0, %v1642
  %v1644 = vpop.f32.mrb[0].mxu0
  %1645 = vmatprep.mubr.f32.mxu0 %v1524
  %1646 = vmatmul.mubr.f32.gmra.mrb[0].mxu0 %v1486
  %v1647 = vpop.f32.mrb[0].mxu0
  %v1648 = vadd.f32 0.0, %v1647
  %v1649 = vpop.f32.mrb[0].mxu0
  %1650 = vmatprep.mubr.f32.mxu0 %v1527
  %1651 = vmatmul.mubr.f32.gmra.mrb[0].mxu0 %v1488
  %v1652 = vpop.f32.mrb[0].mxu0
  %v1653 = vadd.f32 0.0, %v1652
  %v1654 = vpop.f32.mrb[0].mxu0
  %1655 = vmatprep.mubr.f32.mxu0 %v1530
  %1656 = vmatmul.mubr.f32.gmra.mrb[0].mxu0 %v1490
  %v1657 = vpop.f32.mrb[0].mxu0
  %v1658 = vadd.f32 0.0, %v1657
  %v1659 = vpop.f32.mrb[0].mxu0
  %1660 = vmatprep.mubr.f32.mxu0 %v1533
  %1661 = vmatmul.mubr.f32.gmra.mrb[0].mxu0 %v1492
  %v1662 = vpop.f32.mrb[0].mxu0
  %v1663 = vadd.f32 0.0, %v1662
  %v1664 = vpop.f32.mrb[0].mxu0
  %1665 = vmatprep.mubr.f32.mxu0 %v1536
  %1666 = vmatmul.mubr.f32.gmra.mrb[0].mxu0 %v1494
  %v1667 = vpop.f32.mrb[0].mxu0
  %v1668 = vadd.f32 0.0, %v1667
  %v1669 = vpop.f32.mrb[0].mxu0
  %1670 = vmatprep.mubr.f32.mxu0 %v1539
  %1671 = vmatmul.mubr.f32.gmra.mrb[0].mxu0 %v1496
  %v1672 = vpop.f32.mrb[0].mxu0
  %v1673 = vadd.f32 0.0, %v1672
  %v1674 = vpop.f32.mrb[0].mxu0
  %1675 = vmatprep.mubr.f32.mxu0 %v1542
  %1676 = vmatmul.mubr.f32.gmra.mrb[0].mxu0 %v1498
  %v1677 = vpop.f32.mrb[0].mxu0
  %v1678 = vadd.f32 0.0, %v1677
  %v1679 = vpop.f32.mrb[0].mxu0
  %1680 = vmatprep.mubr.f32.mxu0 %v1545
  %1681 = vmatmul.mubr.f32.gmra.mrb[0].mxu0 %v1500
  %v1682 = vpop.f32.mrb[0].mxu0
  %v1683 = vadd.f32 0.0, %v1682
  %v1684 = vpop.f32.mrb[0].mxu0
  %1685 = vmatprep.mubr.f32.mxu0 %v1548
  %1686 = vmatmul.mubr.f32.gmra.mrb[0].mxu0 %v1502
  %v1687 = vpop.f32.mrb[0].mxu0
  %v1688 = vadd.f32 0.0, %v1687
  %v1689 = vpop.f32.mrb[0].mxu0
  %1690 = vmatprep.mubr.f32.mxu0 %v1551
  %1691 = vmatmul.mubr.f32.gmra.mrb[0].mxu0 %v1504
  %v1692 = vpop.f32.mrb[0].mxu0
  %v1693 = vadd.f32 0.0, %v1692
  %v1694 = vpop.f32.mrb[0].mxu0
  %1695 = vmatprep.mubr.f32.mxu0 %v1554
  %1696 = vmatmul.mubr.f32.gmra.mrb[0].mxu0 %v1506
  %v1697 = vpop.f32.mrb[0].mxu0
  %v1698 = vadd.f32 0.0, %v1697
  %v1699 = vpop.f32.mrb[0].mxu0
  %1700 = vdwg.mxu0
  %s1701 = scalar_lea.vmem %s2, 4
  %v1702 = vld [vmem:[%s1701] sm:$0x1]
  %1704 = vset.pattern.permute.xlu0 0
  %1705 = vperm.xlu0 %1704, %v1623
  %v1706 = vpop.permute.xlu0 %1705
  %1709 = vset.pattern.permute.xlu0 0
  %1710 = vperm.xlu0 %1709, %v1628
  %v1711 = vpop.permute.xlu0 %1710
  %1714 = vset.pattern.permute.xlu0 0
  %1715 = vperm.xlu0 %1714, %v1633
  %v1716 = vpop.permute.xlu0 %1715
  %1719 = vset.pattern.permute.xlu0 0
  %1720 = vperm.xlu0 %1719, %v1638
  %v1721 = vpop.permute.xlu0 %1720
  %1724 = vset.pattern.permute.xlu0 0
  %1725 = vperm.xlu0 %1724, %v1643
  %v1726 = vpop.permute.xlu0 %1725
  %1729 = vset.pattern.permute.xlu0 0
  %1730 = vperm.xlu0 %1729, %v1648
  %v1731 = vpop.permute.xlu0 %1730
  %1734 = vset.pattern.permute.xlu0 0
  %1735 = vperm.xlu0 %1734, %v1653
  %v1736 = vpop.permute.xlu0 %1735
  %1739 = vset.pattern.permute.xlu0 0
  %1740 = vperm.xlu0 %1739, %v1658
  %v1741 = vpop.permute.xlu0 %1740
  %1744 = vset.pattern.permute.xlu0 0
  %1745 = vperm.xlu0 %1744, %v1663
  %v1746 = vpop.permute.xlu0 %1745
  %1749 = vset.pattern.permute.xlu0 0
  %1750 = vperm.xlu0 %1749, %v1668
  %v1751 = vpop.permute.xlu0 %1750
  %1754 = vset.pattern.permute.xlu0 0
  %1755 = vperm.xlu0 %1754, %v1673
  %v1756 = vpop.permute.xlu0 %1755
  %1759 = vset.pattern.permute.xlu0 0
  %1760 = vperm.xlu0 %1759, %v1678
  %v1761 = vpop.permute.xlu0 %1760
  %1764 = vset.pattern.permute.xlu0 0
  %1765 = vperm.xlu0 %1764, %v1683
  %v1766 = vpop.permute.xlu0 %1765
  %1769 = vset.pattern.permute.xlu0 0
  %1770 = vperm.xlu0 %1769, %v1688
  %v1771 = vpop.permute.xlu0 %1770
  %1774 = vset.pattern.permute.xlu0 0
  %1775 = vperm.xlu0 %1774, %v1693
  %v1776 = vpop.permute.xlu0 %1775
  %1779 = vset.pattern.permute.xlu0 0
  %1780 = vperm.xlu0 %1779, %v1698
  %v1781 = vpop.permute.xlu0 %1780
  %v1784 = vlaneseq
  %v1785 = vshrl.u32 %v1784, 7
  %v1786 = vsub.s32 0, %v1785
  %v1787 = vrot.slane %v1702, %v1786
  %v1789 = vmul.f32 %v1706, %v1787
  %v1790 = vmul.f32 %v1711, %v1787
  %v1791 = vmul.f32 %v1716, %v1787
  %v1792 = vmul.f32 %v1721, %v1787
  %v1793 = vmul.f32 %v1726, %v1787
  %v1794 = vmul.f32 %v1731, %v1787
  %v1795 = vmul.f32 %v1736, %v1787
  %v1796 = vmul.f32 %v1741, %v1787
  %v1797 = vmul.f32 %v1746, %v1787
  %v1798 = vmul.f32 %v1751, %v1787
  %v1799 = vmul.f32 %v1756, %v1787
  %v1800 = vmul.f32 %v1761, %v1787
  %v1801 = vmul.f32 %v1766, %v1787
  %v1802 = vmul.f32 %v1771, %v1787
  %v1803 = vmul.f32 %v1776, %v1787
  %v1804 = vmul.f32 %v1781, %v1787
  %v1805 = vadd.f32 %v1459, %v1789
  %v1806 = vadd.f32 %v1460, %v1790
  %v1807 = vadd.f32 %v1461, %v1791
  %v1808 = vadd.f32 %v1462, %v1792
  %v1809 = vadd.f32 %v1463, %v1793
  %v1810 = vadd.f32 %v1464, %v1794
  %v1811 = vadd.f32 %v1465, %v1795
  %v1812 = vadd.f32 %v1466, %v1796
  %v1813 = vadd.f32 %v1467, %v1797
  %v1814 = vadd.f32 %v1468, %v1798
  %v1815 = vadd.f32 %v1469, %v1799
  %v1816 = vadd.f32 %v1470, %v1800
  %v1817 = vadd.f32 %v1471, %v1801
  %v1818 = vadd.f32 %v1472, %v1802
  %v1819 = vadd.f32 %v1473, %v1803
  %v1820 = vadd.f32 %v1474, %v1804
  %s1821 = scalar_lea.vmem %s1, 1280
  %v1822 = vld [vmem:[%s1821] sm:$0xff]
  %v1823 = vld [vmem:[%s1821 + $0x8] sm:$0xff]
  %v1824 = vld [vmem:[%s1821 + $0x10] sm:$0xff]
  %v1825 = vld [vmem:[%s1821 + $0x18] sm:$0xff]
  %v1826 = vld [vmem:[%s1821 + $0x20] sm:$0xff]
  %v1827 = vld [vmem:[%s1821 + $0x28] sm:$0xff]
  %v1828 = vld [vmem:[%s1821 + $0x30] sm:$0xff]
  %v1829 = vld [vmem:[%s1821 + $0x38] sm:$0xff]
  %v1830 = vld [vmem:[%s1821 + $0x40] sm:$0xff]
  %v1831 = vld [vmem:[%s1821 + $0x48] sm:$0xff]
  %v1832 = vld [vmem:[%s1821 + $0x50] sm:$0xff]
  %v1833 = vld [vmem:[%s1821 + $0x58] sm:$0xff]
  %v1834 = vld [vmem:[%s1821 + $0x60] sm:$0xff]
  %v1835 = vld [vmem:[%s1821 + $0x68] sm:$0xff]
  %v1836 = vld [vmem:[%s1821 + $0x70] sm:$0xff]
  %v1837 = vld [vmem:[%s1821 + $0x78] sm:$0xff]
  %v1838 = vld [vmem:[%s1821 + $0x80] sm:$0xff]
  %v1839 = vld [vmem:[%s1821 + $0x88] sm:$0xff]
  %v1840 = vld [vmem:[%s1821 + $0x90] sm:$0xff]
  %v1841 = vld [vmem:[%s1821 + $0x98] sm:$0xff]
  %v1842 = vld [vmem:[%s1821 + $0xa0] sm:$0xff]
  %v1843 = vld [vmem:[%s1821 + $0xa8] sm:$0xff]
  %v1844 = vld [vmem:[%s1821 + $0xb0] sm:$0xff]
  %v1845 = vld [vmem:[%s1821 + $0xb8] sm:$0xff]
  %v1846 = vld [vmem:[%s1821 + $0xc0] sm:$0xff]
  %v1847 = vld [vmem:[%s1821 + $0xc8] sm:$0xff]
  %v1848 = vld [vmem:[%s1821 + $0xd0] sm:$0xff]
  %v1849 = vld [vmem:[%s1821 + $0xd8] sm:$0xff]
  %v1850 = vld [vmem:[%s1821 + $0xe0] sm:$0xff]
  %v1851 = vld [vmem:[%s1821 + $0xe8] sm:$0xff]
  %v1852 = vld [vmem:[%s1821 + $0xf0] sm:$0xff]
  %v1853 = vld [vmem:[%s1821 + $0xf8] sm:$0xff]
  %v1855 = vsel %vm124, %v1823, 0
  %v1858 = vsel %vm124, %v1825, 0
  %v1861 = vsel %vm124, %v1827, 0
  %v1864 = vsel %vm124, %v1829, 0
  %v1867 = vsel %vm124, %v1831, 0
  %v1870 = vsel %vm124, %v1833, 0
  %v1873 = vsel %vm124, %v1835, 0
  %v1876 = vsel %vm124, %v1837, 0
  %v1879 = vsel %vm124, %v1839, 0
  %v1882 = vsel %vm124, %v1841, 0
  %v1885 = vsel %vm124, %v1843, 0
  %v1888 = vsel %vm124, %v1845, 0
  %v1891 = vsel %vm124, %v1847, 0
  %v1894 = vsel %vm124, %v1849, 0
  %v1897 = vsel %vm124, %v1851, 0
  %v1900 = vsel %vm124, %v1853, 0
  %1902 = vmatprep.subr.mxu0 0.0
  %1903 = vmatpush1.msra.mxu0 %v67
  %1904 = vmatprep.subr.mxu0 0.0
  %1905 = vmatpush1.msra.mxu0 %v68
  %1906 = vmatprep.subr.mxu0 0.0
  %1907 = vmatpush1.msra.mxu0 %v69
  %1908 = vmatprep.subr.mxu0 0.0
  %1909 = vmatpush1.msra.mxu0 %v70
  %1910 = vmatprep.subr.mxu0 0.0
  %1911 = vmatpush1.msra.mxu0 %v71
  %1912 = vmatprep.subr.mxu0 0.0
  %1913 = vmatpush1.msra.mxu0 %v72
  %1914 = vmatprep.subr.mxu0 0.0
  %1915 = vmatpush1.msra.mxu0 %v73
  %1916 = vmatprep.subr.mxu0 0.0
  %1917 = vmatpush1.msra.mxu0 %v74
  %1918 = vmatprep.subr.mxu0 0.0
  %1919 = vmatpush1.msra.mxu0 %v75
  %1920 = vmatprep.subr.mxu0 0.0
  %1921 = vmatpush1.msra.mxu0 %v76
  %1922 = vmatprep.subr.mxu0 0.0
  %1923 = vmatpush1.msra.mxu0 %v77
  %1924 = vmatprep.subr.mxu0 0.0
  %1925 = vmatpush1.msra.mxu0 %v78
  %1926 = vmatprep.subr.mxu0 0.0
  %1927 = vmatpush1.msra.mxu0 %v79
  %1928 = vmatprep.subr.mxu0 0.0
  %1929 = vmatpush1.msra.mxu0 %v80
  %1930 = vmatprep.subr.mxu0 0.0
  %1931 = vmatpush1.msra.mxu0 %v81
  %1932 = vmatprep.subr.mxu0 0.0
  %1933 = vmatpush1.msra.mxu0 %v82
  %1934 = vmatprep.subr.mxu0 0.0
  %1935 = vmatpush1.msra.mxu0 %v83
  %1936 = vmatprep.subr.mxu0 0.0
  %1937 = vmatpush1.msra.mxu0 %v84
  %1938 = vmatprep.subr.mxu0 0.0
  %1939 = vmatpush1.msra.mxu0 %v85
  %1940 = vmatprep.subr.mxu0 0.0
  %1941 = vmatpush1.msra.mxu0 %v86
  %1942 = vmatprep.subr.mxu0 0.0
  %1943 = vmatpush1.msra.mxu0 %v87
  %1944 = vmatprep.subr.mxu0 0.0
  %1945 = vmatpush1.msra.mxu0 %v88
  %1946 = vmatprep.subr.mxu0 0.0
  %1947 = vmatpush1.msra.mxu0 %v89
  %1948 = vmatprep.subr.mxu0 0.0
  %1949 = vmatpush1.msra.mxu0 %v90
  %1950 = vmatprep.subr.mxu0 0.0
  %1951 = vmatpush1.msra.mxu0 %v91
  %1952 = vmatprep.subr.mxu0 0.0
  %1953 = vmatpush1.msra.mxu0 0.0
  %1954 = vmatprep.subr.mxu0 0.0
  %1955 = vmatpush1.msra.mxu0 0.0
  %1956 = vmatprep.subr.mxu0 0.0
  %1957 = vmatpush1.msra.mxu0 0.0
  %1958 = vmatprep.subr.mxu0 0.0
  %1959 = vmatpush1.msra.mxu0 0.0
  %1960 = vmatprep.subr.mxu0 0.0
  %1961 = vmatpush1.msra.mxu0 0.0
  %1962 = vmatprep.subr.mxu0 0.0
  %1963 = vmatpush1.msra.mxu0 0.0
  %1964 = vmatprep.subr.mxu0 0.0
  %1965 = vmatpush1.msra.mxu0 0.0
  %1966 = vmatprep.mubr.f32.mxu0 %v1855
  %1967 = vmatmul.mubr.f32.gmra.mrb[0].mxu0 %v1822
  %v1968 = vpop.f32.mrb[0].mxu0
  %v1969 = vadd.f32 0.0, %v1968
  %v1970 = vpop.f32.mrb[0].mxu0
  %1971 = vmatprep.mubr.f32.mxu0 %v1858
  %1972 = vmatmul.mubr.f32.gmra.mrb[0].mxu0 %v1824
  %v1973 = vpop.f32.mrb[0].mxu0
  %v1974 = vadd.f32 0.0, %v1973
  %v1975 = vpop.f32.mrb[0].mxu0
  %1976 = vmatprep.mubr.f32.mxu0 %v1861
  %1977 = vmatmul.mubr.f32.gmra.mrb[0].mxu0 %v1826
  %v1978 = vpop.f32.mrb[0].mxu0
  %v1979 = vadd.f32 0.0, %v1978
  %v1980 = vpop.f32.mrb[0].mxu0
  %1981 = vmatprep.mubr.f32.mxu0 %v1864
  %1982 = vmatmul.mubr.f32.gmra.mrb[0].mxu0 %v1828
  %v1983 = vpop.f32.mrb[0].mxu0
  %v1984 = vadd.f32 0.0, %v1983
  %v1985 = vpop.f32.mrb[0].mxu0
  %1986 = vmatprep.mubr.f32.mxu0 %v1867
  %1987 = vmatmul.mubr.f32.gmra.mrb[0].mxu0 %v1830
  %v1988 = vpop.f32.mrb[0].mxu0
  %v1989 = vadd.f32 0.0, %v1988
  %v1990 = vpop.f32.mrb[0].mxu0
  %1991 = vmatprep.mubr.f32.mxu0 %v1870
  %1992 = vmatmul.mubr.f32.gmra.mrb[0].mxu0 %v1832
  %v1993 = vpop.f32.mrb[0].mxu0
  %v1994 = vadd.f32 0.0, %v1993
  %v1995 = vpop.f32.mrb[0].mxu0
  %1996 = vmatprep.mubr.f32.mxu0 %v1873
  %1997 = vmatmul.mubr.f32.gmra.mrb[0].mxu0 %v1834
  %v1998 = vpop.f32.mrb[0].mxu0
  %v1999 = vadd.f32 0.0, %v1998
  %v2000 = vpop.f32.mrb[0].mxu0
  %2001 = vmatprep.mubr.f32.mxu0 %v1876
  %2002 = vmatmul.mubr.f32.gmra.mrb[0].mxu0 %v1836
  %v2003 = vpop.f32.mrb[0].mxu0
  %v2004 = vadd.f32 0.0, %v2003
  %v2005 = vpop.f32.mrb[0].mxu0
  %2006 = vmatprep.mubr.f32.mxu0 %v1879
  %2007 = vmatmul.mubr.f32.gmra.mrb[0].mxu0 %v1838
  %v2008 = vpop.f32.mrb[0].mxu0
  %v2009 = vadd.f32 0.0, %v2008
  %v2010 = vpop.f32.mrb[0].mxu0
  %2011 = vmatprep.mubr.f32.mxu0 %v1882
  %2012 = vmatmul.mubr.f32.gmra.mrb[0].mxu0 %v1840
  %v2013 = vpop.f32.mrb[0].mxu0
  %v2014 = vadd.f32 0.0, %v2013
  %v2015 = vpop.f32.mrb[0].mxu0
  %2016 = vmatprep.mubr.f32.mxu0 %v1885
  %2017 = vmatmul.mubr.f32.gmra.mrb[0].mxu0 %v1842
  %v2018 = vpop.f32.mrb[0].mxu0
  %v2019 = vadd.f32 0.0, %v2018
  %v2020 = vpop.f32.mrb[0].mxu0
  %2021 = vmatprep.mubr.f32.mxu0 %v1888
  %2022 = vmatmul.mubr.f32.gmra.mrb[0].mxu0 %v1844
  %v2023 = vpop.f32.mrb[0].mxu0
  %v2024 = vadd.f32 0.0, %v2023
  %v2025 = vpop.f32.mrb[0].mxu0
  %2026 = vmatprep.mubr.f32.mxu0 %v1891
  %2027 = vmatmul.mubr.f32.gmra.mrb[0].mxu0 %v1846
  %v2028 = vpop.f32.mrb[0].mxu0
  %v2029 = vadd.f32 0.0, %v2028
  %v2030 = vpop.f32.mrb[0].mxu0
  %2031 = vmatprep.mubr.f32.mxu0 %v1894
  %2032 = vmatmul.mubr.f32.gmra.mrb[0].mxu0 %v1848
  %v2033 = vpop.f32.mrb[0].mxu0
  %v2034 = vadd.f32 0.0, %v2033
  %v2035 = vpop.f32.mrb[0].mxu0
  %2036 = vmatprep.mubr.f32.mxu0 %v1897
  %2037 = vmatmul.mubr.f32.gmra.mrb[0].mxu0 %v1850
  %v2038 = vpop.f32.mrb[0].mxu0
  %v2039 = vadd.f32 0.0, %v2038
  %v2040 = vpop.f32.mrb[0].mxu0
  %2041 = vmatprep.mubr.f32.mxu0 %v1900
  %2042 = vmatmul.mubr.f32.gmra.mrb[0].mxu0 %v1852
  %v2043 = vpop.f32.mrb[0].mxu0
  %v2044 = vadd.f32 0.0, %v2043
  %v2045 = vpop.f32.mrb[0].mxu0
  %2046 = vdwg.mxu0
  %s2047 = scalar_lea.vmem %s2, 5
  %v2048 = vld [vmem:[%s2047] sm:$0x1]
  %2050 = vset.pattern.permute.xlu0 0
  %2051 = vperm.xlu0 %2050, %v1969
  %v2052 = vpop.permute.xlu0 %2051
  %2055 = vset.pattern.permute.xlu0 0
  %2056 = vperm.xlu0 %2055, %v1974
  %v2057 = vpop.permute.xlu0 %2056
  %2060 = vset.pattern.permute.xlu0 0
  %2061 = vperm.xlu0 %2060, %v1979
  %v2062 = vpop.permute.xlu0 %2061
  %2065 = vset.pattern.permute.xlu0 0
  %2066 = vperm.xlu0 %2065, %v1984
  %v2067 = vpop.permute.xlu0 %2066
  %2070 = vset.pattern.permute.xlu0 0
  %2071 = vperm.xlu0 %2070, %v1989
  %v2072 = vpop.permute.xlu0 %2071
  %2075 = vset.pattern.permute.xlu0 0
  %2076 = vperm.xlu0 %2075, %v1994
  %v2077 = vpop.permute.xlu0 %2076
  %2080 = vset.pattern.permute.xlu0 0
  %2081 = vperm.xlu0 %2080, %v1999
  %v2082 = vpop.permute.xlu0 %2081
  %2085 = vset.pattern.permute.xlu0 0
  %2086 = vperm.xlu0 %2085, %v2004
  %v2087 = vpop.permute.xlu0 %2086
  %2090 = vset.pattern.permute.xlu0 0
  %2091 = vperm.xlu0 %2090, %v2009
  %v2092 = vpop.permute.xlu0 %2091
  %2095 = vset.pattern.permute.xlu0 0
  %2096 = vperm.xlu0 %2095, %v2014
  %v2097 = vpop.permute.xlu0 %2096
  %2100 = vset.pattern.permute.xlu0 0
  %2101 = vperm.xlu0 %2100, %v2019
  %v2102 = vpop.permute.xlu0 %2101
  %2105 = vset.pattern.permute.xlu0 0
  %2106 = vperm.xlu0 %2105, %v2024
  %v2107 = vpop.permute.xlu0 %2106
  %2110 = vset.pattern.permute.xlu0 0
  %2111 = vperm.xlu0 %2110, %v2029
  %v2112 = vpop.permute.xlu0 %2111
  %2115 = vset.pattern.permute.xlu0 0
  %2116 = vperm.xlu0 %2115, %v2034
  %v2117 = vpop.permute.xlu0 %2116
  %2120 = vset.pattern.permute.xlu0 0
  %2121 = vperm.xlu0 %2120, %v2039
  %v2122 = vpop.permute.xlu0 %2121
  %2125 = vset.pattern.permute.xlu0 0
  %2126 = vperm.xlu0 %2125, %v2044
  %v2127 = vpop.permute.xlu0 %2126
  %v2130 = vlaneseq
  %v2131 = vshrl.u32 %v2130, 7
  %v2132 = vsub.s32 0, %v2131
  %v2133 = vrot.slane %v2048, %v2132
  %v2135 = vmul.f32 %v2052, %v2133
  %v2136 = vmul.f32 %v2057, %v2133
  %v2137 = vmul.f32 %v2062, %v2133
  %v2138 = vmul.f32 %v2067, %v2133
  %v2139 = vmul.f32 %v2072, %v2133
  %v2140 = vmul.f32 %v2077, %v2133
  %v2141 = vmul.f32 %v2082, %v2133
  %v2142 = vmul.f32 %v2087, %v2133
  %v2143 = vmul.f32 %v2092, %v2133
  %v2144 = vmul.f32 %v2097, %v2133
  %v2145 = vmul.f32 %v2102, %v2133
  %v2146 = vmul.f32 %v2107, %v2133
  %v2147 = vmul.f32 %v2112, %v2133
  %v2148 = vmul.f32 %v2117, %v2133
  %v2149 = vmul.f32 %v2122, %v2133
  %v2150 = vmul.f32 %v2127, %v2133
  %v2151 = vadd.f32 %v1805, %v2135
  %v2152 = vadd.f32 %v1806, %v2136
  %v2153 = vadd.f32 %v1807, %v2137
  %v2154 = vadd.f32 %v1808, %v2138
  %v2155 = vadd.f32 %v1809, %v2139
  %v2156 = vadd.f32 %v1810, %v2140
  %v2157 = vadd.f32 %v1811, %v2141
  %v2158 = vadd.f32 %v1812, %v2142
  %v2159 = vadd.f32 %v1813, %v2143
  %v2160 = vadd.f32 %v1814, %v2144
  %v2161 = vadd.f32 %v1815, %v2145
  %v2162 = vadd.f32 %v1816, %v2146
  %v2163 = vadd.f32 %v1817, %v2147
  %v2164 = vadd.f32 %v1818, %v2148
  %v2165 = vadd.f32 %v1819, %v2149
  %v2166 = vadd.f32 %v1820, %v2150
  %s2167 = scalar_lea.vmem %s1, 1536
  %v2168 = vld [vmem:[%s2167] sm:$0xff]
  %v2169 = vld [vmem:[%s2167 + $0x8] sm:$0xff]
  %v2170 = vld [vmem:[%s2167 + $0x10] sm:$0xff]
  %v2171 = vld [vmem:[%s2167 + $0x18] sm:$0xff]
  %v2172 = vld [vmem:[%s2167 + $0x20] sm:$0xff]
  %v2173 = vld [vmem:[%s2167 + $0x28] sm:$0xff]
  %v2174 = vld [vmem:[%s2167 + $0x30] sm:$0xff]
  %v2175 = vld [vmem:[%s2167 + $0x38] sm:$0xff]
  %v2176 = vld [vmem:[%s2167 + $0x40] sm:$0xff]
  %v2177 = vld [vmem:[%s2167 + $0x48] sm:$0xff]
  %v2178 = vld [vmem:[%s2167 + $0x50] sm:$0xff]
  %v2179 = vld [vmem:[%s2167 + $0x58] sm:$0xff]
  %v2180 = vld [vmem:[%s2167 + $0x60] sm:$0xff]
  %v2181 = vld [vmem:[%s2167 + $0x68] sm:$0xff]
  %v2182 = vld [vmem:[%s2167 + $0x70] sm:$0xff]
  %v2183 = vld [vmem:[%s2167 + $0x78] sm:$0xff]
  %v2184 = vld [vmem:[%s2167 + $0x80] sm:$0xff]
  %v2185 = vld [vmem:[%s2167 + $0x88] sm:$0xff]
  %v2186 = vld [vmem:[%s2167 + $0x90] sm:$0xff]
  %v2187 = vld [vmem:[%s2167 + $0x98] sm:$0xff]
  %v2188 = vld [vmem:[%s2167 + $0xa0] sm:$0xff]
  %v2189 = vld [vmem:[%s2167 + $0xa8] sm:$0xff]
  %v2190 = vld [vmem:[%s2167 + $0xb0] sm:$0xff]
  %v2191 = vld [vmem:[%s2167 + $0xb8] sm:$0xff]
  %v2192 = vld [vmem:[%s2167 + $0xc0] sm:$0xff]
  %v2193 = vld [vmem:[%s2167 + $0xc8] sm:$0xff]
  %v2194 = vld [vmem:[%s2167 + $0xd0] sm:$0xff]
  %v2195 = vld [vmem:[%s2167 + $0xd8] sm:$0xff]
  %v2196 = vld [vmem:[%s2167 + $0xe0] sm:$0xff]
  %v2197 = vld [vmem:[%s2167 + $0xe8] sm:$0xff]
  %v2198 = vld [vmem:[%s2167 + $0xf0] sm:$0xff]
  %v2199 = vld [vmem:[%s2167 + $0xf8] sm:$0xff]
  %v2201 = vsel %vm124, %v2169, 0
  %v2204 = vsel %vm124, %v2171, 0
  %v2207 = vsel %vm124, %v2173, 0
  %v2210 = vsel %vm124, %v2175, 0
  %v2213 = vsel %vm124, %v2177, 0
  %v2216 = vsel %vm124, %v2179, 0
  %v2219 = vsel %vm124, %v2181, 0
  %v2222 = vsel %vm124, %v2183, 0
  %v2225 = vsel %vm124, %v2185, 0
  %v2228 = vsel %vm124, %v2187, 0
  %v2231 = vsel %vm124, %v2189, 0
  %v2234 = vsel %vm124, %v2191, 0
  %v2237 = vsel %vm124, %v2193, 0
  %v2240 = vsel %vm124, %v2195, 0
  %v2243 = vsel %vm124, %v2197, 0
  %v2246 = vsel %vm124, %v2199, 0
  %2248 = vmatprep.subr.mxu0 0.0
  %2249 = vmatpush1.msra.mxu0 %v67
  %2250 = vmatprep.subr.mxu0 0.0
  %2251 = vmatpush1.msra.mxu0 %v68
  %2252 = vmatprep.subr.mxu0 0.0
  %2253 = vmatpush1.msra.mxu0 %v69
  %2254 = vmatprep.subr.mxu0 0.0
  %2255 = vmatpush1.msra.mxu0 %v70
  %2256 = vmatprep.subr.mxu0 0.0
  %2257 = vmatpush1.msra.mxu0 %v71
  %2258 = vmatprep.subr.mxu0 0.0
  %2259 = vmatpush1.msra.mxu0 %v72
  %2260 = vmatprep.subr.mxu0 0.0
  %2261 = vmatpush1.msra.mxu0 %v73
  %2262 = vmatprep.subr.mxu0 0.0
  %2263 = vmatpush1.msra.mxu0 %v74
  %2264 = vmatprep.subr.mxu0 0.0
  %2265 = vmatpush1.msra.mxu0 %v75
  %2266 = vmatprep.subr.mxu0 0.0
  %2267 = vmatpush1.msra.mxu0 %v76
  %2268 = vmatprep.subr.mxu0 0.0
  %2269 = vmatpush1.msra.mxu0 %v77
  %2270 = vmatprep.subr.mxu0 0.0
  %2271 = vmatpush1.msra.mxu0 %v78
  %2272 = vmatprep.subr.mxu0 0.0
  %2273 = vmatpush1.msra.mxu0 %v79
  %2274 = vmatprep.subr.mxu0 0.0
  %2275 = vmatpush1.msra.mxu0 %v80
  %2276 = vmatprep.subr.mxu0 0.0
  %2277 = vmatpush1.msra.mxu0 %v81
  %2278 = vmatprep.subr.mxu0 0.0
  %2279 = vmatpush1.msra.mxu0 %v82
  %2280 = vmatprep.subr.mxu0 0.0
  %2281 = vmatpush1.msra.mxu0 %v83
  %2282 = vmatprep.subr.mxu0 0.0
  %2283 = vmatpush1.msra.mxu0 %v84
  %2284 = vmatprep.subr.mxu0 0.0
  %2285 = vmatpush1.msra.mxu0 %v85
  %2286 = vmatprep.subr.mxu0 0.0
  %2287 = vmatpush1.msra.mxu0 %v86
  %2288 = vmatprep.subr.mxu0 0.0
  %2289 = vmatpush1.msra.mxu0 %v87
  %2290 = vmatprep.subr.mxu0 0.0
  %2291 = vmatpush1.msra.mxu0 %v88
  %2292 = vmatprep.subr.mxu0 0.0
  %2293 = vmatpush1.msra.mxu0 %v89
  %2294 = vmatprep.subr.mxu0 0.0
  %2295 = vmatpush1.msra.mxu0 %v90
  %2296 = vmatprep.subr.mxu0 0.0
  %2297 = vmatpush1.msra.mxu0 %v91
  %2298 = vmatprep.subr.mxu0 0.0
  %2299 = vmatpush1.msra.mxu0 0.0
  %2300 = vmatprep.subr.mxu0 0.0
  %2301 = vmatpush1.msra.mxu0 0.0
  %2302 = vmatprep.subr.mxu0 0.0
  %2303 = vmatpush1.msra.mxu0 0.0
  %2304 = vmatprep.subr.mxu0 0.0
  %2305 = vmatpush1.msra.mxu0 0.0
  %2306 = vmatprep.subr.mxu0 0.0
  %2307 = vmatpush1.msra.mxu0 0.0
  %2308 = vmatprep.subr.mxu0 0.0
  %2309 = vmatpush1.msra.mxu0 0.0
  %2310 = vmatprep.subr.mxu0 0.0
  %2311 = vmatpush1.msra.mxu0 0.0
  %2312 = vmatprep.mubr.f32.mxu0 %v2201
  %2313 = vmatmul.mubr.f32.gmra.mrb[0].mxu0 %v2168
  %v2314 = vpop.f32.mrb[0].mxu0
  %v2315 = vadd.f32 0.0, %v2314
  %v2316 = vpop.f32.mrb[0].mxu0
  %2317 = vmatprep.mubr.f32.mxu0 %v2204
  %2318 = vmatmul.mubr.f32.gmra.mrb[0].mxu0 %v2170
  %v2319 = vpop.f32.mrb[0].mxu0
  %v2320 = vadd.f32 0.0, %v2319
  %v2321 = vpop.f32.mrb[0].mxu0
  %2322 = vmatprep.mubr.f32.mxu0 %v2207
  %2323 = vmatmul.mubr.f32.gmra.mrb[0].mxu0 %v2172
  %v2324 = vpop.f32.mrb[0].mxu0
  %v2325 = vadd.f32 0.0, %v2324
  %v2326 = vpop.f32.mrb[0].mxu0
  %2327 = vmatprep.mubr.f32.mxu0 %v2210
  %2328 = vmatmul.mubr.f32.gmra.mrb[0].mxu0 %v2174
  %v2329 = vpop.f32.mrb[0].mxu0
  %v2330 = vadd.f32 0.0, %v2329
  %v2331 = vpop.f32.mrb[0].mxu0
  %2332 = vmatprep.mubr.f32.mxu0 %v2213
  %2333 = vmatmul.mubr.f32.gmra.mrb[0].mxu0 %v2176
  %v2334 = vpop.f32.mrb[0].mxu0
  %v2335 = vadd.f32 0.0, %v2334
  %v2336 = vpop.f32.mrb[0].mxu0
  %2337 = vmatprep.mubr.f32.mxu0 %v2216
  %2338 = vmatmul.mubr.f32.gmra.mrb[0].mxu0 %v2178
  %v2339 = vpop.f32.mrb[0].mxu0
  %v2340 = vadd.f32 0.0, %v2339
  %v2341 = vpop.f32.mrb[0].mxu0
  %2342 = vmatprep.mubr.f32.mxu0 %v2219
  %2343 = vmatmul.mubr.f32.gmra.mrb[0].mxu0 %v2180
  %v2344 = vpop.f32.mrb[0].mxu0
  %v2345 = vadd.f32 0.0, %v2344
  %v2346 = vpop.f32.mrb[0].mxu0
  %2347 = vmatprep.mubr.f32.mxu0 %v2222
  %2348 = vmatmul.mubr.f32.gmra.mrb[0].mxu0 %v2182
  %v2349 = vpop.f32.mrb[0].mxu0
  %v2350 = vadd.f32 0.0, %v2349
  %v2351 = vpop.f32.mrb[0].mxu0
  %2352 = vmatprep.mubr.f32.mxu0 %v2225
  %2353 = vmatmul.mubr.f32.gmra.mrb[0].mxu0 %v2184
  %v2354 = vpop.f32.mrb[0].mxu0
  %v2355 = vadd.f32 0.0, %v2354
  %v2356 = vpop.f32.mrb[0].mxu0
  %2357 = vmatprep.mubr.f32.mxu0 %v2228
  %2358 = vmatmul.mubr.f32.gmra.mrb[0].mxu0 %v2186
  %v2359 = vpop.f32.mrb[0].mxu0
  %v2360 = vadd.f32 0.0, %v2359
  %v2361 = vpop.f32.mrb[0].mxu0
  %2362 = vmatprep.mubr.f32.mxu0 %v2231
  %2363 = vmatmul.mubr.f32.gmra.mrb[0].mxu0 %v2188
  %v2364 = vpop.f32.mrb[0].mxu0
  %v2365 = vadd.f32 0.0, %v2364
  %v2366 = vpop.f32.mrb[0].mxu0
  %2367 = vmatprep.mubr.f32.mxu0 %v2234
  %2368 = vmatmul.mubr.f32.gmra.mrb[0].mxu0 %v2190
  %v2369 = vpop.f32.mrb[0].mxu0
  %v2370 = vadd.f32 0.0, %v2369
  %v2371 = vpop.f32.mrb[0].mxu0
  %2372 = vmatprep.mubr.f32.mxu0 %v2237
  %2373 = vmatmul.mubr.f32.gmra.mrb[0].mxu0 %v2192
  %v2374 = vpop.f32.mrb[0].mxu0
  %v2375 = vadd.f32 0.0, %v2374
  %v2376 = vpop.f32.mrb[0].mxu0
  %2377 = vmatprep.mubr.f32.mxu0 %v2240
  %2378 = vmatmul.mubr.f32.gmra.mrb[0].mxu0 %v2194
  %v2379 = vpop.f32.mrb[0].mxu0
  %v2380 = vadd.f32 0.0, %v2379
  %v2381 = vpop.f32.mrb[0].mxu0
  %2382 = vmatprep.mubr.f32.mxu0 %v2243
  %2383 = vmatmul.mubr.f32.gmra.mrb[0].mxu0 %v2196
  %v2384 = vpop.f32.mrb[0].mxu0
  %v2385 = vadd.f32 0.0, %v2384
  %v2386 = vpop.f32.mrb[0].mxu0
  %2387 = vmatprep.mubr.f32.mxu0 %v2246
  %2388 = vmatmul.mubr.f32.gmra.mrb[0].mxu0 %v2198
  %v2389 = vpop.f32.mrb[0].mxu0
  %v2390 = vadd.f32 0.0, %v2389
  %v2391 = vpop.f32.mrb[0].mxu0
  %2392 = vdwg.mxu0
  %s2393 = scalar_lea.vmem %s2, 6
  %v2394 = vld [vmem:[%s2393] sm:$0x1]
  %2396 = vset.pattern.permute.xlu0 0
  %2397 = vperm.xlu0 %2396, %v2315
  %v2398 = vpop.permute.xlu0 %2397
  %2401 = vset.pattern.permute.xlu0 0
  %2402 = vperm.xlu0 %2401, %v2320
  %v2403 = vpop.permute.xlu0 %2402
  %2406 = vset.pattern.permute.xlu0 0
  %2407 = vperm.xlu0 %2406, %v2325
  %v2408 = vpop.permute.xlu0 %2407
  %2411 = vset.pattern.permute.xlu0 0
  %2412 = vperm.xlu0 %2411, %v2330
  %v2413 = vpop.permute.xlu0 %2412
  %2416 = vset.pattern.permute.xlu0 0
  %2417 = vperm.xlu0 %2416, %v2335
  %v2418 = vpop.permute.xlu0 %2417
  %2421 = vset.pattern.permute.xlu0 0
  %2422 = vperm.xlu0 %2421, %v2340
  %v2423 = vpop.permute.xlu0 %2422
  %2426 = vset.pattern.permute.xlu0 0
  %2427 = vperm.xlu0 %2426, %v2345
  %v2428 = vpop.permute.xlu0 %2427
  %2431 = vset.pattern.permute.xlu0 0
  %2432 = vperm.xlu0 %2431, %v2350
  %v2433 = vpop.permute.xlu0 %2432
  %2436 = vset.pattern.permute.xlu0 0
  %2437 = vperm.xlu0 %2436, %v2355
  %v2438 = vpop.permute.xlu0 %2437
  %2441 = vset.pattern.permute.xlu0 0
  %2442 = vperm.xlu0 %2441, %v2360
  %v2443 = vpop.permute.xlu0 %2442
  %2446 = vset.pattern.permute.xlu0 0
  %2447 = vperm.xlu0 %2446, %v2365
  %v2448 = vpop.permute.xlu0 %2447
  %2451 = vset.pattern.permute.xlu0 0
  %2452 = vperm.xlu0 %2451, %v2370
  %v2453 = vpop.permute.xlu0 %2452
  %2456 = vset.pattern.permute.xlu0 0
  %2457 = vperm.xlu0 %2456, %v2375
  %v2458 = vpop.permute.xlu0 %2457
  %2461 = vset.pattern.permute.xlu0 0
  %2462 = vperm.xlu0 %2461, %v2380
  %v2463 = vpop.permute.xlu0 %2462
  %2466 = vset.pattern.permute.xlu0 0
  %2467 = vperm.xlu0 %2466, %v2385
  %v2468 = vpop.permute.xlu0 %2467
  %2471 = vset.pattern.permute.xlu0 0
  %2472 = vperm.xlu0 %2471, %v2390
  %v2473 = vpop.permute.xlu0 %2472
  %v2476 = vlaneseq
  %v2477 = vshrl.u32 %v2476, 7
  %v2478 = vsub.s32 0, %v2477
  %v2479 = vrot.slane %v2394, %v2478
  %v2481 = vmul.f32 %v2398, %v2479
  %v2482 = vmul.f32 %v2403, %v2479
  %v2483 = vmul.f32 %v2408, %v2479
  %v2484 = vmul.f32 %v2413, %v2479
  %v2485 = vmul.f32 %v2418, %v2479
  %v2486 = vmul.f32 %v2423, %v2479
  %v2487 = vmul.f32 %v2428, %v2479
  %v2488 = vmul.f32 %v2433, %v2479
  %v2489 = vmul.f32 %v2438, %v2479
  %v2490 = vmul.f32 %v2443, %v2479
  %v2491 = vmul.f32 %v2448, %v2479
  %v2492 = vmul.f32 %v2453, %v2479
  %v2493 = vmul.f32 %v2458, %v2479
  %v2494 = vmul.f32 %v2463, %v2479
  %v2495 = vmul.f32 %v2468, %v2479
  %v2496 = vmul.f32 %v2473, %v2479
  %v2497 = vadd.f32 %v2151, %v2481
  %v2498 = vadd.f32 %v2152, %v2482
  %v2499 = vadd.f32 %v2153, %v2483
  %v2500 = vadd.f32 %v2154, %v2484
  %v2501 = vadd.f32 %v2155, %v2485
  %v2502 = vadd.f32 %v2156, %v2486
  %v2503 = vadd.f32 %v2157, %v2487
  %v2504 = vadd.f32 %v2158, %v2488
  %v2505 = vadd.f32 %v2159, %v2489
  %v2506 = vadd.f32 %v2160, %v2490
  %v2507 = vadd.f32 %v2161, %v2491
  %v2508 = vadd.f32 %v2162, %v2492
  %v2509 = vadd.f32 %v2163, %v2493
  %v2510 = vadd.f32 %v2164, %v2494
  %v2511 = vadd.f32 %v2165, %v2495
  %v2512 = vadd.f32 %v2166, %v2496
  %s2513 = scalar_lea.vmem %s1, 1792
  %v2514 = vld [vmem:[%s2513] sm:$0xff]
  %v2515 = vld [vmem:[%s2513 + $0x8] sm:$0xff]
  %v2516 = vld [vmem:[%s2513 + $0x10] sm:$0xff]
  %v2517 = vld [vmem:[%s2513 + $0x18] sm:$0xff]
  %v2518 = vld [vmem:[%s2513 + $0x20] sm:$0xff]
  %v2519 = vld [vmem:[%s2513 + $0x28] sm:$0xff]
  %v2520 = vld [vmem:[%s2513 + $0x30] sm:$0xff]
  %v2521 = vld [vmem:[%s2513 + $0x38] sm:$0xff]
  %v2522 = vld [vmem:[%s2513 + $0x40] sm:$0xff]
  %v2523 = vld [vmem:[%s2513 + $0x48] sm:$0xff]
  %v2524 = vld [vmem:[%s2513 + $0x50] sm:$0xff]
  %v2525 = vld [vmem:[%s2513 + $0x58] sm:$0xff]
  %v2526 = vld [vmem:[%s2513 + $0x60] sm:$0xff]
  %v2527 = vld [vmem:[%s2513 + $0x68] sm:$0xff]
  %v2528 = vld [vmem:[%s2513 + $0x70] sm:$0xff]
  %v2529 = vld [vmem:[%s2513 + $0x78] sm:$0xff]
  %v2530 = vld [vmem:[%s2513 + $0x80] sm:$0xff]
  %v2531 = vld [vmem:[%s2513 + $0x88] sm:$0xff]
  %v2532 = vld [vmem:[%s2513 + $0x90] sm:$0xff]
  %v2533 = vld [vmem:[%s2513 + $0x98] sm:$0xff]
  %v2534 = vld [vmem:[%s2513 + $0xa0] sm:$0xff]
  %v2535 = vld [vmem:[%s2513 + $0xa8] sm:$0xff]
  %v2536 = vld [vmem:[%s2513 + $0xb0] sm:$0xff]
  %v2537 = vld [vmem:[%s2513 + $0xb8] sm:$0xff]
  %v2538 = vld [vmem:[%s2513 + $0xc0] sm:$0xff]
  %v2539 = vld [vmem:[%s2513 + $0xc8] sm:$0xff]
  %v2540 = vld [vmem:[%s2513 + $0xd0] sm:$0xff]
  %v2541 = vld [vmem:[%s2513 + $0xd8] sm:$0xff]
  %v2542 = vld [vmem:[%s2513 + $0xe0] sm:$0xff]
  %v2543 = vld [vmem:[%s2513 + $0xe8] sm:$0xff]
  %v2544 = vld [vmem:[%s2513 + $0xf0] sm:$0xff]
  %v2545 = vld [vmem:[%s2513 + $0xf8] sm:$0xff]
  %v2547 = vsel %vm124, %v2515, 0
  %v2550 = vsel %vm124, %v2517, 0
  %v2553 = vsel %vm124, %v2519, 0
  %v2556 = vsel %vm124, %v2521, 0
  %v2559 = vsel %vm124, %v2523, 0
  %v2562 = vsel %vm124, %v2525, 0
  %v2565 = vsel %vm124, %v2527, 0
  %v2568 = vsel %vm124, %v2529, 0
  %v2571 = vsel %vm124, %v2531, 0
  %v2574 = vsel %vm124, %v2533, 0
  %v2577 = vsel %vm124, %v2535, 0
  %v2580 = vsel %vm124, %v2537, 0
  %v2583 = vsel %vm124, %v2539, 0
  %v2586 = vsel %vm124, %v2541, 0
  %v2589 = vsel %vm124, %v2543, 0
  %v2592 = vsel %vm124, %v2545, 0
  %2594 = vmatprep.subr.mxu0 0.0
  %2595 = vmatpush1.msra.mxu0 %v67
  %2596 = vmatprep.subr.mxu0 0.0
  %2597 = vmatpush1.msra.mxu0 %v68
  %2598 = vmatprep.subr.mxu0 0.0
  %2599 = vmatpush1.msra.mxu0 %v69
  %2600 = vmatprep.subr.mxu0 0.0
  %2601 = vmatpush1.msra.mxu0 %v70
  %2602 = vmatprep.subr.mxu0 0.0
  %2603 = vmatpush1.msra.mxu0 %v71
  %2604 = vmatprep.subr.mxu0 0.0
  %2605 = vmatpush1.msra.mxu0 %v72
  %2606 = vmatprep.subr.mxu0 0.0
  %2607 = vmatpush1.msra.mxu0 %v73
  %2608 = vmatprep.subr.mxu0 0.0
  %2609 = vmatpush1.msra.mxu0 %v74
  %2610 = vmatprep.subr.mxu0 0.0
  %2611 = vmatpush1.msra.mxu0 %v75
  %2612 = vmatprep.subr.mxu0 0.0
  %2613 = vmatpush1.msra.mxu0 %v76
  %2614 = vmatprep.subr.mxu0 0.0
  %2615 = vmatpush1.msra.mxu0 %v77
  %2616 = vmatprep.subr.mxu0 0.0
  %2617 = vmatpush1.msra.mxu0 %v78
  %2618 = vmatprep.subr.mxu0 0.0
  %2619 = vmatpush1.msra.mxu0 %v79
  %2620 = vmatprep.subr.mxu0 0.0
  %2621 = vmatpush1.msra.mxu0 %v80
  %2622 = vmatprep.subr.mxu0 0.0
  %2623 = vmatpush1.msra.mxu0 %v81
  %2624 = vmatprep.subr.mxu0 0.0
  %2625 = vmatpush1.msra.mxu0 %v82
  %2626 = vmatprep.subr.mxu0 0.0
  %2627 = vmatpush1.msra.mxu0 %v83
  %2628 = vmatprep.subr.mxu0 0.0
  %2629 = vmatpush1.msra.mxu0 %v84
  %2630 = vmatprep.subr.mxu0 0.0
  %2631 = vmatpush1.msra.mxu0 %v85
  %2632 = vmatprep.subr.mxu0 0.0
  %2633 = vmatpush1.msra.mxu0 %v86
  %2634 = vmatprep.subr.mxu0 0.0
  %2635 = vmatpush1.msra.mxu0 %v87
  %2636 = vmatprep.subr.mxu0 0.0
  %2637 = vmatpush1.msra.mxu0 %v88
  %2638 = vmatprep.subr.mxu0 0.0
  %2639 = vmatpush1.msra.mxu0 %v89
  %2640 = vmatprep.subr.mxu0 0.0
  %2641 = vmatpush1.msra.mxu0 %v90
  %2642 = vmatprep.subr.mxu0 0.0
  %2643 = vmatpush1.msra.mxu0 %v91
  %2644 = vmatprep.subr.mxu0 0.0
  %2645 = vmatpush1.msra.mxu0 0.0
  %2646 = vmatprep.subr.mxu0 0.0
  %2647 = vmatpush1.msra.mxu0 0.0
  %2648 = vmatprep.subr.mxu0 0.0
  %2649 = vmatpush1.msra.mxu0 0.0
  %2650 = vmatprep.subr.mxu0 0.0
  %2651 = vmatpush1.msra.mxu0 0.0
  %2652 = vmatprep.subr.mxu0 0.0
  %2653 = vmatpush1.msra.mxu0 0.0
  %2654 = vmatprep.subr.mxu0 0.0
  %2655 = vmatpush1.msra.mxu0 0.0
  %2656 = vmatprep.subr.mxu0 0.0
  %2657 = vmatpush1.msra.mxu0 0.0
  %2658 = vmatprep.mubr.f32.mxu0 %v2547
  %2659 = vmatmul.mubr.f32.gmra.mrb[0].mxu0 %v2514
  %v2660 = vpop.f32.mrb[0].mxu0
  %v2661 = vadd.f32 0.0, %v2660
  %v2662 = vpop.f32.mrb[0].mxu0
  %2663 = vmatprep.mubr.f32.mxu0 %v2550
  %2664 = vmatmul.mubr.f32.gmra.mrb[0].mxu0 %v2516
  %v2665 = vpop.f32.mrb[0].mxu0
  %v2666 = vadd.f32 0.0, %v2665
  %v2667 = vpop.f32.mrb[0].mxu0
  %2668 = vmatprep.mubr.f32.mxu0 %v2553
  %2669 = vmatmul.mubr.f32.gmra.mrb[0].mxu0 %v2518
  %v2670 = vpop.f32.mrb[0].mxu0
  %v2671 = vadd.f32 0.0, %v2670
  %v2672 = vpop.f32.mrb[0].mxu0
  %2673 = vmatprep.mubr.f32.mxu0 %v2556
  %2674 = vmatmul.mubr.f32.gmra.mrb[0].mxu0 %v2520
  %v2675 = vpop.f32.mrb[0].mxu0
  %v2676 = vadd.f32 0.0, %v2675
  %v2677 = vpop.f32.mrb[0].mxu0
  %2678 = vmatprep.mubr.f32.mxu0 %v2559
  %2679 = vmatmul.mubr.f32.gmra.mrb[0].mxu0 %v2522
  %v2680 = vpop.f32.mrb[0].mxu0
  %v2681 = vadd.f32 0.0, %v2680
  %v2682 = vpop.f32.mrb[0].mxu0
  %2683 = vmatprep.mubr.f32.mxu0 %v2562
  %2684 = vmatmul.mubr.f32.gmra.mrb[0].mxu0 %v2524
  %v2685 = vpop.f32.mrb[0].mxu0
  %v2686 = vadd.f32 0.0, %v2685
  %v2687 = vpop.f32.mrb[0].mxu0
  %2688 = vmatprep.mubr.f32.mxu0 %v2565
  %2689 = vmatmul.mubr.f32.gmra.mrb[0].mxu0 %v2526
  %v2690 = vpop.f32.mrb[0].mxu0
  %v2691 = vadd.f32 0.0, %v2690
  %v2692 = vpop.f32.mrb[0].mxu0
  %2693 = vmatprep.mubr.f32.mxu0 %v2568
  %2694 = vmatmul.mubr.f32.gmra.mrb[0].mxu0 %v2528
  %v2695 = vpop.f32.mrb[0].mxu0
  %v2696 = vadd.f32 0.0, %v2695
  %v2697 = vpop.f32.mrb[0].mxu0
  %2698 = vmatprep.mubr.f32.mxu0 %v2571
  %2699 = vmatmul.mubr.f32.gmra.mrb[0].mxu0 %v2530
  %v2700 = vpop.f32.mrb[0].mxu0
  %v2701 = vadd.f32 0.0, %v2700
  %v2702 = vpop.f32.mrb[0].mxu0
  %2703 = vmatprep.mubr.f32.mxu0 %v2574
  %2704 = vmatmul.mubr.f32.gmra.mrb[0].mxu0 %v2532
  %v2705 = vpop.f32.mrb[0].mxu0
  %v2706 = vadd.f32 0.0, %v2705
  %v2707 = vpop.f32.mrb[0].mxu0
  %2708 = vmatprep.mubr.f32.mxu0 %v2577
  %2709 = vmatmul.mubr.f32.gmra.mrb[0].mxu0 %v2534
  %v2710 = vpop.f32.mrb[0].mxu0
  %v2711 = vadd.f32 0.0, %v2710
  %v2712 = vpop.f32.mrb[0].mxu0
  %2713 = vmatprep.mubr.f32.mxu0 %v2580
  %2714 = vmatmul.mubr.f32.gmra.mrb[0].mxu0 %v2536
  %v2715 = vpop.f32.mrb[0].mxu0
  %v2716 = vadd.f32 0.0, %v2715
  %v2717 = vpop.f32.mrb[0].mxu0
  %2718 = vmatprep.mubr.f32.mxu0 %v2583
  %2719 = vmatmul.mubr.f32.gmra.mrb[0].mxu0 %v2538
  %v2720 = vpop.f32.mrb[0].mxu0
  %v2721 = vadd.f32 0.0, %v2720
  %v2722 = vpop.f32.mrb[0].mxu0
  %2723 = vmatprep.mubr.f32.mxu0 %v2586
  %2724 = vmatmul.mubr.f32.gmra.mrb[0].mxu0 %v2540
  %v2725 = vpop.f32.mrb[0].mxu0
  %v2726 = vadd.f32 0.0, %v2725
  %v2727 = vpop.f32.mrb[0].mxu0
  %2728 = vmatprep.mubr.f32.mxu0 %v2589
  %2729 = vmatmul.mubr.f32.gmra.mrb[0].mxu0 %v2542
  %v2730 = vpop.f32.mrb[0].mxu0
  %v2731 = vadd.f32 0.0, %v2730
  %v2732 = vpop.f32.mrb[0].mxu0
  %2733 = vmatprep.mubr.f32.mxu0 %v2592
  %2734 = vmatmul.mubr.f32.gmra.mrb[0].mxu0 %v2544
  %v2735 = vpop.f32.mrb[0].mxu0
  %v2736 = vadd.f32 0.0, %v2735
  %v2737 = vpop.f32.mrb[0].mxu0
  %2738 = vdwg.mxu0
  %s2739 = scalar_lea.vmem %s2, 7
  %v2740 = vld [vmem:[%s2739] sm:$0x1]
  %2742 = vset.pattern.permute.xlu0 0
  %2743 = vperm.xlu0 %2742, %v2661
  %v2744 = vpop.permute.xlu0 %2743
  %2747 = vset.pattern.permute.xlu0 0
  %2748 = vperm.xlu0 %2747, %v2666
  %v2749 = vpop.permute.xlu0 %2748
  %2752 = vset.pattern.permute.xlu0 0
  %2753 = vperm.xlu0 %2752, %v2671
  %v2754 = vpop.permute.xlu0 %2753
  %2757 = vset.pattern.permute.xlu0 0
  %2758 = vperm.xlu0 %2757, %v2676
  %v2759 = vpop.permute.xlu0 %2758
  %2762 = vset.pattern.permute.xlu0 0
  %2763 = vperm.xlu0 %2762, %v2681
  %v2764 = vpop.permute.xlu0 %2763
  %2767 = vset.pattern.permute.xlu0 0
  %2768 = vperm.xlu0 %2767, %v2686
  %v2769 = vpop.permute.xlu0 %2768
  %2772 = vset.pattern.permute.xlu0 0
  %2773 = vperm.xlu0 %2772, %v2691
  %v2774 = vpop.permute.xlu0 %2773
  %2777 = vset.pattern.permute.xlu0 0
  %2778 = vperm.xlu0 %2777, %v2696
  %v2779 = vpop.permute.xlu0 %2778
  %2782 = vset.pattern.permute.xlu0 0
  %2783 = vperm.xlu0 %2782, %v2701
  %v2784 = vpop.permute.xlu0 %2783
  %2787 = vset.pattern.permute.xlu0 0
  %2788 = vperm.xlu0 %2787, %v2706
  %v2789 = vpop.permute.xlu0 %2788
  %2792 = vset.pattern.permute.xlu0 0
  %2793 = vperm.xlu0 %2792, %v2711
  %v2794 = vpop.permute.xlu0 %2793
  %2797 = vset.pattern.permute.xlu0 0
  %2798 = vperm.xlu0 %2797, %v2716
  %v2799 = vpop.permute.xlu0 %2798
  %2802 = vset.pattern.permute.xlu0 0
  %2803 = vperm.xlu0 %2802, %v2721
  %v2804 = vpop.permute.xlu0 %2803
  %2807 = vset.pattern.permute.xlu0 0
  %2808 = vperm.xlu0 %2807, %v2726
  %v2809 = vpop.permute.xlu0 %2808
  %2812 = vset.pattern.permute.xlu0 0
  %2813 = vperm.xlu0 %2812, %v2731
  %v2814 = vpop.permute.xlu0 %2813
  %2817 = vset.pattern.permute.xlu0 0
  %2818 = vperm.xlu0 %2817, %v2736
  %v2819 = vpop.permute.xlu0 %2818
  %v2822 = vlaneseq
  %v2823 = vshrl.u32 %v2822, 7
  %v2824 = vsub.s32 0, %v2823
  %v2825 = vrot.slane %v2740, %v2824
  %v2827 = vmul.f32 %v2744, %v2825
  %v2828 = vmul.f32 %v2749, %v2825
  %v2829 = vmul.f32 %v2754, %v2825
  %v2830 = vmul.f32 %v2759, %v2825
  %v2831 = vmul.f32 %v2764, %v2825
  %v2832 = vmul.f32 %v2769, %v2825
  %v2833 = vmul.f32 %v2774, %v2825
  %v2834 = vmul.f32 %v2779, %v2825
  %v2835 = vmul.f32 %v2784, %v2825
  %v2836 = vmul.f32 %v2789, %v2825
  %v2837 = vmul.f32 %v2794, %v2825
  %v2838 = vmul.f32 %v2799, %v2825
  %v2839 = vmul.f32 %v2804, %v2825
  %v2840 = vmul.f32 %v2809, %v2825
  %v2841 = vmul.f32 %v2814, %v2825
  %v2842 = vmul.f32 %v2819, %v2825
  %v2843 = vadd.f32 %v2497, %v2827
  %v2844 = vadd.f32 %v2498, %v2828
  %v2845 = vadd.f32 %v2499, %v2829
  %v2846 = vadd.f32 %v2500, %v2830
  %v2847 = vadd.f32 %v2501, %v2831
  %v2848 = vadd.f32 %v2502, %v2832
  %v2849 = vadd.f32 %v2503, %v2833
  %v2850 = vadd.f32 %v2504, %v2834
  %v2851 = vadd.f32 %v2505, %v2835
  %v2852 = vadd.f32 %v2506, %v2836
  %v2853 = vadd.f32 %v2507, %v2837
  %v2854 = vadd.f32 %v2508, %v2838
  %v2855 = vadd.f32 %v2509, %v2839
  %v2856 = vadd.f32 %v2510, %v2840
  %v2857 = vadd.f32 %v2511, %v2841
  %v2858 = vadd.f32 %v2512, %v2842
  %s2859 = scalar_lea.vmem %s1, 2048
  %v2860 = vld [vmem:[%s2859] sm:$0xff]
  %v2861 = vld [vmem:[%s2859 + $0x8] sm:$0xff]
  %v2862 = vld [vmem:[%s2859 + $0x10] sm:$0xff]
  %v2863 = vld [vmem:[%s2859 + $0x18] sm:$0xff]
  %v2864 = vld [vmem:[%s2859 + $0x20] sm:$0xff]
  %v2865 = vld [vmem:[%s2859 + $0x28] sm:$0xff]
  %v2866 = vld [vmem:[%s2859 + $0x30] sm:$0xff]
  %v2867 = vld [vmem:[%s2859 + $0x38] sm:$0xff]
  %v2868 = vld [vmem:[%s2859 + $0x40] sm:$0xff]
  %v2869 = vld [vmem:[%s2859 + $0x48] sm:$0xff]
  %v2870 = vld [vmem:[%s2859 + $0x50] sm:$0xff]
  %v2871 = vld [vmem:[%s2859 + $0x58] sm:$0xff]
  %v2872 = vld [vmem:[%s2859 + $0x60] sm:$0xff]
  %v2873 = vld [vmem:[%s2859 + $0x68] sm:$0xff]
  %v2874 = vld [vmem:[%s2859 + $0x70] sm:$0xff]
  %v2875 = vld [vmem:[%s2859 + $0x78] sm:$0xff]
  %v2876 = vld [vmem:[%s2859 + $0x80] sm:$0xff]
  %v2877 = vld [vmem:[%s2859 + $0x88] sm:$0xff]
  %v2878 = vld [vmem:[%s2859 + $0x90] sm:$0xff]
  %v2879 = vld [vmem:[%s2859 + $0x98] sm:$0xff]
  %v2880 = vld [vmem:[%s2859 + $0xa0] sm:$0xff]
  %v2881 = vld [vmem:[%s2859 + $0xa8] sm:$0xff]
  %v2882 = vld [vmem:[%s2859 + $0xb0] sm:$0xff]
  %v2883 = vld [vmem:[%s2859 + $0xb8] sm:$0xff]
  %v2884 = vld [vmem:[%s2859 + $0xc0] sm:$0xff]
  %v2885 = vld [vmem:[%s2859 + $0xc8] sm:$0xff]
  %v2886 = vld [vmem:[%s2859 + $0xd0] sm:$0xff]
  %v2887 = vld [vmem:[%s2859 + $0xd8] sm:$0xff]
  %v2888 = vld [vmem:[%s2859 + $0xe0] sm:$0xff]
  %v2889 = vld [vmem:[%s2859 + $0xe8] sm:$0xff]
  %v2890 = vld [vmem:[%s2859 + $0xf0] sm:$0xff]
  %v2891 = vld [vmem:[%s2859 + $0xf8] sm:$0xff]
  %v2893 = vsel %vm124, %v2861, 0
  %v2896 = vsel %vm124, %v2863, 0
  %v2899 = vsel %vm124, %v2865, 0
  %v2902 = vsel %vm124, %v2867, 0
  %v2905 = vsel %vm124, %v2869, 0
  %v2908 = vsel %vm124, %v2871, 0
  %v2911 = vsel %vm124, %v2873, 0
  %v2914 = vsel %vm124, %v2875, 0
  %v2917 = vsel %vm124, %v2877, 0
  %v2920 = vsel %vm124, %v2879, 0
  %v2923 = vsel %vm124, %v2881, 0
  %v2926 = vsel %vm124, %v2883, 0
  %v2929 = vsel %vm124, %v2885, 0
  %v2932 = vsel %vm124, %v2887, 0
  %v2935 = vsel %vm124, %v2889, 0
  %v2938 = vsel %vm124, %v2891, 0
  %2940 = vmatprep.subr.mxu0 0.0
  %2941 = vmatpush1.msra.mxu0 %v67
  %2942 = vmatprep.subr.mxu0 0.0
  %2943 = vmatpush1.msra.mxu0 %v68
  %2944 = vmatprep.subr.mxu0 0.0
  %2945 = vmatpush1.msra.mxu0 %v69
  %2946 = vmatprep.subr.mxu0 0.0
  %2947 = vmatpush1.msra.mxu0 %v70
  %2948 = vmatprep.subr.mxu0 0.0
  %2949 = vmatpush1.msra.mxu0 %v71
  %2950 = vmatprep.subr.mxu0 0.0
  %2951 = vmatpush1.msra.mxu0 %v72
  %2952 = vmatprep.subr.mxu0 0.0
  %2953 = vmatpush1.msra.mxu0 %v73
  %2954 = vmatprep.subr.mxu0 0.0
  %2955 = vmatpush1.msra.mxu0 %v74
  %2956 = vmatprep.subr.mxu0 0.0
  %2957 = vmatpush1.msra.mxu0 %v75
  %2958 = vmatprep.subr.mxu0 0.0
  %2959 = vmatpush1.msra.mxu0 %v76
  %2960 = vmatprep.subr.mxu0 0.0
  %2961 = vmatpush1.msra.mxu0 %v77
  %2962 = vmatprep.subr.mxu0 0.0
  %2963 = vmatpush1.msra.mxu0 %v78
  %2964 = vmatprep.subr.mxu0 0.0
  %2965 = vmatpush1.msra.mxu0 %v79
  %2966 = vmatprep.subr.mxu0 0.0
  %2967 = vmatpush1.msra.mxu0 %v80
  %2968 = vmatprep.subr.mxu0 0.0
  %2969 = vmatpush1.msra.mxu0 %v81
  %2970 = vmatprep.subr.mxu0 0.0
  %2971 = vmatpush1.msra.mxu0 %v82
  %2972 = vmatprep.subr.mxu0 0.0
  %2973 = vmatpush1.msra.mxu0 %v83
  %2974 = vmatprep.subr.mxu0 0.0
  %2975 = vmatpush1.msra.mxu0 %v84
  %2976 = vmatprep.subr.mxu0 0.0
  %2977 = vmatpush1.msra.mxu0 %v85
  %2978 = vmatprep.subr.mxu0 0.0
  %2979 = vmatpush1.msra.mxu0 %v86
  %2980 = vmatprep.subr.mxu0 0.0
  %2981 = vmatpush1.msra.mxu0 %v87
  %2982 = vmatprep.subr.mxu0 0.0
  %2983 = vmatpush1.msra.mxu0 %v88
  %2984 = vmatprep.subr.mxu0 0.0
  %2985 = vmatpush1.msra.mxu0 %v89
  %2986 = vmatprep.subr.mxu0 0.0
  %2987 = vmatpush1.msra.mxu0 %v90
  %2988 = vmatprep.subr.mxu0 0.0
  %2989 = vmatpush1.msra.mxu0 %v91
  %2990 = vmatprep.subr.mxu0 0.0
  %2991 = vmatpush1.msra.mxu0 0.0
  %2992 = vmatprep.subr.mxu0 0.0
  %2993 = vmatpush1.msra.mxu0 0.0
  %2994 = vmatprep.subr.mxu0 0.0
  %2995 = vmatpush1.msra.mxu0 0.0
  %2996 = vmatprep.subr.mxu0 0.0
  %2997 = vmatpush1.msra.mxu0 0.0
  %2998 = vmatprep.subr.mxu0 0.0
  %2999 = vmatpush1.msra.mxu0 0.0
  %3000 = vmatprep.subr.mxu0 0.0
  %3001 = vmatpush1.msra.mxu0 0.0
  %3002 = vmatprep.subr.mxu0 0.0
  %3003 = vmatpush1.msra.mxu0 0.0
  %3004 = vmatprep.mubr.f32.mxu0 %v2893
  %3005 = vmatmul.mubr.f32.gmra.mrb[0].mxu0 %v2860
  %v3006 = vpop.f32.mrb[0].mxu0
  %v3007 = vadd.f32 0.0, %v3006
  %v3008 = vpop.f32.mrb[0].mxu0
  %3009 = vmatprep.mubr.f32.mxu0 %v2896
  %3010 = vmatmul.mubr.f32.gmra.mrb[0].mxu0 %v2862
  %v3011 = vpop.f32.mrb[0].mxu0
  %v3012 = vadd.f32 0.0, %v3011
  %v3013 = vpop.f32.mrb[0].mxu0
  %3014 = vmatprep.mubr.f32.mxu0 %v2899
  %3015 = vmatmul.mubr.f32.gmra.mrb[0].mxu0 %v2864
  %v3016 = vpop.f32.mrb[0].mxu0
  %v3017 = vadd.f32 0.0, %v3016
  %v3018 = vpop.f32.mrb[0].mxu0
  %3019 = vmatprep.mubr.f32.mxu0 %v2902
  %3020 = vmatmul.mubr.f32.gmra.mrb[0].mxu0 %v2866
  %v3021 = vpop.f32.mrb[0].mxu0
  %v3022 = vadd.f32 0.0, %v3021
  %v3023 = vpop.f32.mrb[0].mxu0
  %3024 = vmatprep.mubr.f32.mxu0 %v2905
  %3025 = vmatmul.mubr.f32.gmra.mrb[0].mxu0 %v2868
  %v3026 = vpop.f32.mrb[0].mxu0
  %v3027 = vadd.f32 0.0, %v3026
  %v3028 = vpop.f32.mrb[0].mxu0
  %3029 = vmatprep.mubr.f32.mxu0 %v2908
  %3030 = vmatmul.mubr.f32.gmra.mrb[0].mxu0 %v2870
  %v3031 = vpop.f32.mrb[0].mxu0
  %v3032 = vadd.f32 0.0, %v3031
  %v3033 = vpop.f32.mrb[0].mxu0
  %3034 = vmatprep.mubr.f32.mxu0 %v2911
  %3035 = vmatmul.mubr.f32.gmra.mrb[0].mxu0 %v2872
  %v3036 = vpop.f32.mrb[0].mxu0
  %v3037 = vadd.f32 0.0, %v3036
  %v3038 = vpop.f32.mrb[0].mxu0
  %3039 = vmatprep.mubr.f32.mxu0 %v2914
  %3040 = vmatmul.mubr.f32.gmra.mrb[0].mxu0 %v2874
  %v3041 = vpop.f32.mrb[0].mxu0
  %v3042 = vadd.f32 0.0, %v3041
  %v3043 = vpop.f32.mrb[0].mxu0
  %3044 = vmatprep.mubr.f32.mxu0 %v2917
  %3045 = vmatmul.mubr.f32.gmra.mrb[0].mxu0 %v2876
  %v3046 = vpop.f32.mrb[0].mxu0
  %v3047 = vadd.f32 0.0, %v3046
  %v3048 = vpop.f32.mrb[0].mxu0
  %3049 = vmatprep.mubr.f32.mxu0 %v2920
  %3050 = vmatmul.mubr.f32.gmra.mrb[0].mxu0 %v2878
  %v3051 = vpop.f32.mrb[0].mxu0
  %v3052 = vadd.f32 0.0, %v3051
  %v3053 = vpop.f32.mrb[0].mxu0
  %3054 = vmatprep.mubr.f32.mxu0 %v2923
  %3055 = vmatmul.mubr.f32.gmra.mrb[0].mxu0 %v2880
  %v3056 = vpop.f32.mrb[0].mxu0
  %v3057 = vadd.f32 0.0, %v3056
  %v3058 = vpop.f32.mrb[0].mxu0
  %3059 = vmatprep.mubr.f32.mxu0 %v2926
  %3060 = vmatmul.mubr.f32.gmra.mrb[0].mxu0 %v2882
  %v3061 = vpop.f32.mrb[0].mxu0
  %v3062 = vadd.f32 0.0, %v3061
  %v3063 = vpop.f32.mrb[0].mxu0
  %3064 = vmatprep.mubr.f32.mxu0 %v2929
  %3065 = vmatmul.mubr.f32.gmra.mrb[0].mxu0 %v2884
  %v3066 = vpop.f32.mrb[0].mxu0
  %v3067 = vadd.f32 0.0, %v3066
  %v3068 = vpop.f32.mrb[0].mxu0
  %3069 = vmatprep.mubr.f32.mxu0 %v2932
  %3070 = vmatmul.mubr.f32.gmra.mrb[0].mxu0 %v2886
  %v3071 = vpop.f32.mrb[0].mxu0
  %v3072 = vadd.f32 0.0, %v3071
  %v3073 = vpop.f32.mrb[0].mxu0
  %3074 = vmatprep.mubr.f32.mxu0 %v2935
  %3075 = vmatmul.mubr.f32.gmra.mrb[0].mxu0 %v2888
  %v3076 = vpop.f32.mrb[0].mxu0
  %v3077 = vadd.f32 0.0, %v3076
  %v3078 = vpop.f32.mrb[0].mxu0
  %3079 = vmatprep.mubr.f32.mxu0 %v2938
  %3080 = vmatmul.mubr.f32.gmra.mrb[0].mxu0 %v2890
  %v3081 = vpop.f32.mrb[0].mxu0
  %v3082 = vadd.f32 0.0, %v3081
  %v3083 = vpop.f32.mrb[0].mxu0
  %3084 = vdwg.mxu0
  %s3085 = scalar_lea.vmem %s2, 8
  %v3086 = vld [vmem:[%s3085] sm:$0x1]
  %3088 = vset.pattern.permute.xlu0 0
  %3089 = vperm.xlu0 %3088, %v3007
  %v3090 = vpop.permute.xlu0 %3089
  %3093 = vset.pattern.permute.xlu0 0
  %3094 = vperm.xlu0 %3093, %v3012
  %v3095 = vpop.permute.xlu0 %3094
  %3098 = vset.pattern.permute.xlu0 0
  %3099 = vperm.xlu0 %3098, %v3017
  %v3100 = vpop.permute.xlu0 %3099
  %3103 = vset.pattern.permute.xlu0 0
  %3104 = vperm.xlu0 %3103, %v3022
  %v3105 = vpop.permute.xlu0 %3104
  %3108 = vset.pattern.permute.xlu0 0
  %3109 = vperm.xlu0 %3108, %v3027
  %v3110 = vpop.permute.xlu0 %3109
  %3113 = vset.pattern.permute.xlu0 0
  %3114 = vperm.xlu0 %3113, %v3032
  %v3115 = vpop.permute.xlu0 %3114
  %3118 = vset.pattern.permute.xlu0 0
  %3119 = vperm.xlu0 %3118, %v3037
  %v3120 = vpop.permute.xlu0 %3119
  %3123 = vset.pattern.permute.xlu0 0
  %3124 = vperm.xlu0 %3123, %v3042
  %v3125 = vpop.permute.xlu0 %3124
  %3128 = vset.pattern.permute.xlu0 0
  %3129 = vperm.xlu0 %3128, %v3047
  %v3130 = vpop.permute.xlu0 %3129
  %3133 = vset.pattern.permute.xlu0 0
  %3134 = vperm.xlu0 %3133, %v3052
  %v3135 = vpop.permute.xlu0 %3134
  %3138 = vset.pattern.permute.xlu0 0
  %3139 = vperm.xlu0 %3138, %v3057
  %v3140 = vpop.permute.xlu0 %3139
  %3143 = vset.pattern.permute.xlu0 0
  %3144 = vperm.xlu0 %3143, %v3062
  %v3145 = vpop.permute.xlu0 %3144
  %3148 = vset.pattern.permute.xlu0 0
  %3149 = vperm.xlu0 %3148, %v3067
  %v3150 = vpop.permute.xlu0 %3149
  %3153 = vset.pattern.permute.xlu0 0
  %3154 = vperm.xlu0 %3153, %v3072
  %v3155 = vpop.permute.xlu0 %3154
  %3158 = vset.pattern.permute.xlu0 0
  %3159 = vperm.xlu0 %3158, %v3077
  %v3160 = vpop.permute.xlu0 %3159
  %3163 = vset.pattern.permute.xlu0 0
  %3164 = vperm.xlu0 %3163, %v3082
  %v3165 = vpop.permute.xlu0 %3164
  %v3168 = vlaneseq
  %v3169 = vshrl.u32 %v3168, 7
  %v3170 = vsub.s32 0, %v3169
  %v3171 = vrot.slane %v3086, %v3170
  %v3173 = vmul.f32 %v3090, %v3171
  %v3174 = vmul.f32 %v3095, %v3171
  %v3175 = vmul.f32 %v3100, %v3171
  %v3176 = vmul.f32 %v3105, %v3171
  %v3177 = vmul.f32 %v3110, %v3171
  %v3178 = vmul.f32 %v3115, %v3171
  %v3179 = vmul.f32 %v3120, %v3171
  %v3180 = vmul.f32 %v3125, %v3171
  %v3181 = vmul.f32 %v3130, %v3171
  %v3182 = vmul.f32 %v3135, %v3171
  %v3183 = vmul.f32 %v3140, %v3171
  %v3184 = vmul.f32 %v3145, %v3171
  %v3185 = vmul.f32 %v3150, %v3171
  %v3186 = vmul.f32 %v3155, %v3171
  %v3187 = vmul.f32 %v3160, %v3171
  %v3188 = vmul.f32 %v3165, %v3171
  %v3189 = vadd.f32 %v2843, %v3173
  %v3190 = vadd.f32 %v2844, %v3174
  %v3191 = vadd.f32 %v2845, %v3175
  %v3192 = vadd.f32 %v2846, %v3176
  %v3193 = vadd.f32 %v2847, %v3177
  %v3194 = vadd.f32 %v2848, %v3178
  %v3195 = vadd.f32 %v2849, %v3179
  %v3196 = vadd.f32 %v2850, %v3180
  %v3197 = vadd.f32 %v2851, %v3181
  %v3198 = vadd.f32 %v2852, %v3182
  %v3199 = vadd.f32 %v2853, %v3183
  %v3200 = vadd.f32 %v2854, %v3184
  %v3201 = vadd.f32 %v2855, %v3185
  %v3202 = vadd.f32 %v2856, %v3186
  %v3203 = vadd.f32 %v2857, %v3187
  %v3204 = vadd.f32 %v2858, %v3188
  %vm3205 = vcmask 31744
  %v3206 = vsel %vm3205, %v3189, 0.0
  %v3207 = vsel %vm3205, %v3190, 0.0
  %v3208 = vadd.f32 %v3206, %v3207
  %v3209 = vsel %vm3205, %v3191, 0.0
  %v3210 = vadd.f32 %v3208, %v3209
  %v3211 = vsel %vm3205, %v3192, 0.0
  %v3212 = vadd.f32 %v3210, %v3211
  %v3213 = vsel %vm3205, %v3193, 0.0
  %v3214 = vadd.f32 %v3212, %v3213
  %v3215 = vsel %vm3205, %v3194, 0.0
  %v3216 = vadd.f32 %v3214, %v3215
  %v3217 = vsel %vm3205, %v3195, 0.0
  %v3218 = vadd.f32 %v3216, %v3217
  %v3219 = vsel %vm3205, %v3196, 0.0
  %v3220 = vadd.f32 %v3218, %v3219
  %v3221 = vsel %vm3205, %v3197, 0.0
  %v3222 = vadd.f32 %v3220, %v3221
  %v3223 = vsel %vm3205, %v3198, 0.0
  %v3224 = vadd.f32 %v3222, %v3223
  %v3225 = vsel %vm3205, %v3199, 0.0
  %v3226 = vadd.f32 %v3224, %v3225
  %v3227 = vsel %vm3205, %v3200, 0.0
  %v3228 = vadd.f32 %v3226, %v3227
  %v3229 = vsel %vm3205, %v3201, 0.0
  %v3230 = vadd.f32 %v3228, %v3229
  %v3231 = vsel %vm3205, %v3202, 0.0
  %v3232 = vadd.f32 %v3230, %v3231
  %v3233 = vsel %vm3205, %v3203, 0.0
  %v3234 = vadd.f32 %v3232, %v3233
  %v3235 = vsel %vm3205, %v3204, 0.0
  %v3236 = vadd.f32 %v3234, %v3235
  %v3237 = vrot.slane %v3236, 4
  %v3238 = vadd.f32 %v3236, %v3237
  %v3239 = vrot.slane %v3238, 2
  %v3240 = vadd.f32 %v3238, %v3239
  %v3241 = vrot.slane %v3240, 1
  %v3242 = vadd.f32 %v3240, %v3241
  %v3243 = vmul.f32 %v3242, 0.0078125
  %v3244 = vmul.f32 %v3189, %v3189
  %v3245 = vmul.f32 %v3190, %v3190
  %v3246 = vmul.f32 %v3191, %v3191
  %v3247 = vmul.f32 %v3192, %v3192
  %v3248 = vmul.f32 %v3193, %v3193
  %v3249 = vmul.f32 %v3194, %v3194
  %v3250 = vmul.f32 %v3195, %v3195
  %v3251 = vmul.f32 %v3196, %v3196
  %v3252 = vmul.f32 %v3197, %v3197
  %v3253 = vmul.f32 %v3198, %v3198
  %v3254 = vmul.f32 %v3199, %v3199
  %v3255 = vmul.f32 %v3200, %v3200
  %v3256 = vmul.f32 %v3201, %v3201
  %v3257 = vmul.f32 %v3202, %v3202
  %v3258 = vmul.f32 %v3203, %v3203
  %v3259 = vmul.f32 %v3204, %v3204
  %v3260 = vsel %vm3205, %v3244, 0.0
  %v3261 = vsel %vm3205, %v3245, 0.0
  %v3262 = vadd.f32 %v3260, %v3261
  %v3263 = vsel %vm3205, %v3246, 0.0
  %v3264 = vadd.f32 %v3262, %v3263
  %v3265 = vsel %vm3205, %v3247, 0.0
  %v3266 = vadd.f32 %v3264, %v3265
  %v3267 = vsel %vm3205, %v3248, 0.0
  %v3268 = vadd.f32 %v3266, %v3267
  %v3269 = vsel %vm3205, %v3249, 0.0
  %v3270 = vadd.f32 %v3268, %v3269
  %v3271 = vsel %vm3205, %v3250, 0.0
  %v3272 = vadd.f32 %v3270, %v3271
  %v3273 = vsel %vm3205, %v3251, 0.0
  %v3274 = vadd.f32 %v3272, %v3273
  %v3275 = vsel %vm3205, %v3252, 0.0
  %v3276 = vadd.f32 %v3274, %v3275
  %v3277 = vsel %vm3205, %v3253, 0.0
  %v3278 = vadd.f32 %v3276, %v3277
  %v3279 = vsel %vm3205, %v3254, 0.0
  %v3280 = vadd.f32 %v3278, %v3279
  %v3281 = vsel %vm3205, %v3255, 0.0
  %v3282 = vadd.f32 %v3280, %v3281
  %v3283 = vsel %vm3205, %v3256, 0.0
  %v3284 = vadd.f32 %v3282, %v3283
  %v3285 = vsel %vm3205, %v3257, 0.0
  %v3286 = vadd.f32 %v3284, %v3285
  %v3287 = vsel %vm3205, %v3258, 0.0
  %v3288 = vadd.f32 %v3286, %v3287
  %v3289 = vsel %vm3205, %v3259, 0.0
  %v3290 = vadd.f32 %v3288, %v3289
  %v3291 = vrot.slane %v3290, 4
  %v3292 = vadd.f32 %v3290, %v3291
  %v3293 = vrot.slane %v3292, 2
  %v3294 = vadd.f32 %v3292, %v3293
  %v3295 = vrot.slane %v3294, 1
  %v3296 = vadd.f32 %v3294, %v3295
  %v3297 = vmul.f32 %v3296, 0.0078125
  %v3298 = vmul.f32 %v3243, %v3243
  %v3299 = vsub.f32 %v3297, %v3298
  %v3300 = vmax.f32 %v3299, 0.0
  %v3301 = vsub.f32 %v3189, %v3243
  %v3302 = vsub.f32 %v3190, %v3243
  %v3303 = vsub.f32 %v3191, %v3243
  %v3304 = vsub.f32 %v3192, %v3243
  %v3305 = vsub.f32 %v3193, %v3243
  %v3306 = vsub.f32 %v3194, %v3243
  %v3307 = vsub.f32 %v3195, %v3243
  %v3308 = vsub.f32 %v3196, %v3243
  %v3309 = vsub.f32 %v3197, %v3243
  %v3310 = vsub.f32 %v3198, %v3243
  %v3311 = vsub.f32 %v3199, %v3243
  %v3312 = vsub.f32 %v3200, %v3243
  %v3313 = vsub.f32 %v3201, %v3243
  %v3314 = vsub.f32 %v3202, %v3243
  %v3315 = vsub.f32 %v3203, %v3243
  %v3316 = vsub.f32 %v3204, %v3243
  %v3317 = vadd.f32 %v3300, 1e-05
  %v3318 = vrsqrt.pop %v3317
  %v3319 = vld [vmem:[%s3] sm:$0x1]
  %v3320 = vmul.f32 %v3318, %v3319
  %v3321 = vlaneseq
  %v3322 = vshrl.u32 %v3321, 7
  %v3323 = vsub.s32 0, %v3322
  %v3324 = vrot.slane %v3320, %v3323
  %v3325 = vmul.f32 %v3301, %v3324
  %v3326 = vmul.f32 %v3302, %v3324
  %v3327 = vmul.f32 %v3303, %v3324
  %v3328 = vmul.f32 %v3304, %v3324
  %v3329 = vmul.f32 %v3305, %v3324
  %v3330 = vmul.f32 %v3306, %v3324
  %v3331 = vmul.f32 %v3307, %v3324
  %v3332 = vmul.f32 %v3308, %v3324
  %v3333 = vmul.f32 %v3309, %v3324
  %v3334 = vmul.f32 %v3310, %v3324
  %v3335 = vmul.f32 %v3311, %v3324
  %v3336 = vmul.f32 %v3312, %v3324
  %v3337 = vmul.f32 %v3313, %v3324
  %v3338 = vmul.f32 %v3314, %v3324
  %v3339 = vmul.f32 %v3315, %v3324
  %v3340 = vmul.f32 %v3316, %v3324
  %v3341 = vld [vmem:[%s4] sm:$0x1]
  %v3343 = vlaneseq
  %v3344 = vshrl.u32 %v3343, 7
  %v3345 = vsub.s32 0, %v3344
  %v3346 = vrot.slane %v3341, %v3345
  %v3348 = vadd.f32 %v3325, %v3346
  %v3349 = vadd.f32 %v3326, %v3346
  %v3350 = vadd.f32 %v3327, %v3346
  %v3351 = vadd.f32 %v3328, %v3346
  %v3352 = vadd.f32 %v3329, %v3346
  %v3353 = vadd.f32 %v3330, %v3346
  %v3354 = vadd.f32 %v3331, %v3346
  %v3355 = vadd.f32 %v3332, %v3346
  %v3356 = vadd.f32 %v3333, %v3346
  %v3357 = vadd.f32 %v3334, %v3346
  %v3358 = vadd.f32 %v3335, %v3346
  %v3359 = vadd.f32 %v3336, %v3346
  %v3360 = vadd.f32 %v3337, %v3346
  %v3361 = vadd.f32 %v3338, %v3346
  %v3362 = vadd.f32 %v3339, %v3346
  %v3363 = vadd.f32 %v3340, %v3346
  %vm3364 = vcmp.ge.f32.partialorder %v3348, 0.0
  %vm3365 = vcmp.ge.f32.partialorder %v3349, 0.0
  %vm3366 = vcmp.ge.f32.partialorder %v3350, 0.0
  %vm3367 = vcmp.ge.f32.partialorder %v3351, 0.0
  %vm3368 = vcmp.ge.f32.partialorder %v3352, 0.0
  %vm3369 = vcmp.ge.f32.partialorder %v3353, 0.0
  %vm3370 = vcmp.ge.f32.partialorder %v3354, 0.0
  %vm3371 = vcmp.ge.f32.partialorder %v3355, 0.0
  %vm3372 = vcmp.ge.f32.partialorder %v3356, 0.0
  %vm3373 = vcmp.ge.f32.partialorder %v3357, 0.0
  %vm3374 = vcmp.ge.f32.partialorder %v3358, 0.0
  %vm3375 = vcmp.ge.f32.partialorder %v3359, 0.0
  %vm3376 = vcmp.ge.f32.partialorder %v3360, 0.0
  %vm3377 = vcmp.ge.f32.partialorder %v3361, 0.0
  %vm3378 = vcmp.ge.f32.partialorder %v3362, 0.0
  %vm3379 = vcmp.ge.f32.partialorder %v3363, 0.0
  %v3380 = vmul.f32 %v3348, 0.2
  %v3381 = vmul.f32 %v3349, 0.2
  %v3382 = vmul.f32 %v3350, 0.2
  %v3383 = vmul.f32 %v3351, 0.2
  %v3384 = vmul.f32 %v3352, 0.2
  %v3385 = vmul.f32 %v3353, 0.2
  %v3386 = vmul.f32 %v3354, 0.2
  %v3387 = vmul.f32 %v3355, 0.2
  %v3388 = vmul.f32 %v3356, 0.2
  %v3389 = vmul.f32 %v3357, 0.2
  %v3390 = vmul.f32 %v3358, 0.2
  %v3391 = vmul.f32 %v3359, 0.2
  %v3392 = vmul.f32 %v3360, 0.2
  %v3393 = vmul.f32 %v3361, 0.2
  %v3394 = vmul.f32 %v3362, 0.2
  %v3395 = vmul.f32 %v3363, 0.2
  %v3396 = vsel %vm3364, %v3348, %v3380
  %v3397 = vsel %vm3365, %v3349, %v3381
  %v3398 = vsel %vm3366, %v3350, %v3382
  %v3399 = vsel %vm3367, %v3351, %v3383
  %v3400 = vsel %vm3368, %v3352, %v3384
  %v3401 = vsel %vm3369, %v3353, %v3385
  %v3402 = vsel %vm3370, %v3354, %v3386
  %v3403 = vsel %vm3371, %v3355, %v3387
  %v3404 = vsel %vm3372, %v3356, %v3388
  %v3405 = vsel %vm3373, %v3357, %v3389
  %v3406 = vsel %vm3374, %v3358, %v3390
  %v3407 = vsel %vm3375, %v3359, %v3391
  %v3408 = vsel %vm3376, %v3360, %v3392
  %v3409 = vsel %vm3377, %v3361, %v3393
  %v3410 = vsel %vm3378, %v3362, %v3394
  %v3411 = vsel %vm3379, %v3363, %v3395
  %v3412 = vld [vmem:[%s5] sm:$0xff]
  %v3413 = vld [vmem:[%s5 + $0x8] sm:$0xff]
  %v3414 = vld [vmem:[%s5 + $0x10] sm:$0xff]
  %v3415 = vld [vmem:[%s5 + $0x18] sm:$0xff]
  %v3416 = vld [vmem:[%s5 + $0x20] sm:$0xff]
  %v3417 = vld [vmem:[%s5 + $0x28] sm:$0xff]
  %v3418 = vld [vmem:[%s5 + $0x30] sm:$0xff]
  %v3419 = vld [vmem:[%s5 + $0x38] sm:$0xff]
  %v3420 = vld [vmem:[%s5 + $0x40] sm:$0xff]
  %3421 = vmatprep.subr.mxu0 0.0
  %3422 = vmatpush1.msra.mxu0 %v3396
  %3423 = vmatprep.subr.mxu0 0.0
  %3424 = vmatpush1.msra.mxu0 %v3397
  %3425 = vmatprep.subr.mxu0 0.0
  %3426 = vmatpush1.msra.mxu0 %v3398
  %3427 = vmatprep.subr.mxu0 0.0
  %3428 = vmatpush1.msra.mxu0 %v3399
  %3429 = vmatprep.subr.mxu0 0.0
  %3430 = vmatpush1.msra.mxu0 %v3400
  %3431 = vmatprep.subr.mxu0 0.0
  %3432 = vmatpush1.msra.mxu0 %v3401
  %3433 = vmatprep.subr.mxu0 0.0
  %3434 = vmatpush1.msra.mxu0 %v3402
  %3435 = vmatprep.subr.mxu0 0.0
  %3436 = vmatpush1.msra.mxu0 %v3403
  %3437 = vmatprep.subr.mxu0 0.0
  %3438 = vmatpush1.msra.mxu0 %v3404
  %3439 = vmatprep.subr.mxu0 0.0
  %3440 = vmatpush1.msra.mxu0 %v3405
  %3441 = vmatprep.subr.mxu0 0.0
  %3442 = vmatpush1.msra.mxu0 %v3406
  %3443 = vmatprep.subr.mxu0 0.0
  %3444 = vmatpush1.msra.mxu0 %v3407
  %3445 = vmatprep.subr.mxu0 0.0
  %3446 = vmatpush1.msra.mxu0 %v3408
  %3447 = vmatprep.subr.mxu0 0.0
  %3448 = vmatpush1.msra.mxu0 %v3409
  %3449 = vmatprep.subr.mxu0 0.0
  %3450 = vmatpush1.msra.mxu0 %v3410
  %3451 = vmatprep.subr.mxu0 0.0
  %3452 = vmatpush1.msra.mxu0 %v3411
  %3453 = vmatprep.subr.mxu0 0.0
  %3454 = vmatpush1.msra.mxu0 0.0
  %3455 = vmatprep.subr.mxu0 0.0
  %3456 = vmatpush1.msra.mxu0 0.0
  %3457 = vmatprep.subr.mxu0 0.0
  %3458 = vmatpush1.msra.mxu0 0.0
  %3459 = vmatprep.subr.mxu0 0.0
  %3460 = vmatpush1.msra.mxu0 0.0
  %3461 = vmatprep.subr.mxu0 0.0
  %3462 = vmatpush1.msra.mxu0 0.0
  %3463 = vmatprep.subr.mxu0 0.0
  %3464 = vmatpush1.msra.mxu0 0.0
  %3465 = vmatprep.subr.mxu0 0.0
  %3466 = vmatpush1.msra.mxu0 0.0
  %3467 = vmatprep.subr.mxu0 0.0
  %3468 = vmatpush1.msra.mxu0 0.0
  %3469 = vmatprep.subr.mxu0 0.0
  %3470 = vmatpush1.msra.mxu0 0.0
  %3471 = vmatprep.subr.mxu0 0.0
  %3472 = vmatpush1.msra.mxu0 0.0
  %3473 = vmatprep.subr.mxu0 0.0
  %3474 = vmatpush1.msra.mxu0 0.0
  %3475 = vmatprep.subr.mxu0 0.0
  %3476 = vmatpush1.msra.mxu0 0.0
  %3477 = vmatprep.subr.mxu0 0.0
  %3478 = vmatpush1.msra.mxu0 0.0
  %3479 = vmatprep.subr.mxu0 0.0
  %3480 = vmatpush1.msra.mxu0 0.0
  %3481 = vmatprep.subr.mxu0 0.0
  %3482 = vmatpush1.msra.mxu0 0.0
  %3483 = vmatprep.subr.mxu0 0.0
  %3484 = vmatpush1.msra.mxu0 0.0
  %3485 = vmatprep.mubr.f32.mxu0 0.0
  %3486 = vmatmul.mubr.f32.gmra.mrb[0].mxu0 %v3412
  %v3487 = vpop.f32.mrb[0].mxu0
  %v3488 = vadd.f32 0.0, %v3487
  %v3489 = vpop.f32.mrb[0].mxu0
  %3490 = vmatprep.mubr.f32.mxu0 0.0
  %3491 = vmatmul.mubr.f32.gmra.mrb[0].mxu0 %v3413
  %v3492 = vpop.f32.mrb[0].mxu0
  %v3493 = vadd.f32 0.0, %v3492
  %v3494 = vpop.f32.mrb[0].mxu0
  %3495 = vmatprep.mubr.f32.mxu0 0.0
  %3496 = vmatmul.mubr.f32.gmra.mrb[0].mxu0 %v3414
  %v3497 = vpop.f32.mrb[0].mxu0
  %v3498 = vadd.f32 0.0, %v3497
  %v3499 = vpop.f32.mrb[0].mxu0
  %3500 = vmatprep.mubr.f32.mxu0 0.0
  %3501 = vmatmul.mubr.f32.gmra.mrb[0].mxu0 %v3415
  %v3502 = vpop.f32.mrb[0].mxu0
  %v3503 = vadd.f32 0.0, %v3502
  %v3504 = vpop.f32.mrb[0].mxu0
  %3505 = vmatprep.mubr.f32.mxu0 0.0
  %3506 = vmatmul.mubr.f32.gmra.mrb[0].mxu0 %v3416
  %v3507 = vpop.f32.mrb[0].mxu0
  %v3508 = vadd.f32 0.0, %v3507
  %v3509 = vpop.f32.mrb[0].mxu0
  %3510 = vmatprep.mubr.f32.mxu0 0.0
  %3511 = vmatmul.mubr.f32.gmra.mrb[0].mxu0 %v3417
  %v3512 = vpop.f32.mrb[0].mxu0
  %v3513 = vadd.f32 0.0, %v3512
  %v3514 = vpop.f32.mrb[0].mxu0
  %3515 = vmatprep.mubr.f32.mxu0 0.0
  %3516 = vmatmul.mubr.f32.gmra.mrb[0].mxu0 %v3418
  %v3517 = vpop.f32.mrb[0].mxu0
  %v3518 = vadd.f32 0.0, %v3517
  %v3519 = vpop.f32.mrb[0].mxu0
  %3520 = vmatprep.mubr.f32.mxu0 0.0
  %3521 = vmatmul.mubr.f32.gmra.mrb[0].mxu0 %v3419
  %v3522 = vpop.f32.mrb[0].mxu0
  %v3523 = vadd.f32 0.0, %v3522
  %v3524 = vpop.f32.mrb[0].mxu0
  %3525 = vmatprep.mubr.f32.mxu0 0.0
  %3526 = vmatmul.mubr.f32.gmra.mrb[0].mxu0 %v3420
  %v3527 = vpop.f32.mrb[0].mxu0
  %v3528 = vadd.f32 0.0, %v3527
  %v3529 = vpop.f32.mrb[0].mxu0
  %3530 = vdwg.mxu0
  %v3531 = vld [vmem:[%s6] sm:$0xf]
  %s3532 = scalar_lea.vmem %s5, 72
  %v3533 = vld [vmem:[%s3532] sm:$0xff]
  %v3534 = vld [vmem:[%s3532 + $0x8] sm:$0xff]
  %v3535 = vld [vmem:[%s3532 + $0x10] sm:$0xff]
  %v3536 = vld [vmem:[%s3532 + $0x18] sm:$0xff]
  %v3537 = vld [vmem:[%s3532 + $0x20] sm:$0xff]
  %v3538 = vld [vmem:[%s3532 + $0x28] sm:$0xff]
  %v3539 = vld [vmem:[%s3532 + $0x30] sm:$0xff]
  %v3540 = vld [vmem:[%s3532 + $0x38] sm:$0xff]
  %v3541 = vld [vmem:[%s3532 + $0x40] sm:$0xff]
  %3542 = vmatprep.subr.mxu0 0.0
  %3543 = vmatpush1.msra.mxu0 %v3396
  %3544 = vmatprep.subr.mxu0 0.0
  %3545 = vmatpush1.msra.mxu0 %v3397
  %3546 = vmatprep.subr.mxu0 0.0
  %3547 = vmatpush1.msra.mxu0 %v3398
  %3548 = vmatprep.subr.mxu0 0.0
  %3549 = vmatpush1.msra.mxu0 %v3399
  %3550 = vmatprep.subr.mxu0 0.0
  %3551 = vmatpush1.msra.mxu0 %v3400
  %3552 = vmatprep.subr.mxu0 0.0
  %3553 = vmatpush1.msra.mxu0 %v3401
  %3554 = vmatprep.subr.mxu0 0.0
  %3555 = vmatpush1.msra.mxu0 %v3402
  %3556 = vmatprep.subr.mxu0 0.0
  %3557 = vmatpush1.msra.mxu0 %v3403
  %3558 = vmatprep.subr.mxu0 0.0
  %3559 = vmatpush1.msra.mxu0 %v3404
  %3560 = vmatprep.subr.mxu0 0.0
  %3561 = vmatpush1.msra.mxu0 %v3405
  %3562 = vmatprep.subr.mxu0 0.0
  %3563 = vmatpush1.msra.mxu0 %v3406
  %3564 = vmatprep.subr.mxu0 0.0
  %3565 = vmatpush1.msra.mxu0 %v3407
  %3566 = vmatprep.subr.mxu0 0.0
  %3567 = vmatpush1.msra.mxu0 %v3408
  %3568 = vmatprep.subr.mxu0 0.0
  %3569 = vmatpush1.msra.mxu0 %v3409
  %3570 = vmatprep.subr.mxu0 0.0
  %3571 = vmatpush1.msra.mxu0 %v3410
  %3572 = vmatprep.subr.mxu0 0.0
  %3573 = vmatpush1.msra.mxu0 %v3411
  %3574 = vmatprep.subr.mxu0 0.0
  %3575 = vmatpush1.msra.mxu0 0.0
  %3576 = vmatprep.subr.mxu0 0.0
  %3577 = vmatpush1.msra.mxu0 0.0
  %3578 = vmatprep.subr.mxu0 0.0
  %3579 = vmatpush1.msra.mxu0 0.0
  %3580 = vmatprep.subr.mxu0 0.0
  %3581 = vmatpush1.msra.mxu0 0.0
  %3582 = vmatprep.subr.mxu0 0.0
  %3583 = vmatpush1.msra.mxu0 0.0
  %3584 = vmatprep.subr.mxu0 0.0
  %3585 = vmatpush1.msra.mxu0 0.0
  %3586 = vmatprep.subr.mxu0 0.0
  %3587 = vmatpush1.msra.mxu0 0.0
  %3588 = vmatprep.subr.mxu0 0.0
  %3589 = vmatpush1.msra.mxu0 0.0
  %3590 = vmatprep.subr.mxu0 0.0
  %3591 = vmatpush1.msra.mxu0 0.0
  %3592 = vmatprep.subr.mxu0 0.0
  %3593 = vmatpush1.msra.mxu0 0.0
  %3594 = vmatprep.subr.mxu0 0.0
  %3595 = vmatpush1.msra.mxu0 0.0
  %3596 = vmatprep.subr.mxu0 0.0
  %3597 = vmatpush1.msra.mxu0 0.0
  %3598 = vmatprep.subr.mxu0 0.0
  %3599 = vmatpush1.msra.mxu0 0.0
  %3600 = vmatprep.subr.mxu0 0.0
  %3601 = vmatpush1.msra.mxu0 0.0
  %3602 = vmatprep.subr.mxu0 0.0
  %3603 = vmatpush1.msra.mxu0 0.0
  %3604 = vmatprep.subr.mxu0 0.0
  %3605 = vmatpush1.msra.mxu0 0.0
  %3606 = vmatprep.mubr.f32.mxu0 0.0
  %3607 = vmatmul.mubr.f32.gmra.mrb[0].mxu0 %v3533
  %v3608 = vpop.f32.mrb[0].mxu0
  %v3609 = vadd.f32 0.0, %v3608
  %v3610 = vpop.f32.mrb[0].mxu0
  %3611 = vmatprep.mubr.f32.mxu0 0.0
  %3612 = vmatmul.mubr.f32.gmra.mrb[0].mxu0 %v3534
  %v3613 = vpop.f32.mrb[0].mxu0
  %v3614 = vadd.f32 0.0, %v3613
  %v3615 = vpop.f32.mrb[0].mxu0
  %3616 = vmatprep.mubr.f32.mxu0 0.0
  %3617 = vmatmul.mubr.f32.gmra.mrb[0].mxu0 %v3535
  %v3618 = vpop.f32.mrb[0].mxu0
  %v3619 = vadd.f32 0.0, %v3618
  %v3620 = vpop.f32.mrb[0].mxu0
  %3621 = vmatprep.mubr.f32.mxu0 0.0
  %3622 = vmatmul.mubr.f32.gmra.mrb[0].mxu0 %v3536
  %v3623 = vpop.f32.mrb[0].mxu0
  %v3624 = vadd.f32 0.0, %v3623
  %v3625 = vpop.f32.mrb[0].mxu0
  %3626 = vmatprep.mubr.f32.mxu0 0.0
  %3627 = vmatmul.mubr.f32.gmra.mrb[0].mxu0 %v3537
  %v3628 = vpop.f32.mrb[0].mxu0
  %v3629 = vadd.f32 0.0, %v3628
  %v3630 = vpop.f32.mrb[0].mxu0
  %3631 = vmatprep.mubr.f32.mxu0 0.0
  %3632 = vmatmul.mubr.f32.gmra.mrb[0].mxu0 %v3538
  %v3633 = vpop.f32.mrb[0].mxu0
  %v3634 = vadd.f32 0.0, %v3633
  %v3635 = vpop.f32.mrb[0].mxu0
  %3636 = vmatprep.mubr.f32.mxu0 0.0
  %3637 = vmatmul.mubr.f32.gmra.mrb[0].mxu0 %v3539
  %v3638 = vpop.f32.mrb[0].mxu0
  %v3639 = vadd.f32 0.0, %v3638
  %v3640 = vpop.f32.mrb[0].mxu0
  %3641 = vmatprep.mubr.f32.mxu0 0.0
  %3642 = vmatmul.mubr.f32.gmra.mrb[0].mxu0 %v3540
  %v3643 = vpop.f32.mrb[0].mxu0
  %v3644 = vadd.f32 0.0, %v3643
  %v3645 = vpop.f32.mrb[0].mxu0
  %3646 = vmatprep.mubr.f32.mxu0 0.0
  %3647 = vmatmul.mubr.f32.gmra.mrb[0].mxu0 %v3541
  %v3648 = vpop.f32.mrb[0].mxu0
  %v3649 = vadd.f32 0.0, %v3648
  %v3650 = vpop.f32.mrb[0].mxu0
  %3651 = vdwg.mxu0
  %s3652 = scalar_lea.vmem %s6, 4
  %v3653 = vld [vmem:[%s3652] sm:$0xf]
  %v3655 = vsel %vm3205, %v3609, 0
  %v3658 = vsel %vm3205, %v3614, 0
  %v3661 = vsel %vm3205, %v3619, 0
  %v3664 = vsel %vm3205, %v3624, 0
  %v3667 = vsel %vm3205, %v3629, 0
  %v3670 = vsel %vm3205, %v3634, 0
  %v3673 = vsel %vm3205, %v3639, 0
  %v3676 = vsel %vm3205, %v3644, 0
  %v3679 = vsel %vm3205, %v3649, 0
  %vm3681 = vcmask 1043456
  %v3683 = vsel %vm3681, %v3653, 0
  %3685 = vmatprep.subr.mxu0 0.0
  %3686 = vmatpush1.msra.mxu0 %v3683
  %3687 = vmatprep.subr.mxu0 0.0
  %3688 = vmatpush1.msra.mxu0 0.0
  %3689 = vmatprep.subr.mxu0 0.0
  %3690 = vmatpush1.msra.mxu0 0.0
  %3691 = vmatprep.subr.mxu0 0.0
  %3692 = vmatpush1.msra.mxu0 0.0
  %3693 = vmatprep.subr.mxu0 0.0
  %3694 = vmatpush1.msra.mxu0 0.0
  %3695 = vmatprep.subr.mxu0 0.0
  %3696 = vmatpush1.msra.mxu0 0.0
  %3697 = vmatprep.subr.mxu0 0.0
  %3698 = vmatpush1.msra.mxu0 0.0
  %3699 = vmatprep.subr.mxu0 0.0
  %3700 = vmatpush1.msra.mxu0 0.0
  %3701 = vmatprep.subr.mxu0 0.0
  %3702 = vmatpush1.msra.mxu0 0.0
  %3703 = vmatprep.subr.mxu0 0.0
  %3704 = vmatpush1.msra.mxu0 0.0
  %3705 = vmatprep.subr.mxu0 0.0
  %3706 = vmatpush1.msra.mxu0 0.0
  %3707 = vmatprep.subr.mxu0 0.0
  %3708 = vmatpush1.msra.mxu0 0.0
  %3709 = vmatprep.subr.mxu0 0.0
  %3710 = vmatpush1.msra.mxu0 0.0
  %3711 = vmatprep.subr.mxu0 0.0
  %3712 = vmatpush1.msra.mxu0 0.0
  %3713 = vmatprep.subr.mxu0 0.0
  %3714 = vmatpush1.msra.mxu0 0.0
  %3715 = vmatprep.subr.mxu0 0.0
  %3716 = vmatpush1.msra.mxu0 0.0
  %3717 = vmatprep.subr.mxu0 0.0
  %3718 = vmatpush1.msra.mxu0 0.0
  %3719 = vmatprep.subr.mxu0 0.0
  %3720 = vmatpush1.msra.mxu0 0.0
  %3721 = vmatprep.subr.mxu0 0.0
  %3722 = vmatpush1.msra.mxu0 0.0
  %3723 = vmatprep.subr.mxu0 0.0
  %3724 = vmatpush1.msra.mxu0 0.0
  %3725 = vmatprep.subr.mxu0 0.0
  %3726 = vmatpush1.msra.mxu0 0.0
  %3727 = vmatprep.subr.mxu0 0.0
  %3728 = vmatpush1.msra.mxu0 0.0
  %3729 = vmatprep.subr.mxu0 0.0
  %3730 = vmatpush1.msra.mxu0 0.0
  %3731 = vmatprep.subr.mxu0 0.0
  %3732 = vmatpush1.msra.mxu0 0.0
  %3733 = vmatprep.subr.mxu0 0.0
  %3734 = vmatpush1.msra.mxu0 0.0
  %3735 = vmatprep.subr.mxu0 0.0
  %3736 = vmatpush1.msra.mxu0 0.0
  %3737 = vmatprep.subr.mxu0 0.0
  %3738 = vmatpush1.msra.mxu0 0.0
  %3739 = vmatprep.subr.mxu0 0.0
  %3740 = vmatpush1.msra.mxu0 0.0
  %3741 = vmatprep.subr.mxu0 0.0
  %3742 = vmatpush1.msra.mxu0 0.0
  %3743 = vmatprep.subr.mxu0 0.0
  %3744 = vmatpush1.msra.mxu0 0.0
  %3745 = vmatprep.subr.mxu0 0.0
  %3746 = vmatpush1.msra.mxu0 0.0
  %3747 = vmatprep.subr.mxu0 0.0
  %3748 = vmatpush1.msra.mxu0 0.0
  %3749 = vmatprep.mubr.f32.mxu0 0.0
  %3750 = vmatmul.mubr.f32.gmra.mrb[0].mxu0 %v3655
  %v3751 = vpop.f32.mrb[0].mxu0
  %v3752 = vadd.f32 0.0, %v3751
  %v3753 = vpop.f32.mrb[0].mxu0
  %3754 = vmatprep.mubr.f32.mxu0 0.0
  %3755 = vmatmul.mubr.f32.gmra.mrb[0].mxu0 %v3658
  %v3756 = vpop.f32.mrb[0].mxu0
  %v3757 = vadd.f32 0.0, %v3756
  %v3758 = vpop.f32.mrb[0].mxu0
  %3759 = vmatprep.mubr.f32.mxu0 0.0
  %3760 = vmatmul.mubr.f32.gmra.mrb[0].mxu0 %v3661
  %v3761 = vpop.f32.mrb[0].mxu0
  %v3762 = vadd.f32 0.0, %v3761
  %v3763 = vpop.f32.mrb[0].mxu0
  %3764 = vmatprep.mubr.f32.mxu0 0.0
  %3765 = vmatmul.mubr.f32.gmra.mrb[0].mxu0 %v3664
  %v3766 = vpop.f32.mrb[0].mxu0
  %v3767 = vadd.f32 0.0, %v3766
  %v3768 = vpop.f32.mrb[0].mxu0
  %3769 = vmatprep.mubr.f32.mxu0 0.0
  %3770 = vmatmul.mubr.f32.gmra.mrb[0].mxu0 %v3667
  %v3771 = vpop.f32.mrb[0].mxu0
  %v3772 = vadd.f32 0.0, %v3771
  %v3773 = vpop.f32.mrb[0].mxu0
  %3774 = vmatprep.mubr.f32.mxu0 0.0
  %3775 = vmatmul.mubr.f32.gmra.mrb[0].mxu0 %v3670
  %v3776 = vpop.f32.mrb[0].mxu0
  %v3777 = vadd.f32 0.0, %v3776
  %v3778 = vpop.f32.mrb[0].mxu0
  %3779 = vmatprep.mubr.f32.mxu0 0.0
  %3780 = vmatmul.mubr.f32.gmra.mrb[0].mxu0 %v3673
  %v3781 = vpop.f32.mrb[0].mxu0
  %v3782 = vadd.f32 0.0, %v3781
  %v3783 = vpop.f32.mrb[0].mxu0
  %3784 = vmatprep.mubr.f32.mxu0 0.0
  %3785 = vmatmul.mubr.f32.gmra.mrb[0].mxu0 %v3676
  %v3786 = vpop.f32.mrb[0].mxu0
  %v3787 = vadd.f32 0.0, %v3786
  %v3788 = vpop.f32.mrb[0].mxu0
  %3789 = vmatprep.mubr.f32.mxu0 0.0
  %3790 = vmatmul.mubr.f32.gmra.mrb[0].mxu0 %v3679
  %v3791 = vpop.f32.mrb[0].mxu0
  %v3792 = vadd.f32 0.0, %v3791
  %v3793 = vpop.f32.mrb[0].mxu0
  %3794 = vdwg.mxu0
  %v3796 = vsel %vm3205, %v3488, 0
  %v3799 = vsel %vm3205, %v3493, 0
  %v3802 = vsel %vm3205, %v3498, 0
  %v3805 = vsel %vm3205, %v3503, 0
  %v3808 = vsel %vm3205, %v3508, 0
  %v3811 = vsel %vm3205, %v3513, 0
  %v3814 = vsel %vm3205, %v3518, 0
  %v3817 = vsel %vm3205, %v3523, 0
  %v3820 = vsel %vm3205, %v3528, 0
  %v3823 = vsel %vm3681, %v3531, 0
  %3825 = vmatprep.subr.mxu0 0.0
  %3826 = vmatpush1.msra.mxu0 %v3823
  %3827 = vmatprep.subr.mxu0 0.0
  %3828 = vmatpush1.msra.mxu0 0.0
  %3829 = vmatprep.subr.mxu0 0.0
  %3830 = vmatpush1.msra.mxu0 0.0
  %3831 = vmatprep.subr.mxu0 0.0
  %3832 = vmatpush1.msra.mxu0 0.0
  %3833 = vmatprep.subr.mxu0 0.0
  %3834 = vmatpush1.msra.mxu0 0.0
  %3835 = vmatprep.subr.mxu0 0.0
  %3836 = vmatpush1.msra.mxu0 0.0
  %3837 = vmatprep.subr.mxu0 0.0
  %3838 = vmatpush1.msra.mxu0 0.0
  %3839 = vmatprep.subr.mxu0 0.0
  %3840 = vmatpush1.msra.mxu0 0.0
  %3841 = vmatprep.subr.mxu0 0.0
  %3842 = vmatpush1.msra.mxu0 0.0
  %3843 = vmatprep.subr.mxu0 0.0
  %3844 = vmatpush1.msra.mxu0 0.0
  %3845 = vmatprep.subr.mxu0 0.0
  %3846 = vmatpush1.msra.mxu0 0.0
  %3847 = vmatprep.subr.mxu0 0.0
  %3848 = vmatpush1.msra.mxu0 0.0
  %3849 = vmatprep.subr.mxu0 0.0
  %3850 = vmatpush1.msra.mxu0 0.0
  %3851 = vmatprep.subr.mxu0 0.0
  %3852 = vmatpush1.msra.mxu0 0.0
  %3853 = vmatprep.subr.mxu0 0.0
  %3854 = vmatpush1.msra.mxu0 0.0
  %3855 = vmatprep.subr.mxu0 0.0
  %3856 = vmatpush1.msra.mxu0 0.0
  %3857 = vmatprep.subr.mxu0 0.0
  %3858 = vmatpush1.msra.mxu0 0.0
  %3859 = vmatprep.subr.mxu0 0.0
  %3860 = vmatpush1.msra.mxu0 0.0
  %3861 = vmatprep.subr.mxu0 0.0
  %3862 = vmatpush1.msra.mxu0 0.0
  %3863 = vmatprep.subr.mxu0 0.0
  %3864 = vmatpush1.msra.mxu0 0.0
  %3865 = vmatprep.subr.mxu0 0.0
  %3866 = vmatpush1.msra.mxu0 0.0
  %3867 = vmatprep.subr.mxu0 0.0
  %3868 = vmatpush1.msra.mxu0 0.0
  %3869 = vmatprep.subr.mxu0 0.0
  %3870 = vmatpush1.msra.mxu0 0.0
  %3871 = vmatprep.subr.mxu0 0.0
  %3872 = vmatpush1.msra.mxu0 0.0
  %3873 = vmatprep.subr.mxu0 0.0
  %3874 = vmatpush1.msra.mxu0 0.0
  %3875 = vmatprep.subr.mxu0 0.0
  %3876 = vmatpush1.msra.mxu0 0.0
  %3877 = vmatprep.subr.mxu0 0.0
  %3878 = vmatpush1.msra.mxu0 0.0
  %3879 = vmatprep.subr.mxu0 0.0
  %3880 = vmatpush1.msra.mxu0 0.0
  %3881 = vmatprep.subr.mxu0 0.0
  %3882 = vmatpush1.msra.mxu0 0.0
  %3883 = vmatprep.subr.mxu0 0.0
  %3884 = vmatpush1.msra.mxu0 0.0
  %3885 = vmatprep.subr.mxu0 0.0
  %3886 = vmatpush1.msra.mxu0 0.0
  %3887 = vmatprep.subr.mxu0 0.0
  %3888 = vmatpush1.msra.mxu0 0.0
  %3889 = vmatprep.mubr.f32.mxu0 0.0
  %3890 = vmatmul.mubr.f32.gmra.mrb[0].mxu0 %v3796
  %v3891 = vpop.f32.mrb[0].mxu0
  %v3892 = vadd.f32 %v3752, %v3891
  %v3893 = vpop.f32.mrb[0].mxu0
  %3894 = vmatprep.mubr.f32.mxu0 0.0
  %3895 = vmatmul.mubr.f32.gmra.mrb[0].mxu0 %v3799
  %v3896 = vpop.f32.mrb[0].mxu0
  %v3897 = vadd.f32 %v3757, %v3896
  %v3898 = vpop.f32.mrb[0].mxu0
  %3899 = vmatprep.mubr.f32.mxu0 0.0
  %3900 = vmatmul.mubr.f32.gmra.mrb[0].mxu0 %v3802
  %v3901 = vpop.f32.mrb[0].mxu0
  %v3902 = vadd.f32 %v3762, %v3901
  %v3903 = vpop.f32.mrb[0].mxu0
  %3904 = vmatprep.mubr.f32.mxu0 0.0
  %3905 = vmatmul.mubr.f32.gmra.mrb[0].mxu0 %v3805
  %v3906 = vpop.f32.mrb[0].mxu0
  %v3907 = vadd.f32 %v3767, %v3906
  %v3908 = vpop.f32.mrb[0].mxu0
  %3909 = vmatprep.mubr.f32.mxu0 0.0
  %3910 = vmatmul.mubr.f32.gmra.mrb[0].mxu0 %v3808
  %v3911 = vpop.f32.mrb[0].mxu0
  %v3912 = vadd.f32 %v3772, %v3911
  %v3913 = vpop.f32.mrb[0].mxu0
  %3914 = vmatprep.mubr.f32.mxu0 0.0
  %3915 = vmatmul.mubr.f32.gmra.mrb[0].mxu0 %v3811
  %v3916 = vpop.f32.mrb[0].mxu0
  %v3917 = vadd.f32 %v3777, %v3916
  %v3918 = vpop.f32.mrb[0].mxu0
  %3919 = vmatprep.mubr.f32.mxu0 0.0
  %3920 = vmatmul.mubr.f32.gmra.mrb[0].mxu0 %v3814
  %v3921 = vpop.f32.mrb[0].mxu0
  %v3922 = vadd.f32 %v3782, %v3921
  %v3923 = vpop.f32.mrb[0].mxu0
  %3924 = vmatprep.mubr.f32.mxu0 0.0
  %3925 = vmatmul.mubr.f32.gmra.mrb[0].mxu0 %v3817
  %v3926 = vpop.f32.mrb[0].mxu0
  %v3927 = vadd.f32 %v3787, %v3926
  %v3928 = vpop.f32.mrb[0].mxu0
  %3929 = vmatprep.mubr.f32.mxu0 0.0
  %3930 = vmatmul.mubr.f32.gmra.mrb[0].mxu0 %v3820
  %v3931 = vpop.f32.mrb[0].mxu0
  %v3932 = vadd.f32 %v3792, %v3931
  %v3933 = vpop.f32.mrb[0].mxu0
  %3934 = vdwg.mxu0
  %s3935 = scalar_lea.vmem %s5, 144
  %v3936 = vld [vmem:[%s3935] sm:$0xff]
  %v3937 = vld [vmem:[%s3935 + $0x8] sm:$0xff]
  %v3938 = vld [vmem:[%s3935 + $0x10] sm:$0xff]
  %v3939 = vld [vmem:[%s3935 + $0x18] sm:$0xff]
  %v3940 = vld [vmem:[%s3935 + $0x20] sm:$0xff]
  %v3941 = vld [vmem:[%s3935 + $0x28] sm:$0xff]
  %v3942 = vld [vmem:[%s3935 + $0x30] sm:$0xff]
  %v3943 = vld [vmem:[%s3935 + $0x38] sm:$0xff]
  %v3944 = vld [vmem:[%s3935 + $0x40] sm:$0xff]
  %3945 = vmatprep.subr.mxu0 0.0
  %3946 = vmatpush1.msra.mxu0 %v3396
  %3947 = vmatprep.subr.mxu0 0.0
  %3948 = vmatpush1.msra.mxu0 %v3397
  %3949 = vmatprep.subr.mxu0 0.0
  %3950 = vmatpush1.msra.mxu0 %v3398
  %3951 = vmatprep.subr.mxu0 0.0
  %3952 = vmatpush1.msra.mxu0 %v3399
  %3953 = vmatprep.subr.mxu0 0.0
  %3954 = vmatpush1.msra.mxu0 %v3400
  %3955 = vmatprep.subr.mxu0 0.0
  %3956 = vmatpush1.msra.mxu0 %v3401
  %3957 = vmatprep.subr.mxu0 0.0
  %3958 = vmatpush1.msra.mxu0 %v3402
  %3959 = vmatprep.subr.mxu0 0.0
  %3960 = vmatpush1.msra.mxu0 %v3403
  %3961 = vmatprep.subr.mxu0 0.0
  %3962 = vmatpush1.msra.mxu0 %v3404
  %3963 = vmatprep.subr.mxu0 0.0
  %3964 = vmatpush1.msra.mxu0 %v3405
  %3965 = vmatprep.subr.mxu0 0.0
  %3966 = vmatpush1.msra.mxu0 %v3406
  %3967 = vmatprep.subr.mxu0 0.0
  %3968 = vmatpush1.msra.mxu0 %v3407
  %3969 = vmatprep.subr.mxu0 0.0
  %3970 = vmatpush1.msra.mxu0 %v3408
  %3971 = vmatprep.subr.mxu0 0.0
  %3972 = vmatpush1.msra.mxu0 %v3409
  %3973 = vmatprep.subr.mxu0 0.0
  %3974 = vmatpush1.msra.mxu0 %v3410
  %3975 = vmatprep.subr.mxu0 0.0
  %3976 = vmatpush1.msra.mxu0 %v3411
  %3977 = vmatprep.subr.mxu0 0.0
  %3978 = vmatpush1.msra.mxu0 0.0
  %3979 = vmatprep.subr.mxu0 0.0
  %3980 = vmatpush1.msra.mxu0 0.0
  %3981 = vmatprep.subr.mxu0 0.0
  %3982 = vmatpush1.msra.mxu0 0.0
  %3983 = vmatprep.subr.mxu0 0.0
  %3984 = vmatpush1.msra.mxu0 0.0
  %3985 = vmatprep.subr.mxu0 0.0
  %3986 = vmatpush1.msra.mxu0 0.0
  %3987 = vmatprep.subr.mxu0 0.0
  %3988 = vmatpush1.msra.mxu0 0.0
  %3989 = vmatprep.subr.mxu0 0.0
  %3990 = vmatpush1.msra.mxu0 0.0
  %3991 = vmatprep.subr.mxu0 0.0
  %3992 = vmatpush1.msra.mxu0 0.0
  %3993 = vmatprep.subr.mxu0 0.0
  %3994 = vmatpush1.msra.mxu0 0.0
  %3995 = vmatprep.subr.mxu0 0.0
  %3996 = vmatpush1.msra.mxu0 0.0
  %3997 = vmatprep.subr.mxu0 0.0
  %3998 = vmatpush1.msra.mxu0 0.0
  %3999 = vmatprep.subr.mxu0 0.0
  %4000 = vmatpush1.msra.mxu0 0.0
  %4001 = vmatprep.subr.mxu0 0.0
  %4002 = vmatpush1.msra.mxu0 0.0
  %4003 = vmatprep.subr.mxu0 0.0
  %4004 = vmatpush1.msra.mxu0 0.0
  %4005 = vmatprep.subr.mxu0 0.0
  %4006 = vmatpush1.msra.mxu0 0.0
  %4007 = vmatprep.subr.mxu0 0.0
  %4008 = vmatpush1.msra.mxu0 0.0
  %4009 = vmatprep.mubr.f32.mxu0 0.0
  %4010 = vmatmul.mubr.f32.gmra.mrb[0].mxu0 %v3936
  %v4011 = vpop.f32.mrb[0].mxu0
  %v4012 = vadd.f32 0.0, %v4011
  %v4013 = vpop.f32.mrb[0].mxu0
  %4014 = vmatprep.mubr.f32.mxu0 0.0
  %4015 = vmatmul.mubr.f32.gmra.mrb[0].mxu0 %v3937
  %v4016 = vpop.f32.mrb[0].mxu0
  %v4017 = vadd.f32 0.0, %v4016
  %v4018 = vpop.f32.mrb[0].mxu0
  %4019 = vmatprep.mubr.f32.mxu0 0.0
  %4020 = vmatmul.mubr.f32.gmra.mrb[0].mxu0 %v3938
  %v4021 = vpop.f32.mrb[0].mxu0
  %v4022 = vadd.f32 0.0, %v4021
  %v4023 = vpop.f32.mrb[0].mxu0
  %4024 = vmatprep.mubr.f32.mxu0 0.0
  %4025 = vmatmul.mubr.f32.gmra.mrb[0].mxu0 %v3939
  %v4026 = vpop.f32.mrb[0].mxu0
  %v4027 = vadd.f32 0.0, %v4026
  %v4028 = vpop.f32.mrb[0].mxu0
  %4029 = vmatprep.mubr.f32.mxu0 0.0
  %4030 = vmatmul.mubr.f32.gmra.mrb[0].mxu0 %v3940
  %v4031 = vpop.f32.mrb[0].mxu0
  %v4032 = vadd.f32 0.0, %v4031
  %v4033 = vpop.f32.mrb[0].mxu0
  %4034 = vmatprep.mubr.f32.mxu0 0.0
  %4035 = vmatmul.mubr.f32.gmra.mrb[0].mxu0 %v3941
  %v4036 = vpop.f32.mrb[0].mxu0
  %v4037 = vadd.f32 0.0, %v4036
  %v4038 = vpop.f32.mrb[0].mxu0
  %4039 = vmatprep.mubr.f32.mxu0 0.0
  %4040 = vmatmul.mubr.f32.gmra.mrb[0].mxu0 %v3942
  %v4041 = vpop.f32.mrb[0].mxu0
  %v4042 = vadd.f32 0.0, %v4041
  %v4043 = vpop.f32.mrb[0].mxu0
  %4044 = vmatprep.mubr.f32.mxu0 0.0
  %4045 = vmatmul.mubr.f32.gmra.mrb[0].mxu0 %v3943
  %v4046 = vpop.f32.mrb[0].mxu0
  %v4047 = vadd.f32 0.0, %v4046
  %v4048 = vpop.f32.mrb[0].mxu0
  %4049 = vmatprep.mubr.f32.mxu0 0.0
  %4050 = vmatmul.mubr.f32.gmra.mrb[0].mxu0 %v3944
  %v4051 = vpop.f32.mrb[0].mxu0
  %v4052 = vadd.f32 0.0, %v4051
  %v4053 = vpop.f32.mrb[0].mxu0
  %4054 = vdwg.mxu0
  %s4055 = scalar_lea.vmem %s6, 8
  %v4056 = vld [vmem:[%s4055] sm:$0xf]
  %v4058 = vsel %vm3205, %v4012, 0
  %v4061 = vsel %vm3205, %v4017, 0
  %v4064 = vsel %vm3205, %v4022, 0
  %v4067 = vsel %vm3205, %v4027, 0
  %v4070 = vsel %vm3205, %v4032, 0
  %v4073 = vsel %vm3205, %v4037, 0
  %v4076 = vsel %vm3205, %v4042, 0
  %v4079 = vsel %vm3205, %v4047, 0
  %v4082 = vsel %vm3205, %v4052, 0
  %v4085 = vsel %vm3681, %v4056, 0
  %4087 = vmatprep.subr.mxu0 0.0
  %4088 = vmatpush1.msra.mxu0 %v4085
  %4089 = vmatprep.subr.mxu0 0.0
  %4090 = vmatpush1.msra.mxu0 0.0
  %4091 = vmatprep.subr.mxu0 0.0
  %4092 = vmatpush1.msra.mxu0 0.0
  %4093 = vmatprep.subr.mxu0 0.0
  %4094 = vmatpush1.msra.mxu0 0.0
  %4095 = vmatprep.subr.mxu0 0.0
  %4096 = vmatpush1.msra.mxu0 0.0
  %4097 = vmatprep.subr.mxu0 0.0
  %4098 = vmatpush1.msra.mxu0 0.0
  %4099 = vmatprep.subr.mxu0 0.0
  %4100 = vmatpush1.msra.mxu0 0.0
  %4101 = vmatprep.subr.mxu0 0.0
  %4102 = vmatpush1.msra.mxu0 0.0
  %4103 = vmatprep.subr.mxu0 0.0
  %4104 = vmatpush1.msra.mxu0 0.0
  %4105 = vmatprep.subr.mxu0 0.0
  %4106 = vmatpush1.msra.mxu0 0.0
  %4107 = vmatprep.subr.mxu0 0.0
  %4108 = vmatpush1.msra.mxu0 0.0
  %4109 = vmatprep.subr.mxu0 0.0
  %4110 = vmatpush1.msra.mxu0 0.0
  %4111 = vmatprep.subr.mxu0 0.0
  %4112 = vmatpush1.msra.mxu0 0.0
  %4113 = vmatprep.subr.mxu0 0.0
  %4114 = vmatpush1.msra.mxu0 0.0
  %4115 = vmatprep.subr.mxu0 0.0
  %4116 = vmatpush1.msra.mxu0 0.0
  %4117 = vmatprep.subr.mxu0 0.0
  %4118 = vmatpush1.msra.mxu0 0.0
  %4119 = vmatprep.subr.mxu0 0.0
  %4120 = vmatpush1.msra.mxu0 0.0
  %4121 = vmatprep.subr.mxu0 0.0
  %4122 = vmatpush1.msra.mxu0 0.0
  %4123 = vmatprep.subr.mxu0 0.0
  %4124 = vmatpush1.msra.mxu0 0.0
  %4125 = vmatprep.subr.mxu0 0.0
  %4126 = vmatpush1.msra.mxu0 0.0
  %4127 = vmatprep.subr.mxu0 0.0
  %4128 = vmatpush1.msra.mxu0 0.0
  %4129 = vmatprep.subr.mxu0 0.0
  %4130 = vmatpush1.msra.mxu0 0.0
  %4131 = vmatprep.subr.mxu0 0.0
  %4132 = vmatpush1.msra.mxu0 0.0
  %4133 = vmatprep.subr.mxu0 0.0
  %4134 = vmatpush1.msra.mxu0 0.0
  %4135 = vmatprep.subr.mxu0 0.0
  %4136 = vmatpush1.msra.mxu0 0.0
  %4137 = vmatprep.subr.mxu0 0.0
  %4138 = vmatpush1.msra.mxu0 0.0
  %4139 = vmatprep.subr.mxu0 0.0
  %4140 = vmatpush1.msra.mxu0 0.0
  %4141 = vmatprep.subr.mxu0 0.0
  %4142 = vmatpush1.msra.mxu0 0.0
  %4143 = vmatprep.subr.mxu0 0.0
  %4144 = vmatpush1.msra.mxu0 0.0
  %4145 = vmatprep.subr.mxu0 0.0
  %4146 = vmatpush1.msra.mxu0 0.0
  %4147 = vmatprep.subr.mxu0 0.0
  %4148 = vmatpush1.msra.mxu0 0.0
  %4149 = vmatprep.subr.mxu0 0.0
  %4150 = vmatpush1.msra.mxu0 0.0
  %4151 = vmatprep.mubr.f32.mxu0 0.0
  %4152 = vmatmul.mubr.f32.gmra.mrb[0].mxu0 %v4058
  %v4153 = vpop.f32.mrb[0].mxu0
  %v4154 = vadd.f32 0.0, %v4153
  %v4155 = vpop.f32.mrb[0].mxu0
  %4156 = vmatprep.mubr.f32.mxu0 0.0
  %4157 = vmatmul.mubr.f32.gmra.mrb[0].mxu0 %v4061
  %v4158 = vpop.f32.mrb[0].mxu0
  %v4159 = vadd.f32 0.0, %v4158
  %v4160 = vpop.f32.mrb[0].mxu0
  %4161 = vmatprep.mubr.f32.mxu0 0.0
  %4162 = vmatmul.mubr.f32.gmra.mrb[0].mxu0 %v4064
  %v4163 = vpop.f32.mrb[0].mxu0
  %v4164 = vadd.f32 0.0, %v4163
  %v4165 = vpop.f32.mrb[0].mxu0
  %4166 = vmatprep.mubr.f32.mxu0 0.0
  %4167 = vmatmul.mubr.f32.gmra.mrb[0].mxu0 %v4067
  %v4168 = vpop.f32.mrb[0].mxu0
  %v4169 = vadd.f32 0.0, %v4168
  %v4170 = vpop.f32.mrb[0].mxu0
  %4171 = vmatprep.mubr.f32.mxu0 0.0
  %4172 = vmatmul.mubr.f32.gmra.mrb[0].mxu0 %v4070
  %v4173 = vpop.f32.mrb[0].mxu0
  %v4174 = vadd.f32 0.0, %v4173
  %v4175 = vpop.f32.mrb[0].mxu0
  %4176 = vmatprep.mubr.f32.mxu0 0.0
  %4177 = vmatmul.mubr.f32.gmra.mrb[0].mxu0 %v4073
  %v4178 = vpop.f32.mrb[0].mxu0
  %v4179 = vadd.f32 0.0, %v4178
  %v4180 = vpop.f32.mrb[0].mxu0
  %4181 = vmatprep.mubr.f32.mxu0 0.0
  %4182 = vmatmul.mubr.f32.gmra.mrb[0].mxu0 %v4076
  %v4183 = vpop.f32.mrb[0].mxu0
  %v4184 = vadd.f32 0.0, %v4183
  %v4185 = vpop.f32.mrb[0].mxu0
  %4186 = vmatprep.mubr.f32.mxu0 0.0
  %4187 = vmatmul.mubr.f32.gmra.mrb[0].mxu0 %v4079
  %v4188 = vpop.f32.mrb[0].mxu0
  %v4189 = vadd.f32 0.0, %v4188
  %v4190 = vpop.f32.mrb[0].mxu0
  %4191 = vmatprep.mubr.f32.mxu0 0.0
  %4192 = vmatmul.mubr.f32.gmra.mrb[0].mxu0 %v4082
  %v4193 = vpop.f32.mrb[0].mxu0
  %v4194 = vadd.f32 0.0, %v4193
  %v4195 = vpop.f32.mrb[0].mxu0
  %4196 = vdwg.mxu0
  %v4197 = vadd.f32 %v3892, %v4154
  %v4198 = vadd.f32 %v3897, %v4159
  %v4199 = vadd.f32 %v3902, %v4164
  %v4200 = vadd.f32 %v3907, %v4169
  %v4201 = vadd.f32 %v3912, %v4174
  %v4202 = vadd.f32 %v3917, %v4179
  %v4203 = vadd.f32 %v3922, %v4184
  %v4204 = vadd.f32 %v3927, %v4189
  %v4205 = vadd.f32 %v3932, %v4194
  %s4206 = scalar_lea.vmem %s5, 216
  %v4207 = vld [vmem:[%s4206] sm:$0xff]
  %v4208 = vld [vmem:[%s4206 + $0x8] sm:$0xff]
  %v4209 = vld [vmem:[%s4206 + $0x10] sm:$0xff]
  %v4210 = vld [vmem:[%s4206 + $0x18] sm:$0xff]
  %v4211 = vld [vmem:[%s4206 + $0x20] sm:$0xff]
  %v4212 = vld [vmem:[%s4206 + $0x28] sm:$0xff]
  %v4213 = vld [vmem:[%s4206 + $0x30] sm:$0xff]
  %v4214 = vld [vmem:[%s4206 + $0x38] sm:$0xff]
  %v4215 = vld [vmem:[%s4206 + $0x40] sm:$0xff]
  %4216 = vmatprep.subr.mxu0 0.0
  %4217 = vmatpush1.msra.mxu0 %v3396
  %4218 = vmatprep.subr.mxu0 0.0
  %4219 = vmatpush1.msra.mxu0 %v3397
  %4220 = vmatprep.subr.mxu0 0.0
  %4221 = vmatpush1.msra.mxu0 %v3398
  %4222 = vmatprep.subr.mxu0 0.0
  %4223 = vmatpush1.msra.mxu0 %v3399
  %4224 = vmatprep.subr.mxu0 0.0
  %4225 = vmatpush1.msra.mxu0 %v3400
  %4226 = vmatprep.subr.mxu0 0.0
  %4227 = vmatpush1.msra.mxu0 %v3401
  %4228 = vmatprep.subr.mxu0 0.0
  %4229 = vmatpush1.msra.mxu0 %v3402
  %4230 = vmatprep.subr.mxu0 0.0
  %4231 = vmatpush1.msra.mxu0 %v3403
  %4232 = vmatprep.subr.mxu0 0.0
  %4233 = vmatpush1.msra.mxu0 %v3404
  %4234 = vmatprep.subr.mxu0 0.0
  %4235 = vmatpush1.msra.mxu0 %v3405
  %4236 = vmatprep.subr.mxu0 0.0
  %4237 = vmatpush1.msra.mxu0 %v3406
  %4238 = vmatprep.subr.mxu0 0.0
  %4239 = vmatpush1.msra.mxu0 %v3407
  %4240 = vmatprep.subr.mxu0 0.0
  %4241 = vmatpush1.msra.mxu0 %v3408
  %4242 = vmatprep.subr.mxu0 0.0
  %4243 = vmatpush1.msra.mxu0 %v3409
  %4244 = vmatprep.subr.mxu0 0.0
  %4245 = vmatpush1.msra.mxu0 %v3410
  %4246 = vmatprep.subr.mxu0 0.0
  %4247 = vmatpush1.msra.mxu0 %v3411
  %4248 = vmatprep.subr.mxu0 0.0
  %4249 = vmatpush1.msra.mxu0 0.0
  %4250 = vmatprep.subr.mxu0 0.0
  %4251 = vmatpush1.msra.mxu0 0.0
  %4252 = vmatprep.subr.mxu0 0.0
  %4253 = vmatpush1.msra.mxu0 0.0
  %4254 = vmatprep.subr.mxu0 0.0
  %4255 = vmatpush1.msra.mxu0 0.0
  %4256 = vmatprep.subr.mxu0 0.0
  %4257 = vmatpush1.msra.mxu0 0.0
  %4258 = vmatprep.subr.mxu0 0.0
  %4259 = vmatpush1.msra.mxu0 0.0
  %4260 = vmatprep.subr.mxu0 0.0
  %4261 = vmatpush1.msra.mxu0 0.0
  %4262 = vmatprep.subr.mxu0 0.0
  %4263 = vmatpush1.msra.mxu0 0.0
  %4264 = vmatprep.subr.mxu0 0.0
  %4265 = vmatpush1.msra.mxu0 0.0
  %4266 = vmatprep.subr.mxu0 0.0
  %4267 = vmatpush1.msra.mxu0 0.0
  %4268 = vmatprep.subr.mxu0 0.0
  %4269 = vmatpush1.msra.mxu0 0.0
  %4270 = vmatprep.subr.mxu0 0.0
  %4271 = vmatpush1.msra.mxu0 0.0
  %4272 = vmatprep.subr.mxu0 0.0
  %4273 = vmatpush1.msra.mxu0 0.0
  %4274 = vmatprep.subr.mxu0 0.0
  %4275 = vmatpush1.msra.mxu0 0.0
  %4276 = vmatprep.subr.mxu0 0.0
  %4277 = vmatpush1.msra.mxu0 0.0
  %4278 = vmatprep.subr.mxu0 0.0
  %4279 = vmatpush1.msra.mxu0 0.0
  %4280 = vmatprep.mubr.f32.mxu0 0.0
  %4281 = vmatmul.mubr.f32.gmra.mrb[0].mxu0 %v4207
  %v4282 = vpop.f32.mrb[0].mxu0
  %v4283 = vadd.f32 0.0, %v4282
  %v4284 = vpop.f32.mrb[0].mxu0
  %4285 = vmatprep.mubr.f32.mxu0 0.0
  %4286 = vmatmul.mubr.f32.gmra.mrb[0].mxu0 %v4208
  %v4287 = vpop.f32.mrb[0].mxu0
  %v4288 = vadd.f32 0.0, %v4287
  %v4289 = vpop.f32.mrb[0].mxu0
  %4290 = vmatprep.mubr.f32.mxu0 0.0
  %4291 = vmatmul.mubr.f32.gmra.mrb[0].mxu0 %v4209
  %v4292 = vpop.f32.mrb[0].mxu0
  %v4293 = vadd.f32 0.0, %v4292
  %v4294 = vpop.f32.mrb[0].mxu0
  %4295 = vmatprep.mubr.f32.mxu0 0.0
  %4296 = vmatmul.mubr.f32.gmra.mrb[0].mxu0 %v4210
  %v4297 = vpop.f32.mrb[0].mxu0
  %v4298 = vadd.f32 0.0, %v4297
  %v4299 = vpop.f32.mrb[0].mxu0
  %4300 = vmatprep.mubr.f32.mxu0 0.0
  %4301 = vmatmul.mubr.f32.gmra.mrb[0].mxu0 %v4211
  %v4302 = vpop.f32.mrb[0].mxu0
  %v4303 = vadd.f32 0.0, %v4302
  %v4304 = vpop.f32.mrb[0].mxu0
  %4305 = vmatprep.mubr.f32.mxu0 0.0
  %4306 = vmatmul.mubr.f32.gmra.mrb[0].mxu0 %v4212
  %v4307 = vpop.f32.mrb[0].mxu0
  %v4308 = vadd.f32 0.0, %v4307
  %v4309 = vpop.f32.mrb[0].mxu0
  %4310 = vmatprep.mubr.f32.mxu0 0.0
  %4311 = vmatmul.mubr.f32.gmra.mrb[0].mxu0 %v4213
  %v4312 = vpop.f32.mrb[0].mxu0
  %v4313 = vadd.f32 0.0, %v4312
  %v4314 = vpop.f32.mrb[0].mxu0
  %4315 = vmatprep.mubr.f32.mxu0 0.0
  %4316 = vmatmul.mubr.f32.gmra.mrb[0].mxu0 %v4214
  %v4317 = vpop.f32.mrb[0].mxu0
  %v4318 = vadd.f32 0.0, %v4317
  %v4319 = vpop.f32.mrb[0].mxu0
  %4320 = vmatprep.mubr.f32.mxu0 0.0
  %4321 = vmatmul.mubr.f32.gmra.mrb[0].mxu0 %v4215
  %v4322 = vpop.f32.mrb[0].mxu0
  %v4323 = vadd.f32 0.0, %v4322
  %v4324 = vpop.f32.mrb[0].mxu0
  %4325 = vdwg.mxu0
  %s4326 = scalar_lea.vmem %s6, 12
  %v4327 = vld [vmem:[%s4326] sm:$0xf]
  %v4329 = vsel %vm3205, %v4283, 0
  %v4332 = vsel %vm3205, %v4288, 0
  %v4335 = vsel %vm3205, %v4293, 0
  %v4338 = vsel %vm3205, %v4298, 0
  %v4341 = vsel %vm3205, %v4303, 0
  %v4344 = vsel %vm3205, %v4308, 0
  %v4347 = vsel %vm3205, %v4313, 0
  %v4350 = vsel %vm3205, %v4318, 0
  %v4353 = vsel %vm3205, %v4323, 0
  %v4356 = vsel %vm3681, %v4327, 0
  %4358 = vmatprep.subr.mxu0 0.0
  %4359 = vmatpush1.msra.mxu0 %v4356
  %4360 = vmatprep.subr.mxu0 0.0
  %4361 = vmatpush1.msra.mxu0 0.0
  %4362 = vmatprep.subr.mxu0 0.0
  %4363 = vmatpush1.msra.mxu0 0.0
  %4364 = vmatprep.subr.mxu0 0.0
  %4365 = vmatpush1.msra.mxu0 0.0
  %4366 = vmatprep.subr.mxu0 0.0
  %4367 = vmatpush1.msra.mxu0 0.0
  %4368 = vmatprep.subr.mxu0 0.0
  %4369 = vmatpush1.msra.mxu0 0.0
  %4370 = vmatprep.subr.mxu0 0.0
  %4371 = vmatpush1.msra.mxu0 0.0
  %4372 = vmatprep.subr.mxu0 0.0
  %4373 = vmatpush1.msra.mxu0 0.0
  %4374 = vmatprep.subr.mxu0 0.0
  %4375 = vmatpush1.msra.mxu0 0.0
  %4376 = vmatprep.subr.mxu0 0.0
  %4377 = vmatpush1.msra.mxu0 0.0
  %4378 = vmatprep.subr.mxu0 0.0
  %4379 = vmatpush1.msra.mxu0 0.0
  %4380 = vmatprep.subr.mxu0 0.0
  %4381 = vmatpush1.msra.mxu0 0.0
  %4382 = vmatprep.subr.mxu0 0.0
  %4383 = vmatpush1.msra.mxu0 0.0
  %4384 = vmatprep.subr.mxu0 0.0
  %4385 = vmatpush1.msra.mxu0 0.0
  %4386 = vmatprep.subr.mxu0 0.0
  %4387 = vmatpush1.msra.mxu0 0.0
  %4388 = vmatprep.subr.mxu0 0.0
  %4389 = vmatpush1.msra.mxu0 0.0
  %4390 = vmatprep.subr.mxu0 0.0
  %4391 = vmatpush1.msra.mxu0 0.0
  %4392 = vmatprep.subr.mxu0 0.0
  %4393 = vmatpush1.msra.mxu0 0.0
  %4394 = vmatprep.subr.mxu0 0.0
  %4395 = vmatpush1.msra.mxu0 0.0
  %4396 = vmatprep.subr.mxu0 0.0
  %4397 = vmatpush1.msra.mxu0 0.0
  %4398 = vmatprep.subr.mxu0 0.0
  %4399 = vmatpush1.msra.mxu0 0.0
  %4400 = vmatprep.subr.mxu0 0.0
  %4401 = vmatpush1.msra.mxu0 0.0
  %4402 = vmatprep.subr.mxu0 0.0
  %4403 = vmatpush1.msra.mxu0 0.0
  %4404 = vmatprep.subr.mxu0 0.0
  %4405 = vmatpush1.msra.mxu0 0.0
  %4406 = vmatprep.subr.mxu0 0.0
  %4407 = vmatpush1.msra.mxu0 0.0
  %4408 = vmatprep.subr.mxu0 0.0
  %4409 = vmatpush1.msra.mxu0 0.0
  %4410 = vmatprep.subr.mxu0 0.0
  %4411 = vmatpush1.msra.mxu0 0.0
  %4412 = vmatprep.subr.mxu0 0.0
  %4413 = vmatpush1.msra.mxu0 0.0
  %4414 = vmatprep.subr.mxu0 0.0
  %4415 = vmatpush1.msra.mxu0 0.0
  %4416 = vmatprep.subr.mxu0 0.0
  %4417 = vmatpush1.msra.mxu0 0.0
  %4418 = vmatprep.subr.mxu0 0.0
  %4419 = vmatpush1.msra.mxu0 0.0
  %4420 = vmatprep.subr.mxu0 0.0
  %4421 = vmatpush1.msra.mxu0 0.0
  %4422 = vmatprep.mubr.f32.mxu0 0.0
  %4423 = vmatmul.mubr.f32.gmra.mrb[0].mxu0 %v4329
  %v4424 = vpop.f32.mrb[0].mxu0
  %v4425 = vadd.f32 0.0, %v4424
  %v4426 = vpop.f32.mrb[0].mxu0
  %4427 = vmatprep.mubr.f32.mxu0 0.0
  %4428 = vmatmul.mubr.f32.gmra.mrb[0].mxu0 %v4332
  %v4429 = vpop.f32.mrb[0].mxu0
  %v4430 = vadd.f32 0.0, %v4429
  %v4431 = vpop.f32.mrb[0].mxu0
  %4432 = vmatprep.mubr.f32.mxu0 0.0
  %4433 = vmatmul.mubr.f32.gmra.mrb[0].mxu0 %v4335
  %v4434 = vpop.f32.mrb[0].mxu0
  %v4435 = vadd.f32 0.0, %v4434
  %v4436 = vpop.f32.mrb[0].mxu0
  %4437 = vmatprep.mubr.f32.mxu0 0.0
  %4438 = vmatmul.mubr.f32.gmra.mrb[0].mxu0 %v4338
  %v4439 = vpop.f32.mrb[0].mxu0
  %v4440 = vadd.f32 0.0, %v4439
  %v4441 = vpop.f32.mrb[0].mxu0
  %4442 = vmatprep.mubr.f32.mxu0 0.0
  %4443 = vmatmul.mubr.f32.gmra.mrb[0].mxu0 %v4341
  %v4444 = vpop.f32.mrb[0].mxu0
  %v4445 = vadd.f32 0.0, %v4444
  %v4446 = vpop.f32.mrb[0].mxu0
  %4447 = vmatprep.mubr.f32.mxu0 0.0
  %4448 = vmatmul.mubr.f32.gmra.mrb[0].mxu0 %v4344
  %v4449 = vpop.f32.mrb[0].mxu0
  %v4450 = vadd.f32 0.0, %v4449
  %v4451 = vpop.f32.mrb[0].mxu0
  %4452 = vmatprep.mubr.f32.mxu0 0.0
  %4453 = vmatmul.mubr.f32.gmra.mrb[0].mxu0 %v4347
  %v4454 = vpop.f32.mrb[0].mxu0
  %v4455 = vadd.f32 0.0, %v4454
  %v4456 = vpop.f32.mrb[0].mxu0
  %4457 = vmatprep.mubr.f32.mxu0 0.0
  %4458 = vmatmul.mubr.f32.gmra.mrb[0].mxu0 %v4350
  %v4459 = vpop.f32.mrb[0].mxu0
  %v4460 = vadd.f32 0.0, %v4459
  %v4461 = vpop.f32.mrb[0].mxu0
  %4462 = vmatprep.mubr.f32.mxu0 0.0
  %4463 = vmatmul.mubr.f32.gmra.mrb[0].mxu0 %v4353
  %v4464 = vpop.f32.mrb[0].mxu0
  %v4465 = vadd.f32 0.0, %v4464
  %v4466 = vpop.f32.mrb[0].mxu0
  %4467 = vdwg.mxu0
  %v4468 = vadd.f32 %v4197, %v4425
  %v4469 = vadd.f32 %v4198, %v4430
  %v4470 = vadd.f32 %v4199, %v4435
  %v4471 = vadd.f32 %v4200, %v4440
  %v4472 = vadd.f32 %v4201, %v4445
  %v4473 = vadd.f32 %v4202, %v4450
  %v4474 = vadd.f32 %v4203, %v4455
  %v4475 = vadd.f32 %v4204, %v4460
  %v4476 = vadd.f32 %v4205, %v4465
  %s4477 = scalar_lea.vmem %s5, 288
  %v4478 = vld [vmem:[%s4477] sm:$0xff]
  %v4479 = vld [vmem:[%s4477 + $0x8] sm:$0xff]
  %v4480 = vld [vmem:[%s4477 + $0x10] sm:$0xff]
  %v4481 = vld [vmem:[%s4477 + $0x18] sm:$0xff]
  %v4482 = vld [vmem:[%s4477 + $0x20] sm:$0xff]
  %v4483 = vld [vmem:[%s4477 + $0x28] sm:$0xff]
  %v4484 = vld [vmem:[%s4477 + $0x30] sm:$0xff]
  %v4485 = vld [vmem:[%s4477 + $0x38] sm:$0xff]
  %v4486 = vld [vmem:[%s4477 + $0x40] sm:$0xff]
  %4487 = vmatprep.subr.mxu0 0.0
  %4488 = vmatpush1.msra.mxu0 %v3396
  %4489 = vmatprep.subr.mxu0 0.0
  %4490 = vmatpush1.msra.mxu0 %v3397
  %4491 = vmatprep.subr.mxu0 0.0
  %4492 = vmatpush1.msra.mxu0 %v3398
  %4493 = vmatprep.subr.mxu0 0.0
  %4494 = vmatpush1.msra.mxu0 %v3399
  %4495 = vmatprep.subr.mxu0 0.0
  %4496 = vmatpush1.msra.mxu0 %v3400
  %4497 = vmatprep.subr.mxu0 0.0
  %4498 = vmatpush1.msra.mxu0 %v3401
  %4499 = vmatprep.subr.mxu0 0.0
  %4500 = vmatpush1.msra.mxu0 %v3402
  %4501 = vmatprep.subr.mxu0 0.0
  %4502 = vmatpush1.msra.mxu0 %v3403
  %4503 = vmatprep.subr.mxu0 0.0
  %4504 = vmatpush1.msra.mxu0 %v3404
  %4505 = vmatprep.subr.mxu0 0.0
  %4506 = vmatpush1.msra.mxu0 %v3405
  %4507 = vmatprep.subr.mxu0 0.0
  %4508 = vmatpush1.msra.mxu0 %v3406
  %4509 = vmatprep.subr.mxu0 0.0
  %4510 = vmatpush1.msra.mxu0 %v3407
  %4511 = vmatprep.subr.mxu0 0.0
  %4512 = vmatpush1.msra.mxu0 %v3408
  %4513 = vmatprep.subr.mxu0 0.0
  %4514 = vmatpush1.msra.mxu0 %v3409
  %4515 = vmatprep.subr.mxu0 0.0
  %4516 = vmatpush1.msra.mxu0 %v3410
  %4517 = vmatprep.subr.mxu0 0.0
  %4518 = vmatpush1.msra.mxu0 %v3411
  %4519 = vmatprep.subr.mxu0 0.0
  %4520 = vmatpush1.msra.mxu0 0.0
  %4521 = vmatprep.subr.mxu0 0.0
  %4522 = vmatpush1.msra.mxu0 0.0
  %4523 = vmatprep.subr.mxu0 0.0
  %4524 = vmatpush1.msra.mxu0 0.0
  %4525 = vmatprep.subr.mxu0 0.0
  %4526 = vmatpush1.msra.mxu0 0.0
  %4527 = vmatprep.subr.mxu0 0.0
  %4528 = vmatpush1.msra.mxu0 0.0
  %4529 = vmatprep.subr.mxu0 0.0
  %4530 = vmatpush1.msra.mxu0 0.0
  %4531 = vmatprep.subr.mxu0 0.0
  %4532 = vmatpush1.msra.mxu0 0.0
  %4533 = vmatprep.subr.mxu0 0.0
  %4534 = vmatpush1.msra.mxu0 0.0
  %4535 = vmatprep.subr.mxu0 0.0
  %4536 = vmatpush1.msra.mxu0 0.0
  %4537 = vmatprep.subr.mxu0 0.0
  %4538 = vmatpush1.msra.mxu0 0.0
  %4539 = vmatprep.subr.mxu0 0.0
  %4540 = vmatpush1.msra.mxu0 0.0
  %4541 = vmatprep.subr.mxu0 0.0
  %4542 = vmatpush1.msra.mxu0 0.0
  %4543 = vmatprep.subr.mxu0 0.0
  %4544 = vmatpush1.msra.mxu0 0.0
  %4545 = vmatprep.subr.mxu0 0.0
  %4546 = vmatpush1.msra.mxu0 0.0
  %4547 = vmatprep.subr.mxu0 0.0
  %4548 = vmatpush1.msra.mxu0 0.0
  %4549 = vmatprep.subr.mxu0 0.0
  %4550 = vmatpush1.msra.mxu0 0.0
  %4551 = vmatprep.mubr.f32.mxu0 0.0
  %4552 = vmatmul.mubr.f32.gmra.mrb[0].mxu0 %v4478
  %v4553 = vpop.f32.mrb[0].mxu0
  %v4554 = vadd.f32 0.0, %v4553
  %v4555 = vpop.f32.mrb[0].mxu0
  %4556 = vmatprep.mubr.f32.mxu0 0.0
  %4557 = vmatmul.mubr.f32.gmra.mrb[0].mxu0 %v4479
  %v4558 = vpop.f32.mrb[0].mxu0
  %v4559 = vadd.f32 0.0, %v4558
  %v4560 = vpop.f32.mrb[0].mxu0
  %4561 = vmatprep.mubr.f32.mxu0 0.0
  %4562 = vmatmul.mubr.f32.gmra.mrb[0].mxu0 %v4480
  %v4563 = vpop.f32.mrb[0].mxu0
  %v4564 = vadd.f32 0.0, %v4563
  %v4565 = vpop.f32.mrb[0].mxu0
  %4566 = vmatprep.mubr.f32.mxu0 0.0
  %4567 = vmatmul.mubr.f32.gmra.mrb[0].mxu0 %v4481
  %v4568 = vpop.f32.mrb[0].mxu0
  %v4569 = vadd.f32 0.0, %v4568
  %v4570 = vpop.f32.mrb[0].mxu0
  %4571 = vmatprep.mubr.f32.mxu0 0.0
  %4572 = vmatmul.mubr.f32.gmra.mrb[0].mxu0 %v4482
  %v4573 = vpop.f32.mrb[0].mxu0
  %v4574 = vadd.f32 0.0, %v4573
  %v4575 = vpop.f32.mrb[0].mxu0
  %4576 = vmatprep.mubr.f32.mxu0 0.0
  %4577 = vmatmul.mubr.f32.gmra.mrb[0].mxu0 %v4483
  %v4578 = vpop.f32.mrb[0].mxu0
  %v4579 = vadd.f32 0.0, %v4578
  %v4580 = vpop.f32.mrb[0].mxu0
  %4581 = vmatprep.mubr.f32.mxu0 0.0
  %4582 = vmatmul.mubr.f32.gmra.mrb[0].mxu0 %v4484
  %v4583 = vpop.f32.mrb[0].mxu0
  %v4584 = vadd.f32 0.0, %v4583
  %v4585 = vpop.f32.mrb[0].mxu0
  %4586 = vmatprep.mubr.f32.mxu0 0.0
  %4587 = vmatmul.mubr.f32.gmra.mrb[0].mxu0 %v4485
  %v4588 = vpop.f32.mrb[0].mxu0
  %v4589 = vadd.f32 0.0, %v4588
  %v4590 = vpop.f32.mrb[0].mxu0
  %4591 = vmatprep.mubr.f32.mxu0 0.0
  %4592 = vmatmul.mubr.f32.gmra.mrb[0].mxu0 %v4486
  %v4593 = vpop.f32.mrb[0].mxu0
  %v4594 = vadd.f32 0.0, %v4593
  %v4595 = vpop.f32.mrb[0].mxu0
  %4596 = vdwg.mxu0
  %s4597 = scalar_lea.vmem %s6, 16
  %v4598 = vld [vmem:[%s4597] sm:$0xf]
  %v4600 = vsel %vm3205, %v4554, 0
  %v4603 = vsel %vm3205, %v4559, 0
  %v4606 = vsel %vm3205, %v4564, 0
  %v4609 = vsel %vm3205, %v4569, 0
  %v4612 = vsel %vm3205, %v4574, 0
  %v4615 = vsel %vm3205, %v4579, 0
  %v4618 = vsel %vm3205, %v4584, 0
  %v4621 = vsel %vm3205, %v4589, 0
  %v4624 = vsel %vm3205, %v4594, 0
  %v4627 = vsel %vm3681, %v4598, 0
  %4629 = vmatprep.subr.mxu0 0.0
  %4630 = vmatpush1.msra.mxu0 %v4627
  %4631 = vmatprep.subr.mxu0 0.0
  %4632 = vmatpush1.msra.mxu0 0.0
  %4633 = vmatprep.subr.mxu0 0.0
  %4634 = vmatpush1.msra.mxu0 0.0
  %4635 = vmatprep.subr.mxu0 0.0
  %4636 = vmatpush1.msra.mxu0 0.0
  %4637 = vmatprep.subr.mxu0 0.0
  %4638 = vmatpush1.msra.mxu0 0.0
  %4639 = vmatprep.subr.mxu0 0.0
  %4640 = vmatpush1.msra.mxu0 0.0
  %4641 = vmatprep.subr.mxu0 0.0
  %4642 = vmatpush1.msra.mxu0 0.0
  %4643 = vmatprep.subr.mxu0 0.0
  %4644 = vmatpush1.msra.mxu0 0.0
  %4645 = vmatprep.subr.mxu0 0.0
  %4646 = vmatpush1.msra.mxu0 0.0
  %4647 = vmatprep.subr.mxu0 0.0
  %4648 = vmatpush1.msra.mxu0 0.0
  %4649 = vmatprep.subr.mxu0 0.0
  %4650 = vmatpush1.msra.mxu0 0.0
  %4651 = vmatprep.subr.mxu0 0.0
  %4652 = vmatpush1.msra.mxu0 0.0
  %4653 = vmatprep.subr.mxu0 0.0
  %4654 = vmatpush1.msra.mxu0 0.0
  %4655 = vmatprep.subr.mxu0 0.0
  %4656 = vmatpush1.msra.mxu0 0.0
  %4657 = vmatprep.subr.mxu0 0.0
  %4658 = vmatpush1.msra.mxu0 0.0
  %4659 = vmatprep.subr.mxu0 0.0
  %4660 = vmatpush1.msra.mxu0 0.0
  %4661 = vmatprep.subr.mxu0 0.0
  %4662 = vmatpush1.msra.mxu0 0.0
  %4663 = vmatprep.subr.mxu0 0.0
  %4664 = vmatpush1.msra.mxu0 0.0
  %4665 = vmatprep.subr.mxu0 0.0
  %4666 = vmatpush1.msra.mxu0 0.0
  %4667 = vmatprep.subr.mxu0 0.0
  %4668 = vmatpush1.msra.mxu0 0.0
  %4669 = vmatprep.subr.mxu0 0.0
  %4670 = vmatpush1.msra.mxu0 0.0
  %4671 = vmatprep.subr.mxu0 0.0
  %4672 = vmatpush1.msra.mxu0 0.0
  %4673 = vmatprep.subr.mxu0 0.0
  %4674 = vmatpush1.msra.mxu0 0.0
  %4675 = vmatprep.subr.mxu0 0.0
  %4676 = vmatpush1.msra.mxu0 0.0
  %4677 = vmatprep.subr.mxu0 0.0
  %4678 = vmatpush1.msra.mxu0 0.0
  %4679 = vmatprep.subr.mxu0 0.0
  %4680 = vmatpush1.msra.mxu0 0.0
  %4681 = vmatprep.subr.mxu0 0.0
  %4682 = vmatpush1.msra.mxu0 0.0
  %4683 = vmatprep.subr.mxu0 0.0
  %4684 = vmatpush1.msra.mxu0 0.0
  %4685 = vmatprep.subr.mxu0 0.0
  %4686 = vmatpush1.msra.mxu0 0.0
  %4687 = vmatprep.subr.mxu0 0.0
  %4688 = vmatpush1.msra.mxu0 0.0
  %4689 = vmatprep.subr.mxu0 0.0
  %4690 = vmatpush1.msra.mxu0 0.0
  %4691 = vmatprep.subr.mxu0 0.0
  %4692 = vmatpush1.msra.mxu0 0.0
  %4693 = vmatprep.mubr.f32.mxu0 0.0
  %4694 = vmatmul.mubr.f32.gmra.mrb[0].mxu0 %v4600
  %v4695 = vpop.f32.mrb[0].mxu0
  %v4696 = vadd.f32 0.0, %v4695
  %v4697 = vpop.f32.mrb[0].mxu0
  %4698 = vmatprep.mubr.f32.mxu0 0.0
  %4699 = vmatmul.mubr.f32.gmra.mrb[0].mxu0 %v4603
  %v4700 = vpop.f32.mrb[0].mxu0
  %v4701 = vadd.f32 0.0, %v4700
  %v4702 = vpop.f32.mrb[0].mxu0
  %4703 = vmatprep.mubr.f32.mxu0 0.0
  %4704 = vmatmul.mubr.f32.gmra.mrb[0].mxu0 %v4606
  %v4705 = vpop.f32.mrb[0].mxu0
  %v4706 = vadd.f32 0.0, %v4705
  %v4707 = vpop.f32.mrb[0].mxu0
  %4708 = vmatprep.mubr.f32.mxu0 0.0
  %4709 = vmatmul.mubr.f32.gmra.mrb[0].mxu0 %v4609
  %v4710 = vpop.f32.mrb[0].mxu0
  %v4711 = vadd.f32 0.0, %v4710
  %v4712 = vpop.f32.mrb[0].mxu0
  %4713 = vmatprep.mubr.f32.mxu0 0.0
  %4714 = vmatmul.mubr.f32.gmra.mrb[0].mxu0 %v4612
  %v4715 = vpop.f32.mrb[0].mxu0
  %v4716 = vadd.f32 0.0, %v4715
  %v4717 = vpop.f32.mrb[0].mxu0
  %4718 = vmatprep.mubr.f32.mxu0 0.0
  %4719 = vmatmul.mubr.f32.gmra.mrb[0].mxu0 %v4615
  %v4720 = vpop.f32.mrb[0].mxu0
  %v4721 = vadd.f32 0.0, %v4720
  %v4722 = vpop.f32.mrb[0].mxu0
  %4723 = vmatprep.mubr.f32.mxu0 0.0
  %4724 = vmatmul.mubr.f32.gmra.mrb[0].mxu0 %v4618
  %v4725 = vpop.f32.mrb[0].mxu0
  %v4726 = vadd.f32 0.0, %v4725
  %v4727 = vpop.f32.mrb[0].mxu0
  %4728 = vmatprep.mubr.f32.mxu0 0.0
  %4729 = vmatmul.mubr.f32.gmra.mrb[0].mxu0 %v4621
  %v4730 = vpop.f32.mrb[0].mxu0
  %v4731 = vadd.f32 0.0, %v4730
  %v4732 = vpop.f32.mrb[0].mxu0
  %4733 = vmatprep.mubr.f32.mxu0 0.0
  %4734 = vmatmul.mubr.f32.gmra.mrb[0].mxu0 %v4624
  %v4735 = vpop.f32.mrb[0].mxu0
  %v4736 = vadd.f32 0.0, %v4735
  %v4737 = vpop.f32.mrb[0].mxu0
  %4738 = vdwg.mxu0
  %v4739 = vadd.f32 %v4468, %v4696
  %v4740 = vadd.f32 %v4469, %v4701
  %v4741 = vadd.f32 %v4470, %v4706
  %v4742 = vadd.f32 %v4471, %v4711
  %v4743 = vadd.f32 %v4472, %v4716
  %v4744 = vadd.f32 %v4473, %v4721
  %v4745 = vadd.f32 %v4474, %v4726
  %v4746 = vadd.f32 %v4475, %v4731
  %v4747 = vadd.f32 %v4476, %v4736
  %s4748 = scalar_lea.vmem %s5, 360
  %v4749 = vld [vmem:[%s4748] sm:$0xff]
  %v4750 = vld [vmem:[%s4748 + $0x8] sm:$0xff]
  %v4751 = vld [vmem:[%s4748 + $0x10] sm:$0xff]
  %v4752 = vld [vmem:[%s4748 + $0x18] sm:$0xff]
  %v4753 = vld [vmem:[%s4748 + $0x20] sm:$0xff]
  %v4754 = vld [vmem:[%s4748 + $0x28] sm:$0xff]
  %v4755 = vld [vmem:[%s4748 + $0x30] sm:$0xff]
  %v4756 = vld [vmem:[%s4748 + $0x38] sm:$0xff]
  %v4757 = vld [vmem:[%s4748 + $0x40] sm:$0xff]
  %4758 = vmatprep.subr.mxu0 0.0
  %4759 = vmatpush1.msra.mxu0 %v3396
  %4760 = vmatprep.subr.mxu0 0.0
  %4761 = vmatpush1.msra.mxu0 %v3397
  %4762 = vmatprep.subr.mxu0 0.0
  %4763 = vmatpush1.msra.mxu0 %v3398
  %4764 = vmatprep.subr.mxu0 0.0
  %4765 = vmatpush1.msra.mxu0 %v3399
  %4766 = vmatprep.subr.mxu0 0.0
  %4767 = vmatpush1.msra.mxu0 %v3400
  %4768 = vmatprep.subr.mxu0 0.0
  %4769 = vmatpush1.msra.mxu0 %v3401
  %4770 = vmatprep.subr.mxu0 0.0
  %4771 = vmatpush1.msra.mxu0 %v3402
  %4772 = vmatprep.subr.mxu0 0.0
  %4773 = vmatpush1.msra.mxu0 %v3403
  %4774 = vmatprep.subr.mxu0 0.0
  %4775 = vmatpush1.msra.mxu0 %v3404
  %4776 = vmatprep.subr.mxu0 0.0
  %4777 = vmatpush1.msra.mxu0 %v3405
  %4778 = vmatprep.subr.mxu0 0.0
  %4779 = vmatpush1.msra.mxu0 %v3406
  %4780 = vmatprep.subr.mxu0 0.0
  %4781 = vmatpush1.msra.mxu0 %v3407
  %4782 = vmatprep.subr.mxu0 0.0
  %4783 = vmatpush1.msra.mxu0 %v3408
  %4784 = vmatprep.subr.mxu0 0.0
  %4785 = vmatpush1.msra.mxu0 %v3409
  %4786 = vmatprep.subr.mxu0 0.0
  %4787 = vmatpush1.msra.mxu0 %v3410
  %4788 = vmatprep.subr.mxu0 0.0
  %4789 = vmatpush1.msra.mxu0 %v3411
  %4790 = vmatprep.subr.mxu0 0.0
  %4791 = vmatpush1.msra.mxu0 0.0
  %4792 = vmatprep.subr.mxu0 0.0
  %4793 = vmatpush1.msra.mxu0 0.0
  %4794 = vmatprep.subr.mxu0 0.0
  %4795 = vmatpush1.msra.mxu0 0.0
  %4796 = vmatprep.subr.mxu0 0.0
  %4797 = vmatpush1.msra.mxu0 0.0
  %4798 = vmatprep.subr.mxu0 0.0
  %4799 = vmatpush1.msra.mxu0 0.0
  %4800 = vmatprep.subr.mxu0 0.0
  %4801 = vmatpush1.msra.mxu0 0.0
  %4802 = vmatprep.subr.mxu0 0.0
  %4803 = vmatpush1.msra.mxu0 0.0
  %4804 = vmatprep.subr.mxu0 0.0
  %4805 = vmatpush1.msra.mxu0 0.0
  %4806 = vmatprep.subr.mxu0 0.0
  %4807 = vmatpush1.msra.mxu0 0.0
  %4808 = vmatprep.subr.mxu0 0.0
  %4809 = vmatpush1.msra.mxu0 0.0
  %4810 = vmatprep.subr.mxu0 0.0
  %4811 = vmatpush1.msra.mxu0 0.0
  %4812 = vmatprep.subr.mxu0 0.0
  %4813 = vmatpush1.msra.mxu0 0.0
  %4814 = vmatprep.subr.mxu0 0.0
  %4815 = vmatpush1.msra.mxu0 0.0
  %4816 = vmatprep.subr.mxu0 0.0
  %4817 = vmatpush1.msra.mxu0 0.0
  %4818 = vmatprep.subr.mxu0 0.0
  %4819 = vmatpush1.msra.mxu0 0.0
  %4820 = vmatprep.subr.mxu0 0.0
  %4821 = vmatpush1.msra.mxu0 0.0
  %4822 = vmatprep.mubr.f32.mxu0 0.0
  %4823 = vmatmul.mubr.f32.gmra.mrb[0].mxu0 %v4749
  %v4824 = vpop.f32.mrb[0].mxu0
  %v4825 = vadd.f32 0.0, %v4824
  %v4826 = vpop.f32.mrb[0].mxu0
  %4827 = vmatprep.mubr.f32.mxu0 0.0
  %4828 = vmatmul.mubr.f32.gmra.mrb[0].mxu0 %v4750
  %v4829 = vpop.f32.mrb[0].mxu0
  %v4830 = vadd.f32 0.0, %v4829
  %v4831 = vpop.f32.mrb[0].mxu0
  %4832 = vmatprep.mubr.f32.mxu0 0.0
  %4833 = vmatmul.mubr.f32.gmra.mrb[0].mxu0 %v4751
  %v4834 = vpop.f32.mrb[0].mxu0
  %v4835 = vadd.f32 0.0, %v4834
  %v4836 = vpop.f32.mrb[0].mxu0
  %4837 = vmatprep.mubr.f32.mxu0 0.0
  %4838 = vmatmul.mubr.f32.gmra.mrb[0].mxu0 %v4752
  %v4839 = vpop.f32.mrb[0].mxu0
  %v4840 = vadd.f32 0.0, %v4839
  %v4841 = vpop.f32.mrb[0].mxu0
  %4842 = vmatprep.mubr.f32.mxu0 0.0
  %4843 = vmatmul.mubr.f32.gmra.mrb[0].mxu0 %v4753
  %v4844 = vpop.f32.mrb[0].mxu0
  %v4845 = vadd.f32 0.0, %v4844
  %v4846 = vpop.f32.mrb[0].mxu0
  %4847 = vmatprep.mubr.f32.mxu0 0.0
  %4848 = vmatmul.mubr.f32.gmra.mrb[0].mxu0 %v4754
  %v4849 = vpop.f32.mrb[0].mxu0
  %v4850 = vadd.f32 0.0, %v4849
  %v4851 = vpop.f32.mrb[0].mxu0
  %4852 = vmatprep.mubr.f32.mxu0 0.0
  %4853 = vmatmul.mubr.f32.gmra.mrb[0].mxu0 %v4755
  %v4854 = vpop.f32.mrb[0].mxu0
  %v4855 = vadd.f32 0.0, %v4854
  %v4856 = vpop.f32.mrb[0].mxu0
  %4857 = vmatprep.mubr.f32.mxu0 0.0
  %4858 = vmatmul.mubr.f32.gmra.mrb[0].mxu0 %v4756
  %v4859 = vpop.f32.mrb[0].mxu0
  %v4860 = vadd.f32 0.0, %v4859
  %v4861 = vpop.f32.mrb[0].mxu0
  %4862 = vmatprep.mubr.f32.mxu0 0.0
  %4863 = vmatmul.mubr.f32.gmra.mrb[0].mxu0 %v4757
  %v4864 = vpop.f32.mrb[0].mxu0
  %v4865 = vadd.f32 0.0, %v4864
  %v4866 = vpop.f32.mrb[0].mxu0
  %4867 = vdwg.mxu0
  %s4868 = scalar_lea.vmem %s6, 20
  %v4869 = vld [vmem:[%s4868] sm:$0xf]
  %v4871 = vsel %vm3205, %v4825, 0
  %v4874 = vsel %vm3205, %v4830, 0
  %v4877 = vsel %vm3205, %v4835, 0
  %v4880 = vsel %vm3205, %v4840, 0
  %v4883 = vsel %vm3205, %v4845, 0
  %v4886 = vsel %vm3205, %v4850, 0
  %v4889 = vsel %vm3205, %v4855, 0
  %v4892 = vsel %vm3205, %v4860, 0
  %v4895 = vsel %vm3205, %v4865, 0
  %v4898 = vsel %vm3681, %v4869, 0
  %4900 = vmatprep.subr.mxu0 0.0
  %4901 = vmatpush1.msra.mxu0 %v4898
  %4902 = vmatprep.subr.mxu0 0.0
  %4903 = vmatpush1.msra.mxu0 0.0
  %4904 = vmatprep.subr.mxu0 0.0
  %4905 = vmatpush1.msra.mxu0 0.0
  %4906 = vmatprep.subr.mxu0 0.0
  %4907 = vmatpush1.msra.mxu0 0.0
  %4908 = vmatprep.subr.mxu0 0.0
  %4909 = vmatpush1.msra.mxu0 0.0
  %4910 = vmatprep.subr.mxu0 0.0
  %4911 = vmatpush1.msra.mxu0 0.0
  %4912 = vmatprep.subr.mxu0 0.0
  %4913 = vmatpush1.msra.mxu0 0.0
  %4914 = vmatprep.subr.mxu0 0.0
  %4915 = vmatpush1.msra.mxu0 0.0
  %4916 = vmatprep.subr.mxu0 0.0
  %4917 = vmatpush1.msra.mxu0 0.0
  %4918 = vmatprep.subr.mxu0 0.0
  %4919 = vmatpush1.msra.mxu0 0.0
  %4920 = vmatprep.subr.mxu0 0.0
  %4921 = vmatpush1.msra.mxu0 0.0
  %4922 = vmatprep.subr.mxu0 0.0
  %4923 = vmatpush1.msra.mxu0 0.0
  %4924 = vmatprep.subr.mxu0 0.0
  %4925 = vmatpush1.msra.mxu0 0.0
  %4926 = vmatprep.subr.mxu0 0.0
  %4927 = vmatpush1.msra.mxu0 0.0
  %4928 = vmatprep.subr.mxu0 0.0
  %4929 = vmatpush1.msra.mxu0 0.0
  %4930 = vmatprep.subr.mxu0 0.0
  %4931 = vmatpush1.msra.mxu0 0.0
  %4932 = vmatprep.subr.mxu0 0.0
  %4933 = vmatpush1.msra.mxu0 0.0
  %4934 = vmatprep.subr.mxu0 0.0
  %4935 = vmatpush1.msra.mxu0 0.0
  %4936 = vmatprep.subr.mxu0 0.0
  %4937 = vmatpush1.msra.mxu0 0.0
  %4938 = vmatprep.subr.mxu0 0.0
  %4939 = vmatpush1.msra.mxu0 0.0
  %4940 = vmatprep.subr.mxu0 0.0
  %4941 = vmatpush1.msra.mxu0 0.0
  %4942 = vmatprep.subr.mxu0 0.0
  %4943 = vmatpush1.msra.mxu0 0.0
  %4944 = vmatprep.subr.mxu0 0.0
  %4945 = vmatpush1.msra.mxu0 0.0
  %4946 = vmatprep.subr.mxu0 0.0
  %4947 = vmatpush1.msra.mxu0 0.0
  %4948 = vmatprep.subr.mxu0 0.0
  %4949 = vmatpush1.msra.mxu0 0.0
  %4950 = vmatprep.subr.mxu0 0.0
  %4951 = vmatpush1.msra.mxu0 0.0
  %4952 = vmatprep.subr.mxu0 0.0
  %4953 = vmatpush1.msra.mxu0 0.0
  %4954 = vmatprep.subr.mxu0 0.0
  %4955 = vmatpush1.msra.mxu0 0.0
  %4956 = vmatprep.subr.mxu0 0.0
  %4957 = vmatpush1.msra.mxu0 0.0
  %4958 = vmatprep.subr.mxu0 0.0
  %4959 = vmatpush1.msra.mxu0 0.0
  %4960 = vmatprep.subr.mxu0 0.0
  %4961 = vmatpush1.msra.mxu0 0.0
  %4962 = vmatprep.subr.mxu0 0.0
  %4963 = vmatpush1.msra.mxu0 0.0
  %4964 = vmatprep.mubr.f32.mxu0 0.0
  %4965 = vmatmul.mubr.f32.gmra.mrb[0].mxu0 %v4871
  %v4966 = vpop.f32.mrb[0].mxu0
  %v4967 = vadd.f32 0.0, %v4966
  %v4968 = vpop.f32.mrb[0].mxu0
  %4969 = vmatprep.mubr.f32.mxu0 0.0
  %4970 = vmatmul.mubr.f32.gmra.mrb[0].mxu0 %v4874
  %v4971 = vpop.f32.mrb[0].mxu0
  %v4972 = vadd.f32 0.0, %v4971
  %v4973 = vpop.f32.mrb[0].mxu0
  %4974 = vmatprep.mubr.f32.mxu0 0.0
  %4975 = vmatmul.mubr.f32.gmra.mrb[0].mxu0 %v4877
  %v4976 = vpop.f32.mrb[0].mxu0
  %v4977 = vadd.f32 0.0, %v4976
  %v4978 = vpop.f32.mrb[0].mxu0
  %4979 = vmatprep.mubr.f32.mxu0 0.0
  %4980 = vmatmul.mubr.f32.gmra.mrb[0].mxu0 %v4880
  %v4981 = vpop.f32.mrb[0].mxu0
  %v4982 = vadd.f32 0.0, %v4981
  %v4983 = vpop.f32.mrb[0].mxu0
  %4984 = vmatprep.mubr.f32.mxu0 0.0
  %4985 = vmatmul.mubr.f32.gmra.mrb[0].mxu0 %v4883
  %v4986 = vpop.f32.mrb[0].mxu0
  %v4987 = vadd.f32 0.0, %v4986
  %v4988 = vpop.f32.mrb[0].mxu0
  %4989 = vmatprep.mubr.f32.mxu0 0.0
  %4990 = vmatmul.mubr.f32.gmra.mrb[0].mxu0 %v4886
  %v4991 = vpop.f32.mrb[0].mxu0
  %v4992 = vadd.f32 0.0, %v4991
  %v4993 = vpop.f32.mrb[0].mxu0
  %4994 = vmatprep.mubr.f32.mxu0 0.0
  %4995 = vmatmul.mubr.f32.gmra.mrb[0].mxu0 %v4889
  %v4996 = vpop.f32.mrb[0].mxu0
  %v4997 = vadd.f32 0.0, %v4996
  %v4998 = vpop.f32.mrb[0].mxu0
  %4999 = vmatprep.mubr.f32.mxu0 0.0
  %5000 = vmatmul.mubr.f32.gmra.mrb[0].mxu0 %v4892
  %v5001 = vpop.f32.mrb[0].mxu0
  %v5002 = vadd.f32 0.0, %v5001
  %v5003 = vpop.f32.mrb[0].mxu0
  %5004 = vmatprep.mubr.f32.mxu0 0.0
  %5005 = vmatmul.mubr.f32.gmra.mrb[0].mxu0 %v4895
  %v5006 = vpop.f32.mrb[0].mxu0
  %v5007 = vadd.f32 0.0, %v5006
  %v5008 = vpop.f32.mrb[0].mxu0
  %5009 = vdwg.mxu0
  %v5010 = vadd.f32 %v4739, %v4967
  %v5011 = vadd.f32 %v4740, %v4972
  %v5012 = vadd.f32 %v4741, %v4977
  %v5013 = vadd.f32 %v4742, %v4982
  %v5014 = vadd.f32 %v4743, %v4987
  %v5015 = vadd.f32 %v4744, %v4992
  %v5016 = vadd.f32 %v4745, %v4997
  %v5017 = vadd.f32 %v4746, %v5002
  %v5018 = vadd.f32 %v4747, %v5007
  %s5019 = scalar_lea.vmem %s5, 432
  %v5020 = vld [vmem:[%s5019] sm:$0xff]
  %v5021 = vld [vmem:[%s5019 + $0x8] sm:$0xff]
  %v5022 = vld [vmem:[%s5019 + $0x10] sm:$0xff]
  %v5023 = vld [vmem:[%s5019 + $0x18] sm:$0xff]
  %v5024 = vld [vmem:[%s5019 + $0x20] sm:$0xff]
  %v5025 = vld [vmem:[%s5019 + $0x28] sm:$0xff]
  %v5026 = vld [vmem:[%s5019 + $0x30] sm:$0xff]
  %v5027 = vld [vmem:[%s5019 + $0x38] sm:$0xff]
  %v5028 = vld [vmem:[%s5019 + $0x40] sm:$0xff]
  %5029 = vmatprep.subr.mxu0 0.0
  %5030 = vmatpush1.msra.mxu0 %v3396
  %5031 = vmatprep.subr.mxu0 0.0
  %5032 = vmatpush1.msra.mxu0 %v3397
  %5033 = vmatprep.subr.mxu0 0.0
  %5034 = vmatpush1.msra.mxu0 %v3398
  %5035 = vmatprep.subr.mxu0 0.0
  %5036 = vmatpush1.msra.mxu0 %v3399
  %5037 = vmatprep.subr.mxu0 0.0
  %5038 = vmatpush1.msra.mxu0 %v3400
  %5039 = vmatprep.subr.mxu0 0.0
  %5040 = vmatpush1.msra.mxu0 %v3401
  %5041 = vmatprep.subr.mxu0 0.0
  %5042 = vmatpush1.msra.mxu0 %v3402
  %5043 = vmatprep.subr.mxu0 0.0
  %5044 = vmatpush1.msra.mxu0 %v3403
  %5045 = vmatprep.subr.mxu0 0.0
  %5046 = vmatpush1.msra.mxu0 %v3404
  %5047 = vmatprep.subr.mxu0 0.0
  %5048 = vmatpush1.msra.mxu0 %v3405
  %5049 = vmatprep.subr.mxu0 0.0
  %5050 = vmatpush1.msra.mxu0 %v3406
  %5051 = vmatprep.subr.mxu0 0.0
  %5052 = vmatpush1.msra.mxu0 %v3407
  %5053 = vmatprep.subr.mxu0 0.0
  %5054 = vmatpush1.msra.mxu0 %v3408
  %5055 = vmatprep.subr.mxu0 0.0
  %5056 = vmatpush1.msra.mxu0 %v3409
  %5057 = vmatprep.subr.mxu0 0.0
  %5058 = vmatpush1.msra.mxu0 %v3410
  %5059 = vmatprep.subr.mxu0 0.0
  %5060 = vmatpush1.msra.mxu0 %v3411
  %5061 = vmatprep.subr.mxu0 0.0
  %5062 = vmatpush1.msra.mxu0 0.0
  %5063 = vmatprep.subr.mxu0 0.0
  %5064 = vmatpush1.msra.mxu0 0.0
  %5065 = vmatprep.subr.mxu0 0.0
  %5066 = vmatpush1.msra.mxu0 0.0
  %5067 = vmatprep.subr.mxu0 0.0
  %5068 = vmatpush1.msra.mxu0 0.0
  %5069 = vmatprep.subr.mxu0 0.0
  %5070 = vmatpush1.msra.mxu0 0.0
  %5071 = vmatprep.subr.mxu0 0.0
  %5072 = vmatpush1.msra.mxu0 0.0
  %5073 = vmatprep.subr.mxu0 0.0
  %5074 = vmatpush1.msra.mxu0 0.0
  %5075 = vmatprep.subr.mxu0 0.0
  %5076 = vmatpush1.msra.mxu0 0.0
  %5077 = vmatprep.subr.mxu0 0.0
  %5078 = vmatpush1.msra.mxu0 0.0
  %5079 = vmatprep.subr.mxu0 0.0
  %5080 = vmatpush1.msra.mxu0 0.0
  %5081 = vmatprep.subr.mxu0 0.0
  %5082 = vmatpush1.msra.mxu0 0.0
  %5083 = vmatprep.subr.mxu0 0.0
  %5084 = vmatpush1.msra.mxu0 0.0
  %5085 = vmatprep.subr.mxu0 0.0
  %5086 = vmatpush1.msra.mxu0 0.0
  %5087 = vmatprep.subr.mxu0 0.0
  %5088 = vmatpush1.msra.mxu0 0.0
  %5089 = vmatprep.subr.mxu0 0.0
  %5090 = vmatpush1.msra.mxu0 0.0
  %5091 = vmatprep.subr.mxu0 0.0
  %5092 = vmatpush1.msra.mxu0 0.0
  %5093 = vmatprep.mubr.f32.mxu0 0.0
  %5094 = vmatmul.mubr.f32.gmra.mrb[0].mxu0 %v5020
  %v5095 = vpop.f32.mrb[0].mxu0
  %v5096 = vadd.f32 0.0, %v5095
  %v5097 = vpop.f32.mrb[0].mxu0
  %5098 = vmatprep.mubr.f32.mxu0 0.0
  %5099 = vmatmul.mubr.f32.gmra.mrb[0].mxu0 %v5021
  %v5100 = vpop.f32.mrb[0].mxu0
  %v5101 = vadd.f32 0.0, %v5100
  %v5102 = vpop.f32.mrb[0].mxu0
  %5103 = vmatprep.mubr.f32.mxu0 0.0
  %5104 = vmatmul.mubr.f32.gmra.mrb[0].mxu0 %v5022
  %v5105 = vpop.f32.mrb[0].mxu0
  %v5106 = vadd.f32 0.0, %v5105
  %v5107 = vpop.f32.mrb[0].mxu0
  %5108 = vmatprep.mubr.f32.mxu0 0.0
  %5109 = vmatmul.mubr.f32.gmra.mrb[0].mxu0 %v5023
  %v5110 = vpop.f32.mrb[0].mxu0
  %v5111 = vadd.f32 0.0, %v5110
  %v5112 = vpop.f32.mrb[0].mxu0
  %5113 = vmatprep.mubr.f32.mxu0 0.0
  %5114 = vmatmul.mubr.f32.gmra.mrb[0].mxu0 %v5024
  %v5115 = vpop.f32.mrb[0].mxu0
  %v5116 = vadd.f32 0.0, %v5115
  %v5117 = vpop.f32.mrb[0].mxu0
  %5118 = vmatprep.mubr.f32.mxu0 0.0
  %5119 = vmatmul.mubr.f32.gmra.mrb[0].mxu0 %v5025
  %v5120 = vpop.f32.mrb[0].mxu0
  %v5121 = vadd.f32 0.0, %v5120
  %v5122 = vpop.f32.mrb[0].mxu0
  %5123 = vmatprep.mubr.f32.mxu0 0.0
  %5124 = vmatmul.mubr.f32.gmra.mrb[0].mxu0 %v5026
  %v5125 = vpop.f32.mrb[0].mxu0
  %v5126 = vadd.f32 0.0, %v5125
  %v5127 = vpop.f32.mrb[0].mxu0
  %5128 = vmatprep.mubr.f32.mxu0 0.0
  %5129 = vmatmul.mubr.f32.gmra.mrb[0].mxu0 %v5027
  %v5130 = vpop.f32.mrb[0].mxu0
  %v5131 = vadd.f32 0.0, %v5130
  %v5132 = vpop.f32.mrb[0].mxu0
  %5133 = vmatprep.mubr.f32.mxu0 0.0
  %5134 = vmatmul.mubr.f32.gmra.mrb[0].mxu0 %v5028
  %v5135 = vpop.f32.mrb[0].mxu0
  %v5136 = vadd.f32 0.0, %v5135
  %v5137 = vpop.f32.mrb[0].mxu0
  %5138 = vdwg.mxu0
  %s5139 = scalar_lea.vmem %s6, 24
  %v5140 = vld [vmem:[%s5139] sm:$0xf]
  %v5142 = vsel %vm3205, %v5096, 0
  %v5145 = vsel %vm3205, %v5101, 0
  %v5148 = vsel %vm3205, %v5106, 0
  %v5151 = vsel %vm3205, %v5111, 0
  %v5154 = vsel %vm3205, %v5116, 0
  %v5157 = vsel %vm3205, %v5121, 0
  %v5160 = vsel %vm3205, %v5126, 0
  %v5163 = vsel %vm3205, %v5131, 0
  %v5166 = vsel %vm3205, %v5136, 0
  %v5169 = vsel %vm3681, %v5140, 0
  %5171 = vmatprep.subr.mxu0 0.0
  %5172 = vmatpush1.msra.mxu0 %v5169
  %5173 = vmatprep.subr.mxu0 0.0
  %5174 = vmatpush1.msra.mxu0 0.0
  %5175 = vmatprep.subr.mxu0 0.0
  %5176 = vmatpush1.msra.mxu0 0.0
  %5177 = vmatprep.subr.mxu0 0.0
  %5178 = vmatpush1.msra.mxu0 0.0
  %5179 = vmatprep.subr.mxu0 0.0
  %5180 = vmatpush1.msra.mxu0 0.0
  %5181 = vmatprep.subr.mxu0 0.0
  %5182 = vmatpush1.msra.mxu0 0.0
  %5183 = vmatprep.subr.mxu0 0.0
  %5184 = vmatpush1.msra.mxu0 0.0
  %5185 = vmatprep.subr.mxu0 0.0
  %5186 = vmatpush1.msra.mxu0 0.0
  %5187 = vmatprep.subr.mxu0 0.0
  %5188 = vmatpush1.msra.mxu0 0.0
  %5189 = vmatprep.subr.mxu0 0.0
  %5190 = vmatpush1.msra.mxu0 0.0
  %5191 = vmatprep.subr.mxu0 0.0
  %5192 = vmatpush1.msra.mxu0 0.0
  %5193 = vmatprep.subr.mxu0 0.0
  %5194 = vmatpush1.msra.mxu0 0.0
  %5195 = vmatprep.subr.mxu0 0.0
  %5196 = vmatpush1.msra.mxu0 0.0
  %5197 = vmatprep.subr.mxu0 0.0
  %5198 = vmatpush1.msra.mxu0 0.0
  %5199 = vmatprep.subr.mxu0 0.0
  %5200 = vmatpush1.msra.mxu0 0.0
  %5201 = vmatprep.subr.mxu0 0.0
  %5202 = vmatpush1.msra.mxu0 0.0
  %5203 = vmatprep.subr.mxu0 0.0
  %5204 = vmatpush1.msra.mxu0 0.0
  %5205 = vmatprep.subr.mxu0 0.0
  %5206 = vmatpush1.msra.mxu0 0.0
  %5207 = vmatprep.subr.mxu0 0.0
  %5208 = vmatpush1.msra.mxu0 0.0
  %5209 = vmatprep.subr.mxu0 0.0
  %5210 = vmatpush1.msra.mxu0 0.0
  %5211 = vmatprep.subr.mxu0 0.0
  %5212 = vmatpush1.msra.mxu0 0.0
  %5213 = vmatprep.subr.mxu0 0.0
  %5214 = vmatpush1.msra.mxu0 0.0
  %5215 = vmatprep.subr.mxu0 0.0
  %5216 = vmatpush1.msra.mxu0 0.0
  %5217 = vmatprep.subr.mxu0 0.0
  %5218 = vmatpush1.msra.mxu0 0.0
  %5219 = vmatprep.subr.mxu0 0.0
  %5220 = vmatpush1.msra.mxu0 0.0
  %5221 = vmatprep.subr.mxu0 0.0
  %5222 = vmatpush1.msra.mxu0 0.0
  %5223 = vmatprep.subr.mxu0 0.0
  %5224 = vmatpush1.msra.mxu0 0.0
  %5225 = vmatprep.subr.mxu0 0.0
  %5226 = vmatpush1.msra.mxu0 0.0
  %5227 = vmatprep.subr.mxu0 0.0
  %5228 = vmatpush1.msra.mxu0 0.0
  %5229 = vmatprep.subr.mxu0 0.0
  %5230 = vmatpush1.msra.mxu0 0.0
  %5231 = vmatprep.subr.mxu0 0.0
  %5232 = vmatpush1.msra.mxu0 0.0
  %5233 = vmatprep.subr.mxu0 0.0
  %5234 = vmatpush1.msra.mxu0 0.0
  %5235 = vmatprep.mubr.f32.mxu0 0.0
  %5236 = vmatmul.mubr.f32.gmra.mrb[0].mxu0 %v5142
  %v5237 = vpop.f32.mrb[0].mxu0
  %v5238 = vadd.f32 0.0, %v5237
  %v5239 = vpop.f32.mrb[0].mxu0
  %5240 = vmatprep.mubr.f32.mxu0 0.0
  %5241 = vmatmul.mubr.f32.gmra.mrb[0].mxu0 %v5145
  %v5242 = vpop.f32.mrb[0].mxu0
  %v5243 = vadd.f32 0.0, %v5242
  %v5244 = vpop.f32.mrb[0].mxu0
  %5245 = vmatprep.mubr.f32.mxu0 0.0
  %5246 = vmatmul.mubr.f32.gmra.mrb[0].mxu0 %v5148
  %v5247 = vpop.f32.mrb[0].mxu0
  %v5248 = vadd.f32 0.0, %v5247
  %v5249 = vpop.f32.mrb[0].mxu0
  %5250 = vmatprep.mubr.f32.mxu0 0.0
  %5251 = vmatmul.mubr.f32.gmra.mrb[0].mxu0 %v5151
  %v5252 = vpop.f32.mrb[0].mxu0
  %v5253 = vadd.f32 0.0, %v5252
  %v5254 = vpop.f32.mrb[0].mxu0
  %5255 = vmatprep.mubr.f32.mxu0 0.0
  %5256 = vmatmul.mubr.f32.gmra.mrb[0].mxu0 %v5154
  %v5257 = vpop.f32.mrb[0].mxu0
  %v5258 = vadd.f32 0.0, %v5257
  %v5259 = vpop.f32.mrb[0].mxu0
  %5260 = vmatprep.mubr.f32.mxu0 0.0
  %5261 = vmatmul.mubr.f32.gmra.mrb[0].mxu0 %v5157
  %v5262 = vpop.f32.mrb[0].mxu0
  %v5263 = vadd.f32 0.0, %v5262
  %v5264 = vpop.f32.mrb[0].mxu0
  %5265 = vmatprep.mubr.f32.mxu0 0.0
  %5266 = vmatmul.mubr.f32.gmra.mrb[0].mxu0 %v5160
  %v5267 = vpop.f32.mrb[0].mxu0
  %v5268 = vadd.f32 0.0, %v5267
  %v5269 = vpop.f32.mrb[0].mxu0
  %5270 = vmatprep.mubr.f32.mxu0 0.0
  %5271 = vmatmul.mubr.f32.gmra.mrb[0].mxu0 %v5163
  %v5272 = vpop.f32.mrb[0].mxu0
  %v5273 = vadd.f32 0.0, %v5272
  %v5274 = vpop.f32.mrb[0].mxu0
  %5275 = vmatprep.mubr.f32.mxu0 0.0
  %5276 = vmatmul.mubr.f32.gmra.mrb[0].mxu0 %v5166
  %v5277 = vpop.f32.mrb[0].mxu0
  %v5278 = vadd.f32 0.0, %v5277
  %v5279 = vpop.f32.mrb[0].mxu0
  %5280 = vdwg.mxu0
  %v5281 = vadd.f32 %v5010, %v5238
  %v5282 = vadd.f32 %v5011, %v5243
  %v5283 = vadd.f32 %v5012, %v5248
  %v5284 = vadd.f32 %v5013, %v5253
  %v5285 = vadd.f32 %v5014, %v5258
  %v5286 = vadd.f32 %v5015, %v5263
  %v5287 = vadd.f32 %v5016, %v5268
  %v5288 = vadd.f32 %v5017, %v5273
  %v5289 = vadd.f32 %v5018, %v5278
  %s5290 = scalar_lea.vmem %s5, 504
  %v5291 = vld [vmem:[%s5290] sm:$0xff]
  %v5292 = vld [vmem:[%s5290 + $0x8] sm:$0xff]
  %v5293 = vld [vmem:[%s5290 + $0x10] sm:$0xff]
  %v5294 = vld [vmem:[%s5290 + $0x18] sm:$0xff]
  %v5295 = vld [vmem:[%s5290 + $0x20] sm:$0xff]
  %v5296 = vld [vmem:[%s5290 + $0x28] sm:$0xff]
  %v5297 = vld [vmem:[%s5290 + $0x30] sm:$0xff]
  %v5298 = vld [vmem:[%s5290 + $0x38] sm:$0xff]
  %v5299 = vld [vmem:[%s5290 + $0x40] sm:$0xff]
  %5300 = vmatprep.subr.mxu0 0.0
  %5301 = vmatpush1.msra.mxu0 %v3396
  %5302 = vmatprep.subr.mxu0 0.0
  %5303 = vmatpush1.msra.mxu0 %v3397
  %5304 = vmatprep.subr.mxu0 0.0
  %5305 = vmatpush1.msra.mxu0 %v3398
  %5306 = vmatprep.subr.mxu0 0.0
  %5307 = vmatpush1.msra.mxu0 %v3399
  %5308 = vmatprep.subr.mxu0 0.0
  %5309 = vmatpush1.msra.mxu0 %v3400
  %5310 = vmatprep.subr.mxu0 0.0
  %5311 = vmatpush1.msra.mxu0 %v3401
  %5312 = vmatprep.subr.mxu0 0.0
  %5313 = vmatpush1.msra.mxu0 %v3402
  %5314 = vmatprep.subr.mxu0 0.0
  %5315 = vmatpush1.msra.mxu0 %v3403
  %5316 = vmatprep.subr.mxu0 0.0
  %5317 = vmatpush1.msra.mxu0 %v3404
  %5318 = vmatprep.subr.mxu0 0.0
  %5319 = vmatpush1.msra.mxu0 %v3405
  %5320 = vmatprep.subr.mxu0 0.0
  %5321 = vmatpush1.msra.mxu0 %v3406
  %5322 = vmatprep.subr.mxu0 0.0
  %5323 = vmatpush1.msra.mxu0 %v3407
  %5324 = vmatprep.subr.mxu0 0.0
  %5325 = vmatpush1.msra.mxu0 %v3408
  %5326 = vmatprep.subr.mxu0 0.0
  %5327 = vmatpush1.msra.mxu0 %v3409
  %5328 = vmatprep.subr.mxu0 0.0
  %5329 = vmatpush1.msra.mxu0 %v3410
  %5330 = vmatprep.subr.mxu0 0.0
  %5331 = vmatpush1.msra.mxu0 %v3411
  %5332 = vmatprep.subr.mxu0 0.0
  %5333 = vmatpush1.msra.mxu0 0.0
  %5334 = vmatprep.subr.mxu0 0.0
  %5335 = vmatpush1.msra.mxu0 0.0
  %5336 = vmatprep.subr.mxu0 0.0
  %5337 = vmatpush1.msra.mxu0 0.0
  %5338 = vmatprep.subr.mxu0 0.0
  %5339 = vmatpush1.msra.mxu0 0.0
  %5340 = vmatprep.subr.mxu0 0.0
  %5341 = vmatpush1.msra.mxu0 0.0
  %5342 = vmatprep.subr.mxu0 0.0
  %5343 = vmatpush1.msra.mxu0 0.0
  %5344 = vmatprep.subr.mxu0 0.0
  %5345 = vmatpush1.msra.mxu0 0.0
  %5346 = vmatprep.subr.mxu0 0.0
  %5347 = vmatpush1.msra.mxu0 0.0
  %5348 = vmatprep.subr.mxu0 0.0
  %5349 = vmatpush1.msra.mxu0 0.0
  %5350 = vmatprep.subr.mxu0 0.0
  %5351 = vmatpush1.msra.mxu0 0.0
  %5352 = vmatprep.subr.mxu0 0.0
  %5353 = vmatpush1.msra.mxu0 0.0
  %5354 = vmatprep.subr.mxu0 0.0
  %5355 = vmatpush1.msra.mxu0 0.0
  %5356 = vmatprep.subr.mxu0 0.0
  %5357 = vmatpush1.msra.mxu0 0.0
  %5358 = vmatprep.subr.mxu0 0.0
  %5359 = vmatpush1.msra.mxu0 0.0
  %5360 = vmatprep.subr.mxu0 0.0
  %5361 = vmatpush1.msra.mxu0 0.0
  %5362 = vmatprep.subr.mxu0 0.0
  %5363 = vmatpush1.msra.mxu0 0.0
  %5364 = vmatprep.mubr.f32.mxu0 0.0
  %5365 = vmatmul.mubr.f32.gmra.mrb[0].mxu0 %v5291
  %v5366 = vpop.f32.mrb[0].mxu0
  %v5367 = vadd.f32 0.0, %v5366
  %v5368 = vpop.f32.mrb[0].mxu0
  %5369 = vmatprep.mubr.f32.mxu0 0.0
  %5370 = vmatmul.mubr.f32.gmra.mrb[0].mxu0 %v5292
  %v5371 = vpop.f32.mrb[0].mxu0
  %v5372 = vadd.f32 0.0, %v5371
  %v5373 = vpop.f32.mrb[0].mxu0
  %5374 = vmatprep.mubr.f32.mxu0 0.0
  %5375 = vmatmul.mubr.f32.gmra.mrb[0].mxu0 %v5293
  %v5376 = vpop.f32.mrb[0].mxu0
  %v5377 = vadd.f32 0.0, %v5376
  %v5378 = vpop.f32.mrb[0].mxu0
  %5379 = vmatprep.mubr.f32.mxu0 0.0
  %5380 = vmatmul.mubr.f32.gmra.mrb[0].mxu0 %v5294
  %v5381 = vpop.f32.mrb[0].mxu0
  %v5382 = vadd.f32 0.0, %v5381
  %v5383 = vpop.f32.mrb[0].mxu0
  %5384 = vmatprep.mubr.f32.mxu0 0.0
  %5385 = vmatmul.mubr.f32.gmra.mrb[0].mxu0 %v5295
  %v5386 = vpop.f32.mrb[0].mxu0
  %v5387 = vadd.f32 0.0, %v5386
  %v5388 = vpop.f32.mrb[0].mxu0
  %5389 = vmatprep.mubr.f32.mxu0 0.0
  %5390 = vmatmul.mubr.f32.gmra.mrb[0].mxu0 %v5296
  %v5391 = vpop.f32.mrb[0].mxu0
  %v5392 = vadd.f32 0.0, %v5391
  %v5393 = vpop.f32.mrb[0].mxu0
  %5394 = vmatprep.mubr.f32.mxu0 0.0
  %5395 = vmatmul.mubr.f32.gmra.mrb[0].mxu0 %v5297
  %v5396 = vpop.f32.mrb[0].mxu0
  %v5397 = vadd.f32 0.0, %v5396
  %v5398 = vpop.f32.mrb[0].mxu0
  %5399 = vmatprep.mubr.f32.mxu0 0.0
  %5400 = vmatmul.mubr.f32.gmra.mrb[0].mxu0 %v5298
  %v5401 = vpop.f32.mrb[0].mxu0
  %v5402 = vadd.f32 0.0, %v5401
  %v5403 = vpop.f32.mrb[0].mxu0
  %5404 = vmatprep.mubr.f32.mxu0 0.0
  %5405 = vmatmul.mubr.f32.gmra.mrb[0].mxu0 %v5299
  %v5406 = vpop.f32.mrb[0].mxu0
  %v5407 = vadd.f32 0.0, %v5406
  %v5408 = vpop.f32.mrb[0].mxu0
  %5409 = vdwg.mxu0
  %s5410 = scalar_lea.vmem %s6, 28
  %v5411 = vld [vmem:[%s5410] sm:$0xf]
  %v5413 = vsel %vm3205, %v5367, 0
  %v5416 = vsel %vm3205, %v5372, 0
  %v5419 = vsel %vm3205, %v5377, 0
  %v5422 = vsel %vm3205, %v5382, 0
  %v5425 = vsel %vm3205, %v5387, 0
  %v5428 = vsel %vm3205, %v5392, 0
  %v5431 = vsel %vm3205, %v5397, 0
  %v5434 = vsel %vm3205, %v5402, 0
  %v5437 = vsel %vm3205, %v5407, 0
  %v5440 = vsel %vm3681, %v5411, 0
  %5442 = vmatprep.subr.mxu0 0.0
  %5443 = vmatpush1.msra.mxu0 %v5440
  %5444 = vmatprep.subr.mxu0 0.0
  %5445 = vmatpush1.msra.mxu0 0.0
  %5446 = vmatprep.subr.mxu0 0.0
  %5447 = vmatpush1.msra.mxu0 0.0
  %5448 = vmatprep.subr.mxu0 0.0
  %5449 = vmatpush1.msra.mxu0 0.0
  %5450 = vmatprep.subr.mxu0 0.0
  %5451 = vmatpush1.msra.mxu0 0.0
  %5452 = vmatprep.subr.mxu0 0.0
  %5453 = vmatpush1.msra.mxu0 0.0
  %5454 = vmatprep.subr.mxu0 0.0
  %5455 = vmatpush1.msra.mxu0 0.0
  %5456 = vmatprep.subr.mxu0 0.0
  %5457 = vmatpush1.msra.mxu0 0.0
  %5458 = vmatprep.subr.mxu0 0.0
  %5459 = vmatpush1.msra.mxu0 0.0
  %5460 = vmatprep.subr.mxu0 0.0
  %5461 = vmatpush1.msra.mxu0 0.0
  %5462 = vmatprep.subr.mxu0 0.0
  %5463 = vmatpush1.msra.mxu0 0.0
  %5464 = vmatprep.subr.mxu0 0.0
  %5465 = vmatpush1.msra.mxu0 0.0
  %5466 = vmatprep.subr.mxu0 0.0
  %5467 = vmatpush1.msra.mxu0 0.0
  %5468 = vmatprep.subr.mxu0 0.0
  %5469 = vmatpush1.msra.mxu0 0.0
  %5470 = vmatprep.subr.mxu0 0.0
  %5471 = vmatpush1.msra.mxu0 0.0
  %5472 = vmatprep.subr.mxu0 0.0
  %5473 = vmatpush1.msra.mxu0 0.0
  %5474 = vmatprep.subr.mxu0 0.0
  %5475 = vmatpush1.msra.mxu0 0.0
  %5476 = vmatprep.subr.mxu0 0.0
  %5477 = vmatpush1.msra.mxu0 0.0
  %5478 = vmatprep.subr.mxu0 0.0
  %5479 = vmatpush1.msra.mxu0 0.0
  %5480 = vmatprep.subr.mxu0 0.0
  %5481 = vmatpush1.msra.mxu0 0.0
  %5482 = vmatprep.subr.mxu0 0.0
  %5483 = vmatpush1.msra.mxu0 0.0
  %5484 = vmatprep.subr.mxu0 0.0
  %5485 = vmatpush1.msra.mxu0 0.0
  %5486 = vmatprep.subr.mxu0 0.0
  %5487 = vmatpush1.msra.mxu0 0.0
  %5488 = vmatprep.subr.mxu0 0.0
  %5489 = vmatpush1.msra.mxu0 0.0
  %5490 = vmatprep.subr.mxu0 0.0
  %5491 = vmatpush1.msra.mxu0 0.0
  %5492 = vmatprep.subr.mxu0 0.0
  %5493 = vmatpush1.msra.mxu0 0.0
  %5494 = vmatprep.subr.mxu0 0.0
  %5495 = vmatpush1.msra.mxu0 0.0
  %5496 = vmatprep.subr.mxu0 0.0
  %5497 = vmatpush1.msra.mxu0 0.0
  %5498 = vmatprep.subr.mxu0 0.0
  %5499 = vmatpush1.msra.mxu0 0.0
  %5500 = vmatprep.subr.mxu0 0.0
  %5501 = vmatpush1.msra.mxu0 0.0
  %5502 = vmatprep.subr.mxu0 0.0
  %5503 = vmatpush1.msra.mxu0 0.0
  %5504 = vmatprep.subr.mxu0 0.0
  %5505 = vmatpush1.msra.mxu0 0.0
  %5506 = vmatprep.mubr.f32.mxu0 0.0
  %5507 = vmatmul.mubr.f32.gmra.mrb[0].mxu0 %v5413
  %v5508 = vpop.f32.mrb[0].mxu0
  %v5509 = vadd.f32 0.0, %v5508
  %v5510 = vpop.f32.mrb[0].mxu0
  %5511 = vmatprep.mubr.f32.mxu0 0.0
  %5512 = vmatmul.mubr.f32.gmra.mrb[0].mxu0 %v5416
  %v5513 = vpop.f32.mrb[0].mxu0
  %v5514 = vadd.f32 0.0, %v5513
  %v5515 = vpop.f32.mrb[0].mxu0
  %5516 = vmatprep.mubr.f32.mxu0 0.0
  %5517 = vmatmul.mubr.f32.gmra.mrb[0].mxu0 %v5419
  %v5518 = vpop.f32.mrb[0].mxu0
  %v5519 = vadd.f32 0.0, %v5518
  %v5520 = vpop.f32.mrb[0].mxu0
  %5521 = vmatprep.mubr.f32.mxu0 0.0
  %5522 = vmatmul.mubr.f32.gmra.mrb[0].mxu0 %v5422
  %v5523 = vpop.f32.mrb[0].mxu0
  %v5524 = vadd.f32 0.0, %v5523
  %v5525 = vpop.f32.mrb[0].mxu0
  %5526 = vmatprep.mubr.f32.mxu0 0.0
  %5527 = vmatmul.mubr.f32.gmra.mrb[0].mxu0 %v5425
  %v5528 = vpop.f32.mrb[0].mxu0
  %v5529 = vadd.f32 0.0, %v5528
  %v5530 = vpop.f32.mrb[0].mxu0
  %5531 = vmatprep.mubr.f32.mxu0 0.0
  %5532 = vmatmul.mubr.f32.gmra.mrb[0].mxu0 %v5428
  %v5533 = vpop.f32.mrb[0].mxu0
  %v5534 = vadd.f32 0.0, %v5533
  %v5535 = vpop.f32.mrb[0].mxu0
  %5536 = vmatprep.mubr.f32.mxu0 0.0
  %5537 = vmatmul.mubr.f32.gmra.mrb[0].mxu0 %v5431
  %v5538 = vpop.f32.mrb[0].mxu0
  %v5539 = vadd.f32 0.0, %v5538
  %v5540 = vpop.f32.mrb[0].mxu0
  %5541 = vmatprep.mubr.f32.mxu0 0.0
  %5542 = vmatmul.mubr.f32.gmra.mrb[0].mxu0 %v5434
  %v5543 = vpop.f32.mrb[0].mxu0
  %v5544 = vadd.f32 0.0, %v5543
  %v5545 = vpop.f32.mrb[0].mxu0
  %5546 = vmatprep.mubr.f32.mxu0 0.0
  %5547 = vmatmul.mubr.f32.gmra.mrb[0].mxu0 %v5437
  %v5548 = vpop.f32.mrb[0].mxu0
  %v5549 = vadd.f32 0.0, %v5548
  %v5550 = vpop.f32.mrb[0].mxu0
  %5551 = vdwg.mxu0
  %v5552 = vadd.f32 %v5281, %v5509
  %v5553 = vadd.f32 %v5282, %v5514
  %v5554 = vadd.f32 %v5283, %v5519
  %v5555 = vadd.f32 %v5284, %v5524
  %v5556 = vadd.f32 %v5285, %v5529
  %v5557 = vadd.f32 %v5286, %v5534
  %v5558 = vadd.f32 %v5287, %v5539
  %v5559 = vadd.f32 %v5288, %v5544
  %v5560 = vadd.f32 %v5289, %v5549
  %s5561 = scalar_lea.vmem %s5, 576
  %v5562 = vld [vmem:[%s5561] sm:$0xff]
  %v5563 = vld [vmem:[%s5561 + $0x8] sm:$0xff]
  %v5564 = vld [vmem:[%s5561 + $0x10] sm:$0xff]
  %v5565 = vld [vmem:[%s5561 + $0x18] sm:$0xff]
  %v5566 = vld [vmem:[%s5561 + $0x20] sm:$0xff]
  %v5567 = vld [vmem:[%s5561 + $0x28] sm:$0xff]
  %v5568 = vld [vmem:[%s5561 + $0x30] sm:$0xff]
  %v5569 = vld [vmem:[%s5561 + $0x38] sm:$0xff]
  %v5570 = vld [vmem:[%s5561 + $0x40] sm:$0xff]
  %5571 = vmatprep.subr.mxu0 0.0
  %5572 = vmatpush1.msra.mxu0 %v3396
  %5573 = vmatprep.subr.mxu0 0.0
  %5574 = vmatpush1.msra.mxu0 %v3397
  %5575 = vmatprep.subr.mxu0 0.0
  %5576 = vmatpush1.msra.mxu0 %v3398
  %5577 = vmatprep.subr.mxu0 0.0
  %5578 = vmatpush1.msra.mxu0 %v3399
  %5579 = vmatprep.subr.mxu0 0.0
  %5580 = vmatpush1.msra.mxu0 %v3400
  %5581 = vmatprep.subr.mxu0 0.0
  %5582 = vmatpush1.msra.mxu0 %v3401
  %5583 = vmatprep.subr.mxu0 0.0
  %5584 = vmatpush1.msra.mxu0 %v3402
  %5585 = vmatprep.subr.mxu0 0.0
  %5586 = vmatpush1.msra.mxu0 %v3403
  %5587 = vmatprep.subr.mxu0 0.0
  %5588 = vmatpush1.msra.mxu0 %v3404
  %5589 = vmatprep.subr.mxu0 0.0
  %5590 = vmatpush1.msra.mxu0 %v3405
  %5591 = vmatprep.subr.mxu0 0.0
  %5592 = vmatpush1.msra.mxu0 %v3406
  %5593 = vmatprep.subr.mxu0 0.0
  %5594 = vmatpush1.msra.mxu0 %v3407
  %5595 = vmatprep.subr.mxu0 0.0
  %5596 = vmatpush1.msra.mxu0 %v3408
  %5597 = vmatprep.subr.mxu0 0.0
  %5598 = vmatpush1.msra.mxu0 %v3409
  %5599 = vmatprep.subr.mxu0 0.0
  %5600 = vmatpush1.msra.mxu0 %v3410
  %5601 = vmatprep.subr.mxu0 0.0
  %5602 = vmatpush1.msra.mxu0 %v3411
  %5603 = vmatprep.subr.mxu0 0.0
  %5604 = vmatpush1.msra.mxu0 0.0
  %5605 = vmatprep.subr.mxu0 0.0
  %5606 = vmatpush1.msra.mxu0 0.0
  %5607 = vmatprep.subr.mxu0 0.0
  %5608 = vmatpush1.msra.mxu0 0.0
  %5609 = vmatprep.subr.mxu0 0.0
  %5610 = vmatpush1.msra.mxu0 0.0
  %5611 = vmatprep.subr.mxu0 0.0
  %5612 = vmatpush1.msra.mxu0 0.0
  %5613 = vmatprep.subr.mxu0 0.0
  %5614 = vmatpush1.msra.mxu0 0.0
  %5615 = vmatprep.subr.mxu0 0.0
  %5616 = vmatpush1.msra.mxu0 0.0
  %5617 = vmatprep.subr.mxu0 0.0
  %5618 = vmatpush1.msra.mxu0 0.0
  %5619 = vmatprep.subr.mxu0 0.0
  %5620 = vmatpush1.msra.mxu0 0.0
  %5621 = vmatprep.subr.mxu0 0.0
  %5622 = vmatpush1.msra.mxu0 0.0
  %5623 = vmatprep.subr.mxu0 0.0
  %5624 = vmatpush1.msra.mxu0 0.0
  %5625 = vmatprep.subr.mxu0 0.0
  %5626 = vmatpush1.msra.mxu0 0.0
  %5627 = vmatprep.subr.mxu0 0.0
  %5628 = vmatpush1.msra.mxu0 0.0
  %5629 = vmatprep.subr.mxu0 0.0
  %5630 = vmatpush1.msra.mxu0 0.0
  %5631 = vmatprep.subr.mxu0 0.0
  %5632 = vmatpush1.msra.mxu0 0.0
  %5633 = vmatprep.subr.mxu0 0.0
  %5634 = vmatpush1.msra.mxu0 0.0
  %5635 = vmatprep.mubr.f32.mxu0 0.0
  %5636 = vmatmul.mubr.f32.gmra.mrb[0].mxu0 %v5562
  %v5637 = vpop.f32.mrb[0].mxu0
  %v5638 = vadd.f32 0.0, %v5637
  %v5639 = vpop.f32.mrb[0].mxu0
  %5640 = vmatprep.mubr.f32.mxu0 0.0
  %5641 = vmatmul.mubr.f32.gmra.mrb[0].mxu0 %v5563
  %v5642 = vpop.f32.mrb[0].mxu0
  %v5643 = vadd.f32 0.0, %v5642
  %v5644 = vpop.f32.mrb[0].mxu0
  %5645 = vmatprep.mubr.f32.mxu0 0.0
  %5646 = vmatmul.mubr.f32.gmra.mrb[0].mxu0 %v5564
  %v5647 = vpop.f32.mrb[0].mxu0
  %v5648 = vadd.f32 0.0, %v5647
  %v5649 = vpop.f32.mrb[0].mxu0
  %5650 = vmatprep.mubr.f32.mxu0 0.0
  %5651 = vmatmul.mubr.f32.gmra.mrb[0].mxu0 %v5565
  %v5652 = vpop.f32.mrb[0].mxu0
  %v5653 = vadd.f32 0.0, %v5652
  %v5654 = vpop.f32.mrb[0].mxu0
  %5655 = vmatprep.mubr.f32.mxu0 0.0
  %5656 = vmatmul.mubr.f32.gmra.mrb[0].mxu0 %v5566
  %v5657 = vpop.f32.mrb[0].mxu0
  %v5658 = vadd.f32 0.0, %v5657
  %v5659 = vpop.f32.mrb[0].mxu0
  %5660 = vmatprep.mubr.f32.mxu0 0.0
  %5661 = vmatmul.mubr.f32.gmra.mrb[0].mxu0 %v5567
  %v5662 = vpop.f32.mrb[0].mxu0
  %v5663 = vadd.f32 0.0, %v5662
  %v5664 = vpop.f32.mrb[0].mxu0
  %5665 = vmatprep.mubr.f32.mxu0 0.0
  %5666 = vmatmul.mubr.f32.gmra.mrb[0].mxu0 %v5568
  %v5667 = vpop.f32.mrb[0].mxu0
  %v5668 = vadd.f32 0.0, %v5667
  %v5669 = vpop.f32.mrb[0].mxu0
  %5670 = vmatprep.mubr.f32.mxu0 0.0
  %5671 = vmatmul.mubr.f32.gmra.mrb[0].mxu0 %v5569
  %v5672 = vpop.f32.mrb[0].mxu0
  %v5673 = vadd.f32 0.0, %v5672
  %v5674 = vpop.f32.mrb[0].mxu0
  %5675 = vmatprep.mubr.f32.mxu0 0.0
  %5676 = vmatmul.mubr.f32.gmra.mrb[0].mxu0 %v5570
  %v5677 = vpop.f32.mrb[0].mxu0
  %v5678 = vadd.f32 0.0, %v5677
  %v5679 = vpop.f32.mrb[0].mxu0
  %5680 = vdwg.mxu0
  %s5681 = scalar_lea.vmem %s6, 32
  %v5682 = vld [vmem:[%s5681] sm:$0xf]
  %v5684 = vsel %vm3205, %v5638, 0
  %v5687 = vsel %vm3205, %v5643, 0
  %v5690 = vsel %vm3205, %v5648, 0
  %v5693 = vsel %vm3205, %v5653, 0
  %v5696 = vsel %vm3205, %v5658, 0
  %v5699 = vsel %vm3205, %v5663, 0
  %v5702 = vsel %vm3205, %v5668, 0
  %v5705 = vsel %vm3205, %v5673, 0
  %v5708 = vsel %vm3205, %v5678, 0
  %v5711 = vsel %vm3681, %v5682, 0
  %5713 = vmatprep.subr.mxu0 0.0
  %5714 = vmatpush1.msra.mxu0 %v5711
  %5715 = vmatprep.subr.mxu0 0.0
  %5716 = vmatpush1.msra.mxu0 0.0
  %5717 = vmatprep.subr.mxu0 0.0
  %5718 = vmatpush1.msra.mxu0 0.0
  %5719 = vmatprep.subr.mxu0 0.0
  %5720 = vmatpush1.msra.mxu0 0.0
  %5721 = vmatprep.subr.mxu0 0.0
  %5722 = vmatpush1.msra.mxu0 0.0
  %5723 = vmatprep.subr.mxu0 0.0
  %5724 = vmatpush1.msra.mxu0 0.0
  %5725 = vmatprep.subr.mxu0 0.0
  %5726 = vmatpush1.msra.mxu0 0.0
  %5727 = vmatprep.subr.mxu0 0.0
  %5728 = vmatpush1.msra.mxu0 0.0
  %5729 = vmatprep.subr.mxu0 0.0
  %5730 = vmatpush1.msra.mxu0 0.0
  %5731 = vmatprep.subr.mxu0 0.0
  %5732 = vmatpush1.msra.mxu0 0.0
  %5733 = vmatprep.subr.mxu0 0.0
  %5734 = vmatpush1.msra.mxu0 0.0
  %5735 = vmatprep.subr.mxu0 0.0
  %5736 = vmatpush1.msra.mxu0 0.0
  %5737 = vmatprep.subr.mxu0 0.0
  %5738 = vmatpush1.msra.mxu0 0.0
  %5739 = vmatprep.subr.mxu0 0.0
  %5740 = vmatpush1.msra.mxu0 0.0
  %5741 = vmatprep.subr.mxu0 0.0
  %5742 = vmatpush1.msra.mxu0 0.0
  %5743 = vmatprep.subr.mxu0 0.0
  %5744 = vmatpush1.msra.mxu0 0.0
  %5745 = vmatprep.subr.mxu0 0.0
  %5746 = vmatpush1.msra.mxu0 0.0
  %5747 = vmatprep.subr.mxu0 0.0
  %5748 = vmatpush1.msra.mxu0 0.0
  %5749 = vmatprep.subr.mxu0 0.0
  %5750 = vmatpush1.msra.mxu0 0.0
  %5751 = vmatprep.subr.mxu0 0.0
  %5752 = vmatpush1.msra.mxu0 0.0
  %5753 = vmatprep.subr.mxu0 0.0
  %5754 = vmatpush1.msra.mxu0 0.0
  %5755 = vmatprep.subr.mxu0 0.0
  %5756 = vmatpush1.msra.mxu0 0.0
  %5757 = vmatprep.subr.mxu0 0.0
  %5758 = vmatpush1.msra.mxu0 0.0
  %5759 = vmatprep.subr.mxu0 0.0
  %5760 = vmatpush1.msra.mxu0 0.0
  %5761 = vmatprep.subr.mxu0 0.0
  %5762 = vmatpush1.msra.mxu0 0.0
  %5763 = vmatprep.subr.mxu0 0.0
  %5764 = vmatpush1.msra.mxu0 0.0
  %5765 = vmatprep.subr.mxu0 0.0
  %5766 = vmatpush1.msra.mxu0 0.0
  %5767 = vmatprep.subr.mxu0 0.0
  %5768 = vmatpush1.msra.mxu0 0.0
  %5769 = vmatprep.subr.mxu0 0.0
  %5770 = vmatpush1.msra.mxu0 0.0
  %5771 = vmatprep.subr.mxu0 0.0
  %5772 = vmatpush1.msra.mxu0 0.0
  %5773 = vmatprep.subr.mxu0 0.0
  %5774 = vmatpush1.msra.mxu0 0.0
  %5775 = vmatprep.subr.mxu0 0.0
  %5776 = vmatpush1.msra.mxu0 0.0
  %5777 = vmatprep.mubr.f32.mxu0 0.0
  %5778 = vmatmul.mubr.f32.gmra.mrb[0].mxu0 %v5684
  %v5779 = vpop.f32.mrb[0].mxu0
  %v5780 = vadd.f32 0.0, %v5779
  %v5781 = vpop.f32.mrb[0].mxu0
  %5782 = vmatprep.mubr.f32.mxu0 0.0
  %5783 = vmatmul.mubr.f32.gmra.mrb[0].mxu0 %v5687
  %v5784 = vpop.f32.mrb[0].mxu0
  %v5785 = vadd.f32 0.0, %v5784
  %v5786 = vpop.f32.mrb[0].mxu0
  %5787 = vmatprep.mubr.f32.mxu0 0.0
  %5788 = vmatmul.mubr.f32.gmra.mrb[0].mxu0 %v5690
  %v5789 = vpop.f32.mrb[0].mxu0
  %v5790 = vadd.f32 0.0, %v5789
  %v5791 = vpop.f32.mrb[0].mxu0
  %5792 = vmatprep.mubr.f32.mxu0 0.0
  %5793 = vmatmul.mubr.f32.gmra.mrb[0].mxu0 %v5693
  %v5794 = vpop.f32.mrb[0].mxu0
  %v5795 = vadd.f32 0.0, %v5794
  %v5796 = vpop.f32.mrb[0].mxu0
  %5797 = vmatprep.mubr.f32.mxu0 0.0
  %5798 = vmatmul.mubr.f32.gmra.mrb[0].mxu0 %v5696
  %v5799 = vpop.f32.mrb[0].mxu0
  %v5800 = vadd.f32 0.0, %v5799
  %v5801 = vpop.f32.mrb[0].mxu0
  %5802 = vmatprep.mubr.f32.mxu0 0.0
  %5803 = vmatmul.mubr.f32.gmra.mrb[0].mxu0 %v5699
  %v5804 = vpop.f32.mrb[0].mxu0
  %v5805 = vadd.f32 0.0, %v5804
  %v5806 = vpop.f32.mrb[0].mxu0
  %5807 = vmatprep.mubr.f32.mxu0 0.0
  %5808 = vmatmul.mubr.f32.gmra.mrb[0].mxu0 %v5702
  %v5809 = vpop.f32.mrb[0].mxu0
  %v5810 = vadd.f32 0.0, %v5809
  %v5811 = vpop.f32.mrb[0].mxu0
  %5812 = vmatprep.mubr.f32.mxu0 0.0
  %5813 = vmatmul.mubr.f32.gmra.mrb[0].mxu0 %v5705
  %v5814 = vpop.f32.mrb[0].mxu0
  %v5815 = vadd.f32 0.0, %v5814
  %v5816 = vpop.f32.mrb[0].mxu0
  %5817 = vmatprep.mubr.f32.mxu0 0.0
  %5818 = vmatmul.mubr.f32.gmra.mrb[0].mxu0 %v5708
  %v5819 = vpop.f32.mrb[0].mxu0
  %v5820 = vadd.f32 0.0, %v5819
  %v5821 = vpop.f32.mrb[0].mxu0
  %5822 = vdwg.mxu0
  %v5823 = vadd.f32 %v5552, %v5780
  %v5824 = vadd.f32 %v5553, %v5785
  %v5825 = vadd.f32 %v5554, %v5790
  %v5826 = vadd.f32 %v5555, %v5795
  %v5827 = vadd.f32 %v5556, %v5800
  %v5828 = vadd.f32 %v5557, %v5805
  %v5829 = vadd.f32 %v5558, %v5810
  %v5830 = vadd.f32 %v5559, %v5815
  %v5831 = vadd.f32 %v5560, %v5820
  %vm5832 = vcmask 64512
  %v5833 = vsel %vm5832, %v5823, 0.0
  %v5834 = vsel %vm5832, %v5824, 0.0
  %v5835 = vadd.f32 %v5833, %v5834
  %v5836 = vsel %vm5832, %v5825, 0.0
  %v5837 = vadd.f32 %v5835, %v5836
  %v5838 = vsel %vm5832, %v5826, 0.0
  %v5839 = vadd.f32 %v5837, %v5838
  %v5840 = vsel %vm5832, %v5827, 0.0
  %v5841 = vadd.f32 %v5839, %v5840
  %v5842 = vsel %vm5832, %v5828, 0.0
  %v5843 = vadd.f32 %v5841, %v5842
  %v5844 = vsel %vm5832, %v5829, 0.0
  %v5845 = vadd.f32 %v5843, %v5844
  %v5846 = vsel %vm5832, %v5830, 0.0
  %v5847 = vadd.f32 %v5845, %v5846
  %v5848 = vsel %vm5832, %v5831, 0.0
  %v5849 = vadd.f32 %v5847, %v5848
  %v5850 = vrot.slane %v5849, 4
  %v5851 = vadd.f32 %v5849, %v5850
  %v5852 = vrot.slane %v5851, 2
  %v5853 = vadd.f32 %v5851, %v5852
  %v5854 = vrot.slane %v5853, 1
  %v5855 = vadd.f32 %v5853, %v5854
  %v5856 = vmul.f32 %v5855, 0.013888889
  %v5857 = vmul.f32 %v5823, %v5823
  %v5858 = vmul.f32 %v5824, %v5824
  %v5859 = vmul.f32 %v5825, %v5825
  %v5860 = vmul.f32 %v5826, %v5826
  %v5861 = vmul.f32 %v5827, %v5827
  %v5862 = vmul.f32 %v5828, %v5828
  %v5863 = vmul.f32 %v5829, %v5829
  %v5864 = vmul.f32 %v5830, %v5830
  %v5865 = vmul.f32 %v5831, %v5831
  %v5866 = vsel %vm5832, %v5857, 0.0
  %v5867 = vsel %vm5832, %v5858, 0.0
  %v5868 = vadd.f32 %v5866, %v5867
  %v5869 = vsel %vm5832, %v5859, 0.0
  %v5870 = vadd.f32 %v5868, %v5869
  %v5871 = vsel %vm5832, %v5860, 0.0
  %v5872 = vadd.f32 %v5870, %v5871
  %v5873 = vsel %vm5832, %v5861, 0.0
  %v5874 = vadd.f32 %v5872, %v5873
  %v5875 = vsel %vm5832, %v5862, 0.0
  %v5876 = vadd.f32 %v5874, %v5875
  %v5877 = vsel %vm5832, %v5863, 0.0
  %v5878 = vadd.f32 %v5876, %v5877
  %v5879 = vsel %vm5832, %v5864, 0.0
  %v5880 = vadd.f32 %v5878, %v5879
  %v5881 = vsel %vm5832, %v5865, 0.0
  %v5882 = vadd.f32 %v5880, %v5881
  %v5883 = vrot.slane %v5882, 4
  %v5884 = vadd.f32 %v5882, %v5883
  %v5885 = vrot.slane %v5884, 2
  %v5886 = vadd.f32 %v5884, %v5885
  %v5887 = vrot.slane %v5886, 1
  %v5888 = vadd.f32 %v5886, %v5887
  %v5889 = vmul.f32 %v5888, 0.013888889
  %v5890 = vmul.f32 %v5856, %v5856
  %v5891 = vsub.f32 %v5889, %v5890
  %v5892 = vmax.f32 %v5891, 0.0
  %v5893 = vsub.f32 %v5823, %v5856
  %v5894 = vsub.f32 %v5824, %v5856
  %v5895 = vsub.f32 %v5825, %v5856
  %v5896 = vsub.f32 %v5826, %v5856
  %v5897 = vsub.f32 %v5827, %v5856
  %v5898 = vsub.f32 %v5828, %v5856
  %v5899 = vsub.f32 %v5829, %v5856
  %v5900 = vsub.f32 %v5830, %v5856
  %v5901 = vsub.f32 %v5831, %v5856
  %v5902 = vadd.f32 %v5892, 1e-05
  %v5903 = vrsqrt.pop %v5902
  %v5904 = vld [vmem:[%s7] sm:$0x1]
  %v5905 = vmul.f32 %v5903, %v5904
  %v5906 = vlaneseq
  %v5907 = vshrl.u32 %v5906, 7
  %v5908 = vsub.s32 0, %v5907
  %v5909 = vrot.slane %v5905, %v5908
  %v5910 = vmul.f32 %v5893, %v5909
  %v5911 = vmul.f32 %v5894, %v5909
  %v5912 = vmul.f32 %v5895, %v5909
  %v5913 = vmul.f32 %v5896, %v5909
  %v5914 = vmul.f32 %v5897, %v5909
  %v5915 = vmul.f32 %v5898, %v5909
  %v5916 = vmul.f32 %v5899, %v5909
  %v5917 = vmul.f32 %v5900, %v5909
  %v5918 = vmul.f32 %v5901, %v5909
  %v5919 = vld [vmem:[%s8] sm:$0x1]
  %v5921 = vlaneseq
  %v5922 = vshrl.u32 %v5921, 7
  %v5923 = vsub.s32 0, %v5922
  %v5924 = vrot.slane %v5919, %v5923
  %v5926 = vadd.f32 %v5910, %v5924
  %v5927 = vadd.f32 %v5911, %v5924
  %v5928 = vadd.f32 %v5912, %v5924
  %v5929 = vadd.f32 %v5913, %v5924
  %v5930 = vadd.f32 %v5914, %v5924
  %v5931 = vadd.f32 %v5915, %v5924
  %v5932 = vadd.f32 %v5916, %v5924
  %v5933 = vadd.f32 %v5917, %v5924
  %v5934 = vadd.f32 %v5918, %v5924
  %vm5935 = vcmp.ge.f32.partialorder %v5926, 0.0
  %vm5936 = vcmp.ge.f32.partialorder %v5927, 0.0
  %vm5937 = vcmp.ge.f32.partialorder %v5928, 0.0
  %vm5938 = vcmp.ge.f32.partialorder %v5929, 0.0
  %vm5939 = vcmp.ge.f32.partialorder %v5930, 0.0
  %vm5940 = vcmp.ge.f32.partialorder %v5931, 0.0
  %vm5941 = vcmp.ge.f32.partialorder %v5932, 0.0
  %vm5942 = vcmp.ge.f32.partialorder %v5933, 0.0
  %vm5943 = vcmp.ge.f32.partialorder %v5934, 0.0
  %v5944 = vmul.f32 %v5926, 0.2
  %v5945 = vmul.f32 %v5927, 0.2
  %v5946 = vmul.f32 %v5928, 0.2
  %v5947 = vmul.f32 %v5929, 0.2
  %v5948 = vmul.f32 %v5930, 0.2
  %v5949 = vmul.f32 %v5931, 0.2
  %v5950 = vmul.f32 %v5932, 0.2
  %v5951 = vmul.f32 %v5933, 0.2
  %v5952 = vmul.f32 %v5934, 0.2
  %v5953 = vsel %vm5935, %v5926, %v5944
  %v5954 = vsel %vm5936, %v5927, %v5945
  %v5955 = vsel %vm5937, %v5928, %v5946
  %v5956 = vsel %vm5938, %v5929, %v5947
  %v5957 = vsel %vm5939, %v5930, %v5948
  %v5958 = vsel %vm5940, %v5931, %v5949
  %v5959 = vsel %vm5941, %v5932, %v5950
  %v5960 = vsel %vm5942, %v5933, %v5951
  %v5961 = vsel %vm5943, %v5934, %v5952
  %v5962 = vld [vmem:[%s9] sm:$0xff]
  %v5963 = vld [vmem:[%s9 + $0x8] sm:$0xff]
  %v5964 = vld [vmem:[%s9 + $0x10] sm:$0xff]
  %v5965 = vld [vmem:[%s9 + $0x18] sm:$0xff]
  %v5967 = vsel %vm124, %v5962, 0
  %v5970 = vsel %vm124, %v5963, 0
  %v5973 = vsel %vm124, %v5964, 0
  %v5976 = vsel %vm124, %v5965, 0
  %5978 = vmatprep.subr.mxu0 0.0
  %5979 = vmatpush1.msra.mxu0 %v5953
  %5980 = vmatprep.subr.mxu0 0.0
  %5981 = vmatpush1.msra.mxu0 %v5954
  %5982 = vmatprep.subr.mxu0 0.0
  %5983 = vmatpush1.msra.mxu0 %v5955
  %5984 = vmatprep.subr.mxu0 0.0
  %5985 = vmatpush1.msra.mxu0 %v5956
  %5986 = vmatprep.subr.mxu0 0.0
  %5987 = vmatpush1.msra.mxu0 %v5957
  %5988 = vmatprep.subr.mxu0 0.0
  %5989 = vmatpush1.msra.mxu0 %v5958
  %5990 = vmatprep.subr.mxu0 0.0
  %5991 = vmatpush1.msra.mxu0 %v5959
  %5992 = vmatprep.subr.mxu0 0.0
  %5993 = vmatpush1.msra.mxu0 %v5960
  %5994 = vmatprep.subr.mxu0 0.0
  %5995 = vmatpush1.msra.mxu0 %v5961
  %5996 = vmatprep.subr.mxu0 0.0
  %5997 = vmatpush1.msra.mxu0 0.0
  %5998 = vmatprep.subr.mxu0 0.0
  %5999 = vmatpush1.msra.mxu0 0.0
  %6000 = vmatprep.subr.mxu0 0.0
  %6001 = vmatpush1.msra.mxu0 0.0
  %6002 = vmatprep.subr.mxu0 0.0
  %6003 = vmatpush1.msra.mxu0 0.0
  %6004 = vmatprep.subr.mxu0 0.0
  %6005 = vmatpush1.msra.mxu0 0.0
  %6006 = vmatprep.subr.mxu0 0.0
  %6007 = vmatpush1.msra.mxu0 0.0
  %6008 = vmatprep.subr.mxu0 0.0
  %6009 = vmatpush1.msra.mxu0 0.0
  %6010 = vmatprep.subr.mxu0 0.0
  %6011 = vmatpush1.msra.mxu0 0.0
  %6012 = vmatprep.subr.mxu0 0.0
  %6013 = vmatpush1.msra.mxu0 0.0
  %6014 = vmatprep.subr.mxu0 0.0
  %6015 = vmatpush1.msra.mxu0 0.0
  %6016 = vmatprep.subr.mxu0 0.0
  %6017 = vmatpush1.msra.mxu0 0.0
  %6018 = vmatprep.subr.mxu0 0.0
  %6019 = vmatpush1.msra.mxu0 0.0
  %6020 = vmatprep.subr.mxu0 0.0
  %6021 = vmatpush1.msra.mxu0 0.0
  %6022 = vmatprep.subr.mxu0 0.0
  %6023 = vmatpush1.msra.mxu0 0.0
  %6024 = vmatprep.subr.mxu0 0.0
  %6025 = vmatpush1.msra.mxu0 0.0
  %6026 = vmatprep.subr.mxu0 0.0
  %6027 = vmatpush1.msra.mxu0 0.0
  %6028 = vmatprep.subr.mxu0 0.0
  %6029 = vmatpush1.msra.mxu0 0.0
  %6030 = vmatprep.subr.mxu0 0.0
  %6031 = vmatpush1.msra.mxu0 0.0
  %6032 = vmatprep.subr.mxu0 0.0
  %6033 = vmatpush1.msra.mxu0 0.0
  %6034 = vmatprep.subr.mxu0 0.0
  %6035 = vmatpush1.msra.mxu0 0.0
  %6036 = vmatprep.subr.mxu0 0.0
  %6037 = vmatpush1.msra.mxu0 0.0
  %6038 = vmatprep.subr.mxu0 0.0
  %6039 = vmatpush1.msra.mxu0 0.0
  %6040 = vmatprep.subr.mxu0 0.0
  %6041 = vmatpush1.msra.mxu0 0.0
  %6042 = vmatprep.mubr.f32.mxu0 0.0
  %6043 = vmatmul.mubr.f32.gmra.mrb[0].mxu0 %v5967
  %v6044 = vpop.f32.mrb[0].mxu0
  %v6045 = vadd.f32 0.0, %v6044
  %v6046 = vpop.f32.mrb[0].mxu0
  %6047 = vmatprep.mubr.f32.mxu0 0.0
  %6048 = vmatmul.mubr.f32.gmra.mrb[0].mxu0 %v5970
  %v6049 = vpop.f32.mrb[0].mxu0
  %v6050 = vadd.f32 0.0, %v6049
  %v6051 = vpop.f32.mrb[0].mxu0
  %6052 = vmatprep.mubr.f32.mxu0 0.0
  %6053 = vmatmul.mubr.f32.gmra.mrb[0].mxu0 %v5973
  %v6054 = vpop.f32.mrb[0].mxu0
  %v6055 = vadd.f32 0.0, %v6054
  %v6056 = vpop.f32.mrb[0].mxu0
  %6057 = vmatprep.mubr.f32.mxu0 0.0
  %6058 = vmatmul.mubr.f32.gmra.mrb[0].mxu0 %v5976
  %v6059 = vpop.f32.mrb[0].mxu0
  %v6060 = vadd.f32 0.0, %v6059
  %v6061 = vpop.f32.mrb[0].mxu0
  %6062 = vdwg.mxu0
  %v6063 = vld [vmem:[%s10] sm:$0xff]
  %s6064 = scalar_lea.vmem %s9, 32
  %v6065 = vld [vmem:[%s6064] sm:$0xff]
  %v6066 = vld [vmem:[%s6064 + $0x8] sm:$0xff]
  %v6067 = vld [vmem:[%s6064 + $0x10] sm:$0xff]
  %v6068 = vld [vmem:[%s6064 + $0x18] sm:$0xff]
  %v6070 = vsel %vm124, %v6065, 0
  %v6073 = vsel %vm124, %v6066, 0
  %v6076 = vsel %vm124, %v6067, 0
  %v6079 = vsel %vm124, %v6068, 0
  %6081 = vmatprep.subr.mxu0 0.0
  %6082 = vmatpush1.msra.mxu0 %v5953
  %6083 = vmatprep.subr.mxu0 0.0
  %6084 = vmatpush1.msra.mxu0 %v5954
  %6085 = vmatprep.subr.mxu0 0.0
  %6086 = vmatpush1.msra.mxu0 %v5955
  %6087 = vmatprep.subr.mxu0 0.0
  %6088 = vmatpush1.msra.mxu0 %v5956
  %6089 = vmatprep.subr.mxu0 0.0
  %6090 = vmatpush1.msra.mxu0 %v5957
  %6091 = vmatprep.subr.mxu0 0.0
  %6092 = vmatpush1.msra.mxu0 %v5958
  %6093 = vmatprep.subr.mxu0 0.0
  %6094 = vmatpush1.msra.mxu0 %v5959
  %6095 = vmatprep.subr.mxu0 0.0
  %6096 = vmatpush1.msra.mxu0 %v5960
  %6097 = vmatprep.subr.mxu0 0.0
  %6098 = vmatpush1.msra.mxu0 %v5961
  %6099 = vmatprep.subr.mxu0 0.0
  %6100 = vmatpush1.msra.mxu0 0.0
  %6101 = vmatprep.subr.mxu0 0.0
  %6102 = vmatpush1.msra.mxu0 0.0
  %6103 = vmatprep.subr.mxu0 0.0
  %6104 = vmatpush1.msra.mxu0 0.0
  %6105 = vmatprep.subr.mxu0 0.0
  %6106 = vmatpush1.msra.mxu0 0.0
  %6107 = vmatprep.subr.mxu0 0.0
  %6108 = vmatpush1.msra.mxu0 0.0
  %6109 = vmatprep.subr.mxu0 0.0
  %6110 = vmatpush1.msra.mxu0 0.0
  %6111 = vmatprep.subr.mxu0 0.0
  %6112 = vmatpush1.msra.mxu0 0.0
  %6113 = vmatprep.subr.mxu0 0.0
  %6114 = vmatpush1.msra.mxu0 0.0
  %6115 = vmatprep.subr.mxu0 0.0
  %6116 = vmatpush1.msra.mxu0 0.0
  %6117 = vmatprep.subr.mxu0 0.0
  %6118 = vmatpush1.msra.mxu0 0.0
  %6119 = vmatprep.subr.mxu0 0.0
  %6120 = vmatpush1.msra.mxu0 0.0
  %6121 = vmatprep.subr.mxu0 0.0
  %6122 = vmatpush1.msra.mxu0 0.0
  %6123 = vmatprep.subr.mxu0 0.0
  %6124 = vmatpush1.msra.mxu0 0.0
  %6125 = vmatprep.subr.mxu0 0.0
  %6126 = vmatpush1.msra.mxu0 0.0
  %6127 = vmatprep.subr.mxu0 0.0
  %6128 = vmatpush1.msra.mxu0 0.0
  %6129 = vmatprep.subr.mxu0 0.0
  %6130 = vmatpush1.msra.mxu0 0.0
  %6131 = vmatprep.subr.mxu0 0.0
  %6132 = vmatpush1.msra.mxu0 0.0
  %6133 = vmatprep.subr.mxu0 0.0
  %6134 = vmatpush1.msra.mxu0 0.0
  %6135 = vmatprep.subr.mxu0 0.0
  %6136 = vmatpush1.msra.mxu0 0.0
  %6137 = vmatprep.subr.mxu0 0.0
  %6138 = vmatpush1.msra.mxu0 0.0
  %6139 = vmatprep.subr.mxu0 0.0
  %6140 = vmatpush1.msra.mxu0 0.0
  %6141 = vmatprep.subr.mxu0 0.0
  %6142 = vmatpush1.msra.mxu0 0.0
  %6143 = vmatprep.subr.mxu0 0.0
  %6144 = vmatpush1.msra.mxu0 0.0
  %6145 = vmatprep.mubr.f32.mxu0 0.0
  %6146 = vmatmul.mubr.f32.gmra.mrb[0].mxu0 %v6070
  %v6147 = vpop.f32.mrb[0].mxu0
  %v6148 = vadd.f32 0.0, %v6147
  %v6149 = vpop.f32.mrb[0].mxu0
  %6150 = vmatprep.mubr.f32.mxu0 0.0
  %6151 = vmatmul.mubr.f32.gmra.mrb[0].mxu0 %v6073
  %v6152 = vpop.f32.mrb[0].mxu0
  %v6153 = vadd.f32 0.0, %v6152
  %v6154 = vpop.f32.mrb[0].mxu0
  %6155 = vmatprep.mubr.f32.mxu0 0.0
  %6156 = vmatmul.mubr.f32.gmra.mrb[0].mxu0 %v6076
  %v6157 = vpop.f32.mrb[0].mxu0
  %v6158 = vadd.f32 0.0, %v6157
  %v6159 = vpop.f32.mrb[0].mxu0
  %6160 = vmatprep.mubr.f32.mxu0 0.0
  %6161 = vmatmul.mubr.f32.gmra.mrb[0].mxu0 %v6079
  %v6162 = vpop.f32.mrb[0].mxu0
  %v6163 = vadd.f32 0.0, %v6162
  %v6164 = vpop.f32.mrb[0].mxu0
  %6165 = vdwg.mxu0
  %s6166 = scalar_lea.vmem %s10, 8
  %v6167 = vld [vmem:[%s6166] sm:$0xff]
  %v6169 = vsel %vm5832, %v6148, 0
  %v6172 = vsel %vm5832, %v6153, 0
  %v6175 = vsel %vm5832, %v6158, 0
  %v6178 = vsel %vm5832, %v6163, 0
  %6180 = vmatprep.subr.mxu0 0.0
  %6181 = vmatpush1.msra.mxu0 %v6167
  %6182 = vmatprep.subr.mxu0 0.0
  %6183 = vmatpush1.msra.mxu0 0.0
  %6184 = vmatprep.subr.mxu0 0.0
  %6185 = vmatpush1.msra.mxu0 0.0
  %6186 = vmatprep.subr.mxu0 0.0
  %6187 = vmatpush1.msra.mxu0 0.0
  %6188 = vmatprep.subr.mxu0 0.0
  %6189 = vmatpush1.msra.mxu0 0.0
  %6190 = vmatprep.subr.mxu0 0.0
  %6191 = vmatpush1.msra.mxu0 0.0
  %6192 = vmatprep.subr.mxu0 0.0
  %6193 = vmatpush1.msra.mxu0 0.0
  %6194 = vmatprep.subr.mxu0 0.0
  %6195 = vmatpush1.msra.mxu0 0.0
  %6196 = vmatprep.subr.mxu0 0.0
  %6197 = vmatpush1.msra.mxu0 0.0
  %6198 = vmatprep.subr.mxu0 0.0
  %6199 = vmatpush1.msra.mxu0 0.0
  %6200 = vmatprep.subr.mxu0 0.0
  %6201 = vmatpush1.msra.mxu0 0.0
  %6202 = vmatprep.subr.mxu0 0.0
  %6203 = vmatpush1.msra.mxu0 0.0
  %6204 = vmatprep.subr.mxu0 0.0
  %6205 = vmatpush1.msra.mxu0 0.0
  %6206 = vmatprep.subr.mxu0 0.0
  %6207 = vmatpush1.msra.mxu0 0.0
  %6208 = vmatprep.subr.mxu0 0.0
  %6209 = vmatpush1.msra.mxu0 0.0
  %6210 = vmatprep.subr.mxu0 0.0
  %6211 = vmatpush1.msra.mxu0 0.0
  %6212 = vmatprep.subr.mxu0 0.0
  %6213 = vmatpush1.msra.mxu0 0.0
  %6214 = vmatprep.subr.mxu0 0.0
  %6215 = vmatpush1.msra.mxu0 0.0
  %6216 = vmatprep.subr.mxu0 0.0
  %6217 = vmatpush1.msra.mxu0 0.0
  %6218 = vmatprep.subr.mxu0 0.0
  %6219 = vmatpush1.msra.mxu0 0.0
  %6220 = vmatprep.subr.mxu0 0.0
  %6221 = vmatpush1.msra.mxu0 0.0
  %6222 = vmatprep.subr.mxu0 0.0
  %6223 = vmatpush1.msra.mxu0 0.0
  %6224 = vmatprep.subr.mxu0 0.0
  %6225 = vmatpush1.msra.mxu0 0.0
  %6226 = vmatprep.subr.mxu0 0.0
  %6227 = vmatpush1.msra.mxu0 0.0
  %6228 = vmatprep.subr.mxu0 0.0
  %6229 = vmatpush1.msra.mxu0 0.0
  %6230 = vmatprep.subr.mxu0 0.0
  %6231 = vmatpush1.msra.mxu0 0.0
  %6232 = vmatprep.subr.mxu0 0.0
  %6233 = vmatpush1.msra.mxu0 0.0
  %6234 = vmatprep.subr.mxu0 0.0
  %6235 = vmatpush1.msra.mxu0 0.0
  %6236 = vmatprep.subr.mxu0 0.0
  %6237 = vmatpush1.msra.mxu0 0.0
  %6238 = vmatprep.subr.mxu0 0.0
  %6239 = vmatpush1.msra.mxu0 0.0
  %6240 = vmatprep.subr.mxu0 0.0
  %6241 = vmatpush1.msra.mxu0 0.0
  %6242 = vmatprep.subr.mxu0 0.0
  %6243 = vmatpush1.msra.mxu0 0.0
  %6244 = vmatprep.mubr.f32.mxu0 0.0
  %6245 = vmatmul.mubr.f32.gmra.mrb[0].mxu0 %v6169
  %v6246 = vpop.f32.mrb[0].mxu0
  %v6247 = vadd.f32 0.0, %v6246
  %v6248 = vpop.f32.mrb[0].mxu0
  %6249 = vmatprep.mubr.f32.mxu0 0.0
  %6250 = vmatmul.mubr.f32.gmra.mrb[0].mxu0 %v6172
  %v6251 = vpop.f32.mrb[0].mxu0
  %v6252 = vadd.f32 0.0, %v6251
  %v6253 = vpop.f32.mrb[0].mxu0
  %6254 = vmatprep.mubr.f32.mxu0 0.0
  %6255 = vmatmul.mubr.f32.gmra.mrb[0].mxu0 %v6175
  %v6256 = vpop.f32.mrb[0].mxu0
  %v6257 = vadd.f32 0.0, %v6256
  %v6258 = vpop.f32.mrb[0].mxu0
  %6259 = vmatprep.mubr.f32.mxu0 0.0
  %6260 = vmatmul.mubr.f32.gmra.mrb[0].mxu0 %v6178
  %v6261 = vpop.f32.mrb[0].mxu0
  %v6262 = vadd.f32 0.0, %v6261
  %v6263 = vpop.f32.mrb[0].mxu0
  %6264 = vdwg.mxu0
  %v6266 = vsel %vm5832, %v6045, 0
  %v6269 = vsel %vm5832, %v6050, 0
  %v6272 = vsel %vm5832, %v6055, 0
  %v6275 = vsel %vm5832, %v6060, 0
  %6277 = vmatprep.subr.mxu0 0.0
  %6278 = vmatpush1.msra.mxu0 %v6063
  %6279 = vmatprep.subr.mxu0 0.0
  %6280 = vmatpush1.msra.mxu0 0.0
  %6281 = vmatprep.subr.mxu0 0.0
  %6282 = vmatpush1.msra.mxu0 0.0
  %6283 = vmatprep.subr.mxu0 0.0
  %6284 = vmatpush1.msra.mxu0 0.0
  %6285 = vmatprep.subr.mxu0 0.0
  %6286 = vmatpush1.msra.mxu0 0.0
  %6287 = vmatprep.subr.mxu0 0.0
  %6288 = vmatpush1.msra.mxu0 0.0
  %6289 = vmatprep.subr.mxu0 0.0
  %6290 = vmatpush1.msra.mxu0 0.0
  %6291 = vmatprep.subr.mxu0 0.0
  %6292 = vmatpush1.msra.mxu0 0.0
  %6293 = vmatprep.subr.mxu0 0.0
  %6294 = vmatpush1.msra.mxu0 0.0
  %6295 = vmatprep.subr.mxu0 0.0
  %6296 = vmatpush1.msra.mxu0 0.0
  %6297 = vmatprep.subr.mxu0 0.0
  %6298 = vmatpush1.msra.mxu0 0.0
  %6299 = vmatprep.subr.mxu0 0.0
  %6300 = vmatpush1.msra.mxu0 0.0
  %6301 = vmatprep.subr.mxu0 0.0
  %6302 = vmatpush1.msra.mxu0 0.0
  %6303 = vmatprep.subr.mxu0 0.0
  %6304 = vmatpush1.msra.mxu0 0.0
  %6305 = vmatprep.subr.mxu0 0.0
  %6306 = vmatpush1.msra.mxu0 0.0
  %6307 = vmatprep.subr.mxu0 0.0
  %6308 = vmatpush1.msra.mxu0 0.0
  %6309 = vmatprep.subr.mxu0 0.0
  %6310 = vmatpush1.msra.mxu0 0.0
  %6311 = vmatprep.subr.mxu0 0.0
  %6312 = vmatpush1.msra.mxu0 0.0
  %6313 = vmatprep.subr.mxu0 0.0
  %6314 = vmatpush1.msra.mxu0 0.0
  %6315 = vmatprep.subr.mxu0 0.0
  %6316 = vmatpush1.msra.mxu0 0.0
  %6317 = vmatprep.subr.mxu0 0.0
  %6318 = vmatpush1.msra.mxu0 0.0
  %6319 = vmatprep.subr.mxu0 0.0
  %6320 = vmatpush1.msra.mxu0 0.0
  %6321 = vmatprep.subr.mxu0 0.0
  %6322 = vmatpush1.msra.mxu0 0.0
  %6323 = vmatprep.subr.mxu0 0.0
  %6324 = vmatpush1.msra.mxu0 0.0
  %6325 = vmatprep.subr.mxu0 0.0
  %6326 = vmatpush1.msra.mxu0 0.0
  %6327 = vmatprep.subr.mxu0 0.0
  %6328 = vmatpush1.msra.mxu0 0.0
  %6329 = vmatprep.subr.mxu0 0.0
  %6330 = vmatpush1.msra.mxu0 0.0
  %6331 = vmatprep.subr.mxu0 0.0
  %6332 = vmatpush1.msra.mxu0 0.0
  %6333 = vmatprep.subr.mxu0 0.0
  %6334 = vmatpush1.msra.mxu0 0.0
  %6335 = vmatprep.subr.mxu0 0.0
  %6336 = vmatpush1.msra.mxu0 0.0
  %6337 = vmatprep.subr.mxu0 0.0
  %6338 = vmatpush1.msra.mxu0 0.0
  %6339 = vmatprep.subr.mxu0 0.0
  %6340 = vmatpush1.msra.mxu0 0.0
  %6341 = vmatprep.mubr.f32.mxu0 0.0
  %6342 = vmatmul.mubr.f32.gmra.mrb[0].mxu0 %v6266
  %v6343 = vpop.f32.mrb[0].mxu0
  %v6344 = vadd.f32 %v6247, %v6343
  %v6345 = vpop.f32.mrb[0].mxu0
  %6346 = vmatprep.mubr.f32.mxu0 0.0
  %6347 = vmatmul.mubr.f32.gmra.mrb[0].mxu0 %v6269
  %v6348 = vpop.f32.mrb[0].mxu0
  %v6349 = vadd.f32 %v6252, %v6348
  %v6350 = vpop.f32.mrb[0].mxu0
  %6351 = vmatprep.mubr.f32.mxu0 0.0
  %6352 = vmatmul.mubr.f32.gmra.mrb[0].mxu0 %v6272
  %v6353 = vpop.f32.mrb[0].mxu0
  %v6354 = vadd.f32 %v6257, %v6353
  %v6355 = vpop.f32.mrb[0].mxu0
  %6356 = vmatprep.mubr.f32.mxu0 0.0
  %6357 = vmatmul.mubr.f32.gmra.mrb[0].mxu0 %v6275
  %v6358 = vpop.f32.mrb[0].mxu0
  %v6359 = vadd.f32 %v6262, %v6358
  %v6360 = vpop.f32.mrb[0].mxu0
  %6361 = vdwg.mxu0
  %s6362 = scalar_lea.vmem %s9, 64
  %v6363 = vld [vmem:[%s6362] sm:$0xff]
  %v6364 = vld [vmem:[%s6362 + $0x8] sm:$0xff]
  %v6365 = vld [vmem:[%s6362 + $0x10] sm:$0xff]
  %v6366 = vld [vmem:[%s6362 + $0x18] sm:$0xff]
  %v6368 = vsel %vm124, %v6363, 0
  %v6371 = vsel %vm124, %v6364, 0
  %v6374 = vsel %vm124, %v6365, 0
  %v6377 = vsel %vm124, %v6366, 0
  %6379 = vmatprep.subr.mxu0 0.0
  %6380 = vmatpush1.msra.mxu0 %v5953
  %6381 = vmatprep.subr.mxu0 0.0
  %6382 = vmatpush1.msra.mxu0 %v5954
  %6383 = vmatprep.subr.mxu0 0.0
  %6384 = vmatpush1.msra.mxu0 %v5955
  %6385 = vmatprep.subr.mxu0 0.0
  %6386 = vmatpush1.msra.mxu0 %v5956
  %6387 = vmatprep.subr.mxu0 0.0
  %6388 = vmatpush1.msra.mxu0 %v5957
  %6389 = vmatprep.subr.mxu0 0.0
  %6390 = vmatpush1.msra.mxu0 %v5958
  %6391 = vmatprep.subr.mxu0 0.0
  %6392 = vmatpush1.msra.mxu0 %v5959
  %6393 = vmatprep.subr.mxu0 0.0
  %6394 = vmatpush1.msra.mxu0 %v5960
  %6395 = vmatprep.subr.mxu0 0.0
  %6396 = vmatpush1.msra.mxu0 %v5961
  %6397 = vmatprep.subr.mxu0 0.0
  %6398 = vmatpush1.msra.mxu0 0.0
  %6399 = vmatprep.subr.mxu0 0.0
  %6400 = vmatpush1.msra.mxu0 0.0
  %6401 = vmatprep.subr.mxu0 0.0
  %6402 = vmatpush1.msra.mxu0 0.0
  %6403 = vmatprep.subr.mxu0 0.0
  %6404 = vmatpush1.msra.mxu0 0.0
  %6405 = vmatprep.subr.mxu0 0.0
  %6406 = vmatpush1.msra.mxu0 0.0
  %6407 = vmatprep.subr.mxu0 0.0
  %6408 = vmatpush1.msra.mxu0 0.0
  %6409 = vmatprep.subr.mxu0 0.0
  %6410 = vmatpush1.msra.mxu0 0.0
  %6411 = vmatprep.subr.mxu0 0.0
  %6412 = vmatpush1.msra.mxu0 0.0
  %6413 = vmatprep.subr.mxu0 0.0
  %6414 = vmatpush1.msra.mxu0 0.0
  %6415 = vmatprep.subr.mxu0 0.0
  %6416 = vmatpush1.msra.mxu0 0.0
  %6417 = vmatprep.subr.mxu0 0.0
  %6418 = vmatpush1.msra.mxu0 0.0
  %6419 = vmatprep.subr.mxu0 0.0
  %6420 = vmatpush1.msra.mxu0 0.0
  %6421 = vmatprep.subr.mxu0 0.0
  %6422 = vmatpush1.msra.mxu0 0.0
  %6423 = vmatprep.subr.mxu0 0.0
  %6424 = vmatpush1.msra.mxu0 0.0
  %6425 = vmatprep.subr.mxu0 0.0
  %6426 = vmatpush1.msra.mxu0 0.0
  %6427 = vmatprep.subr.mxu0 0.0
  %6428 = vmatpush1.msra.mxu0 0.0
  %6429 = vmatprep.subr.mxu0 0.0
  %6430 = vmatpush1.msra.mxu0 0.0
  %6431 = vmatprep.subr.mxu0 0.0
  %6432 = vmatpush1.msra.mxu0 0.0
  %6433 = vmatprep.subr.mxu0 0.0
  %6434 = vmatpush1.msra.mxu0 0.0
  %6435 = vmatprep.subr.mxu0 0.0
  %6436 = vmatpush1.msra.mxu0 0.0
  %6437 = vmatprep.subr.mxu0 0.0
  %6438 = vmatpush1.msra.mxu0 0.0
  %6439 = vmatprep.subr.mxu0 0.0
  %6440 = vmatpush1.msra.mxu0 0.0
  %6441 = vmatprep.subr.mxu0 0.0
  %6442 = vmatpush1.msra.mxu0 0.0
  %6443 = vmatprep.mubr.f32.mxu0 0.0
  %6444 = vmatmul.mubr.f32.gmra.mrb[0].mxu0 %v6368
  %v6445 = vpop.f32.mrb[0].mxu0
  %v6446 = vadd.f32 0.0, %v6445
  %v6447 = vpop.f32.mrb[0].mxu0
  %6448 = vmatprep.mubr.f32.mxu0 0.0
  %6449 = vmatmul.mubr.f32.gmra.mrb[0].mxu0 %v6371
  %v6450 = vpop.f32.mrb[0].mxu0
  %v6451 = vadd.f32 0.0, %v6450
  %v6452 = vpop.f32.mrb[0].mxu0
  %6453 = vmatprep.mubr.f32.mxu0 0.0
  %6454 = vmatmul.mubr.f32.gmra.mrb[0].mxu0 %v6374
  %v6455 = vpop.f32.mrb[0].mxu0
  %v6456 = vadd.f32 0.0, %v6455
  %v6457 = vpop.f32.mrb[0].mxu0
  %6458 = vmatprep.mubr.f32.mxu0 0.0
  %6459 = vmatmul.mubr.f32.gmra.mrb[0].mxu0 %v6377
  %v6460 = vpop.f32.mrb[0].mxu0
  %v6461 = vadd.f32 0.0, %v6460
  %v6462 = vpop.f32.mrb[0].mxu0
  %6463 = vdwg.mxu0
  %s6464 = scalar_lea.vmem %s10, 16
  %v6465 = vld [vmem:[%s6464] sm:$0xff]
  %v6467 = vsel %vm5832, %v6446, 0
  %v6470 = vsel %vm5832, %v6451, 0
  %v6473 = vsel %vm5832, %v6456, 0
  %v6476 = vsel %vm5832, %v6461, 0
  %6478 = vmatprep.subr.mxu0 0.0
  %6479 = vmatpush1.msra.mxu0 %v6465
  %6480 = vmatprep.subr.mxu0 0.0
  %6481 = vmatpush1.msra.mxu0 0.0
  %6482 = vmatprep.subr.mxu0 0.0
  %6483 = vmatpush1.msra.mxu0 0.0
  %6484 = vmatprep.subr.mxu0 0.0
  %6485 = vmatpush1.msra.mxu0 0.0
  %6486 = vmatprep.subr.mxu0 0.0
  %6487 = vmatpush1.msra.mxu0 0.0
  %6488 = vmatprep.subr.mxu0 0.0
  %6489 = vmatpush1.msra.mxu0 0.0
  %6490 = vmatprep.subr.mxu0 0.0
  %6491 = vmatpush1.msra.mxu0 0.0
  %6492 = vmatprep.subr.mxu0 0.0
  %6493 = vmatpush1.msra.mxu0 0.0
  %6494 = vmatprep.subr.mxu0 0.0
  %6495 = vmatpush1.msra.mxu0 0.0
  %6496 = vmatprep.subr.mxu0 0.0
  %6497 = vmatpush1.msra.mxu0 0.0
  %6498 = vmatprep.subr.mxu0 0.0
  %6499 = vmatpush1.msra.mxu0 0.0
  %6500 = vmatprep.subr.mxu0 0.0
  %6501 = vmatpush1.msra.mxu0 0.0
  %6502 = vmatprep.subr.mxu0 0.0
  %6503 = vmatpush1.msra.mxu0 0.0
  %6504 = vmatprep.subr.mxu0 0.0
  %6505 = vmatpush1.msra.mxu0 0.0
  %6506 = vmatprep.subr.mxu0 0.0
  %6507 = vmatpush1.msra.mxu0 0.0
  %6508 = vmatprep.subr.mxu0 0.0
  %6509 = vmatpush1.msra.mxu0 0.0
  %6510 = vmatprep.subr.mxu0 0.0
  %6511 = vmatpush1.msra.mxu0 0.0
  %6512 = vmatprep.subr.mxu0 0.0
  %6513 = vmatpush1.msra.mxu0 0.0
  %6514 = vmatprep.subr.mxu0 0.0
  %6515 = vmatpush1.msra.mxu0 0.0
  %6516 = vmatprep.subr.mxu0 0.0
  %6517 = vmatpush1.msra.mxu0 0.0
  %6518 = vmatprep.subr.mxu0 0.0
  %6519 = vmatpush1.msra.mxu0 0.0
  %6520 = vmatprep.subr.mxu0 0.0
  %6521 = vmatpush1.msra.mxu0 0.0
  %6522 = vmatprep.subr.mxu0 0.0
  %6523 = vmatpush1.msra.mxu0 0.0
  %6524 = vmatprep.subr.mxu0 0.0
  %6525 = vmatpush1.msra.mxu0 0.0
  %6526 = vmatprep.subr.mxu0 0.0
  %6527 = vmatpush1.msra.mxu0 0.0
  %6528 = vmatprep.subr.mxu0 0.0
  %6529 = vmatpush1.msra.mxu0 0.0
  %6530 = vmatprep.subr.mxu0 0.0
  %6531 = vmatpush1.msra.mxu0 0.0
  %6532 = vmatprep.subr.mxu0 0.0
  %6533 = vmatpush1.msra.mxu0 0.0
  %6534 = vmatprep.subr.mxu0 0.0
  %6535 = vmatpush1.msra.mxu0 0.0
  %6536 = vmatprep.subr.mxu0 0.0
  %6537 = vmatpush1.msra.mxu0 0.0
  %6538 = vmatprep.subr.mxu0 0.0
  %6539 = vmatpush1.msra.mxu0 0.0
  %6540 = vmatprep.subr.mxu0 0.0
  %6541 = vmatpush1.msra.mxu0 0.0
  %6542 = vmatprep.mubr.f32.mxu0 0.0
  %6543 = vmatmul.mubr.f32.gmra.mrb[0].mxu0 %v6467
  %v6544 = vpop.f32.mrb[0].mxu0
  %v6545 = vadd.f32 0.0, %v6544
  %v6546 = vpop.f32.mrb[0].mxu0
  %6547 = vmatprep.mubr.f32.mxu0 0.0
  %6548 = vmatmul.mubr.f32.gmra.mrb[0].mxu0 %v6470
  %v6549 = vpop.f32.mrb[0].mxu0
  %v6550 = vadd.f32 0.0, %v6549
  %v6551 = vpop.f32.mrb[0].mxu0
  %6552 = vmatprep.mubr.f32.mxu0 0.0
  %6553 = vmatmul.mubr.f32.gmra.mrb[0].mxu0 %v6473
  %v6554 = vpop.f32.mrb[0].mxu0
  %v6555 = vadd.f32 0.0, %v6554
  %v6556 = vpop.f32.mrb[0].mxu0
  %6557 = vmatprep.mubr.f32.mxu0 0.0
  %6558 = vmatmul.mubr.f32.gmra.mrb[0].mxu0 %v6476
  %v6559 = vpop.f32.mrb[0].mxu0
  %v6560 = vadd.f32 0.0, %v6559
  %v6561 = vpop.f32.mrb[0].mxu0
  %6562 = vdwg.mxu0
  %v6563 = vadd.f32 %v6344, %v6545
  %v6564 = vadd.f32 %v6349, %v6550
  %v6565 = vadd.f32 %v6354, %v6555
  %v6566 = vadd.f32 %v6359, %v6560
  %s6567 = scalar_lea.vmem %s9, 96
  %v6568 = vld [vmem:[%s6567] sm:$0xff]
  %v6569 = vld [vmem:[%s6567 + $0x8] sm:$0xff]
  %v6570 = vld [vmem:[%s6567 + $0x10] sm:$0xff]
  %v6571 = vld [vmem:[%s6567 + $0x18] sm:$0xff]
  %v6573 = vsel %vm124, %v6568, 0
  %v6576 = vsel %vm124, %v6569, 0
  %v6579 = vsel %vm124, %v6570, 0
  %v6582 = vsel %vm124, %v6571, 0
  %6584 = vmatprep.subr.mxu0 0.0
  %6585 = vmatpush1.msra.mxu0 %v5953
  %6586 = vmatprep.subr.mxu0 0.0
  %6587 = vmatpush1.msra.mxu0 %v5954
  %6588 = vmatprep.subr.mxu0 0.0
  %6589 = vmatpush1.msra.mxu0 %v5955
  %6590 = vmatprep.subr.mxu0 0.0
  %6591 = vmatpush1.msra.mxu0 %v5956
  %6592 = vmatprep.subr.mxu0 0.0
  %6593 = vmatpush1.msra.mxu0 %v5957
  %6594 = vmatprep.subr.mxu0 0.0
  %6595 = vmatpush1.msra.mxu0 %v5958
  %6596 = vmatprep.subr.mxu0 0.0
  %6597 = vmatpush1.msra.mxu0 %v5959
  %6598 = vmatprep.subr.mxu0 0.0
  %6599 = vmatpush1.msra.mxu0 %v5960
  %6600 = vmatprep.subr.mxu0 0.0
  %6601 = vmatpush1.msra.mxu0 %v5961
  %6602 = vmatprep.subr.mxu0 0.0
  %6603 = vmatpush1.msra.mxu0 0.0
  %6604 = vmatprep.subr.mxu0 0.0
  %6605 = vmatpush1.msra.mxu0 0.0
  %6606 = vmatprep.subr.mxu0 0.0
  %6607 = vmatpush1.msra.mxu0 0.0
  %6608 = vmatprep.subr.mxu0 0.0
  %6609 = vmatpush1.msra.mxu0 0.0
  %6610 = vmatprep.subr.mxu0 0.0
  %6611 = vmatpush1.msra.mxu0 0.0
  %6612 = vmatprep.subr.mxu0 0.0
  %6613 = vmatpush1.msra.mxu0 0.0
  %6614 = vmatprep.subr.mxu0 0.0
  %6615 = vmatpush1.msra.mxu0 0.0
  %6616 = vmatprep.subr.mxu0 0.0
  %6617 = vmatpush1.msra.mxu0 0.0
  %6618 = vmatprep.subr.mxu0 0.0
  %6619 = vmatpush1.msra.mxu0 0.0
  %6620 = vmatprep.subr.mxu0 0.0
  %6621 = vmatpush1.msra.mxu0 0.0
  %6622 = vmatprep.subr.mxu0 0.0
  %6623 = vmatpush1.msra.mxu0 0.0
  %6624 = vmatprep.subr.mxu0 0.0
  %6625 = vmatpush1.msra.mxu0 0.0
  %6626 = vmatprep.subr.mxu0 0.0
  %6627 = vmatpush1.msra.mxu0 0.0
  %6628 = vmatprep.subr.mxu0 0.0
  %6629 = vmatpush1.msra.mxu0 0.0
  %6630 = vmatprep.subr.mxu0 0.0
  %6631 = vmatpush1.msra.mxu0 0.0
  %6632 = vmatprep.subr.mxu0 0.0
  %6633 = vmatpush1.msra.mxu0 0.0
  %6634 = vmatprep.subr.mxu0 0.0
  %6635 = vmatpush1.msra.mxu0 0.0
  %6636 = vmatprep.subr.mxu0 0.0
  %6637 = vmatpush1.msra.mxu0 0.0
  %6638 = vmatprep.subr.mxu0 0.0
  %6639 = vmatpush1.msra.mxu0 0.0
  %6640 = vmatprep.subr.mxu0 0.0
  %6641 = vmatpush1.msra.mxu0 0.0
  %6642 = vmatprep.subr.mxu0 0.0
  %6643 = vmatpush1.msra.mxu0 0.0
  %6644 = vmatprep.subr.mxu0 0.0
  %6645 = vmatpush1.msra.mxu0 0.0
  %6646 = vmatprep.subr.mxu0 0.0
  %6647 = vmatpush1.msra.mxu0 0.0
  %6648 = vmatprep.mubr.f32.mxu0 0.0
  %6649 = vmatmul.mubr.f32.gmra.mrb[0].mxu0 %v6573
  %v6650 = vpop.f32.mrb[0].mxu0
  %v6651 = vadd.f32 0.0, %v6650
  %v6652 = vpop.f32.mrb[0].mxu0
  %6653 = vmatprep.mubr.f32.mxu0 0.0
  %6654 = vmatmul.mubr.f32.gmra.mrb[0].mxu0 %v6576
  %v6655 = vpop.f32.mrb[0].mxu0
  %v6656 = vadd.f32 0.0, %v6655
  %v6657 = vpop.f32.mrb[0].mxu0
  %6658 = vmatprep.mubr.f32.mxu0 0.0
  %6659 = vmatmul.mubr.f32.gmra.mrb[0].mxu0 %v6579
  %v6660 = vpop.f32.mrb[0].mxu0
  %v6661 = vadd.f32 0.0, %v6660
  %v6662 = vpop.f32.mrb[0].mxu0
  %6663 = vmatprep.mubr.f32.mxu0 0.0
  %6664 = vmatmul.mubr.f32.gmra.mrb[0].mxu0 %v6582
  %v6665 = vpop.f32.mrb[0].mxu0
  %v6666 = vadd.f32 0.0, %v6665
  %v6667 = vpop.f32.mrb[0].mxu0
  %6668 = vdwg.mxu0
  %s6669 = scalar_lea.vmem %s10, 24
  %v6670 = vld [vmem:[%s6669] sm:$0xff]
  %v6672 = vsel %vm5832, %v6651, 0
  %v6675 = vsel %vm5832, %v6656, 0
  %v6678 = vsel %vm5832, %v6661, 0
  %v6681 = vsel %vm5832, %v6666, 0
  %6683 = vmatprep.subr.mxu0 0.0
  %6684 = vmatpush1.msra.mxu0 %v6670
  %6685 = vmatprep.subr.mxu0 0.0
  %6686 = vmatpush1.msra.mxu0 0.0
  %6687 = vmatprep.subr.mxu0 0.0
  %6688 = vmatpush1.msra.mxu0 0.0
  %6689 = vmatprep.subr.mxu0 0.0
  %6690 = vmatpush1.msra.mxu0 0.0
  %6691 = vmatprep.subr.mxu0 0.0
  %6692 = vmatpush1.msra.mxu0 0.0
  %6693 = vmatprep.subr.mxu0 0.0
  %6694 = vmatpush1.msra.mxu0 0.0
  %6695 = vmatprep.subr.mxu0 0.0
  %6696 = vmatpush1.msra.mxu0 0.0
  %6697 = vmatprep.subr.mxu0 0.0
  %6698 = vmatpush1.msra.mxu0 0.0
  %6699 = vmatprep.subr.mxu0 0.0
  %6700 = vmatpush1.msra.mxu0 0.0
  %6701 = vmatprep.subr.mxu0 0.0
  %6702 = vmatpush1.msra.mxu0 0.0
  %6703 = vmatprep.subr.mxu0 0.0
  %6704 = vmatpush1.msra.mxu0 0.0
  %6705 = vmatprep.subr.mxu0 0.0
  %6706 = vmatpush1.msra.mxu0 0.0
  %6707 = vmatprep.subr.mxu0 0.0
  %6708 = vmatpush1.msra.mxu0 0.0
  %6709 = vmatprep.subr.mxu0 0.0
  %6710 = vmatpush1.msra.mxu0 0.0
  %6711 = vmatprep.subr.mxu0 0.0
  %6712 = vmatpush1.msra.mxu0 0.0
  %6713 = vmatprep.subr.mxu0 0.0
  %6714 = vmatpush1.msra.mxu0 0.0
  %6715 = vmatprep.subr.mxu0 0.0
  %6716 = vmatpush1.msra.mxu0 0.0
  %6717 = vmatprep.subr.mxu0 0.0
  %6718 = vmatpush1.msra.mxu0 0.0
  %6719 = vmatprep.subr.mxu0 0.0
  %6720 = vmatpush1.msra.mxu0 0.0
  %6721 = vmatprep.subr.mxu0 0.0
  %6722 = vmatpush1.msra.mxu0 0.0
  %6723 = vmatprep.subr.mxu0 0.0
  %6724 = vmatpush1.msra.mxu0 0.0
  %6725 = vmatprep.subr.mxu0 0.0
  %6726 = vmatpush1.msra.mxu0 0.0
  %6727 = vmatprep.subr.mxu0 0.0
  %6728 = vmatpush1.msra.mxu0 0.0
  %6729 = vmatprep.subr.mxu0 0.0
  %6730 = vmatpush1.msra.mxu0 0.0
  %6731 = vmatprep.subr.mxu0 0.0
  %6732 = vmatpush1.msra.mxu0 0.0
  %6733 = vmatprep.subr.mxu0 0.0
  %6734 = vmatpush1.msra.mxu0 0.0
  %6735 = vmatprep.subr.mxu0 0.0
  %6736 = vmatpush1.msra.mxu0 0.0
  %6737 = vmatprep.subr.mxu0 0.0
  %6738 = vmatpush1.msra.mxu0 0.0
  %6739 = vmatprep.subr.mxu0 0.0
  %6740 = vmatpush1.msra.mxu0 0.0
  %6741 = vmatprep.subr.mxu0 0.0
  %6742 = vmatpush1.msra.mxu0 0.0
  %6743 = vmatprep.subr.mxu0 0.0
  %6744 = vmatpush1.msra.mxu0 0.0
  %6745 = vmatprep.subr.mxu0 0.0
  %6746 = vmatpush1.msra.mxu0 0.0
  %6747 = vmatprep.mubr.f32.mxu0 0.0
  %6748 = vmatmul.mubr.f32.gmra.mrb[0].mxu0 %v6672
  %v6749 = vpop.f32.mrb[0].mxu0
  %v6750 = vadd.f32 0.0, %v6749
  %v6751 = vpop.f32.mrb[0].mxu0
  %6752 = vmatprep.mubr.f32.mxu0 0.0
  %6753 = vmatmul.mubr.f32.gmra.mrb[0].mxu0 %v6675
  %v6754 = vpop.f32.mrb[0].mxu0
  %v6755 = vadd.f32 0.0, %v6754
  %v6756 = vpop.f32.mrb[0].mxu0
  %6757 = vmatprep.mubr.f32.mxu0 0.0
  %6758 = vmatmul.mubr.f32.gmra.mrb[0].mxu0 %v6678
  %v6759 = vpop.f32.mrb[0].mxu0
  %v6760 = vadd.f32 0.0, %v6759
  %v6761 = vpop.f32.mrb[0].mxu0
  %6762 = vmatprep.mubr.f32.mxu0 0.0
  %6763 = vmatmul.mubr.f32.gmra.mrb[0].mxu0 %v6681
  %v6764 = vpop.f32.mrb[0].mxu0
  %v6765 = vadd.f32 0.0, %v6764
  %v6766 = vpop.f32.mrb[0].mxu0
  %6767 = vdwg.mxu0
  %v6768 = vadd.f32 %v6563, %v6750
  %v6769 = vadd.f32 %v6564, %v6755
  %v6770 = vadd.f32 %v6565, %v6760
  %v6771 = vadd.f32 %v6566, %v6765
  %s6772 = scalar_lea.vmem %s9, 128
  %v6773 = vld [vmem:[%s6772] sm:$0xff]
  %v6774 = vld [vmem:[%s6772 + $0x8] sm:$0xff]
  %v6775 = vld [vmem:[%s6772 + $0x10] sm:$0xff]
  %v6776 = vld [vmem:[%s6772 + $0x18] sm:$0xff]
  %v6778 = vsel %vm124, %v6773, 0
  %v6781 = vsel %vm124, %v6774, 0
  %v6784 = vsel %vm124, %v6775, 0
  %v6787 = vsel %vm124, %v6776, 0
  %6789 = vmatprep.subr.mxu0 0.0
  %6790 = vmatpush1.msra.mxu0 %v5953
  %6791 = vmatprep.subr.mxu0 0.0
  %6792 = vmatpush1.msra.mxu0 %v5954
  %6793 = vmatprep.subr.mxu0 0.0
  %6794 = vmatpush1.msra.mxu0 %v5955
  %6795 = vmatprep.subr.mxu0 0.0
  %6796 = vmatpush1.msra.mxu0 %v5956
  %6797 = vmatprep.subr.mxu0 0.0
  %6798 = vmatpush1.msra.mxu0 %v5957
  %6799 = vmatprep.subr.mxu0 0.0
  %6800 = vmatpush1.msra.mxu0 %v5958
  %6801 = vmatprep.subr.mxu0 0.0
  %6802 = vmatpush1.msra.mxu0 %v5959
  %6803 = vmatprep.subr.mxu0 0.0
  %6804 = vmatpush1.msra.mxu0 %v5960
  %6805 = vmatprep.subr.mxu0 0.0
  %6806 = vmatpush1.msra.mxu0 %v5961
  %6807 = vmatprep.subr.mxu0 0.0
  %6808 = vmatpush1.msra.mxu0 0.0
  %6809 = vmatprep.subr.mxu0 0.0
  %6810 = vmatpush1.msra.mxu0 0.0
  %6811 = vmatprep.subr.mxu0 0.0
  %6812 = vmatpush1.msra.mxu0 0.0
  %6813 = vmatprep.subr.mxu0 0.0
  %6814 = vmatpush1.msra.mxu0 0.0
  %6815 = vmatprep.subr.mxu0 0.0
  %6816 = vmatpush1.msra.mxu0 0.0
  %6817 = vmatprep.subr.mxu0 0.0
  %6818 = vmatpush1.msra.mxu0 0.0
  %6819 = vmatprep.subr.mxu0 0.0
  %6820 = vmatpush1.msra.mxu0 0.0
  %6821 = vmatprep.subr.mxu0 0.0
  %6822 = vmatpush1.msra.mxu0 0.0
  %6823 = vmatprep.subr.mxu0 0.0
  %6824 = vmatpush1.msra.mxu0 0.0
  %6825 = vmatprep.subr.mxu0 0.0
  %6826 = vmatpush1.msra.mxu0 0.0
  %6827 = vmatprep.subr.mxu0 0.0
  %6828 = vmatpush1.msra.mxu0 0.0
  %6829 = vmatprep.subr.mxu0 0.0
  %6830 = vmatpush1.msra.mxu0 0.0
  %6831 = vmatprep.subr.mxu0 0.0
  %6832 = vmatpush1.msra.mxu0 0.0
  %6833 = vmatprep.subr.mxu0 0.0
  %6834 = vmatpush1.msra.mxu0 0.0
  %6835 = vmatprep.subr.mxu0 0.0
  %6836 = vmatpush1.msra.mxu0 0.0
  %6837 = vmatprep.subr.mxu0 0.0
  %6838 = vmatpush1.msra.mxu0 0.0
  %6839 = vmatprep.subr.mxu0 0.0
  %6840 = vmatpush1.msra.mxu0 0.0
  %6841 = vmatprep.subr.mxu0 0.0
  %6842 = vmatpush1.msra.mxu0 0.0
  %6843 = vmatprep.subr.mxu0 0.0
  %6844 = vmatpush1.msra.mxu0 0.0
  %6845 = vmatprep.subr.mxu0 0.0
  %6846 = vmatpush1.msra.mxu0 0.0
  %6847 = vmatprep.subr.mxu0 0.0
  %6848 = vmatpush1.msra.mxu0 0.0
  %6849 = vmatprep.subr.mxu0 0.0
  %6850 = vmatpush1.msra.mxu0 0.0
  %6851 = vmatprep.subr.mxu0 0.0
  %6852 = vmatpush1.msra.mxu0 0.0
  %6853 = vmatprep.mubr.f32.mxu0 0.0
  %6854 = vmatmul.mubr.f32.gmra.mrb[0].mxu0 %v6778
  %v6855 = vpop.f32.mrb[0].mxu0
  %v6856 = vadd.f32 0.0, %v6855
  %v6857 = vpop.f32.mrb[0].mxu0
  %6858 = vmatprep.mubr.f32.mxu0 0.0
  %6859 = vmatmul.mubr.f32.gmra.mrb[0].mxu0 %v6781
  %v6860 = vpop.f32.mrb[0].mxu0
  %v6861 = vadd.f32 0.0, %v6860
  %v6862 = vpop.f32.mrb[0].mxu0
  %6863 = vmatprep.mubr.f32.mxu0 0.0
  %6864 = vmatmul.mubr.f32.gmra.mrb[0].mxu0 %v6784
  %v6865 = vpop.f32.mrb[0].mxu0
  %v6866 = vadd.f32 0.0, %v6865
  %v6867 = vpop.f32.mrb[0].mxu0
  %6868 = vmatprep.mubr.f32.mxu0 0.0
  %6869 = vmatmul.mubr.f32.gmra.mrb[0].mxu0 %v6787
  %v6870 = vpop.f32.mrb[0].mxu0
  %v6871 = vadd.f32 0.0, %v6870
  %v6872 = vpop.f32.mrb[0].mxu0
  %6873 = vdwg.mxu0
  %s6874 = scalar_lea.vmem %s10, 32
  %v6875 = vld [vmem:[%s6874] sm:$0xff]
  %v6877 = vsel %vm5832, %v6856, 0
  %v6880 = vsel %vm5832, %v6861, 0
  %v6883 = vsel %vm5832, %v6866, 0
  %v6886 = vsel %vm5832, %v6871, 0
  %6888 = vmatprep.subr.mxu0 0.0
  %6889 = vmatpush1.msra.mxu0 %v6875
  %6890 = vmatprep.subr.mxu0 0.0
  %6891 = vmatpush1.msra.mxu0 0.0
  %6892 = vmatprep.subr.mxu0 0.0
  %6893 = vmatpush1.msra.mxu0 0.0
  %6894 = vmatprep.subr.mxu0 0.0
  %6895 = vmatpush1.msra.mxu0 0.0
  %6896 = vmatprep.subr.mxu0 0.0
  %6897 = vmatpush1.msra.mxu0 0.0
  %6898 = vmatprep.subr.mxu0 0.0
  %6899 = vmatpush1.msra.mxu0 0.0
  %6900 = vmatprep.subr.mxu0 0.0
  %6901 = vmatpush1.msra.mxu0 0.0
  %6902 = vmatprep.subr.mxu0 0.0
  %6903 = vmatpush1.msra.mxu0 0.0
  %6904 = vmatprep.subr.mxu0 0.0
  %6905 = vmatpush1.msra.mxu0 0.0
  %6906 = vmatprep.subr.mxu0 0.0
  %6907 = vmatpush1.msra.mxu0 0.0
  %6908 = vmatprep.subr.mxu0 0.0
  %6909 = vmatpush1.msra.mxu0 0.0
  %6910 = vmatprep.subr.mxu0 0.0
  %6911 = vmatpush1.msra.mxu0 0.0
  %6912 = vmatprep.subr.mxu0 0.0
  %6913 = vmatpush1.msra.mxu0 0.0
  %6914 = vmatprep.subr.mxu0 0.0
  %6915 = vmatpush1.msra.mxu0 0.0
  %6916 = vmatprep.subr.mxu0 0.0
  %6917 = vmatpush1.msra.mxu0 0.0
  %6918 = vmatprep.subr.mxu0 0.0
  %6919 = vmatpush1.msra.mxu0 0.0
  %6920 = vmatprep.subr.mxu0 0.0
  %6921 = vmatpush1.msra.mxu0 0.0
  %6922 = vmatprep.subr.mxu0 0.0
  %6923 = vmatpush1.msra.mxu0 0.0
  %6924 = vmatprep.subr.mxu0 0.0
  %6925 = vmatpush1.msra.mxu0 0.0
  %6926 = vmatprep.subr.mxu0 0.0
  %6927 = vmatpush1.msra.mxu0 0.0
  %6928 = vmatprep.subr.mxu0 0.0
  %6929 = vmatpush1.msra.mxu0 0.0
  %6930 = vmatprep.subr.mxu0 0.0
  %6931 = vmatpush1.msra.mxu0 0.0
  %6932 = vmatprep.subr.mxu0 0.0
  %6933 = vmatpush1.msra.mxu0 0.0
  %6934 = vmatprep.subr.mxu0 0.0
  %6935 = vmatpush1.msra.mxu0 0.0
  %6936 = vmatprep.subr.mxu0 0.0
  %6937 = vmatpush1.msra.mxu0 0.0
  %6938 = vmatprep.subr.mxu0 0.0
  %6939 = vmatpush1.msra.mxu0 0.0
  %6940 = vmatprep.subr.mxu0 0.0
  %6941 = vmatpush1.msra.mxu0 0.0
  %6942 = vmatprep.subr.mxu0 0.0
  %6943 = vmatpush1.msra.mxu0 0.0
  %6944 = vmatprep.subr.mxu0 0.0
  %6945 = vmatpush1.msra.mxu0 0.0
  %6946 = vmatprep.subr.mxu0 0.0
  %6947 = vmatpush1.msra.mxu0 0.0
  %6948 = vmatprep.subr.mxu0 0.0
  %6949 = vmatpush1.msra.mxu0 0.0
  %6950 = vmatprep.subr.mxu0 0.0
  %6951 = vmatpush1.msra.mxu0 0.0
  %6952 = vmatprep.mubr.f32.mxu0 0.0
  %6953 = vmatmul.mubr.f32.gmra.mrb[0].mxu0 %v6877
  %v6954 = vpop.f32.mrb[0].mxu0
  %v6955 = vadd.f32 0.0, %v6954
  %v6956 = vpop.f32.mrb[0].mxu0
  %6957 = vmatprep.mubr.f32.mxu0 0.0
  %6958 = vmatmul.mubr.f32.gmra.mrb[0].mxu0 %v6880
  %v6959 = vpop.f32.mrb[0].mxu0
  %v6960 = vadd.f32 0.0, %v6959
  %v6961 = vpop.f32.mrb[0].mxu0
  %6962 = vmatprep.mubr.f32.mxu0 0.0
  %6963 = vmatmul.mubr.f32.gmra.mrb[0].mxu0 %v6883
  %v6964 = vpop.f32.mrb[0].mxu0
  %v6965 = vadd.f32 0.0, %v6964
  %v6966 = vpop.f32.mrb[0].mxu0
  %6967 = vmatprep.mubr.f32.mxu0 0.0
  %6968 = vmatmul.mubr.f32.gmra.mrb[0].mxu0 %v6886
  %v6969 = vpop.f32.mrb[0].mxu0
  %v6970 = vadd.f32 0.0, %v6969
  %v6971 = vpop.f32.mrb[0].mxu0
  %6972 = vdwg.mxu0
  %v6973 = vadd.f32 %v6768, %v6955
  %v6974 = vadd.f32 %v6769, %v6960
  %v6975 = vadd.f32 %v6770, %v6965
  %v6976 = vadd.f32 %v6771, %v6970
  %s6977 = scalar_lea.vmem %s9, 160
  %v6978 = vld [vmem:[%s6977] sm:$0xff]
  %v6979 = vld [vmem:[%s6977 + $0x8] sm:$0xff]
  %v6980 = vld [vmem:[%s6977 + $0x10] sm:$0xff]
  %v6981 = vld [vmem:[%s6977 + $0x18] sm:$0xff]
  %v6983 = vsel %vm124, %v6978, 0
  %v6986 = vsel %vm124, %v6979, 0
  %v6989 = vsel %vm124, %v6980, 0
  %v6992 = vsel %vm124, %v6981, 0
  %6994 = vmatprep.subr.mxu0 0.0
  %6995 = vmatpush1.msra.mxu0 %v5953
  %6996 = vmatprep.subr.mxu0 0.0
  %6997 = vmatpush1.msra.mxu0 %v5954
  %6998 = vmatprep.subr.mxu0 0.0
  %6999 = vmatpush1.msra.mxu0 %v5955
  %7000 = vmatprep.subr.mxu0 0.0
  %7001 = vmatpush1.msra.mxu0 %v5956
  %7002 = vmatprep.subr.mxu0 0.0
  %7003 = vmatpush1.msra.mxu0 %v5957
  %7004 = vmatprep.subr.mxu0 0.0
  %7005 = vmatpush1.msra.mxu0 %v5958
  %7006 = vmatprep.subr.mxu0 0.0
  %7007 = vmatpush1.msra.mxu0 %v5959
  %7008 = vmatprep.subr.mxu0 0.0
  %7009 = vmatpush1.msra.mxu0 %v5960
  %7010 = vmatprep.subr.mxu0 0.0
  %7011 = vmatpush1.msra.mxu0 %v5961
  %7012 = vmatprep.subr.mxu0 0.0
  %7013 = vmatpush1.msra.mxu0 0.0
  %7014 = vmatprep.subr.mxu0 0.0
  %7015 = vmatpush1.msra.mxu0 0.0
  %7016 = vmatprep.subr.mxu0 0.0
  %7017 = vmatpush1.msra.mxu0 0.0
  %7018 = vmatprep.subr.mxu0 0.0
  %7019 = vmatpush1.msra.mxu0 0.0
  %7020 = vmatprep.subr.mxu0 0.0
  %7021 = vmatpush1.msra.mxu0 0.0
  %7022 = vmatprep.subr.mxu0 0.0
  %7023 = vmatpush1.msra.mxu0 0.0
  %7024 = vmatprep.subr.mxu0 0.0
  %7025 = vmatpush1.msra.mxu0 0.0
  %7026 = vmatprep.subr.mxu0 0.0
  %7027 = vmatpush1.msra.mxu0 0.0
  %7028 = vmatprep.subr.mxu0 0.0
  %7029 = vmatpush1.msra.mxu0 0.0
  %7030 = vmatprep.subr.mxu0 0.0
  %7031 = vmatpush1.msra.mxu0 0.0
  %7032 = vmatprep.subr.mxu0 0.0
  %7033 = vmatpush1.msra.mxu0 0.0
  %7034 = vmatprep.subr.mxu0 0.0
  %7035 = vmatpush1.msra.mxu0 0.0
  %7036 = vmatprep.subr.mxu0 0.0
  %7037 = vmatpush1.msra.mxu0 0.0
  %7038 = vmatprep.subr.mxu0 0.0
  %7039 = vmatpush1.msra.mxu0 0.0
  %7040 = vmatprep.subr.mxu0 0.0
  %7041 = vmatpush1.msra.mxu0 0.0
  %7042 = vmatprep.subr.mxu0 0.0
  %7043 = vmatpush1.msra.mxu0 0.0
  %7044 = vmatprep.subr.mxu0 0.0
  %7045 = vmatpush1.msra.mxu0 0.0
  %7046 = vmatprep.subr.mxu0 0.0
  %7047 = vmatpush1.msra.mxu0 0.0
  %7048 = vmatprep.subr.mxu0 0.0
  %7049 = vmatpush1.msra.mxu0 0.0
  %7050 = vmatprep.subr.mxu0 0.0
  %7051 = vmatpush1.msra.mxu0 0.0
  %7052 = vmatprep.subr.mxu0 0.0
  %7053 = vmatpush1.msra.mxu0 0.0
  %7054 = vmatprep.subr.mxu0 0.0
  %7055 = vmatpush1.msra.mxu0 0.0
  %7056 = vmatprep.subr.mxu0 0.0
  %7057 = vmatpush1.msra.mxu0 0.0
  %7058 = vmatprep.mubr.f32.mxu0 0.0
  %7059 = vmatmul.mubr.f32.gmra.mrb[0].mxu0 %v6983
  %v7060 = vpop.f32.mrb[0].mxu0
  %v7061 = vadd.f32 0.0, %v7060
  %v7062 = vpop.f32.mrb[0].mxu0
  %7063 = vmatprep.mubr.f32.mxu0 0.0
  %7064 = vmatmul.mubr.f32.gmra.mrb[0].mxu0 %v6986
  %v7065 = vpop.f32.mrb[0].mxu0
  %v7066 = vadd.f32 0.0, %v7065
  %v7067 = vpop.f32.mrb[0].mxu0
  %7068 = vmatprep.mubr.f32.mxu0 0.0
  %7069 = vmatmul.mubr.f32.gmra.mrb[0].mxu0 %v6989
  %v7070 = vpop.f32.mrb[0].mxu0
  %v7071 = vadd.f32 0.0, %v7070
  %v7072 = vpop.f32.mrb[0].mxu0
  %7073 = vmatprep.mubr.f32.mxu0 0.0
  %7074 = vmatmul.mubr.f32.gmra.mrb[0].mxu0 %v6992
  %v7075 = vpop.f32.mrb[0].mxu0
  %v7076 = vadd.f32 0.0, %v7075
  %v7077 = vpop.f32.mrb[0].mxu0
  %7078 = vdwg.mxu0
  %s7079 = scalar_lea.vmem %s10, 40
  %v7080 = vld [vmem:[%s7079] sm:$0xff]
  %v7082 = vsel %vm5832, %v7061, 0
  %v7085 = vsel %vm5832, %v7066, 0
  %v7088 = vsel %vm5832, %v7071, 0
  %v7091 = vsel %vm5832, %v7076, 0
  %7093 = vmatprep.subr.mxu0 0.0
  %7094 = vmatpush1.msra.mxu0 %v7080
  %7095 = vmatprep.subr.mxu0 0.0
  %7096 = vmatpush1.msra.mxu0 0.0
  %7097 = vmatprep.subr.mxu0 0.0
  %7098 = vmatpush1.msra.mxu0 0.0
  %7099 = vmatprep.subr.mxu0 0.0
  %7100 = vmatpush1.msra.mxu0 0.0
  %7101 = vmatprep.subr.mxu0 0.0
  %7102 = vmatpush1.msra.mxu0 0.0
  %7103 = vmatprep.subr.mxu0 0.0
  %7104 = vmatpush1.msra.mxu0 0.0
  %7105 = vmatprep.subr.mxu0 0.0
  %7106 = vmatpush1.msra.mxu0 0.0
  %7107 = vmatprep.subr.mxu0 0.0
  %7108 = vmatpush1.msra.mxu0 0.0
  %7109 = vmatprep.subr.mxu0 0.0
  %7110 = vmatpush1.msra.mxu0 0.0
  %7111 = vmatprep.subr.mxu0 0.0
  %7112 = vmatpush1.msra.mxu0 0.0
  %7113 = vmatprep.subr.mxu0 0.0
  %7114 = vmatpush1.msra.mxu0 0.0
  %7115 = vmatprep.subr.mxu0 0.0
  %7116 = vmatpush1.msra.mxu0 0.0
  %7117 = vmatprep.subr.mxu0 0.0
  %7118 = vmatpush1.msra.mxu0 0.0
  %7119 = vmatprep.subr.mxu0 0.0
  %7120 = vmatpush1.msra.mxu0 0.0
  %7121 = vmatprep.subr.mxu0 0.0
  %7122 = vmatpush1.msra.mxu0 0.0
  %7123 = vmatprep.subr.mxu0 0.0
  %7124 = vmatpush1.msra.mxu0 0.0
  %7125 = vmatprep.subr.mxu0 0.0
  %7126 = vmatpush1.msra.mxu0 0.0
  %7127 = vmatprep.subr.mxu0 0.0
  %7128 = vmatpush1.msra.mxu0 0.0
  %7129 = vmatprep.subr.mxu0 0.0
  %7130 = vmatpush1.msra.mxu0 0.0
  %7131 = vmatprep.subr.mxu0 0.0
  %7132 = vmatpush1.msra.mxu0 0.0
  %7133 = vmatprep.subr.mxu0 0.0
  %7134 = vmatpush1.msra.mxu0 0.0
  %7135 = vmatprep.subr.mxu0 0.0
  %7136 = vmatpush1.msra.mxu0 0.0
  %7137 = vmatprep.subr.mxu0 0.0
  %7138 = vmatpush1.msra.mxu0 0.0
  %7139 = vmatprep.subr.mxu0 0.0
  %7140 = vmatpush1.msra.mxu0 0.0
  %7141 = vmatprep.subr.mxu0 0.0
  %7142 = vmatpush1.msra.mxu0 0.0
  %7143 = vmatprep.subr.mxu0 0.0
  %7144 = vmatpush1.msra.mxu0 0.0
  %7145 = vmatprep.subr.mxu0 0.0
  %7146 = vmatpush1.msra.mxu0 0.0
  %7147 = vmatprep.subr.mxu0 0.0
  %7148 = vmatpush1.msra.mxu0 0.0
  %7149 = vmatprep.subr.mxu0 0.0
  %7150 = vmatpush1.msra.mxu0 0.0
  %7151 = vmatprep.subr.mxu0 0.0
  %7152 = vmatpush1.msra.mxu0 0.0
  %7153 = vmatprep.subr.mxu0 0.0
  %7154 = vmatpush1.msra.mxu0 0.0
  %7155 = vmatprep.subr.mxu0 0.0
  %7156 = vmatpush1.msra.mxu0 0.0
  %7157 = vmatprep.mubr.f32.mxu0 0.0
  %7158 = vmatmul.mubr.f32.gmra.mrb[0].mxu0 %v7082
  %v7159 = vpop.f32.mrb[0].mxu0
  %v7160 = vadd.f32 0.0, %v7159
  %v7161 = vpop.f32.mrb[0].mxu0
  %7162 = vmatprep.mubr.f32.mxu0 0.0
  %7163 = vmatmul.mubr.f32.gmra.mrb[0].mxu0 %v7085
  %v7164 = vpop.f32.mrb[0].mxu0
  %v7165 = vadd.f32 0.0, %v7164
  %v7166 = vpop.f32.mrb[0].mxu0
  %7167 = vmatprep.mubr.f32.mxu0 0.0
  %7168 = vmatmul.mubr.f32.gmra.mrb[0].mxu0 %v7088
  %v7169 = vpop.f32.mrb[0].mxu0
  %v7170 = vadd.f32 0.0, %v7169
  %v7171 = vpop.f32.mrb[0].mxu0
  %7172 = vmatprep.mubr.f32.mxu0 0.0
  %7173 = vmatmul.mubr.f32.gmra.mrb[0].mxu0 %v7091
  %v7174 = vpop.f32.mrb[0].mxu0
  %v7175 = vadd.f32 0.0, %v7174
  %v7176 = vpop.f32.mrb[0].mxu0
  %7177 = vdwg.mxu0
  %v7178 = vadd.f32 %v6973, %v7160
  %v7179 = vadd.f32 %v6974, %v7165
  %v7180 = vadd.f32 %v6975, %v7170
  %v7181 = vadd.f32 %v6976, %v7175
  %s7182 = scalar_lea.vmem %s9, 192
  %v7183 = vld [vmem:[%s7182] sm:$0xff]
  %v7184 = vld [vmem:[%s7182 + $0x8] sm:$0xff]
  %v7185 = vld [vmem:[%s7182 + $0x10] sm:$0xff]
  %v7186 = vld [vmem:[%s7182 + $0x18] sm:$0xff]
  %v7188 = vsel %vm124, %v7183, 0
  %v7191 = vsel %vm124, %v7184, 0
  %v7194 = vsel %vm124, %v7185, 0
  %v7197 = vsel %vm124, %v7186, 0
  %7199 = vmatprep.subr.mxu0 0.0
  %7200 = vmatpush1.msra.mxu0 %v5953
  %7201 = vmatprep.subr.mxu0 0.0
  %7202 = vmatpush1.msra.mxu0 %v5954
  %7203 = vmatprep.subr.mxu0 0.0
  %7204 = vmatpush1.msra.mxu0 %v5955
  %7205 = vmatprep.subr.mxu0 0.0
  %7206 = vmatpush1.msra.mxu0 %v5956
  %7207 = vmatprep.subr.mxu0 0.0
  %7208 = vmatpush1.msra.mxu0 %v5957
  %7209 = vmatprep.subr.mxu0 0.0
  %7210 = vmatpush1.msra.mxu0 %v5958
  %7211 = vmatprep.subr.mxu0 0.0
  %7212 = vmatpush1.msra.mxu0 %v5959
  %7213 = vmatprep.subr.mxu0 0.0
  %7214 = vmatpush1.msra.mxu0 %v5960
  %7215 = vmatprep.subr.mxu0 0.0
  %7216 = vmatpush1.msra.mxu0 %v5961
  %7217 = vmatprep.subr.mxu0 0.0
  %7218 = vmatpush1.msra.mxu0 0.0
  %7219 = vmatprep.subr.mxu0 0.0
  %7220 = vmatpush1.msra.mxu0 0.0
  %7221 = vmatprep.subr.mxu0 0.0
  %7222 = vmatpush1.msra.mxu0 0.0
  %7223 = vmatprep.subr.mxu0 0.0
  %7224 = vmatpush1.msra.mxu0 0.0
  %7225 = vmatprep.subr.mxu0 0.0
  %7226 = vmatpush1.msra.mxu0 0.0
  %7227 = vmatprep.subr.mxu0 0.0
  %7228 = vmatpush1.msra.mxu0 0.0
  %7229 = vmatprep.subr.mxu0 0.0
  %7230 = vmatpush1.msra.mxu0 0.0
  %7231 = vmatprep.subr.mxu0 0.0
  %7232 = vmatpush1.msra.mxu0 0.0
  %7233 = vmatprep.subr.mxu0 0.0
  %7234 = vmatpush1.msra.mxu0 0.0
  %7235 = vmatprep.subr.mxu0 0.0
  %7236 = vmatpush1.msra.mxu0 0.0
  %7237 = vmatprep.subr.mxu0 0.0
  %7238 = vmatpush1.msra.mxu0 0.0
  %7239 = vmatprep.subr.mxu0 0.0
  %7240 = vmatpush1.msra.mxu0 0.0
  %7241 = vmatprep.subr.mxu0 0.0
  %7242 = vmatpush1.msra.mxu0 0.0
  %7243 = vmatprep.subr.mxu0 0.0
  %7244 = vmatpush1.msra.mxu0 0.0
  %7245 = vmatprep.subr.mxu0 0.0
  %7246 = vmatpush1.msra.mxu0 0.0
  %7247 = vmatprep.subr.mxu0 0.0
  %7248 = vmatpush1.msra.mxu0 0.0
  %7249 = vmatprep.subr.mxu0 0.0
  %7250 = vmatpush1.msra.mxu0 0.0
  %7251 = vmatprep.subr.mxu0 0.0
  %7252 = vmatpush1.msra.mxu0 0.0
  %7253 = vmatprep.subr.mxu0 0.0
  %7254 = vmatpush1.msra.mxu0 0.0
  %7255 = vmatprep.subr.mxu0 0.0
  %7256 = vmatpush1.msra.mxu0 0.0
  %7257 = vmatprep.subr.mxu0 0.0
  %7258 = vmatpush1.msra.mxu0 0.0
  %7259 = vmatprep.subr.mxu0 0.0
  %7260 = vmatpush1.msra.mxu0 0.0
  %7261 = vmatprep.subr.mxu0 0.0
  %7262 = vmatpush1.msra.mxu0 0.0
  %7263 = vmatprep.mubr.f32.mxu0 0.0
  %7264 = vmatmul.mubr.f32.gmra.mrb[0].mxu0 %v7188
  %v7265 = vpop.f32.mrb[0].mxu0
  %v7266 = vadd.f32 0.0, %v7265
  %v7267 = vpop.f32.mrb[0].mxu0
  %7268 = vmatprep.mubr.f32.mxu0 0.0
  %7269 = vmatmul.mubr.f32.gmra.mrb[0].mxu0 %v7191
  %v7270 = vpop.f32.mrb[0].mxu0
  %v7271 = vadd.f32 0.0, %v7270
  %v7272 = vpop.f32.mrb[0].mxu0
  %7273 = vmatprep.mubr.f32.mxu0 0.0
  %7274 = vmatmul.mubr.f32.gmra.mrb[0].mxu0 %v7194
  %v7275 = vpop.f32.mrb[0].mxu0
  %v7276 = vadd.f32 0.0, %v7275
  %v7277 = vpop.f32.mrb[0].mxu0
  %7278 = vmatprep.mubr.f32.mxu0 0.0
  %7279 = vmatmul.mubr.f32.gmra.mrb[0].mxu0 %v7197
  %v7280 = vpop.f32.mrb[0].mxu0
  %v7281 = vadd.f32 0.0, %v7280
  %v7282 = vpop.f32.mrb[0].mxu0
  %7283 = vdwg.mxu0
  %s7284 = scalar_lea.vmem %s10, 48
  %v7285 = vld [vmem:[%s7284] sm:$0xff]
  %v7287 = vsel %vm5832, %v7266, 0
  %v7290 = vsel %vm5832, %v7271, 0
  %v7293 = vsel %vm5832, %v7276, 0
  %v7296 = vsel %vm5832, %v7281, 0
  %7298 = vmatprep.subr.mxu0 0.0
  %7299 = vmatpush1.msra.mxu0 %v7285
  %7300 = vmatprep.subr.mxu0 0.0
  %7301 = vmatpush1.msra.mxu0 0.0
  %7302 = vmatprep.subr.mxu0 0.0
  %7303 = vmatpush1.msra.mxu0 0.0
  %7304 = vmatprep.subr.mxu0 0.0
  %7305 = vmatpush1.msra.mxu0 0.0
  %7306 = vmatprep.subr.mxu0 0.0
  %7307 = vmatpush1.msra.mxu0 0.0
  %7308 = vmatprep.subr.mxu0 0.0
  %7309 = vmatpush1.msra.mxu0 0.0
  %7310 = vmatprep.subr.mxu0 0.0
  %7311 = vmatpush1.msra.mxu0 0.0
  %7312 = vmatprep.subr.mxu0 0.0
  %7313 = vmatpush1.msra.mxu0 0.0
  %7314 = vmatprep.subr.mxu0 0.0
  %7315 = vmatpush1.msra.mxu0 0.0
  %7316 = vmatprep.subr.mxu0 0.0
  %7317 = vmatpush1.msra.mxu0 0.0
  %7318 = vmatprep.subr.mxu0 0.0
  %7319 = vmatpush1.msra.mxu0 0.0
  %7320 = vmatprep.subr.mxu0 0.0
  %7321 = vmatpush1.msra.mxu0 0.0
  %7322 = vmatprep.subr.mxu0 0.0
  %7323 = vmatpush1.msra.mxu0 0.0
  %7324 = vmatprep.subr.mxu0 0.0
  %7325 = vmatpush1.msra.mxu0 0.0
  %7326 = vmatprep.subr.mxu0 0.0
  %7327 = vmatpush1.msra.mxu0 0.0
  %7328 = vmatprep.subr.mxu0 0.0
  %7329 = vmatpush1.msra.mxu0 0.0
  %7330 = vmatprep.subr.mxu0 0.0
  %7331 = vmatpush1.msra.mxu0 0.0
  %7332 = vmatprep.subr.mxu0 0.0
  %7333 = vmatpush1.msra.mxu0 0.0
  %7334 = vmatprep.subr.mxu0 0.0
  %7335 = vmatpush1.msra.mxu0 0.0
  %7336 = vmatprep.subr.mxu0 0.0
  %7337 = vmatpush1.msra.mxu0 0.0
  %7338 = vmatprep.subr.mxu0 0.0
  %7339 = vmatpush1.msra.mxu0 0.0
  %7340 = vmatprep.subr.mxu0 0.0
  %7341 = vmatpush1.msra.mxu0 0.0
  %7342 = vmatprep.subr.mxu0 0.0
  %7343 = vmatpush1.msra.mxu0 0.0
  %7344 = vmatprep.subr.mxu0 0.0
  %7345 = vmatpush1.msra.mxu0 0.0
  %7346 = vmatprep.subr.mxu0 0.0
  %7347 = vmatpush1.msra.mxu0 0.0
  %7348 = vmatprep.subr.mxu0 0.0
  %7349 = vmatpush1.msra.mxu0 0.0
  %7350 = vmatprep.subr.mxu0 0.0
  %7351 = vmatpush1.msra.mxu0 0.0
  %7352 = vmatprep.subr.mxu0 0.0
  %7353 = vmatpush1.msra.mxu0 0.0
  %7354 = vmatprep.subr.mxu0 0.0
  %7355 = vmatpush1.msra.mxu0 0.0
  %7356 = vmatprep.subr.mxu0 0.0
  %7357 = vmatpush1.msra.mxu0 0.0
  %7358 = vmatprep.subr.mxu0 0.0
  %7359 = vmatpush1.msra.mxu0 0.0
  %7360 = vmatprep.subr.mxu0 0.0
  %7361 = vmatpush1.msra.mxu0 0.0
  %7362 = vmatprep.mubr.f32.mxu0 0.0
  %7363 = vmatmul.mubr.f32.gmra.mrb[0].mxu0 %v7287
  %v7364 = vpop.f32.mrb[0].mxu0
  %v7365 = vadd.f32 0.0, %v7364
  %v7366 = vpop.f32.mrb[0].mxu0
  %7367 = vmatprep.mubr.f32.mxu0 0.0
  %7368 = vmatmul.mubr.f32.gmra.mrb[0].mxu0 %v7290
  %v7369 = vpop.f32.mrb[0].mxu0
  %v7370 = vadd.f32 0.0, %v7369
  %v7371 = vpop.f32.mrb[0].mxu0
  %7372 = vmatprep.mubr.f32.mxu0 0.0
  %7373 = vmatmul.mubr.f32.gmra.mrb[0].mxu0 %v7293
  %v7374 = vpop.f32.mrb[0].mxu0
  %v7375 = vadd.f32 0.0, %v7374
  %v7376 = vpop.f32.mrb[0].mxu0
  %7377 = vmatprep.mubr.f32.mxu0 0.0
  %7378 = vmatmul.mubr.f32.gmra.mrb[0].mxu0 %v7296
  %v7379 = vpop.f32.mrb[0].mxu0
  %v7380 = vadd.f32 0.0, %v7379
  %v7381 = vpop.f32.mrb[0].mxu0
  %7382 = vdwg.mxu0
  %v7383 = vadd.f32 %v7178, %v7365
  %v7384 = vadd.f32 %v7179, %v7370
  %v7385 = vadd.f32 %v7180, %v7375
  %v7386 = vadd.f32 %v7181, %v7380
  %s7387 = scalar_lea.vmem %s9, 224
  %v7388 = vld [vmem:[%s7387] sm:$0xff]
  %v7389 = vld [vmem:[%s7387 + $0x8] sm:$0xff]
  %v7390 = vld [vmem:[%s7387 + $0x10] sm:$0xff]
  %v7391 = vld [vmem:[%s7387 + $0x18] sm:$0xff]
  %v7393 = vsel %vm124, %v7388, 0
  %v7396 = vsel %vm124, %v7389, 0
  %v7399 = vsel %vm124, %v7390, 0
  %v7402 = vsel %vm124, %v7391, 0
  %7404 = vmatprep.subr.mxu0 0.0
  %7405 = vmatpush1.msra.mxu0 %v5953
  %7406 = vmatprep.subr.mxu0 0.0
  %7407 = vmatpush1.msra.mxu0 %v5954
  %7408 = vmatprep.subr.mxu0 0.0
  %7409 = vmatpush1.msra.mxu0 %v5955
  %7410 = vmatprep.subr.mxu0 0.0
  %7411 = vmatpush1.msra.mxu0 %v5956
  %7412 = vmatprep.subr.mxu0 0.0
  %7413 = vmatpush1.msra.mxu0 %v5957
  %7414 = vmatprep.subr.mxu0 0.0
  %7415 = vmatpush1.msra.mxu0 %v5958
  %7416 = vmatprep.subr.mxu0 0.0
  %7417 = vmatpush1.msra.mxu0 %v5959
  %7418 = vmatprep.subr.mxu0 0.0
  %7419 = vmatpush1.msra.mxu0 %v5960
  %7420 = vmatprep.subr.mxu0 0.0
  %7421 = vmatpush1.msra.mxu0 %v5961
  %7422 = vmatprep.subr.mxu0 0.0
  %7423 = vmatpush1.msra.mxu0 0.0
  %7424 = vmatprep.subr.mxu0 0.0
  %7425 = vmatpush1.msra.mxu0 0.0
  %7426 = vmatprep.subr.mxu0 0.0
  %7427 = vmatpush1.msra.mxu0 0.0
  %7428 = vmatprep.subr.mxu0 0.0
  %7429 = vmatpush1.msra.mxu0 0.0
  %7430 = vmatprep.subr.mxu0 0.0
  %7431 = vmatpush1.msra.mxu0 0.0
  %7432 = vmatprep.subr.mxu0 0.0
  %7433 = vmatpush1.msra.mxu0 0.0
  %7434 = vmatprep.subr.mxu0 0.0
  %7435 = vmatpush1.msra.mxu0 0.0
  %7436 = vmatprep.subr.mxu0 0.0
  %7437 = vmatpush1.msra.mxu0 0.0
  %7438 = vmatprep.subr.mxu0 0.0
  %7439 = vmatpush1.msra.mxu0 0.0
  %7440 = vmatprep.subr.mxu0 0.0
  %7441 = vmatpush1.msra.mxu0 0.0
  %7442 = vmatprep.subr.mxu0 0.0
  %7443 = vmatpush1.msra.mxu0 0.0
  %7444 = vmatprep.subr.mxu0 0.0
  %7445 = vmatpush1.msra.mxu0 0.0
  %7446 = vmatprep.subr.mxu0 0.0
  %7447 = vmatpush1.msra.mxu0 0.0
  %7448 = vmatprep.subr.mxu0 0.0
  %7449 = vmatpush1.msra.mxu0 0.0
  %7450 = vmatprep.subr.mxu0 0.0
  %7451 = vmatpush1.msra.mxu0 0.0
  %7452 = vmatprep.subr.mxu0 0.0
  %7453 = vmatpush1.msra.mxu0 0.0
  %7454 = vmatprep.subr.mxu0 0.0
  %7455 = vmatpush1.msra.mxu0 0.0
  %7456 = vmatprep.subr.mxu0 0.0
  %7457 = vmatpush1.msra.mxu0 0.0
  %7458 = vmatprep.subr.mxu0 0.0
  %7459 = vmatpush1.msra.mxu0 0.0
  %7460 = vmatprep.subr.mxu0 0.0
  %7461 = vmatpush1.msra.mxu0 0.0
  %7462 = vmatprep.subr.mxu0 0.0
  %7463 = vmatpush1.msra.mxu0 0.0
  %7464 = vmatprep.subr.mxu0 0.0
  %7465 = vmatpush1.msra.mxu0 0.0
  %7466 = vmatprep.subr.mxu0 0.0
  %7467 = vmatpush1.msra.mxu0 0.0
  %7468 = vmatprep.mubr.f32.mxu0 0.0
  %7469 = vmatmul.mubr.f32.gmra.mrb[0].mxu0 %v7393
  %v7470 = vpop.f32.mrb[0].mxu0
  %v7471 = vadd.f32 0.0, %v7470
  %v7472 = vpop.f32.mrb[0].mxu0
  %7473 = vmatprep.mubr.f32.mxu0 0.0
  %7474 = vmatmul.mubr.f32.gmra.mrb[0].mxu0 %v7396
  %v7475 = vpop.f32.mrb[0].mxu0
  %v7476 = vadd.f32 0.0, %v7475
  %v7477 = vpop.f32.mrb[0].mxu0
  %7478 = vmatprep.mubr.f32.mxu0 0.0
  %7479 = vmatmul.mubr.f32.gmra.mrb[0].mxu0 %v7399
  %v7480 = vpop.f32.mrb[0].mxu0
  %v7481 = vadd.f32 0.0, %v7480
  %v7482 = vpop.f32.mrb[0].mxu0
  %7483 = vmatprep.mubr.f32.mxu0 0.0
  %7484 = vmatmul.mubr.f32.gmra.mrb[0].mxu0 %v7402
  %v7485 = vpop.f32.mrb[0].mxu0
  %v7486 = vadd.f32 0.0, %v7485
  %v7487 = vpop.f32.mrb[0].mxu0
  %7488 = vdwg.mxu0
  %s7489 = scalar_lea.vmem %s10, 56
  %v7490 = vld [vmem:[%s7489] sm:$0xff]
  %v7492 = vsel %vm5832, %v7471, 0
  %v7495 = vsel %vm5832, %v7476, 0
  %v7498 = vsel %vm5832, %v7481, 0
  %v7501 = vsel %vm5832, %v7486, 0
  %7503 = vmatprep.subr.mxu0 0.0
  %7504 = vmatpush1.msra.mxu0 %v7490
  %7505 = vmatprep.subr.mxu0 0.0
  %7506 = vmatpush1.msra.mxu0 0.0
  %7507 = vmatprep.subr.mxu0 0.0
  %7508 = vmatpush1.msra.mxu0 0.0
  %7509 = vmatprep.subr.mxu0 0.0
  %7510 = vmatpush1.msra.mxu0 0.0
  %7511 = vmatprep.subr.mxu0 0.0
  %7512 = vmatpush1.msra.mxu0 0.0
  %7513 = vmatprep.subr.mxu0 0.0
  %7514 = vmatpush1.msra.mxu0 0.0
  %7515 = vmatprep.subr.mxu0 0.0
  %7516 = vmatpush1.msra.mxu0 0.0
  %7517 = vmatprep.subr.mxu0 0.0
  %7518 = vmatpush1.msra.mxu0 0.0
  %7519 = vmatprep.subr.mxu0 0.0
  %7520 = vmatpush1.msra.mxu0 0.0
  %7521 = vmatprep.subr.mxu0 0.0
  %7522 = vmatpush1.msra.mxu0 0.0
  %7523 = vmatprep.subr.mxu0 0.0
  %7524 = vmatpush1.msra.mxu0 0.0
  %7525 = vmatprep.subr.mxu0 0.0
  %7526 = vmatpush1.msra.mxu0 0.0
  %7527 = vmatprep.subr.mxu0 0.0
  %7528 = vmatpush1.msra.mxu0 0.0
  %7529 = vmatprep.subr.mxu0 0.0
  %7530 = vmatpush1.msra.mxu0 0.0
  %7531 = vmatprep.subr.mxu0 0.0
  %7532 = vmatpush1.msra.mxu0 0.0
  %7533 = vmatprep.subr.mxu0 0.0
  %7534 = vmatpush1.msra.mxu0 0.0
  %7535 = vmatprep.subr.mxu0 0.0
  %7536 = vmatpush1.msra.mxu0 0.0
  %7537 = vmatprep.subr.mxu0 0.0
  %7538 = vmatpush1.msra.mxu0 0.0
  %7539 = vmatprep.subr.mxu0 0.0
  %7540 = vmatpush1.msra.mxu0 0.0
  %7541 = vmatprep.subr.mxu0 0.0
  %7542 = vmatpush1.msra.mxu0 0.0
  %7543 = vmatprep.subr.mxu0 0.0
  %7544 = vmatpush1.msra.mxu0 0.0
  %7545 = vmatprep.subr.mxu0 0.0
  %7546 = vmatpush1.msra.mxu0 0.0
  %7547 = vmatprep.subr.mxu0 0.0
  %7548 = vmatpush1.msra.mxu0 0.0
  %7549 = vmatprep.subr.mxu0 0.0
  %7550 = vmatpush1.msra.mxu0 0.0
  %7551 = vmatprep.subr.mxu0 0.0
  %7552 = vmatpush1.msra.mxu0 0.0
  %7553 = vmatprep.subr.mxu0 0.0
  %7554 = vmatpush1.msra.mxu0 0.0
  %7555 = vmatprep.subr.mxu0 0.0
  %7556 = vmatpush1.msra.mxu0 0.0
  %7557 = vmatprep.subr.mxu0 0.0
  %7558 = vmatpush1.msra.mxu0 0.0
  %7559 = vmatprep.subr.mxu0 0.0
  %7560 = vmatpush1.msra.mxu0 0.0
  %7561 = vmatprep.subr.mxu0 0.0
  %7562 = vmatpush1.msra.mxu0 0.0
  %7563 = vmatprep.subr.mxu0 0.0
  %7564 = vmatpush1.msra.mxu0 0.0
  %7565 = vmatprep.subr.mxu0 0.0
  %7566 = vmatpush1.msra.mxu0 0.0
  %7567 = vmatprep.mubr.f32.mxu0 0.0
  %7568 = vmatmul.mubr.f32.gmra.mrb[0].mxu0 %v7492
  %v7569 = vpop.f32.mrb[0].mxu0
  %v7570 = vadd.f32 0.0, %v7569
  %v7571 = vpop.f32.mrb[0].mxu0
  %7572 = vmatprep.mubr.f32.mxu0 0.0
  %7573 = vmatmul.mubr.f32.gmra.mrb[0].mxu0 %v7495
  %v7574 = vpop.f32.mrb[0].mxu0
  %v7575 = vadd.f32 0.0, %v7574
  %v7576 = vpop.f32.mrb[0].mxu0
  %7577 = vmatprep.mubr.f32.mxu0 0.0
  %7578 = vmatmul.mubr.f32.gmra.mrb[0].mxu0 %v7498
  %v7579 = vpop.f32.mrb[0].mxu0
  %v7580 = vadd.f32 0.0, %v7579
  %v7581 = vpop.f32.mrb[0].mxu0
  %7582 = vmatprep.mubr.f32.mxu0 0.0
  %7583 = vmatmul.mubr.f32.gmra.mrb[0].mxu0 %v7501
  %v7584 = vpop.f32.mrb[0].mxu0
  %v7585 = vadd.f32 0.0, %v7584
  %v7586 = vpop.f32.mrb[0].mxu0
  %7587 = vdwg.mxu0
  %v7588 = vadd.f32 %v7383, %v7570
  %v7589 = vadd.f32 %v7384, %v7575
  %v7590 = vadd.f32 %v7385, %v7580
  %v7591 = vadd.f32 %v7386, %v7585
  %s7592 = scalar_lea.vmem %s9, 256
  %v7593 = vld [vmem:[%s7592] sm:$0xff]
  %v7594 = vld [vmem:[%s7592 + $0x8] sm:$0xff]
  %v7595 = vld [vmem:[%s7592 + $0x10] sm:$0xff]
  %v7596 = vld [vmem:[%s7592 + $0x18] sm:$0xff]
  %v7598 = vsel %vm124, %v7593, 0
  %v7601 = vsel %vm124, %v7594, 0
  %v7604 = vsel %vm124, %v7595, 0
  %v7607 = vsel %vm124, %v7596, 0
  %7609 = vmatprep.subr.mxu0 0.0
  %7610 = vmatpush1.msra.mxu0 %v5953
  %7611 = vmatprep.subr.mxu0 0.0
  %7612 = vmatpush1.msra.mxu0 %v5954
  %7613 = vmatprep.subr.mxu0 0.0
  %7614 = vmatpush1.msra.mxu0 %v5955
  %7615 = vmatprep.subr.mxu0 0.0
  %7616 = vmatpush1.msra.mxu0 %v5956
  %7617 = vmatprep.subr.mxu0 0.0
  %7618 = vmatpush1.msra.mxu0 %v5957
  %7619 = vmatprep.subr.mxu0 0.0
  %7620 = vmatpush1.msra.mxu0 %v5958
  %7621 = vmatprep.subr.mxu0 0.0
  %7622 = vmatpush1.msra.mxu0 %v5959
  %7623 = vmatprep.subr.mxu0 0.0
  %7624 = vmatpush1.msra.mxu0 %v5960
  %7625 = vmatprep.subr.mxu0 0.0
  %7626 = vmatpush1.msra.mxu0 %v5961
  %7627 = vmatprep.subr.mxu0 0.0
  %7628 = vmatpush1.msra.mxu0 0.0
  %7629 = vmatprep.subr.mxu0 0.0
  %7630 = vmatpush1.msra.mxu0 0.0
  %7631 = vmatprep.subr.mxu0 0.0
  %7632 = vmatpush1.msra.mxu0 0.0
  %7633 = vmatprep.subr.mxu0 0.0
  %7634 = vmatpush1.msra.mxu0 0.0
  %7635 = vmatprep.subr.mxu0 0.0
  %7636 = vmatpush1.msra.mxu0 0.0
  %7637 = vmatprep.subr.mxu0 0.0
  %7638 = vmatpush1.msra.mxu0 0.0
  %7639 = vmatprep.subr.mxu0 0.0
  %7640 = vmatpush1.msra.mxu0 0.0
  %7641 = vmatprep.subr.mxu0 0.0
  %7642 = vmatpush1.msra.mxu0 0.0
  %7643 = vmatprep.subr.mxu0 0.0
  %7644 = vmatpush1.msra.mxu0 0.0
  %7645 = vmatprep.subr.mxu0 0.0
  %7646 = vmatpush1.msra.mxu0 0.0
  %7647 = vmatprep.subr.mxu0 0.0
  %7648 = vmatpush1.msra.mxu0 0.0
  %7649 = vmatprep.subr.mxu0 0.0
  %7650 = vmatpush1.msra.mxu0 0.0
  %7651 = vmatprep.subr.mxu0 0.0
  %7652 = vmatpush1.msra.mxu0 0.0
  %7653 = vmatprep.subr.mxu0 0.0
  %7654 = vmatpush1.msra.mxu0 0.0
  %7655 = vmatprep.subr.mxu0 0.0
  %7656 = vmatpush1.msra.mxu0 0.0
  %7657 = vmatprep.subr.mxu0 0.0
  %7658 = vmatpush1.msra.mxu0 0.0
  %7659 = vmatprep.subr.mxu0 0.0
  %7660 = vmatpush1.msra.mxu0 0.0
  %7661 = vmatprep.subr.mxu0 0.0
  %7662 = vmatpush1.msra.mxu0 0.0
  %7663 = vmatprep.subr.mxu0 0.0
  %7664 = vmatpush1.msra.mxu0 0.0
  %7665 = vmatprep.subr.mxu0 0.0
  %7666 = vmatpush1.msra.mxu0 0.0
  %7667 = vmatprep.subr.mxu0 0.0
  %7668 = vmatpush1.msra.mxu0 0.0
  %7669 = vmatprep.subr.mxu0 0.0
  %7670 = vmatpush1.msra.mxu0 0.0
  %7671 = vmatprep.subr.mxu0 0.0
  %7672 = vmatpush1.msra.mxu0 0.0
  %7673 = vmatprep.mubr.f32.mxu0 0.0
  %7674 = vmatmul.mubr.f32.gmra.mrb[0].mxu0 %v7598
  %v7675 = vpop.f32.mrb[0].mxu0
  %v7676 = vadd.f32 0.0, %v7675
  %v7677 = vpop.f32.mrb[0].mxu0
  %7678 = vmatprep.mubr.f32.mxu0 0.0
  %7679 = vmatmul.mubr.f32.gmra.mrb[0].mxu0 %v7601
  %v7680 = vpop.f32.mrb[0].mxu0
  %v7681 = vadd.f32 0.0, %v7680
  %v7682 = vpop.f32.mrb[0].mxu0
  %7683 = vmatprep.mubr.f32.mxu0 0.0
  %7684 = vmatmul.mubr.f32.gmra.mrb[0].mxu0 %v7604
  %v7685 = vpop.f32.mrb[0].mxu0
  %v7686 = vadd.f32 0.0, %v7685
  %v7687 = vpop.f32.mrb[0].mxu0
  %7688 = vmatprep.mubr.f32.mxu0 0.0
  %7689 = vmatmul.mubr.f32.gmra.mrb[0].mxu0 %v7607
  %v7690 = vpop.f32.mrb[0].mxu0
  %v7691 = vadd.f32 0.0, %v7690
  %v7692 = vpop.f32.mrb[0].mxu0
  %7693 = vdwg.mxu0
  %s7694 = scalar_lea.vmem %s10, 64
  %v7695 = vld [vmem:[%s7694] sm:$0xff]
  %v7697 = vsel %vm5832, %v7676, 0
  %v7700 = vsel %vm5832, %v7681, 0
  %v7703 = vsel %vm5832, %v7686, 0
  %v7706 = vsel %vm5832, %v7691, 0
  %7708 = vmatprep.subr.mxu0 0.0
  %7709 = vmatpush1.msra.mxu0 %v7695
  %7710 = vmatprep.subr.mxu0 0.0
  %7711 = vmatpush1.msra.mxu0 0.0
  %7712 = vmatprep.subr.mxu0 0.0
  %7713 = vmatpush1.msra.mxu0 0.0
  %7714 = vmatprep.subr.mxu0 0.0
  %7715 = vmatpush1.msra.mxu0 0.0
  %7716 = vmatprep.subr.mxu0 0.0
  %7717 = vmatpush1.msra.mxu0 0.0
  %7718 = vmatprep.subr.mxu0 0.0
  %7719 = vmatpush1.msra.mxu0 0.0
  %7720 = vmatprep.subr.mxu0 0.0
  %7721 = vmatpush1.msra.mxu0 0.0
  %7722 = vmatprep.subr.mxu0 0.0
  %7723 = vmatpush1.msra.mxu0 0.0
  %7724 = vmatprep.subr.mxu0 0.0
  %7725 = vmatpush1.msra.mxu0 0.0
  %7726 = vmatprep.subr.mxu0 0.0
  %7727 = vmatpush1.msra.mxu0 0.0
  %7728 = vmatprep.subr.mxu0 0.0
  %7729 = vmatpush1.msra.mxu0 0.0
  %7730 = vmatprep.subr.mxu0 0.0
  %7731 = vmatpush1.msra.mxu0 0.0
  %7732 = vmatprep.subr.mxu0 0.0
  %7733 = vmatpush1.msra.mxu0 0.0
  %7734 = vmatprep.subr.mxu0 0.0
  %7735 = vmatpush1.msra.mxu0 0.0
  %7736 = vmatprep.subr.mxu0 0.0
  %7737 = vmatpush1.msra.mxu0 0.0
  %7738 = vmatprep.subr.mxu0 0.0
  %7739 = vmatpush1.msra.mxu0 0.0
  %7740 = vmatprep.subr.mxu0 0.0
  %7741 = vmatpush1.msra.mxu0 0.0
  %7742 = vmatprep.subr.mxu0 0.0
  %7743 = vmatpush1.msra.mxu0 0.0
  %7744 = vmatprep.subr.mxu0 0.0
  %7745 = vmatpush1.msra.mxu0 0.0
  %7746 = vmatprep.subr.mxu0 0.0
  %7747 = vmatpush1.msra.mxu0 0.0
  %7748 = vmatprep.subr.mxu0 0.0
  %7749 = vmatpush1.msra.mxu0 0.0
  %7750 = vmatprep.subr.mxu0 0.0
  %7751 = vmatpush1.msra.mxu0 0.0
  %7752 = vmatprep.subr.mxu0 0.0
  %7753 = vmatpush1.msra.mxu0 0.0
  %7754 = vmatprep.subr.mxu0 0.0
  %7755 = vmatpush1.msra.mxu0 0.0
  %7756 = vmatprep.subr.mxu0 0.0
  %7757 = vmatpush1.msra.mxu0 0.0
  %7758 = vmatprep.subr.mxu0 0.0
  %7759 = vmatpush1.msra.mxu0 0.0
  %7760 = vmatprep.subr.mxu0 0.0
  %7761 = vmatpush1.msra.mxu0 0.0
  %7762 = vmatprep.subr.mxu0 0.0
  %7763 = vmatpush1.msra.mxu0 0.0
  %7764 = vmatprep.subr.mxu0 0.0
  %7765 = vmatpush1.msra.mxu0 0.0
  %7766 = vmatprep.subr.mxu0 0.0
  %7767 = vmatpush1.msra.mxu0 0.0
  %7768 = vmatprep.subr.mxu0 0.0
  %7769 = vmatpush1.msra.mxu0 0.0
  %7770 = vmatprep.subr.mxu0 0.0
  %7771 = vmatpush1.msra.mxu0 0.0
  %7772 = vmatprep.mubr.f32.mxu0 0.0
  %7773 = vmatmul.mubr.f32.gmra.mrb[0].mxu0 %v7697
  %v7774 = vpop.f32.mrb[0].mxu0
  %v7775 = vadd.f32 0.0, %v7774
  %v7776 = vpop.f32.mrb[0].mxu0
  %7777 = vmatprep.mubr.f32.mxu0 0.0
  %7778 = vmatmul.mubr.f32.gmra.mrb[0].mxu0 %v7700
  %v7779 = vpop.f32.mrb[0].mxu0
  %v7780 = vadd.f32 0.0, %v7779
  %v7781 = vpop.f32.mrb[0].mxu0
  %7782 = vmatprep.mubr.f32.mxu0 0.0
  %7783 = vmatmul.mubr.f32.gmra.mrb[0].mxu0 %v7703
  %v7784 = vpop.f32.mrb[0].mxu0
  %v7785 = vadd.f32 0.0, %v7784
  %v7786 = vpop.f32.mrb[0].mxu0
  %7787 = vmatprep.mubr.f32.mxu0 0.0
  %7788 = vmatmul.mubr.f32.gmra.mrb[0].mxu0 %v7706
  %v7789 = vpop.f32.mrb[0].mxu0
  %v7790 = vadd.f32 0.0, %v7789
  %v7791 = vpop.f32.mrb[0].mxu0
  %7792 = vdwg.mxu0
  %v7793 = vadd.f32 %v7588, %v7775
  %v7794 = vadd.f32 %v7589, %v7780
  %v7795 = vadd.f32 %v7590, %v7785
  %v7796 = vadd.f32 %v7591, %v7790
  %vm7797 = vcmask 130048
  %v7798 = vsel %vm7797, %v7793, 0.0
  %v7799 = vsel %vm7797, %v7794, 0.0
  %v7800 = vadd.f32 %v7798, %v7799
  %v7801 = vsel %vm7797, %v7795, 0.0
  %v7802 = vadd.f32 %v7800, %v7801
  %v7803 = vsel %vm7797, %v7796, 0.0
  %v7804 = vadd.f32 %v7802, %v7803
  %v7805 = vrot.slane %v7804, 4
  %v7806 = vadd.f32 %v7804, %v7805
  %v7807 = vrot.slane %v7806, 2
  %v7808 = vadd.f32 %v7806, %v7807
  %v7809 = vrot.slane %v7808, 1
  %v7810 = vadd.f32 %v7808, %v7809
  %v7811 = vmul.f32 %v7810, 0.03125
  %v7812 = vmul.f32 %v7793, %v7793
  %v7813 = vmul.f32 %v7794, %v7794
  %v7814 = vmul.f32 %v7795, %v7795
  %v7815 = vmul.f32 %v7796, %v7796
  %v7816 = vsel %vm7797, %v7812, 0.0
  %v7817 = vsel %vm7797, %v7813, 0.0
  %v7818 = vadd.f32 %v7816, %v7817
  %v7819 = vsel %vm7797, %v7814, 0.0
  %v7820 = vadd.f32 %v7818, %v7819
  %v7821 = vsel %vm7797, %v7815, 0.0
  %v7822 = vadd.f32 %v7820, %v7821
  %v7823 = vrot.slane %v7822, 4
  %v7824 = vadd.f32 %v7822, %v7823
  %v7825 = vrot.slane %v7824, 2
  %v7826 = vadd.f32 %v7824, %v7825
  %v7827 = vrot.slane %v7826, 1
  %v7828 = vadd.f32 %v7826, %v7827
  %v7829 = vmul.f32 %v7828, 0.03125
  %v7830 = vmul.f32 %v7811, %v7811
  %v7831 = vsub.f32 %v7829, %v7830
  %v7832 = vmax.f32 %v7831, 0.0
  %v7833 = vsub.f32 %v7793, %v7811
  %v7834 = vsub.f32 %v7794, %v7811
  %v7835 = vsub.f32 %v7795, %v7811
  %v7836 = vsub.f32 %v7796, %v7811
  %v7837 = vadd.f32 %v7832, 1e-05
  %v7838 = vrsqrt.pop %v7837
  %v7839 = vld [vmem:[%s11] sm:$0x1]
  %v7840 = vmul.f32 %v7838, %v7839
  %v7841 = vlaneseq
  %v7842 = vshrl.u32 %v7841, 7
  %v7843 = vsub.s32 0, %v7842
  %v7844 = vrot.slane %v7840, %v7843
  %v7845 = vmul.f32 %v7833, %v7844
  %v7846 = vmul.f32 %v7834, %v7844
  %v7847 = vmul.f32 %v7835, %v7844
  %v7848 = vmul.f32 %v7836, %v7844
  %v7849 = vld [vmem:[%s12] sm:$0x1]
  %v7851 = vlaneseq
  %v7852 = vshrl.u32 %v7851, 7
  %v7853 = vsub.s32 0, %v7852
  %v7854 = vrot.slane %v7849, %v7853
  %v7856 = vadd.f32 %v7845, %v7854
  %v7857 = vadd.f32 %v7846, %v7854
  %v7858 = vadd.f32 %v7847, %v7854
  %v7859 = vadd.f32 %v7848, %v7854
  %vm7860 = vcmp.ge.f32.partialorder %v7856, 0.0
  %vm7861 = vcmp.ge.f32.partialorder %v7857, 0.0
  %vm7862 = vcmp.ge.f32.partialorder %v7858, 0.0
  %vm7863 = vcmp.ge.f32.partialorder %v7859, 0.0
  %v7864 = vmul.f32 %v7856, 0.2
  %v7865 = vmul.f32 %v7857, 0.2
  %v7866 = vmul.f32 %v7858, 0.2
  %v7867 = vmul.f32 %v7859, 0.2
  %v7868 = vsel %vm7860, %v7856, %v7864
  %v7869 = vsel %vm7861, %v7857, %v7865
  %v7870 = vsel %vm7862, %v7858, %v7866
  %v7871 = vsel %vm7863, %v7859, %v7867
  %v7872 = vld [vmem:[%s13] sm:$0xff]
  %vm7873 = vcmask 261120
  %v7875 = vsel %vm7873, %v7872, 0
  %7877 = vmatprep.subr.mxu0 0.0
  %7878 = vmatpush1.msra.mxu0 %v7868
  %7879 = vmatprep.subr.mxu0 0.0
  %7880 = vmatpush1.msra.mxu0 %v7869
  %7881 = vmatprep.subr.mxu0 0.0
  %7882 = vmatpush1.msra.mxu0 %v7870
  %7883 = vmatprep.subr.mxu0 0.0
  %7884 = vmatpush1.msra.mxu0 %v7871
  %7885 = vmatprep.subr.mxu0 0.0
  %7886 = vmatpush1.msra.mxu0 0.0
  %7887 = vmatprep.subr.mxu0 0.0
  %7888 = vmatpush1.msra.mxu0 0.0
  %7889 = vmatprep.subr.mxu0 0.0
  %7890 = vmatpush1.msra.mxu0 0.0
  %7891 = vmatprep.subr.mxu0 0.0
  %7892 = vmatpush1.msra.mxu0 0.0
  %7893 = vmatprep.subr.mxu0 0.0
  %7894 = vmatpush1.msra.mxu0 0.0
  %7895 = vmatprep.subr.mxu0 0.0
  %7896 = vmatpush1.msra.mxu0 0.0
  %7897 = vmatprep.subr.mxu0 0.0
  %7898 = vmatpush1.msra.mxu0 0.0
  %7899 = vmatprep.subr.mxu0 0.0
  %7900 = vmatpush1.msra.mxu0 0.0
  %7901 = vmatprep.subr.mxu0 0.0
  %7902 = vmatpush1.msra.mxu0 0.0
  %7903 = vmatprep.subr.mxu0 0.0
  %7904 = vmatpush1.msra.mxu0 0.0
  %7905 = vmatprep.subr.mxu0 0.0
  %7906 = vmatpush1.msra.mxu0 0.0
  %7907 = vmatprep.subr.mxu0 0.0
  %7908 = vmatpush1.msra.mxu0 0.0
  %7909 = vmatprep.subr.mxu0 0.0
  %7910 = vmatpush1.msra.mxu0 0.0
  %7911 = vmatprep.subr.mxu0 0.0
  %7912 = vmatpush1.msra.mxu0 0.0
  %7913 = vmatprep.subr.mxu0 0.0
  %7914 = vmatpush1.msra.mxu0 0.0
  %7915 = vmatprep.subr.mxu0 0.0
  %7916 = vmatpush1.msra.mxu0 0.0
  %7917 = vmatprep.subr.mxu0 0.0
  %7918 = vmatpush1.msra.mxu0 0.0
  %7919 = vmatprep.subr.mxu0 0.0
  %7920 = vmatpush1.msra.mxu0 0.0
  %7921 = vmatprep.subr.mxu0 0.0
  %7922 = vmatpush1.msra.mxu0 0.0
  %7923 = vmatprep.subr.mxu0 0.0
  %7924 = vmatpush1.msra.mxu0 0.0
  %7925 = vmatprep.subr.mxu0 0.0
  %7926 = vmatpush1.msra.mxu0 0.0
  %7927 = vmatprep.subr.mxu0 0.0
  %7928 = vmatpush1.msra.mxu0 0.0
  %7929 = vmatprep.subr.mxu0 0.0
  %7930 = vmatpush1.msra.mxu0 0.0
  %7931 = vmatprep.subr.mxu0 0.0
  %7932 = vmatpush1.msra.mxu0 0.0
  %7933 = vmatprep.subr.mxu0 0.0
  %7934 = vmatpush1.msra.mxu0 0.0
  %7935 = vmatprep.subr.mxu0 0.0
  %7936 = vmatpush1.msra.mxu0 0.0
  %7937 = vmatprep.subr.mxu0 0.0
  %7938 = vmatpush1.msra.mxu0 0.0
  %7939 = vmatprep.subr.mxu0 0.0
  %7940 = vmatpush1.msra.mxu0 0.0
  %7941 = vmatprep.mubr.f32.mxu0 0.0
  %7942 = vmatmul.mubr.f32.gmra.mrb[0].mxu0 %v7875
  %v7943 = vpop.f32.mrb[0].mxu0
  %v7944 = vadd.f32 0.0, %v7943
  %v7945 = vpop.f32.mrb[0].mxu0
  %7946 = vdwg.mxu0
  %v7947 = vld [vmem:[%s14] sm:$0xff]
  %v7948 = vld [vmem:[%s14 + $0x8] sm:$0xff]
  %s7949 = scalar_lea.vmem %s13, 8
  %v7950 = vld [vmem:[%s7949] sm:$0xff]
  %v7952 = vsel %vm7873, %v7950, 0
  %7954 = vmatprep.subr.mxu0 0.0
  %7955 = vmatpush1.msra.mxu0 %v7868
  %7956 = vmatprep.subr.mxu0 0.0
  %7957 = vmatpush1.msra.mxu0 %v7869
  %7958 = vmatprep.subr.mxu0 0.0
  %7959 = vmatpush1.msra.mxu0 %v7870
  %7960 = vmatprep.subr.mxu0 0.0
  %7961 = vmatpush1.msra.mxu0 %v7871
  %7962 = vmatprep.subr.mxu0 0.0
  %7963 = vmatpush1.msra.mxu0 0.0
  %7964 = vmatprep.subr.mxu0 0.0
  %7965 = vmatpush1.msra.mxu0 0.0
  %7966 = vmatprep.subr.mxu0 0.0
  %7967 = vmatpush1.msra.mxu0 0.0
  %7968 = vmatprep.subr.mxu0 0.0
  %7969 = vmatpush1.msra.mxu0 0.0
  %7970 = vmatprep.subr.mxu0 0.0
  %7971 = vmatpush1.msra.mxu0 0.0
  %7972 = vmatprep.subr.mxu0 0.0
  %7973 = vmatpush1.msra.mxu0 0.0
  %7974 = vmatprep.subr.mxu0 0.0
  %7975 = vmatpush1.msra.mxu0 0.0
  %7976 = vmatprep.subr.mxu0 0.0
  %7977 = vmatpush1.msra.mxu0 0.0
  %7978 = vmatprep.subr.mxu0 0.0
  %7979 = vmatpush1.msra.mxu0 0.0
  %7980 = vmatprep.subr.mxu0 0.0
  %7981 = vmatpush1.msra.mxu0 0.0
  %7982 = vmatprep.subr.mxu0 0.0
  %7983 = vmatpush1.msra.mxu0 0.0
  %7984 = vmatprep.subr.mxu0 0.0
  %7985 = vmatpush1.msra.mxu0 0.0
  %7986 = vmatprep.subr.mxu0 0.0
  %7987 = vmatpush1.msra.mxu0 0.0
  %7988 = vmatprep.subr.mxu0 0.0
  %7989 = vmatpush1.msra.mxu0 0.0
  %7990 = vmatprep.subr.mxu0 0.0
  %7991 = vmatpush1.msra.mxu0 0.0
  %7992 = vmatprep.subr.mxu0 0.0
  %7993 = vmatpush1.msra.mxu0 0.0
  %7994 = vmatprep.subr.mxu0 0.0
  %7995 = vmatpush1.msra.mxu0 0.0
  %7996 = vmatprep.subr.mxu0 0.0
  %7997 = vmatpush1.msra.mxu0 0.0
  %7998 = vmatprep.subr.mxu0 0.0
  %7999 = vmatpush1.msra.mxu0 0.0
  %8000 = vmatprep.subr.mxu0 0.0
  %8001 = vmatpush1.msra.mxu0 0.0
  %8002 = vmatprep.subr.mxu0 0.0
  %8003 = vmatpush1.msra.mxu0 0.0
  %8004 = vmatprep.subr.mxu0 0.0
  %8005 = vmatpush1.msra.mxu0 0.0
  %8006 = vmatprep.subr.mxu0 0.0
  %8007 = vmatpush1.msra.mxu0 0.0
  %8008 = vmatprep.subr.mxu0 0.0
  %8009 = vmatpush1.msra.mxu0 0.0
  %8010 = vmatprep.subr.mxu0 0.0
  %8011 = vmatpush1.msra.mxu0 0.0
  %8012 = vmatprep.subr.mxu0 0.0
  %8013 = vmatpush1.msra.mxu0 0.0
  %8014 = vmatprep.subr.mxu0 0.0
  %8015 = vmatpush1.msra.mxu0 0.0
  %8016 = vmatprep.subr.mxu0 0.0
  %8017 = vmatpush1.msra.mxu0 0.0
  %8018 = vmatprep.mubr.f32.mxu0 0.0
  %8019 = vmatmul.mubr.f32.gmra.mrb[0].mxu0 %v7952
  %v8020 = vpop.f32.mrb[0].mxu0
  %v8021 = vadd.f32 0.0, %v8020
  %v8022 = vpop.f32.mrb[0].mxu0
  %8023 = vdwg.mxu0
  %s8024 = scalar_lea.vmem %s14, 16
  %v8025 = vld [vmem:[%s8024] sm:$0xff]
  %v8026 = vld [vmem:[%s8024 + $0x8] sm:$0xff]
  %v8028 = vsel %vm7797, %v8021, 0
  %8030 = vmatprep.subr.mxu0 0.0
  %8031 = vmatpush1.msra.mxu0 %v8025
  %8032 = vmatprep.subr.mxu0 0.0
  %8033 = vmatpush1.msra.mxu0 %v8026
  %8034 = vmatprep.subr.mxu0 0.0
  %8035 = vmatpush1.msra.mxu0 0.0
  %8036 = vmatprep.subr.mxu0 0.0
  %8037 = vmatpush1.msra.mxu0 0.0
  %8038 = vmatprep.subr.mxu0 0.0
  %8039 = vmatpush1.msra.mxu0 0.0
  %8040 = vmatprep.subr.mxu0 0.0
  %8041 = vmatpush1.msra.mxu0 0.0
  %8042 = vmatprep.subr.mxu0 0.0
  %8043 = vmatpush1.msra.mxu0 0.0
  %8044 = vmatprep.subr.mxu0 0.0
  %8045 = vmatpush1.msra.mxu0 0.0
  %8046 = vmatprep.subr.mxu0 0.0
  %8047 = vmatpush1.msra.mxu0 0.0
  %8048 = vmatprep.subr.mxu0 0.0
  %8049 = vmatpush1.msra.mxu0 0.0
  %8050 = vmatprep.subr.mxu0 0.0
  %8051 = vmatpush1.msra.mxu0 0.0
  %8052 = vmatprep.subr.mxu0 0.0
  %8053 = vmatpush1.msra.mxu0 0.0
  %8054 = vmatprep.subr.mxu0 0.0
  %8055 = vmatpush1.msra.mxu0 0.0
  %8056 = vmatprep.subr.mxu0 0.0
  %8057 = vmatpush1.msra.mxu0 0.0
  %8058 = vmatprep.subr.mxu0 0.0
  %8059 = vmatpush1.msra.mxu0 0.0
  %8060 = vmatprep.subr.mxu0 0.0
  %8061 = vmatpush1.msra.mxu0 0.0
  %8062 = vmatprep.subr.mxu0 0.0
  %8063 = vmatpush1.msra.mxu0 0.0
  %8064 = vmatprep.subr.mxu0 0.0
  %8065 = vmatpush1.msra.mxu0 0.0
  %8066 = vmatprep.subr.mxu0 0.0
  %8067 = vmatpush1.msra.mxu0 0.0
  %8068 = vmatprep.subr.mxu0 0.0
  %8069 = vmatpush1.msra.mxu0 0.0
  %8070 = vmatprep.subr.mxu0 0.0
  %8071 = vmatpush1.msra.mxu0 0.0
  %8072 = vmatprep.subr.mxu0 0.0
  %8073 = vmatpush1.msra.mxu0 0.0
  %8074 = vmatprep.subr.mxu0 0.0
  %8075 = vmatpush1.msra.mxu0 0.0
  %8076 = vmatprep.subr.mxu0 0.0
  %8077 = vmatpush1.msra.mxu0 0.0
  %8078 = vmatprep.subr.mxu0 0.0
  %8079 = vmatpush1.msra.mxu0 0.0
  %8080 = vmatprep.subr.mxu0 0.0
  %8081 = vmatpush1.msra.mxu0 0.0
  %8082 = vmatprep.subr.mxu0 0.0
  %8083 = vmatpush1.msra.mxu0 0.0
  %8084 = vmatprep.subr.mxu0 0.0
  %8085 = vmatpush1.msra.mxu0 0.0
  %8086 = vmatprep.subr.mxu0 0.0
  %8087 = vmatpush1.msra.mxu0 0.0
  %8088 = vmatprep.subr.mxu0 0.0
  %8089 = vmatpush1.msra.mxu0 0.0
  %8090 = vmatprep.subr.mxu0 0.0
  %8091 = vmatpush1.msra.mxu0 0.0
  %8092 = vmatprep.subr.mxu0 0.0
  %8093 = vmatpush1.msra.mxu0 0.0
  %8094 = vmatprep.mubr.f32.mxu0 0.0
  %8095 = vmatmul.mubr.f32.gmra.mrb[0].mxu0 %v8028
  %v8096 = vpop.f32.mrb[0].mxu0
  %v8097 = vadd.f32 0.0, %v8096
  %v8098 = vpop.f32.mrb[0].mxu0
  %8099 = vdwg.mxu0
  %v8101 = vsel %vm7797, %v7944, 0
  %8103 = vmatprep.subr.mxu0 0.0
  %8104 = vmatpush1.msra.mxu0 %v7947
  %8105 = vmatprep.subr.mxu0 0.0
  %8106 = vmatpush1.msra.mxu0 %v7948
  %8107 = vmatprep.subr.mxu0 0.0
  %8108 = vmatpush1.msra.mxu0 0.0
  %8109 = vmatprep.subr.mxu0 0.0
  %8110 = vmatpush1.msra.mxu0 0.0
  %8111 = vmatprep.subr.mxu0 0.0
  %8112 = vmatpush1.msra.mxu0 0.0
  %8113 = vmatprep.subr.mxu0 0.0
  %8114 = vmatpush1.msra.mxu0 0.0
  %8115 = vmatprep.subr.mxu0 0.0
  %8116 = vmatpush1.msra.mxu0 0.0
  %8117 = vmatprep.subr.mxu0 0.0
  %8118 = vmatpush1.msra.mxu0 0.0
  %8119 = vmatprep.subr.mxu0 0.0
  %8120 = vmatpush1.msra.mxu0 0.0
  %8121 = vmatprep.subr.mxu0 0.0
  %8122 = vmatpush1.msra.mxu0 0.0
  %8123 = vmatprep.subr.mxu0 0.0
  %8124 = vmatpush1.msra.mxu0 0.0
  %8125 = vmatprep.subr.mxu0 0.0
  %8126 = vmatpush1.msra.mxu0 0.0
  %8127 = vmatprep.subr.mxu0 0.0
  %8128 = vmatpush1.msra.mxu0 0.0
  %8129 = vmatprep.subr.mxu0 0.0
  %8130 = vmatpush1.msra.mxu0 0.0
  %8131 = vmatprep.subr.mxu0 0.0
  %8132 = vmatpush1.msra.mxu0 0.0
  %8133 = vmatprep.subr.mxu0 0.0
  %8134 = vmatpush1.msra.mxu0 0.0
  %8135 = vmatprep.subr.mxu0 0.0
  %8136 = vmatpush1.msra.mxu0 0.0
  %8137 = vmatprep.subr.mxu0 0.0
  %8138 = vmatpush1.msra.mxu0 0.0
  %8139 = vmatprep.subr.mxu0 0.0
  %8140 = vmatpush1.msra.mxu0 0.0
  %8141 = vmatprep.subr.mxu0 0.0
  %8142 = vmatpush1.msra.mxu0 0.0
  %8143 = vmatprep.subr.mxu0 0.0
  %8144 = vmatpush1.msra.mxu0 0.0
  %8145 = vmatprep.subr.mxu0 0.0
  %8146 = vmatpush1.msra.mxu0 0.0
  %8147 = vmatprep.subr.mxu0 0.0
  %8148 = vmatpush1.msra.mxu0 0.0
  %8149 = vmatprep.subr.mxu0 0.0
  %8150 = vmatpush1.msra.mxu0 0.0
  %8151 = vmatprep.subr.mxu0 0.0
  %8152 = vmatpush1.msra.mxu0 0.0
  %8153 = vmatprep.subr.mxu0 0.0
  %8154 = vmatpush1.msra.mxu0 0.0
  %8155 = vmatprep.subr.mxu0 0.0
  %8156 = vmatpush1.msra.mxu0 0.0
  %8157 = vmatprep.subr.mxu0 0.0
  %8158 = vmatpush1.msra.mxu0 0.0
  %8159 = vmatprep.subr.mxu0 0.0
  %8160 = vmatpush1.msra.mxu0 0.0
  %8161 = vmatprep.subr.mxu0 0.0
  %8162 = vmatpush1.msra.mxu0 0.0
  %8163 = vmatprep.subr.mxu0 0.0
  %8164 = vmatpush1.msra.mxu0 0.0
  %8165 = vmatprep.subr.mxu0 0.0
  %8166 = vmatpush1.msra.mxu0 0.0
  %8167 = vmatprep.mubr.f32.mxu0 0.0
  %8168 = vmatmul.mubr.f32.gmra.mrb[0].mxu0 %v8101
  %v8169 = vpop.f32.mrb[0].mxu0
  %v8170 = vadd.f32 %v8097, %v8169
  %v8171 = vpop.f32.mrb[0].mxu0
  %8172 = vdwg.mxu0
  %s8173 = scalar_lea.vmem %s13, 16
  %v8174 = vld [vmem:[%s8173] sm:$0xff]
  %v8176 = vsel %vm7873, %v8174, 0
  %8178 = vmatprep.subr.mxu0 0.0
  %8179 = vmatpush1.msra.mxu0 %v7868
  %8180 = vmatprep.subr.mxu0 0.0
  %8181 = vmatpush1.msra.mxu0 %v7869
  %8182 = vmatprep.subr.mxu0 0.0
  %8183 = vmatpush1.msra.mxu0 %v7870
  %8184 = vmatprep.subr.mxu0 0.0
  %8185 = vmatpush1.msra.mxu0 %v7871
  %8186 = vmatprep.subr.mxu0 0.0
  %8187 = vmatpush1.msra.mxu0 0.0
  %8188 = vmatprep.subr.mxu0 0.0
  %8189 = vmatpush1.msra.mxu0 0.0
  %8190 = vmatprep.subr.mxu0 0.0
  %8191 = vmatpush1.msra.mxu0 0.0
  %8192 = vmatprep.subr.mxu0 0.0
  %8193 = vmatpush1.msra.mxu0 0.0
  %8194 = vmatprep.subr.mxu0 0.0
  %8195 = vmatpush1.msra.mxu0 0.0
  %8196 = vmatprep.subr.mxu0 0.0
  %8197 = vmatpush1.msra.mxu0 0.0
  %8198 = vmatprep.subr.mxu0 0.0
  %8199 = vmatpush1.msra.mxu0 0.0
  %8200 = vmatprep.subr.mxu0 0.0
  %8201 = vmatpush1.msra.mxu0 0.0
  %8202 = vmatprep.subr.mxu0 0.0
  %8203 = vmatpush1.msra.mxu0 0.0
  %8204 = vmatprep.subr.mxu0 0.0
  %8205 = vmatpush1.msra.mxu0 0.0
  %8206 = vmatprep.subr.mxu0 0.0
  %8207 = vmatpush1.msra.mxu0 0.0
  %8208 = vmatprep.subr.mxu0 0.0
  %8209 = vmatpush1.msra.mxu0 0.0
  %8210 = vmatprep.subr.mxu0 0.0
  %8211 = vmatpush1.msra.mxu0 0.0
  %8212 = vmatprep.subr.mxu0 0.0
  %8213 = vmatpush1.msra.mxu0 0.0
  %8214 = vmatprep.subr.mxu0 0.0
  %8215 = vmatpush1.msra.mxu0 0.0
  %8216 = vmatprep.subr.mxu0 0.0
  %8217 = vmatpush1.msra.mxu0 0.0
  %8218 = vmatprep.subr.mxu0 0.0
  %8219 = vmatpush1.msra.mxu0 0.0
  %8220 = vmatprep.subr.mxu0 0.0
  %8221 = vmatpush1.msra.mxu0 0.0
  %8222 = vmatprep.subr.mxu0 0.0
  %8223 = vmatpush1.msra.mxu0 0.0
  %8224 = vmatprep.subr.mxu0 0.0
  %8225 = vmatpush1.msra.mxu0 0.0
  %8226 = vmatprep.subr.mxu0 0.0
  %8227 = vmatpush1.msra.mxu0 0.0
  %8228 = vmatprep.subr.mxu0 0.0
  %8229 = vmatpush1.msra.mxu0 0.0
  %8230 = vmatprep.subr.mxu0 0.0
  %8231 = vmatpush1.msra.mxu0 0.0
  %8232 = vmatprep.subr.mxu0 0.0
  %8233 = vmatpush1.msra.mxu0 0.0
  %8234 = vmatprep.subr.mxu0 0.0
  %8235 = vmatpush1.msra.mxu0 0.0
  %8236 = vmatprep.subr.mxu0 0.0
  %8237 = vmatpush1.msra.mxu0 0.0
  %8238 = vmatprep.subr.mxu0 0.0
  %8239 = vmatpush1.msra.mxu0 0.0
  %8240 = vmatprep.subr.mxu0 0.0
  %8241 = vmatpush1.msra.mxu0 0.0
  %8242 = vmatprep.mubr.f32.mxu0 0.0
  %8243 = vmatmul.mubr.f32.gmra.mrb[0].mxu0 %v8176
  %v8244 = vpop.f32.mrb[0].mxu0
  %v8245 = vadd.f32 0.0, %v8244
  %v8246 = vpop.f32.mrb[0].mxu0
  %8247 = vdwg.mxu0
  %s8248 = scalar_lea.vmem %s14, 32
  %v8249 = vld [vmem:[%s8248] sm:$0xff]
  %v8250 = vld [vmem:[%s8248 + $0x8] sm:$0xff]
  %v8252 = vsel %vm7797, %v8245, 0
  %8254 = vmatprep.subr.mxu0 0.0
  %8255 = vmatpush1.msra.mxu0 %v8249
  %8256 = vmatprep.subr.mxu0 0.0
  %8257 = vmatpush1.msra.mxu0 %v8250
  %8258 = vmatprep.subr.mxu0 0.0
  %8259 = vmatpush1.msra.mxu0 0.0
  %8260 = vmatprep.subr.mxu0 0.0
  %8261 = vmatpush1.msra.mxu0 0.0
  %8262 = vmatprep.subr.mxu0 0.0
  %8263 = vmatpush1.msra.mxu0 0.0
  %8264 = vmatprep.subr.mxu0 0.0
  %8265 = vmatpush1.msra.mxu0 0.0
  %8266 = vmatprep.subr.mxu0 0.0
  %8267 = vmatpush1.msra.mxu0 0.0
  %8268 = vmatprep.subr.mxu0 0.0
  %8269 = vmatpush1.msra.mxu0 0.0
  %8270 = vmatprep.subr.mxu0 0.0
  %8271 = vmatpush1.msra.mxu0 0.0
  %8272 = vmatprep.subr.mxu0 0.0
  %8273 = vmatpush1.msra.mxu0 0.0
  %8274 = vmatprep.subr.mxu0 0.0
  %8275 = vmatpush1.msra.mxu0 0.0
  %8276 = vmatprep.subr.mxu0 0.0
  %8277 = vmatpush1.msra.mxu0 0.0
  %8278 = vmatprep.subr.mxu0 0.0
  %8279 = vmatpush1.msra.mxu0 0.0
  %8280 = vmatprep.subr.mxu0 0.0
  %8281 = vmatpush1.msra.mxu0 0.0
  %8282 = vmatprep.subr.mxu0 0.0
  %8283 = vmatpush1.msra.mxu0 0.0
  %8284 = vmatprep.subr.mxu0 0.0
  %8285 = vmatpush1.msra.mxu0 0.0
  %8286 = vmatprep.subr.mxu0 0.0
  %8287 = vmatpush1.msra.mxu0 0.0
  %8288 = vmatprep.subr.mxu0 0.0
  %8289 = vmatpush1.msra.mxu0 0.0
  %8290 = vmatprep.subr.mxu0 0.0
  %8291 = vmatpush1.msra.mxu0 0.0
  %8292 = vmatprep.subr.mxu0 0.0
  %8293 = vmatpush1.msra.mxu0 0.0
  %8294 = vmatprep.subr.mxu0 0.0
  %8295 = vmatpush1.msra.mxu0 0.0
  %8296 = vmatprep.subr.mxu0 0.0
  %8297 = vmatpush1.msra.mxu0 0.0
  %8298 = vmatprep.subr.mxu0 0.0
  %8299 = vmatpush1.msra.mxu0 0.0
  %8300 = vmatprep.subr.mxu0 0.0
  %8301 = vmatpush1.msra.mxu0 0.0
  %8302 = vmatprep.subr.mxu0 0.0
  %8303 = vmatpush1.msra.mxu0 0.0
  %8304 = vmatprep.subr.mxu0 0.0
  %8305 = vmatpush1.msra.mxu0 0.0
  %8306 = vmatprep.subr.mxu0 0.0
  %8307 = vmatpush1.msra.mxu0 0.0
  %8308 = vmatprep.subr.mxu0 0.0
  %8309 = vmatpush1.msra.mxu0 0.0
  %8310 = vmatprep.subr.mxu0 0.0
  %8311 = vmatpush1.msra.mxu0 0.0
  %8312 = vmatprep.subr.mxu0 0.0
  %8313 = vmatpush1.msra.mxu0 0.0
  %8314 = vmatprep.subr.mxu0 0.0
  %8315 = vmatpush1.msra.mxu0 0.0
  %8316 = vmatprep.subr.mxu0 0.0
  %8317 = vmatpush1.msra.mxu0 0.0
  %8318 = vmatprep.mubr.f32.mxu0 0.0
  %8319 = vmatmul.mubr.f32.gmra.mrb[0].mxu0 %v8252
  %v8320 = vpop.f32.mrb[0].mxu0
  %v8321 = vadd.f32 0.0, %v8320
  %v8322 = vpop.f32.mrb[0].mxu0
  %8323 = vdwg.mxu0
  %v8324 = vadd.f32 %v8170, %v8321
  %s8325 = scalar_lea.vmem %s13, 24
  %v8326 = vld [vmem:[%s8325] sm:$0xff]
  %v8328 = vsel %vm7873, %v8326, 0
  %8330 = vmatprep.subr.mxu0 0.0
  %8331 = vmatpush1.msra.mxu0 %v7868
  %8332 = vmatprep.subr.mxu0 0.0
  %8333 = vmatpush1.msra.mxu0 %v7869
  %8334 = vmatprep.subr.mxu0 0.0
  %8335 = vmatpush1.msra.mxu0 %v7870
  %8336 = vmatprep.subr.mxu0 0.0
  %8337 = vmatpush1.msra.mxu0 %v7871
  %8338 = vmatprep.subr.mxu0 0.0
  %8339 = vmatpush1.msra.mxu0 0.0
  %8340 = vmatprep.subr.mxu0 0.0
  %8341 = vmatpush1.msra.mxu0 0.0
  %8342 = vmatprep.subr.mxu0 0.0
  %8343 = vmatpush1.msra.mxu0 0.0
  %8344 = vmatprep.subr.mxu0 0.0
  %8345 = vmatpush1.msra.mxu0 0.0
  %8346 = vmatprep.subr.mxu0 0.0
  %8347 = vmatpush1.msra.mxu0 0.0
  %8348 = vmatprep.subr.mxu0 0.0
  %8349 = vmatpush1.msra.mxu0 0.0
  %8350 = vmatprep.subr.mxu0 0.0
  %8351 = vmatpush1.msra.mxu0 0.0
  %8352 = vmatprep.subr.mxu0 0.0
  %8353 = vmatpush1.msra.mxu0 0.0
  %8354 = vmatprep.subr.mxu0 0.0
  %8355 = vmatpush1.msra.mxu0 0.0
  %8356 = vmatprep.subr.mxu0 0.0
  %8357 = vmatpush1.msra.mxu0 0.0
  %8358 = vmatprep.subr.mxu0 0.0
  %8359 = vmatpush1.msra.mxu0 0.0
  %8360 = vmatprep.subr.mxu0 0.0
  %8361 = vmatpush1.msra.mxu0 0.0
  %8362 = vmatprep.subr.mxu0 0.0
  %8363 = vmatpush1.msra.mxu0 0.0
  %8364 = vmatprep.subr.mxu0 0.0
  %8365 = vmatpush1.msra.mxu0 0.0
  %8366 = vmatprep.subr.mxu0 0.0
  %8367 = vmatpush1.msra.mxu0 0.0
  %8368 = vmatprep.subr.mxu0 0.0
  %8369 = vmatpush1.msra.mxu0 0.0
  %8370 = vmatprep.subr.mxu0 0.0
  %8371 = vmatpush1.msra.mxu0 0.0
  %8372 = vmatprep.subr.mxu0 0.0
  %8373 = vmatpush1.msra.mxu0 0.0
  %8374 = vmatprep.subr.mxu0 0.0
  %8375 = vmatpush1.msra.mxu0 0.0
  %8376 = vmatprep.subr.mxu0 0.0
  %8377 = vmatpush1.msra.mxu0 0.0
  %8378 = vmatprep.subr.mxu0 0.0
  %8379 = vmatpush1.msra.mxu0 0.0
  %8380 = vmatprep.subr.mxu0 0.0
  %8381 = vmatpush1.msra.mxu0 0.0
  %8382 = vmatprep.subr.mxu0 0.0
  %8383 = vmatpush1.msra.mxu0 0.0
  %8384 = vmatprep.subr.mxu0 0.0
  %8385 = vmatpush1.msra.mxu0 0.0
  %8386 = vmatprep.subr.mxu0 0.0
  %8387 = vmatpush1.msra.mxu0 0.0
  %8388 = vmatprep.subr.mxu0 0.0
  %8389 = vmatpush1.msra.mxu0 0.0
  %8390 = vmatprep.subr.mxu0 0.0
  %8391 = vmatpush1.msra.mxu0 0.0
  %8392 = vmatprep.subr.mxu0 0.0
  %8393 = vmatpush1.msra.mxu0 0.0
  %8394 = vmatprep.mubr.f32.mxu0 0.0
  %8395 = vmatmul.mubr.f32.gmra.mrb[0].mxu0 %v8328
  %v8396 = vpop.f32.mrb[0].mxu0
  %v8397 = vadd.f32 0.0, %v8396
  %v8398 = vpop.f32.mrb[0].mxu0
  %8399 = vdwg.mxu0
  %s8400 = scalar_lea.vmem %s14, 48
  %v8401 = vld [vmem:[%s8400] sm:$0xff]
  %v8402 = vld [vmem:[%s8400 + $0x8] sm:$0xff]
  %v8404 = vsel %vm7797, %v8397, 0
  %8406 = vmatprep.subr.mxu0 0.0
  %8407 = vmatpush1.msra.mxu0 %v8401
  %8408 = vmatprep.subr.mxu0 0.0
  %8409 = vmatpush1.msra.mxu0 %v8402
  %8410 = vmatprep.subr.mxu0 0.0
  %8411 = vmatpush1.msra.mxu0 0.0
  %8412 = vmatprep.subr.mxu0 0.0
  %8413 = vmatpush1.msra.mxu0 0.0
  %8414 = vmatprep.subr.mxu0 0.0
  %8415 = vmatpush1.msra.mxu0 0.0
  %8416 = vmatprep.subr.mxu0 0.0
  %8417 = vmatpush1.msra.mxu0 0.0
  %8418 = vmatprep.subr.mxu0 0.0
  %8419 = vmatpush1.msra.mxu0 0.0
  %8420 = vmatprep.subr.mxu0 0.0
  %8421 = vmatpush1.msra.mxu0 0.0
  %8422 = vmatprep.subr.mxu0 0.0
  %8423 = vmatpush1.msra.mxu0 0.0
  %8424 = vmatprep.subr.mxu0 0.0
  %8425 = vmatpush1.msra.mxu0 0.0
  %8426 = vmatprep.subr.mxu0 0.0
  %8427 = vmatpush1.msra.mxu0 0.0
  %8428 = vmatprep.subr.mxu0 0.0
  %8429 = vmatpush1.msra.mxu0 0.0
  %8430 = vmatprep.subr.mxu0 0.0
  %8431 = vmatpush1.msra.mxu0 0.0
  %8432 = vmatprep.subr.mxu0 0.0
  %8433 = vmatpush1.msra.mxu0 0.0
  %8434 = vmatprep.subr.mxu0 0.0
  %8435 = vmatpush1.msra.mxu0 0.0
  %8436 = vmatprep.subr.mxu0 0.0
  %8437 = vmatpush1.msra.mxu0 0.0
  %8438 = vmatprep.subr.mxu0 0.0
  %8439 = vmatpush1.msra.mxu0 0.0
  %8440 = vmatprep.subr.mxu0 0.0
  %8441 = vmatpush1.msra.mxu0 0.0
  %8442 = vmatprep.subr.mxu0 0.0
  %8443 = vmatpush1.msra.mxu0 0.0
  %8444 = vmatprep.subr.mxu0 0.0
  %8445 = vmatpush1.msra.mxu0 0.0
  %8446 = vmatprep.subr.mxu0 0.0
  %8447 = vmatpush1.msra.mxu0 0.0
  %8448 = vmatprep.subr.mxu0 0.0
  %8449 = vmatpush1.msra.mxu0 0.0
  %8450 = vmatprep.subr.mxu0 0.0
  %8451 = vmatpush1.msra.mxu0 0.0
  %8452 = vmatprep.subr.mxu0 0.0
  %8453 = vmatpush1.msra.mxu0 0.0
  %8454 = vmatprep.subr.mxu0 0.0
  %8455 = vmatpush1.msra.mxu0 0.0
  %8456 = vmatprep.subr.mxu0 0.0
  %8457 = vmatpush1.msra.mxu0 0.0
  %8458 = vmatprep.subr.mxu0 0.0
  %8459 = vmatpush1.msra.mxu0 0.0
  %8460 = vmatprep.subr.mxu0 0.0
  %8461 = vmatpush1.msra.mxu0 0.0
  %8462 = vmatprep.subr.mxu0 0.0
  %8463 = vmatpush1.msra.mxu0 0.0
  %8464 = vmatprep.subr.mxu0 0.0
  %8465 = vmatpush1.msra.mxu0 0.0
  %8466 = vmatprep.subr.mxu0 0.0
  %8467 = vmatpush1.msra.mxu0 0.0
  %8468 = vmatprep.subr.mxu0 0.0
  %8469 = vmatpush1.msra.mxu0 0.0
  %8470 = vmatprep.mubr.f32.mxu0 0.0
  %8471 = vmatmul.mubr.f32.gmra.mrb[0].mxu0 %v8404
  %v8472 = vpop.f32.mrb[0].mxu0
  %v8473 = vadd.f32 0.0, %v8472
  %v8474 = vpop.f32.mrb[0].mxu0
  %8475 = vdwg.mxu0
  %v8476 = vadd.f32 %v8324, %v8473
  %s8477 = scalar_lea.vmem %s13, 32
  %v8478 = vld [vmem:[%s8477] sm:$0xff]
  %v8480 = vsel %vm7873, %v8478, 0
  %8482 = vmatprep.subr.mxu0 0.0
  %8483 = vmatpush1.msra.mxu0 %v7868
  %8484 = vmatprep.subr.mxu0 0.0
  %8485 = vmatpush1.msra.mxu0 %v7869
  %8486 = vmatprep.subr.mxu0 0.0
  %8487 = vmatpush1.msra.mxu0 %v7870
  %8488 = vmatprep.subr.mxu0 0.0
  %8489 = vmatpush1.msra.mxu0 %v7871
  %8490 = vmatprep.subr.mxu0 0.0
  %8491 = vmatpush1.msra.mxu0 0.0
  %8492 = vmatprep.subr.mxu0 0.0
  %8493 = vmatpush1.msra.mxu0 0.0
  %8494 = vmatprep.subr.mxu0 0.0
  %8495 = vmatpush1.msra.mxu0 0.0
  %8496 = vmatprep.subr.mxu0 0.0
  %8497 = vmatpush1.msra.mxu0 0.0
  %8498 = vmatprep.subr.mxu0 0.0
  %8499 = vmatpush1.msra.mxu0 0.0
  %8500 = vmatprep.subr.mxu0 0.0
  %8501 = vmatpush1.msra.mxu0 0.0
  %8502 = vmatprep.subr.mxu0 0.0
  %8503 = vmatpush1.msra.mxu0 0.0
  %8504 = vmatprep.subr.mxu0 0.0
  %8505 = vmatpush1.msra.mxu0 0.0
  %8506 = vmatprep.subr.mxu0 0.0
  %8507 = vmatpush1.msra.mxu0 0.0
  %8508 = vmatprep.subr.mxu0 0.0
  %8509 = vmatpush1.msra.mxu0 0.0
  %8510 = vmatprep.subr.mxu0 0.0
  %8511 = vmatpush1.msra.mxu0 0.0
  %8512 = vmatprep.subr.mxu0 0.0
  %8513 = vmatpush1.msra.mxu0 0.0
  %8514 = vmatprep.subr.mxu0 0.0
  %8515 = vmatpush1.msra.mxu0 0.0
  %8516 = vmatprep.subr.mxu0 0.0
  %8517 = vmatpush1.msra.mxu0 0.0
  %8518 = vmatprep.subr.mxu0 0.0
  %8519 = vmatpush1.msra.mxu0 0.0
  %8520 = vmatprep.subr.mxu0 0.0
  %8521 = vmatpush1.msra.mxu0 0.0
  %8522 = vmatprep.subr.mxu0 0.0
  %8523 = vmatpush1.msra.mxu0 0.0
  %8524 = vmatprep.subr.mxu0 0.0
  %8525 = vmatpush1.msra.mxu0 0.0
  %8526 = vmatprep.subr.mxu0 0.0
  %8527 = vmatpush1.msra.mxu0 0.0
  %8528 = vmatprep.subr.mxu0 0.0
  %8529 = vmatpush1.msra.mxu0 0.0
  %8530 = vmatprep.subr.mxu0 0.0
  %8531 = vmatpush1.msra.mxu0 0.0
  %8532 = vmatprep.subr.mxu0 0.0
  %8533 = vmatpush1.msra.mxu0 0.0
  %8534 = vmatprep.subr.mxu0 0.0
  %8535 = vmatpush1.msra.mxu0 0.0
  %8536 = vmatprep.subr.mxu0 0.0
  %8537 = vmatpush1.msra.mxu0 0.0
  %8538 = vmatprep.subr.mxu0 0.0
  %8539 = vmatpush1.msra.mxu0 0.0
  %8540 = vmatprep.subr.mxu0 0.0
  %8541 = vmatpush1.msra.mxu0 0.0
  %8542 = vmatprep.subr.mxu0 0.0
  %8543 = vmatpush1.msra.mxu0 0.0
  %8544 = vmatprep.subr.mxu0 0.0
  %8545 = vmatpush1.msra.mxu0 0.0
  %8546 = vmatprep.mubr.f32.mxu0 0.0
  %8547 = vmatmul.mubr.f32.gmra.mrb[0].mxu0 %v8480
  %v8548 = vpop.f32.mrb[0].mxu0
  %v8549 = vadd.f32 0.0, %v8548
  %v8550 = vpop.f32.mrb[0].mxu0
  %8551 = vdwg.mxu0
  %s8552 = scalar_lea.vmem %s14, 64
  %v8553 = vld [vmem:[%s8552] sm:$0xff]
  %v8554 = vld [vmem:[%s8552 + $0x8] sm:$0xff]
  %v8556 = vsel %vm7797, %v8549, 0
  %8558 = vmatprep.subr.mxu0 0.0
  %8559 = vmatpush1.msra.mxu0 %v8553
  %8560 = vmatprep.subr.mxu0 0.0
  %8561 = vmatpush1.msra.mxu0 %v8554
  %8562 = vmatprep.subr.mxu0 0.0
  %8563 = vmatpush1.msra.mxu0 0.0
  %8564 = vmatprep.subr.mxu0 0.0
  %8565 = vmatpush1.msra.mxu0 0.0
  %8566 = vmatprep.subr.mxu0 0.0
  %8567 = vmatpush1.msra.mxu0 0.0
  %8568 = vmatprep.subr.mxu0 0.0
  %8569 = vmatpush1.msra.mxu0 0.0
  %8570 = vmatprep.subr.mxu0 0.0
  %8571 = vmatpush1.msra.mxu0 0.0
  %8572 = vmatprep.subr.mxu0 0.0
  %8573 = vmatpush1.msra.mxu0 0.0
  %8574 = vmatprep.subr.mxu0 0.0
  %8575 = vmatpush1.msra.mxu0 0.0
  %8576 = vmatprep.subr.mxu0 0.0
  %8577 = vmatpush1.msra.mxu0 0.0
  %8578 = vmatprep.subr.mxu0 0.0
  %8579 = vmatpush1.msra.mxu0 0.0
  %8580 = vmatprep.subr.mxu0 0.0
  %8581 = vmatpush1.msra.mxu0 0.0
  %8582 = vmatprep.subr.mxu0 0.0
  %8583 = vmatpush1.msra.mxu0 0.0
  %8584 = vmatprep.subr.mxu0 0.0
  %8585 = vmatpush1.msra.mxu0 0.0
  %8586 = vmatprep.subr.mxu0 0.0
  %8587 = vmatpush1.msra.mxu0 0.0
  %8588 = vmatprep.subr.mxu0 0.0
  %8589 = vmatpush1.msra.mxu0 0.0
  %8590 = vmatprep.subr.mxu0 0.0
  %8591 = vmatpush1.msra.mxu0 0.0
  %8592 = vmatprep.subr.mxu0 0.0
  %8593 = vmatpush1.msra.mxu0 0.0
  %8594 = vmatprep.subr.mxu0 0.0
  %8595 = vmatpush1.msra.mxu0 0.0
  %8596 = vmatprep.subr.mxu0 0.0
  %8597 = vmatpush1.msra.mxu0 0.0
  %8598 = vmatprep.subr.mxu0 0.0
  %8599 = vmatpush1.msra.mxu0 0.0
  %8600 = vmatprep.subr.mxu0 0.0
  %8601 = vmatpush1.msra.mxu0 0.0
  %8602 = vmatprep.subr.mxu0 0.0
  %8603 = vmatpush1.msra.mxu0 0.0
  %8604 = vmatprep.subr.mxu0 0.0
  %8605 = vmatpush1.msra.mxu0 0.0
  %8606 = vmatprep.subr.mxu0 0.0
  %8607 = vmatpush1.msra.mxu0 0.0
  %8608 = vmatprep.subr.mxu0 0.0
  %8609 = vmatpush1.msra.mxu0 0.0
  %8610 = vmatprep.subr.mxu0 0.0
  %8611 = vmatpush1.msra.mxu0 0.0
  %8612 = vmatprep.subr.mxu0 0.0
  %8613 = vmatpush1.msra.mxu0 0.0
  %8614 = vmatprep.subr.mxu0 0.0
  %8615 = vmatpush1.msra.mxu0 0.0
  %8616 = vmatprep.subr.mxu0 0.0
  %8617 = vmatpush1.msra.mxu0 0.0
  %8618 = vmatprep.subr.mxu0 0.0
  %8619 = vmatpush1.msra.mxu0 0.0
  %8620 = vmatprep.subr.mxu0 0.0
  %8621 = vmatpush1.msra.mxu0 0.0
  %8622 = vmatprep.mubr.f32.mxu0 0.0
  %8623 = vmatmul.mubr.f32.gmra.mrb[0].mxu0 %v8556
  %v8624 = vpop.f32.mrb[0].mxu0
  %v8625 = vadd.f32 0.0, %v8624
  %v8626 = vpop.f32.mrb[0].mxu0
  %8627 = vdwg.mxu0
  %v8628 = vadd.f32 %v8476, %v8625
  %s8629 = scalar_lea.vmem %s13, 40
  %v8630 = vld [vmem:[%s8629] sm:$0xff]
  %v8632 = vsel %vm7873, %v8630, 0
  %8634 = vmatprep.subr.mxu0 0.0
  %8635 = vmatpush1.msra.mxu0 %v7868
  %8636 = vmatprep.subr.mxu0 0.0
  %8637 = vmatpush1.msra.mxu0 %v7869
  %8638 = vmatprep.subr.mxu0 0.0
  %8639 = vmatpush1.msra.mxu0 %v7870
  %8640 = vmatprep.subr.mxu0 0.0
  %8641 = vmatpush1.msra.mxu0 %v7871
  %8642 = vmatprep.subr.mxu0 0.0
  %8643 = vmatpush1.msra.mxu0 0.0
  %8644 = vmatprep.subr.mxu0 0.0
  %8645 = vmatpush1.msra.mxu0 0.0
  %8646 = vmatprep.subr.mxu0 0.0
  %8647 = vmatpush1.msra.mxu0 0.0
  %8648 = vmatprep.subr.mxu0 0.0
  %8649 = vmatpush1.msra.mxu0 0.0
  %8650 = vmatprep.subr.mxu0 0.0
  %8651 = vmatpush1.msra.mxu0 0.0
  %8652 = vmatprep.subr.mxu0 0.0
  %8653 = vmatpush1.msra.mxu0 0.0
  %8654 = vmatprep.subr.mxu0 0.0
  %8655 = vmatpush1.msra.mxu0 0.0
  %8656 = vmatprep.subr.mxu0 0.0
  %8657 = vmatpush1.msra.mxu0 0.0
  %8658 = vmatprep.subr.mxu0 0.0
  %8659 = vmatpush1.msra.mxu0 0.0
  %8660 = vmatprep.subr.mxu0 0.0
  %8661 = vmatpush1.msra.mxu0 0.0
  %8662 = vmatprep.subr.mxu0 0.0
  %8663 = vmatpush1.msra.mxu0 0.0
  %8664 = vmatprep.subr.mxu0 0.0
  %8665 = vmatpush1.msra.mxu0 0.0
  %8666 = vmatprep.subr.mxu0 0.0
  %8667 = vmatpush1.msra.mxu0 0.0
  %8668 = vmatprep.subr.mxu0 0.0
  %8669 = vmatpush1.msra.mxu0 0.0
  %8670 = vmatprep.subr.mxu0 0.0
  %8671 = vmatpush1.msra.mxu0 0.0
  %8672 = vmatprep.subr.mxu0 0.0
  %8673 = vmatpush1.msra.mxu0 0.0
  %8674 = vmatprep.subr.mxu0 0.0
  %8675 = vmatpush1.msra.mxu0 0.0
  %8676 = vmatprep.subr.mxu0 0.0
  %8677 = vmatpush1.msra.mxu0 0.0
  %8678 = vmatprep.subr.mxu0 0.0
  %8679 = vmatpush1.msra.mxu0 0.0
  %8680 = vmatprep.subr.mxu0 0.0
  %8681 = vmatpush1.msra.mxu0 0.0
  %8682 = vmatprep.subr.mxu0 0.0
  %8683 = vmatpush1.msra.mxu0 0.0
  %8684 = vmatprep.subr.mxu0 0.0
  %8685 = vmatpush1.msra.mxu0 0.0
  %8686 = vmatprep.subr.mxu0 0.0
  %8687 = vmatpush1.msra.mxu0 0.0
  %8688 = vmatprep.subr.mxu0 0.0
  %8689 = vmatpush1.msra.mxu0 0.0
  %8690 = vmatprep.subr.mxu0 0.0
  %8691 = vmatpush1.msra.mxu0 0.0
  %8692 = vmatprep.subr.mxu0 0.0
  %8693 = vmatpush1.msra.mxu0 0.0
  %8694 = vmatprep.subr.mxu0 0.0
  %8695 = vmatpush1.msra.mxu0 0.0
  %8696 = vmatprep.subr.mxu0 0.0
  %8697 = vmatpush1.msra.mxu0 0.0
  %8698 = vmatprep.mubr.f32.mxu0 0.0
  %8699 = vmatmul.mubr.f32.gmra.mrb[0].mxu0 %v8632
  %v8700 = vpop.f32.mrb[0].mxu0
  %v8701 = vadd.f32 0.0, %v8700
  %v8702 = vpop.f32.mrb[0].mxu0
  %8703 = vdwg.mxu0
  %s8704 = scalar_lea.vmem %s14, 80
  %v8705 = vld [vmem:[%s8704] sm:$0xff]
  %v8706 = vld [vmem:[%s8704 + $0x8] sm:$0xff]
  %v8708 = vsel %vm7797, %v8701, 0
  %8710 = vmatprep.subr.mxu0 0.0
  %8711 = vmatpush1.msra.mxu0 %v8705
  %8712 = vmatprep.subr.mxu0 0.0
  %8713 = vmatpush1.msra.mxu0 %v8706
  %8714 = vmatprep.subr.mxu0 0.0
  %8715 = vmatpush1.msra.mxu0 0.0
  %8716 = vmatprep.subr.mxu0 0.0
  %8717 = vmatpush1.msra.mxu0 0.0
  %8718 = vmatprep.subr.mxu0 0.0
  %8719 = vmatpush1.msra.mxu0 0.0
  %8720 = vmatprep.subr.mxu0 0.0
  %8721 = vmatpush1.msra.mxu0 0.0
  %8722 = vmatprep.subr.mxu0 0.0
  %8723 = vmatpush1.msra.mxu0 0.0
  %8724 = vmatprep.subr.mxu0 0.0
  %8725 = vmatpush1.msra.mxu0 0.0
  %8726 = vmatprep.subr.mxu0 0.0
  %8727 = vmatpush1.msra.mxu0 0.0
  %8728 = vmatprep.subr.mxu0 0.0
  %8729 = vmatpush1.msra.mxu0 0.0
  %8730 = vmatprep.subr.mxu0 0.0
  %8731 = vmatpush1.msra.mxu0 0.0
  %8732 = vmatprep.subr.mxu0 0.0
  %8733 = vmatpush1.msra.mxu0 0.0
  %8734 = vmatprep.subr.mxu0 0.0
  %8735 = vmatpush1.msra.mxu0 0.0
  %8736 = vmatprep.subr.mxu0 0.0
  %8737 = vmatpush1.msra.mxu0 0.0
  %8738 = vmatprep.subr.mxu0 0.0
  %8739 = vmatpush1.msra.mxu0 0.0
  %8740 = vmatprep.subr.mxu0 0.0
  %8741 = vmatpush1.msra.mxu0 0.0
  %8742 = vmatprep.subr.mxu0 0.0
  %8743 = vmatpush1.msra.mxu0 0.0
  %8744 = vmatprep.subr.mxu0 0.0
  %8745 = vmatpush1.msra.mxu0 0.0
  %8746 = vmatprep.subr.mxu0 0.0
  %8747 = vmatpush1.msra.mxu0 0.0
  %8748 = vmatprep.subr.mxu0 0.0
  %8749 = vmatpush1.msra.mxu0 0.0
  %8750 = vmatprep.subr.mxu0 0.0
  %8751 = vmatpush1.msra.mxu0 0.0
  %8752 = vmatprep.subr.mxu0 0.0
  %8753 = vmatpush1.msra.mxu0 0.0
  %8754 = vmatprep.subr.mxu0 0.0
  %8755 = vmatpush1.msra.mxu0 0.0
  %8756 = vmatprep.subr.mxu0 0.0
  %8757 = vmatpush1.msra.mxu0 0.0
  %8758 = vmatprep.subr.mxu0 0.0
  %8759 = vmatpush1.msra.mxu0 0.0
  %8760 = vmatprep.subr.mxu0 0.0
  %8761 = vmatpush1.msra.mxu0 0.0
  %8762 = vmatprep.subr.mxu0 0.0
  %8763 = vmatpush1.msra.mxu0 0.0
  %8764 = vmatprep.subr.mxu0 0.0
  %8765 = vmatpush1.msra.mxu0 0.0
  %8766 = vmatprep.subr.mxu0 0.0
  %8767 = vmatpush1.msra.mxu0 0.0
  %8768 = vmatprep.subr.mxu0 0.0
  %8769 = vmatpush1.msra.mxu0 0.0
  %8770 = vmatprep.subr.mxu0 0.0
  %8771 = vmatpush1.msra.mxu0 0.0
  %8772 = vmatprep.subr.mxu0 0.0
  %8773 = vmatpush1.msra.mxu0 0.0
  %8774 = vmatprep.mubr.f32.mxu0 0.0
  %8775 = vmatmul.mubr.f32.gmra.mrb[0].mxu0 %v8708
  %v8776 = vpop.f32.mrb[0].mxu0
  %v8777 = vadd.f32 0.0, %v8776
  %v8778 = vpop.f32.mrb[0].mxu0
  %8779 = vdwg.mxu0
  %v8780 = vadd.f32 %v8628, %v8777
  %s8781 = scalar_lea.vmem %s13, 48
  %v8782 = vld [vmem:[%s8781] sm:$0xff]
  %v8784 = vsel %vm7873, %v8782, 0
  %8786 = vmatprep.subr.mxu0 0.0
  %8787 = vmatpush1.msra.mxu0 %v7868
  %8788 = vmatprep.subr.mxu0 0.0
  %8789 = vmatpush1.msra.mxu0 %v7869
  %8790 = vmatprep.subr.mxu0 0.0
  %8791 = vmatpush1.msra.mxu0 %v7870
  %8792 = vmatprep.subr.mxu0 0.0
  %8793 = vmatpush1.msra.mxu0 %v7871
  %8794 = vmatprep.subr.mxu0 0.0
  %8795 = vmatpush1.msra.mxu0 0.0
  %8796 = vmatprep.subr.mxu0 0.0
  %8797 = vmatpush1.msra.mxu0 0.0
  %8798 = vmatprep.subr.mxu0 0.0
  %8799 = vmatpush1.msra.mxu0 0.0
  %8800 = vmatprep.subr.mxu0 0.0
  %8801 = vmatpush1.msra.mxu0 0.0
  %8802 = vmatprep.subr.mxu0 0.0
  %8803 = vmatpush1.msra.mxu0 0.0
  %8804 = vmatprep.subr.mxu0 0.0
  %8805 = vmatpush1.msra.mxu0 0.0
  %8806 = vmatprep.subr.mxu0 0.0
  %8807 = vmatpush1.msra.mxu0 0.0
  %8808 = vmatprep.subr.mxu0 0.0
  %8809 = vmatpush1.msra.mxu0 0.0
  %8810 = vmatprep.subr.mxu0 0.0
  %8811 = vmatpush1.msra.mxu0 0.0
  %8812 = vmatprep.subr.mxu0 0.0
  %8813 = vmatpush1.msra.mxu0 0.0
  %8814 = vmatprep.subr.mxu0 0.0
  %8815 = vmatpush1.msra.mxu0 0.0
  %8816 = vmatprep.subr.mxu0 0.0
  %8817 = vmatpush1.msra.mxu0 0.0
  %8818 = vmatprep.subr.mxu0 0.0
  %8819 = vmatpush1.msra.mxu0 0.0
  %8820 = vmatprep.subr.mxu0 0.0
  %8821 = vmatpush1.msra.mxu0 0.0
  %8822 = vmatprep.subr.mxu0 0.0
  %8823 = vmatpush1.msra.mxu0 0.0
  %8824 = vmatprep.subr.mxu0 0.0
  %8825 = vmatpush1.msra.mxu0 0.0
  %8826 = vmatprep.subr.mxu0 0.0
  %8827 = vmatpush1.msra.mxu0 0.0
  %8828 = vmatprep.subr.mxu0 0.0
  %8829 = vmatpush1.msra.mxu0 0.0
  %8830 = vmatprep.subr.mxu0 0.0
  %8831 = vmatpush1.msra.mxu0 0.0
  %8832 = vmatprep.subr.mxu0 0.0
  %8833 = vmatpush1.msra.mxu0 0.0
  %8834 = vmatprep.subr.mxu0 0.0
  %8835 = vmatpush1.msra.mxu0 0.0
  %8836 = vmatprep.subr.mxu0 0.0
  %8837 = vmatpush1.msra.mxu0 0.0
  %8838 = vmatprep.subr.mxu0 0.0
  %8839 = vmatpush1.msra.mxu0 0.0
  %8840 = vmatprep.subr.mxu0 0.0
  %8841 = vmatpush1.msra.mxu0 0.0
  %8842 = vmatprep.subr.mxu0 0.0
  %8843 = vmatpush1.msra.mxu0 0.0
  %8844 = vmatprep.subr.mxu0 0.0
  %8845 = vmatpush1.msra.mxu0 0.0
  %8846 = vmatprep.subr.mxu0 0.0
  %8847 = vmatpush1.msra.mxu0 0.0
  %8848 = vmatprep.subr.mxu0 0.0
  %8849 = vmatpush1.msra.mxu0 0.0
  %8850 = vmatprep.mubr.f32.mxu0 0.0
  %8851 = vmatmul.mubr.f32.gmra.mrb[0].mxu0 %v8784
  %v8852 = vpop.f32.mrb[0].mxu0
  %v8853 = vadd.f32 0.0, %v8852
  %v8854 = vpop.f32.mrb[0].mxu0
  %8855 = vdwg.mxu0
  %s8856 = scalar_lea.vmem %s14, 96
  %v8857 = vld [vmem:[%s8856] sm:$0xff]
  %v8858 = vld [vmem:[%s8856 + $0x8] sm:$0xff]
  %v8860 = vsel %vm7797, %v8853, 0
  %8862 = vmatprep.subr.mxu0 0.0
  %8863 = vmatpush1.msra.mxu0 %v8857
  %8864 = vmatprep.subr.mxu0 0.0
  %8865 = vmatpush1.msra.mxu0 %v8858
  %8866 = vmatprep.subr.mxu0 0.0
  %8867 = vmatpush1.msra.mxu0 0.0
  %8868 = vmatprep.subr.mxu0 0.0
  %8869 = vmatpush1.msra.mxu0 0.0
  %8870 = vmatprep.subr.mxu0 0.0
  %8871 = vmatpush1.msra.mxu0 0.0
  %8872 = vmatprep.subr.mxu0 0.0
  %8873 = vmatpush1.msra.mxu0 0.0
  %8874 = vmatprep.subr.mxu0 0.0
  %8875 = vmatpush1.msra.mxu0 0.0
  %8876 = vmatprep.subr.mxu0 0.0
  %8877 = vmatpush1.msra.mxu0 0.0
  %8878 = vmatprep.subr.mxu0 0.0
  %8879 = vmatpush1.msra.mxu0 0.0
  %8880 = vmatprep.subr.mxu0 0.0
  %8881 = vmatpush1.msra.mxu0 0.0
  %8882 = vmatprep.subr.mxu0 0.0
  %8883 = vmatpush1.msra.mxu0 0.0
  %8884 = vmatprep.subr.mxu0 0.0
  %8885 = vmatpush1.msra.mxu0 0.0
  %8886 = vmatprep.subr.mxu0 0.0
  %8887 = vmatpush1.msra.mxu0 0.0
  %8888 = vmatprep.subr.mxu0 0.0
  %8889 = vmatpush1.msra.mxu0 0.0
  %8890 = vmatprep.subr.mxu0 0.0
  %8891 = vmatpush1.msra.mxu0 0.0
  %8892 = vmatprep.subr.mxu0 0.0
  %8893 = vmatpush1.msra.mxu0 0.0
  %8894 = vmatprep.subr.mxu0 0.0
  %8895 = vmatpush1.msra.mxu0 0.0
  %8896 = vmatprep.subr.mxu0 0.0
  %8897 = vmatpush1.msra.mxu0 0.0
  %8898 = vmatprep.subr.mxu0 0.0
  %8899 = vmatpush1.msra.mxu0 0.0
  %8900 = vmatprep.subr.mxu0 0.0
  %8901 = vmatpush1.msra.mxu0 0.0
  %8902 = vmatprep.subr.mxu0 0.0
  %8903 = vmatpush1.msra.mxu0 0.0
  %8904 = vmatprep.subr.mxu0 0.0
  %8905 = vmatpush1.msra.mxu0 0.0
  %8906 = vmatprep.subr.mxu0 0.0
  %8907 = vmatpush1.msra.mxu0 0.0
  %8908 = vmatprep.subr.mxu0 0.0
  %8909 = vmatpush1.msra.mxu0 0.0
  %8910 = vmatprep.subr.mxu0 0.0
  %8911 = vmatpush1.msra.mxu0 0.0
  %8912 = vmatprep.subr.mxu0 0.0
  %8913 = vmatpush1.msra.mxu0 0.0
  %8914 = vmatprep.subr.mxu0 0.0
  %8915 = vmatpush1.msra.mxu0 0.0
  %8916 = vmatprep.subr.mxu0 0.0
  %8917 = vmatpush1.msra.mxu0 0.0
  %8918 = vmatprep.subr.mxu0 0.0
  %8919 = vmatpush1.msra.mxu0 0.0
  %8920 = vmatprep.subr.mxu0 0.0
  %8921 = vmatpush1.msra.mxu0 0.0
  %8922 = vmatprep.subr.mxu0 0.0
  %8923 = vmatpush1.msra.mxu0 0.0
  %8924 = vmatprep.subr.mxu0 0.0
  %8925 = vmatpush1.msra.mxu0 0.0
  %8926 = vmatprep.mubr.f32.mxu0 0.0
  %8927 = vmatmul.mubr.f32.gmra.mrb[0].mxu0 %v8860
  %v8928 = vpop.f32.mrb[0].mxu0
  %v8929 = vadd.f32 0.0, %v8928
  %v8930 = vpop.f32.mrb[0].mxu0
  %8931 = vdwg.mxu0
  %v8932 = vadd.f32 %v8780, %v8929
  %s8933 = scalar_lea.vmem %s13, 56
  %v8934 = vld [vmem:[%s8933] sm:$0xff]
  %v8936 = vsel %vm7873, %v8934, 0
  %8938 = vmatprep.subr.mxu0 0.0
  %8939 = vmatpush1.msra.mxu0 %v7868
  %8940 = vmatprep.subr.mxu0 0.0
  %8941 = vmatpush1.msra.mxu0 %v7869
  %8942 = vmatprep.subr.mxu0 0.0
  %8943 = vmatpush1.msra.mxu0 %v7870
  %8944 = vmatprep.subr.mxu0 0.0
  %8945 = vmatpush1.msra.mxu0 %v7871
  %8946 = vmatprep.subr.mxu0 0.0
  %8947 = vmatpush1.msra.mxu0 0.0
  %8948 = vmatprep.subr.mxu0 0.0
  %8949 = vmatpush1.msra.mxu0 0.0
  %8950 = vmatprep.subr.mxu0 0.0
  %8951 = vmatpush1.msra.mxu0 0.0
  %8952 = vmatprep.subr.mxu0 0.0
  %8953 = vmatpush1.msra.mxu0 0.0
  %8954 = vmatprep.subr.mxu0 0.0
  %8955 = vmatpush1.msra.mxu0 0.0
  %8956 = vmatprep.subr.mxu0 0.0
  %8957 = vmatpush1.msra.mxu0 0.0
  %8958 = vmatprep.subr.mxu0 0.0
  %8959 = vmatpush1.msra.mxu0 0.0
  %8960 = vmatprep.subr.mxu0 0.0
  %8961 = vmatpush1.msra.mxu0 0.0
  %8962 = vmatprep.subr.mxu0 0.0
  %8963 = vmatpush1.msra.mxu0 0.0
  %8964 = vmatprep.subr.mxu0 0.0
  %8965 = vmatpush1.msra.mxu0 0.0
  %8966 = vmatprep.subr.mxu0 0.0
  %8967 = vmatpush1.msra.mxu0 0.0
  %8968 = vmatprep.subr.mxu0 0.0
  %8969 = vmatpush1.msra.mxu0 0.0
  %8970 = vmatprep.subr.mxu0 0.0
  %8971 = vmatpush1.msra.mxu0 0.0
  %8972 = vmatprep.subr.mxu0 0.0
  %8973 = vmatpush1.msra.mxu0 0.0
  %8974 = vmatprep.subr.mxu0 0.0
  %8975 = vmatpush1.msra.mxu0 0.0
  %8976 = vmatprep.subr.mxu0 0.0
  %8977 = vmatpush1.msra.mxu0 0.0
  %8978 = vmatprep.subr.mxu0 0.0
  %8979 = vmatpush1.msra.mxu0 0.0
  %8980 = vmatprep.subr.mxu0 0.0
  %8981 = vmatpush1.msra.mxu0 0.0
  %8982 = vmatprep.subr.mxu0 0.0
  %8983 = vmatpush1.msra.mxu0 0.0
  %8984 = vmatprep.subr.mxu0 0.0
  %8985 = vmatpush1.msra.mxu0 0.0
  %8986 = vmatprep.subr.mxu0 0.0
  %8987 = vmatpush1.msra.mxu0 0.0
  %8988 = vmatprep.subr.mxu0 0.0
  %8989 = vmatpush1.msra.mxu0 0.0
  %8990 = vmatprep.subr.mxu0 0.0
  %8991 = vmatpush1.msra.mxu0 0.0
  %8992 = vmatprep.subr.mxu0 0.0
  %8993 = vmatpush1.msra.mxu0 0.0
  %8994 = vmatprep.subr.mxu0 0.0
  %8995 = vmatpush1.msra.mxu0 0.0
  %8996 = vmatprep.subr.mxu0 0.0
  %8997 = vmatpush1.msra.mxu0 0.0
  %8998 = vmatprep.subr.mxu0 0.0
  %8999 = vmatpush1.msra.mxu0 0.0
  %9000 = vmatprep.subr.mxu0 0.0
  %9001 = vmatpush1.msra.mxu0 0.0
  %9002 = vmatprep.mubr.f32.mxu0 0.0
  %9003 = vmatmul.mubr.f32.gmra.mrb[0].mxu0 %v8936
  %v9004 = vpop.f32.mrb[0].mxu0
  %v9005 = vadd.f32 0.0, %v9004
  %v9006 = vpop.f32.mrb[0].mxu0
  %9007 = vdwg.mxu0
  %s9008 = scalar_lea.vmem %s14, 112
  %v9009 = vld [vmem:[%s9008] sm:$0xff]
  %v9010 = vld [vmem:[%s9008 + $0x8] sm:$0xff]
  %v9012 = vsel %vm7797, %v9005, 0
  %9014 = vmatprep.subr.mxu0 0.0
  %9015 = vmatpush1.msra.mxu0 %v9009
  %9016 = vmatprep.subr.mxu0 0.0
  %9017 = vmatpush1.msra.mxu0 %v9010
  %9018 = vmatprep.subr.mxu0 0.0
  %9019 = vmatpush1.msra.mxu0 0.0
  %9020 = vmatprep.subr.mxu0 0.0
  %9021 = vmatpush1.msra.mxu0 0.0
  %9022 = vmatprep.subr.mxu0 0.0
  %9023 = vmatpush1.msra.mxu0 0.0
  %9024 = vmatprep.subr.mxu0 0.0
  %9025 = vmatpush1.msra.mxu0 0.0
  %9026 = vmatprep.subr.mxu0 0.0
  %9027 = vmatpush1.msra.mxu0 0.0
  %9028 = vmatprep.subr.mxu0 0.0
  %9029 = vmatpush1.msra.mxu0 0.0
  %9030 = vmatprep.subr.mxu0 0.0
  %9031 = vmatpush1.msra.mxu0 0.0
  %9032 = vmatprep.subr.mxu0 0.0
  %9033 = vmatpush1.msra.mxu0 0.0
  %9034 = vmatprep.subr.mxu0 0.0
  %9035 = vmatpush1.msra.mxu0 0.0
  %9036 = vmatprep.subr.mxu0 0.0
  %9037 = vmatpush1.msra.mxu0 0.0
  %9038 = vmatprep.subr.mxu0 0.0
  %9039 = vmatpush1.msra.mxu0 0.0
  %9040 = vmatprep.subr.mxu0 0.0
  %9041 = vmatpush1.msra.mxu0 0.0
  %9042 = vmatprep.subr.mxu0 0.0
  %9043 = vmatpush1.msra.mxu0 0.0
  %9044 = vmatprep.subr.mxu0 0.0
  %9045 = vmatpush1.msra.mxu0 0.0
  %9046 = vmatprep.subr.mxu0 0.0
  %9047 = vmatpush1.msra.mxu0 0.0
  %9048 = vmatprep.subr.mxu0 0.0
  %9049 = vmatpush1.msra.mxu0 0.0
  %9050 = vmatprep.subr.mxu0 0.0
  %9051 = vmatpush1.msra.mxu0 0.0
  %9052 = vmatprep.subr.mxu0 0.0
  %9053 = vmatpush1.msra.mxu0 0.0
  %9054 = vmatprep.subr.mxu0 0.0
  %9055 = vmatpush1.msra.mxu0 0.0
  %9056 = vmatprep.subr.mxu0 0.0
  %9057 = vmatpush1.msra.mxu0 0.0
  %9058 = vmatprep.subr.mxu0 0.0
  %9059 = vmatpush1.msra.mxu0 0.0
  %9060 = vmatprep.subr.mxu0 0.0
  %9061 = vmatpush1.msra.mxu0 0.0
  %9062 = vmatprep.subr.mxu0 0.0
  %9063 = vmatpush1.msra.mxu0 0.0
  %9064 = vmatprep.subr.mxu0 0.0
  %9065 = vmatpush1.msra.mxu0 0.0
  %9066 = vmatprep.subr.mxu0 0.0
  %9067 = vmatpush1.msra.mxu0 0.0
  %9068 = vmatprep.subr.mxu0 0.0
  %9069 = vmatpush1.msra.mxu0 0.0
  %9070 = vmatprep.subr.mxu0 0.0
  %9071 = vmatpush1.msra.mxu0 0.0
  %9072 = vmatprep.subr.mxu0 0.0
  %9073 = vmatpush1.msra.mxu0 0.0
  %9074 = vmatprep.subr.mxu0 0.0
  %9075 = vmatpush1.msra.mxu0 0.0
  %9076 = vmatprep.subr.mxu0 0.0
  %9077 = vmatpush1.msra.mxu0 0.0
  %9078 = vmatprep.mubr.f32.mxu0 0.0
  %9079 = vmatmul.mubr.f32.gmra.mrb[0].mxu0 %v9012
  %v9080 = vpop.f32.mrb[0].mxu0
  %v9081 = vadd.f32 0.0, %v9080
  %v9082 = vpop.f32.mrb[0].mxu0
  %9083 = vdwg.mxu0
  %v9084 = vadd.f32 %v8932, %v9081
  %s9085 = scalar_lea.vmem %s13, 64
  %v9086 = vld [vmem:[%s9085] sm:$0xff]
  %v9088 = vsel %vm7873, %v9086, 0
  %9090 = vmatprep.subr.mxu0 0.0
  %9091 = vmatpush1.msra.mxu0 %v7868
  %9092 = vmatprep.subr.mxu0 0.0
  %9093 = vmatpush1.msra.mxu0 %v7869
  %9094 = vmatprep.subr.mxu0 0.0
  %9095 = vmatpush1.msra.mxu0 %v7870
  %9096 = vmatprep.subr.mxu0 0.0
  %9097 = vmatpush1.msra.mxu0 %v7871
  %9098 = vmatprep.subr.mxu0 0.0
  %9099 = vmatpush1.msra.mxu0 0.0
  %9100 = vmatprep.subr.mxu0 0.0
  %9101 = vmatpush1.msra.mxu0 0.0
  %9102 = vmatprep.subr.mxu0 0.0
  %9103 = vmatpush1.msra.mxu0 0.0
  %9104 = vmatprep.subr.mxu0 0.0
  %9105 = vmatpush1.msra.mxu0 0.0
  %9106 = vmatprep.subr.mxu0 0.0
  %9107 = vmatpush1.msra.mxu0 0.0
  %9108 = vmatprep.subr.mxu0 0.0
  %9109 = vmatpush1.msra.mxu0 0.0
  %9110 = vmatprep.subr.mxu0 0.0
  %9111 = vmatpush1.msra.mxu0 0.0
  %9112 = vmatprep.subr.mxu0 0.0
  %9113 = vmatpush1.msra.mxu0 0.0
  %9114 = vmatprep.subr.mxu0 0.0
  %9115 = vmatpush1.msra.mxu0 0.0
  %9116 = vmatprep.subr.mxu0 0.0
  %9117 = vmatpush1.msra.mxu0 0.0
  %9118 = vmatprep.subr.mxu0 0.0
  %9119 = vmatpush1.msra.mxu0 0.0
  %9120 = vmatprep.subr.mxu0 0.0
  %9121 = vmatpush1.msra.mxu0 0.0
  %9122 = vmatprep.subr.mxu0 0.0
  %9123 = vmatpush1.msra.mxu0 0.0
  %9124 = vmatprep.subr.mxu0 0.0
  %9125 = vmatpush1.msra.mxu0 0.0
  %9126 = vmatprep.subr.mxu0 0.0
  %9127 = vmatpush1.msra.mxu0 0.0
  %9128 = vmatprep.subr.mxu0 0.0
  %9129 = vmatpush1.msra.mxu0 0.0
  %9130 = vmatprep.subr.mxu0 0.0
  %9131 = vmatpush1.msra.mxu0 0.0
  %9132 = vmatprep.subr.mxu0 0.0
  %9133 = vmatpush1.msra.mxu0 0.0
  %9134 = vmatprep.subr.mxu0 0.0
  %9135 = vmatpush1.msra.mxu0 0.0
  %9136 = vmatprep.subr.mxu0 0.0
  %9137 = vmatpush1.msra.mxu0 0.0
  %9138 = vmatprep.subr.mxu0 0.0
  %9139 = vmatpush1.msra.mxu0 0.0
  %9140 = vmatprep.subr.mxu0 0.0
  %9141 = vmatpush1.msra.mxu0 0.0
  %9142 = vmatprep.subr.mxu0 0.0
  %9143 = vmatpush1.msra.mxu0 0.0
  %9144 = vmatprep.subr.mxu0 0.0
  %9145 = vmatpush1.msra.mxu0 0.0
  %9146 = vmatprep.subr.mxu0 0.0
  %9147 = vmatpush1.msra.mxu0 0.0
  %9148 = vmatprep.subr.mxu0 0.0
  %9149 = vmatpush1.msra.mxu0 0.0
  %9150 = vmatprep.subr.mxu0 0.0
  %9151 = vmatpush1.msra.mxu0 0.0
  %9152 = vmatprep.subr.mxu0 0.0
  %9153 = vmatpush1.msra.mxu0 0.0
  %9154 = vmatprep.mubr.f32.mxu0 0.0
  %9155 = vmatmul.mubr.f32.gmra.mrb[0].mxu0 %v9088
  %v9156 = vpop.f32.mrb[0].mxu0
  %v9157 = vadd.f32 0.0, %v9156
  %v9158 = vpop.f32.mrb[0].mxu0
  %9159 = vdwg.mxu0
  %s9160 = scalar_lea.vmem %s14, 128
  %v9161 = vld [vmem:[%s9160] sm:$0xff]
  %v9162 = vld [vmem:[%s9160 + $0x8] sm:$0xff]
  %v9164 = vsel %vm7797, %v9157, 0
  %9166 = vmatprep.subr.mxu0 0.0
  %9167 = vmatpush1.msra.mxu0 %v9161
  %9168 = vmatprep.subr.mxu0 0.0
  %9169 = vmatpush1.msra.mxu0 %v9162
  %9170 = vmatprep.subr.mxu0 0.0
  %9171 = vmatpush1.msra.mxu0 0.0
  %9172 = vmatprep.subr.mxu0 0.0
  %9173 = vmatpush1.msra.mxu0 0.0
  %9174 = vmatprep.subr.mxu0 0.0
  %9175 = vmatpush1.msra.mxu0 0.0
  %9176 = vmatprep.subr.mxu0 0.0
  %9177 = vmatpush1.msra.mxu0 0.0
  %9178 = vmatprep.subr.mxu0 0.0
  %9179 = vmatpush1.msra.mxu0 0.0
  %9180 = vmatprep.subr.mxu0 0.0
  %9181 = vmatpush1.msra.mxu0 0.0
  %9182 = vmatprep.subr.mxu0 0.0
  %9183 = vmatpush1.msra.mxu0 0.0
  %9184 = vmatprep.subr.mxu0 0.0
  %9185 = vmatpush1.msra.mxu0 0.0
  %9186 = vmatprep.subr.mxu0 0.0
  %9187 = vmatpush1.msra.mxu0 0.0
  %9188 = vmatprep.subr.mxu0 0.0
  %9189 = vmatpush1.msra.mxu0 0.0
  %9190 = vmatprep.subr.mxu0 0.0
  %9191 = vmatpush1.msra.mxu0 0.0
  %9192 = vmatprep.subr.mxu0 0.0
  %9193 = vmatpush1.msra.mxu0 0.0
  %9194 = vmatprep.subr.mxu0 0.0
  %9195 = vmatpush1.msra.mxu0 0.0
  %9196 = vmatprep.subr.mxu0 0.0
  %9197 = vmatpush1.msra.mxu0 0.0
  %9198 = vmatprep.subr.mxu0 0.0
  %9199 = vmatpush1.msra.mxu0 0.0
  %9200 = vmatprep.subr.mxu0 0.0
  %9201 = vmatpush1.msra.mxu0 0.0
  %9202 = vmatprep.subr.mxu0 0.0
  %9203 = vmatpush1.msra.mxu0 0.0
  %9204 = vmatprep.subr.mxu0 0.0
  %9205 = vmatpush1.msra.mxu0 0.0
  %9206 = vmatprep.subr.mxu0 0.0
  %9207 = vmatpush1.msra.mxu0 0.0
  %9208 = vmatprep.subr.mxu0 0.0
  %9209 = vmatpush1.msra.mxu0 0.0
  %9210 = vmatprep.subr.mxu0 0.0
  %9211 = vmatpush1.msra.mxu0 0.0
  %9212 = vmatprep.subr.mxu0 0.0
  %9213 = vmatpush1.msra.mxu0 0.0
  %9214 = vmatprep.subr.mxu0 0.0
  %9215 = vmatpush1.msra.mxu0 0.0
  %9216 = vmatprep.subr.mxu0 0.0
  %9217 = vmatpush1.msra.mxu0 0.0
  %9218 = vmatprep.subr.mxu0 0.0
  %9219 = vmatpush1.msra.mxu0 0.0
  %9220 = vmatprep.subr.mxu0 0.0
  %9221 = vmatpush1.msra.mxu0 0.0
  %9222 = vmatprep.subr.mxu0 0.0
  %9223 = vmatpush1.msra.mxu0 0.0
  %9224 = vmatprep.subr.mxu0 0.0
  %9225 = vmatpush1.msra.mxu0 0.0
  %9226 = vmatprep.subr.mxu0 0.0
  %9227 = vmatpush1.msra.mxu0 0.0
  %9228 = vmatprep.subr.mxu0 0.0
  %9229 = vmatpush1.msra.mxu0 0.0
  %9230 = vmatprep.mubr.f32.mxu0 0.0
  %9231 = vmatmul.mubr.f32.gmra.mrb[0].mxu0 %v9164
  %v9232 = vpop.f32.mrb[0].mxu0
  %v9233 = vadd.f32 0.0, %v9232
  %v9234 = vpop.f32.mrb[0].mxu0
  %9235 = vdwg.mxu0
  %v9236 = vadd.f32 %v9084, %v9233
  %v9237 = vsel %vm7873, %v9236, 0.0
  %v9238 = vrot.slane %v9237, 4
  %v9239 = vadd.f32 %v9237, %v9238
  %v9240 = vrot.slane %v9239, 2
  %v9241 = vadd.f32 %v9239, %v9240
  %v9242 = vrot.slane %v9241, 1
  %v9243 = vadd.f32 %v9241, %v9242
  %v9244 = vmul.f32 %v9243, 0.125
  %v9245 = vmul.f32 %v9236, %v9236
  %v9246 = vsel %vm7873, %v9245, 0.0
  %v9247 = vrot.slane %v9246, 4
  %v9248 = vadd.f32 %v9246, %v9247
  %v9249 = vrot.slane %v9248, 2
  %v9250 = vadd.f32 %v9248, %v9249
  %v9251 = vrot.slane %v9250, 1
  %v9252 = vadd.f32 %v9250, %v9251
  %v9253 = vmul.f32 %v9252, 0.125
  %v9254 = vmul.f32 %v9244, %v9244
  %v9255 = vsub.f32 %v9253, %v9254
  %v9256 = vmax.f32 %v9255, 0.0
  %v9257 = vsub.f32 %v9236, %v9244
  %v9258 = vadd.f32 %v9256, 1e-05
  %v9259 = vrsqrt.pop %v9258
  %v9260 = vld [vmem:[%s15] sm:$0x1]
  %v9261 = vmul.f32 %v9259, %v9260
  %v9262 = vlaneseq
  %v9263 = vshrl.u32 %v9262, 7
  %v9264 = vsub.s32 0, %v9263
  %v9265 = vrot.slane %v9261, %v9264
  %v9266 = vmul.f32 %v9257, %v9265
  %v9267 = vld [vmem:[%s16] sm:$0x1]
  %v9269 = vlaneseq
  %v9270 = vshrl.u32 %v9269, 7
  %v9271 = vsub.s32 0, %v9270
  %v9272 = vrot.slane %v9267, %v9271
  %v9274 = vadd.f32 %v9266, %v9272
  %vm9275 = vcmp.ge.f32.partialorder %v9274, 0.0
  %v9276 = vmul.f32 %v9274, 0.2
  %v9277 = vsel %vm9275, %v9274, %v9276
  %v9278 = vld [vmem:[%s17] sm:$0xff]
  %v9279 = vmul.f32 %v9277, %v9278
  %v9280 = vsel %vm7873, %v9279, 0.0
  %9281 = vadd.xlane.f32.xlu0 %v9280
  %v9282 = vpop.xlane.xlu0 %9281
  %v9283 = vld [vmem:[%s18] sm:$0x3]
  %v9284 = vld [vmem:[#allocation2] sm:$0x1]
  %v9286 = vlaneseq
  %v9287 = vshrl.u32 %v9286, 7
  %v9288 = vsub.s32 0, %v9287
  %v9289 = vrot.slane %v9284, %v9288
  %v9292 = vsel %vm5832, %v9283, 0
  %9294 = vmatprep.subr.mxu0 0.0
  %9295 = vmatpush1.msra.mxu0 %v9282
  %9296 = vmatprep.subr.mxu0 0.0
  %9297 = vmatpush1.msra.mxu0 0.0
  %9298 = vmatprep.subr.mxu0 0.0
  %9299 = vmatpush1.msra.mxu0 0.0
  %9300 = vmatprep.subr.mxu0 0.0
  %9301 = vmatpush1.msra.mxu0 0.0
  %9302 = vmatprep.subr.mxu0 0.0
  %9303 = vmatpush1.msra.mxu0 0.0
  %9304 = vmatprep.subr.mxu0 0.0
  %9305 = vmatpush1.msra.mxu0 0.0
  %9306 = vmatprep.subr.mxu0 0.0
  %9307 = vmatpush1.msra.mxu0 0.0
  %9308 = vmatprep.subr.mxu0 0.0
  %9309 = vmatpush1.msra.mxu0 0.0
  %9310 = vmatprep.subr.mxu0 0.0
  %9311 = vmatpush1.msra.mxu0 0.0
  %9312 = vmatprep.subr.mxu0 0.0
  %9313 = vmatpush1.msra.mxu0 0.0
  %9314 = vmatprep.subr.mxu0 0.0
  %9315 = vmatpush1.msra.mxu0 0.0
  %9316 = vmatprep.subr.mxu0 0.0
  %9317 = vmatpush1.msra.mxu0 0.0
  %9318 = vmatprep.subr.mxu0 0.0
  %9319 = vmatpush1.msra.mxu0 0.0
  %9320 = vmatprep.subr.mxu0 0.0
  %9321 = vmatpush1.msra.mxu0 0.0
  %9322 = vmatprep.subr.mxu0 0.0
  %9323 = vmatpush1.msra.mxu0 0.0
  %9324 = vmatprep.subr.mxu0 0.0
  %9325 = vmatpush1.msra.mxu0 0.0
  %9326 = vmatprep.subr.mxu0 0.0
  %9327 = vmatpush1.msra.mxu0 0.0
  %9328 = vmatprep.subr.mxu0 0.0
  %9329 = vmatpush1.msra.mxu0 0.0
  %9330 = vmatprep.subr.mxu0 0.0
  %9331 = vmatpush1.msra.mxu0 0.0
  %9332 = vmatprep.subr.mxu0 0.0
  %9333 = vmatpush1.msra.mxu0 0.0
  %9334 = vmatprep.subr.mxu0 0.0
  %9335 = vmatpush1.msra.mxu0 0.0
  %9336 = vmatprep.subr.mxu0 0.0
  %9337 = vmatpush1.msra.mxu0 0.0
  %9338 = vmatprep.subr.mxu0 0.0
  %9339 = vmatpush1.msra.mxu0 0.0
  %9340 = vmatprep.subr.mxu0 0.0
  %9341 = vmatpush1.msra.mxu0 0.0
  %9342 = vmatprep.subr.mxu0 0.0
  %9343 = vmatpush1.msra.mxu0 0.0
  %9344 = vmatprep.subr.mxu0 0.0
  %9345 = vmatpush1.msra.mxu0 0.0
  %9346 = vmatprep.subr.mxu0 0.0
  %9347 = vmatpush1.msra.mxu0 0.0
  %9348 = vmatprep.subr.mxu0 0.0
  %9349 = vmatpush1.msra.mxu0 0.0
  %9350 = vmatprep.subr.mxu0 0.0
  %9351 = vmatpush1.msra.mxu0 0.0
  %9352 = vmatprep.subr.mxu0 0.0
  %9353 = vmatpush1.msra.mxu0 0.0
  %9354 = vmatprep.subr.mxu0 0.0
  %9355 = vmatpush1.msra.mxu0 0.0
  %9356 = vmatprep.subr.mxu0 0.0
  %9357 = vmatpush1.msra.mxu0 0.0
  %9358 = vmatprep.mubr.f32.mxu0 0.0
  %9359 = vmatmul.mubr.f32.gmra.mrb[0].mxu0 %v9292
  %v9360 = vpop.f32.mrb[0].mxu0
  %v9361 = vadd.f32 %v9289, %v9360
  %v9362 = vpop.f32.mrb[0].mxu0
  %9363 = vdwg.mxu0
  %v9364 = vsub.f32 0.0, %v9361
  %v9365 = vmul.f32 %v9364, 1.442695
  %v9366 = vpow.pop %v9365
  %v9367 = vadd.f32 %v9366, 1.0
  %v9368 = vrcp.pop %v9367
  %vm9369 = vcmask 1024
  %9370 = vst.msk [vmem:[%s20] sm:$0x3] %vm9369, %v9368
  // Predicated region
  $region82: #{discriminator_forward.1} parent=0 // pred_check
    _
  $region83: #{discriminator_forward.1} parent=0 // pred_check_branch
    %9372 = sbr.rel (0) target = $region85
  $region84: #{discriminator_forward.1} parent=0 // pred_region
    _
  $region85: #{discriminator_forward.1} parent=0 // pred_fallthru
    _
  // Predicated region
  $region86: #{discriminator_forward.1} parent=0 // pred_check
    _
  $region87: #{discriminator_forward.1} parent=0 // pred_check_branch
    %9374 = sbr.rel (0) target = $region89
  $region88: #{discriminator_forward.1} parent=0 // pred_region
    _
  $region89: #{discriminator_forward.1} parent=0 // pred_fallthru
    _

</llo_original>
